<compile_context>
chip_gen: v7x
topology: tpu7x:2x2x1
jax: 0.10.0
libtpu: 0.0.40
codegen_flags: <defaults>
</compile_context>

<pallas_src>
import functools

import jax
import jax.numpy as jnp
from jax.experimental import pallas as pl
from jax.experimental.pallas import tpu as pltpu


def _round_up(x, m):
    return ((x + m - 1) // m) * m


# --------------------------- Pallas kernels ---------------------------------

def _mm_bias_acc_kernel(a_ref, w_ref, b_ref, o_ref, acc_ref, *, relu):
    """One (tm,tk)x(tk,tn) step of A @ W + b [+ReLU]; f32 accumulation over K axis."""
    @pl.when(pl.program_id(2) == 0)
    def _():
        acc_ref[...] = jnp.zeros_like(acc_ref)

    acc_ref[...] += jnp.dot(a_ref[...], w_ref[...],
                            preferred_element_type=jnp.float32)

    @pl.when(pl.program_id(2) == pl.num_programs(2) - 1)
    def _():
        out = acc_ref[...] + b_ref[...]
        if relu:
            out = jnp.maximum(out, 0.0)
        o_ref[...] = out.astype(o_ref.dtype)


def _mm_bias_single_kernel(a_ref, w_ref, b_ref, o_ref, *, relu):
    """Single-K-step A @ W + b [+ReLU]: no accumulator scratch, no zero-init."""
    out = jnp.dot(a_ref[...], w_ref[...],
                  preferred_element_type=jnp.float32) + b_ref[...]
    if relu:
        out = jnp.maximum(out, 0.0)
    o_ref[...] = out.astype(o_ref.dtype)


def _maxpool3x3s2_kernel(r0_ref, r1_ref, r2_ref, o_ref, *, C, Wo):
    """3x3 / stride-2 max pool for one band of output rows.

    r0/r1/r2 are the three input-row taps (dh = 0,1,2) of the SAME NHWC activation,
    with W pre-packed into even/odd column phases along the lane axis:
    shape (N, 1, W2, 2*C).  Column taps then reduce to static unit-stride slices.
    """
    hmax = jnp.maximum(jnp.maximum(r0_ref[...], r1_ref[...]), r2_ref[...])
    even = hmax[..., :C]                         # input columns 0, 2, 4, ...
    odd = hmax[..., C:]                          # input columns 1, 3, 5, ...
    out = jnp.maximum(jnp.maximum(even[:, :, :Wo, :], odd[:, :, :Wo, :]),
                      even[:, :, 1:Wo + 1, :])
    o_ref[...] = out


def _global_max_kernel(x_ref, o_ref):
    # x: (N, H*W, C) -> (N, 1, C): max over the flattened spatial axis per image.
    o_ref[...] = jnp.max(x_ref[...], axis=1, keepdims=True)


# --------------------------- Kernel wrappers ---------------------------------

def _choose_k_tile(K):
    """Deep K tiles: one step up to 1024, else largest of 512/384/256 with small pad."""
    Kp128 = _round_up(K, 128)
    if Kp128 <= 1024:
        return Kp128, Kp128                      # single K step (scratch-free path)
    for tk in (512, 384, 256):
        Kp = _round_up(K, tk)
        if Kp - K <= K // 8:                     # <= 12.5% zero-padded MXU work
            return tk, Kp
    return 256, _round_up(K, 256)


def matmul_bias(a, w, b, relu, out_dtype=jnp.bfloat16):
    """Fused (a @ w + b) [+ReLU] on the MXU.  a:(M,K), w:(K,N), b:(N,)."""
    M, K = a.shape
    Kw, N = w.shape
    assert K == Kw

    # --- N (output-channel / lane) tile: pad tiny N to a full 128-lane block ---
    if N < 128:
        tn, Np = 128, 128
    elif N <= 512:
        tn, Np = N, N
    else:
        tn, Np = 256, _round_up(N, 256)

    # --- K (reduction) tile ---
    tk, Kp = _choose_k_tile(K)
    nk = Kp // tk

    # --- M (row) tile ---
    if M >= 1024:
        tm = 512
    elif M >= 512:
        tm = 256
    else:
        tm = _round_up(M, 16)
    Mp = _round_up(M, tm)
    # v7x: if the parallel grid collapsed to 1x1, split M so both TensorCores get work.
    if Mp // tm == 1 and Np // tn == 1 and M > 16:
        tm = _round_up((M + 1) // 2, 16)
        Mp = 2 * tm

    # --- operands: bf16 MXU inputs; pad only M (rows), K (reduction), small N ---
    a_p = a.astype(jnp.bfloat16)
    if (Mp, Kp) != (M, K):
        a_p = jnp.pad(a_p, ((0, Mp - M), (0, Kp - K)))
    w_p = w.astype(jnp.bfloat16)
    if (Kp, Np) != (K, N):
        w_p = jnp.pad(w_p, ((0, Kp - K), (0, Np - N)))
    b_p = b.reshape(1, N).astype(jnp.float32)
    if Np != N:
        b_p = jnp.pad(b_p, ((0, 0), (0, Np - N)))

    out_bytes = 2 if out_dtype == jnp.bfloat16 else 4
    footprint = (2 * tm * tk * 2 + 2 * tk * tn * 2 + 2 * tm * tn * out_bytes
                 + (tm * tn * 4 if nk > 1 else 0) + 2 * tn * 4)
    vmem_limit = int(min(48 * 1024 * 1024, max(8 * 1024 * 1024, 4 * footprint)))

    if nk == 1:
        out = pl.pallas_call(
            functools.partial(_mm_bias_single_kernel, relu=relu),
            grid=(Mp // tm, Np // tn),
            in_specs=[
                pl.BlockSpec((tm, tk), lambda i, j: (i, 0)),
                pl.BlockSpec((tk, tn), lambda i, j: (0, j)),
                pl.BlockSpec((1, tn), lambda i, j: (0, j)),
            ],
            out_specs=pl.BlockSpec((tm, tn), lambda i, j: (i, j)),
            out_shape=jax.ShapeDtypeStruct((Mp, Np), out_dtype),
            compiler_params=pltpu.CompilerParams(
                dimension_semantics=("parallel", "parallel"),
                vmem_limit_bytes=vmem_limit,
            ),
        )(a_p, w_p, b_p)
    else:
        out = pl.pallas_call(
            functools.partial(_mm_bias_acc_kernel, relu=relu),
            grid=(Mp // tm, Np // tn, nk),
            in_specs=[
                pl.BlockSpec((tm, tk), lambda i, j, k: (i, k)),
                pl.BlockSpec((tk, tn), lambda i, j, k: (k, j)),
                pl.BlockSpec((1, tn), lambda i, j, k: (0, j)),
            ],
            out_specs=pl.BlockSpec((tm, tn), lambda i, j, k: (i, j)),
            out_shape=jax.ShapeDtypeStruct((Mp, Np), out_dtype),
            scratch_shapes=[pltpu.VMEM((tm, tn), jnp.float32)],
            compiler_params=pltpu.CompilerParams(
                dimension_semantics=("parallel", "parallel", "arbitrary"),
                vmem_limit_bytes=vmem_limit,
            ),
        )(a_p, w_p, b_p)

    if (Mp, Np) != (M, N):
        out = out[:M, :N]
    return out


def maxpool2d_nhwc(x, k=3, s=2):
    """nn.MaxPool2d(kernel_size=3, stride=2) on NHWC in one Pallas kernel."""
    assert k == 3 and s == 2
    N, H, W, C = x.shape
    Ho = (H - k) // s + 1
    Wo = (W - k) // s + 1

    # Pack W into even/odd column phases along the lane axis: (N, H, W2, 2*C).
    Wp = W if W % 2 == 0 else W + 1
    xp = x if Wp == W else jnp.pad(x, ((0, 0), (0, 0), (0, 1), (0, 0)))
    W2 = Wp // 2
    xp = xp.reshape(N, H, W2, 2 * C)

    out = pl.pallas_call(
        functools.partial(_maxpool3x3s2_kernel, C=C, Wo=Wo),
        grid=(Ho,),
        in_specs=[
            pl.BlockSpec((N, 1, W2, 2 * C), lambda i, dh=dh: (0, s * i + dh, 0, 0))
            for dh in range(k)
        ],
        out_specs=pl.BlockSpec((N, 1, Wo, C), lambda i: (0, i, 0, 0)),
        out_shape=jax.ShapeDtypeStruct((N, Ho, Wo, C), x.dtype),
        compiler_params=pltpu.CompilerParams(
            dimension_semantics=("parallel",),
        ),
    )(xp, xp, xp)          # same array, three row-tap views: no shifted copies in HBM
    return out


def global_maxpool2d_nhwc(x):
    """F.max_pool2d(x, kernel_size=x.size()[2:]) on NHWC -> (N, 1, 1, C)."""
    N, H, W, C = x.shape
    xr = x.reshape(N, H * W, C)
    out = pl.pallas_call(
        _global_max_kernel,
        grid=(1,),
        in_specs=[pl.BlockSpec((N, H * W, C), lambda i: (0, 0, 0))],
        out_specs=pl.BlockSpec((N, 1, C), lambda i: (0, 0, 0)),
        out_shape=jax.ShapeDtypeStruct((N, 1, C), x.dtype),
    )(xr)
    return out.reshape(N, 1, 1, C)


# ------------------------------ Glue (JAX) ----------------------------------

def _im2col_nhwc(x, kh, kw, stride, padding):
    """NHWC -> (N*Ho*Wo, kh*kw*C) patches (built in x's dtype), K ordered (dh, dw, Cin)."""
    N, H, W, C = x.shape
    Ho = (H + 2 * padding - kh) // stride + 1
    Wo = (W + 2 * padding - kw) // stride + 1
    if kh == 1 and kw == 1 and stride == 1 and padding == 0:
        return x.reshape(N * H * W, C), Ho, Wo
    xp = x if padding == 0 else jnp.pad(
        x, ((0, 0), (padding, padding), (padding, padding), (0, 0)))
    cols = []
    for dh in range(kh):
        for dw in range(kw):
            cols.append(xp[:, dh:dh + stride * (Ho - 1) + 1:stride,
                              dw:dw + stride * (Wo - 1) + 1:stride, :])
    patches = jnp.stack(cols, axis=3)                 # (N, Ho, Wo, kh*kw, C)
    return patches.reshape(N * Ho * Wo, kh * kw * C), Ho, Wo


def conv2d_nhwc(x, w_oihw, b, stride=1, padding=0, relu=False,
                out_dtype=jnp.bfloat16):
    """PyTorch-semantics Conv2d; NHWC activations, OIHW weights; hot path on the MXU."""
    N = x.shape[0]
    Cout, Cin, kh, kw = w_oihw.shape
    x = x.astype(jnp.bfloat16)                        # patches built/stored as bf16
    cols, Ho, Wo = _im2col_nhwc(x, kh, kw, stride, padding)       # (M, kh*kw*Cin)
    wm = w_oihw.transpose(2, 3, 1, 0).reshape(kh * kw * Cin, Cout)  # K order (dh,dw,Cin)
    y = matmul_bias(cols, wm, b, relu, out_dtype=out_dtype)        # (M, Cout)
    return y.reshape(N, Ho, Wo, Cout)


# ------------------------- Parameters & forward ------------------------------

def init_params(key, num_classes=20):
    # Conv2d weight shapes exactly as in LocalizerAlexNet.__init__ (OIHW), deterministic init.
    shapes = [
        (64, 3, 11, 11),           # features.0
        (192, 64, 5, 5),           # features.3
        (384, 192, 3, 3),          # features.6
        (256, 384, 3, 3),          # features.8
        (256, 256, 3, 3),          # features.10
        (256, 256, 3, 3),          # classifier.0
        (256, 256, 1, 1),          # classifier.2
        (num_classes, 256, 1, 1),  # classifier.4
    ]
    params = []
    for s in shapes:
        key, kw_, kb_ = jax.random.split(key, 3)
        fan_in = s[1] * s[2] * s[3]
        w = ((2.0 / fan_in) ** 0.5) * jax.random.normal(kw_, s, jnp.float32)
        b = 0.01 * jax.random.normal(kb_, (s[0],), jnp.float32)
        params.append((w, b))
    return params


def localizer_alexnet_forward(params, x_nchw):
    (w1, b1), (w2, b2), (w3, b3), (w4, b4), (w5, b5), \
        (wc1, bc1), (wc2, bc2), (wc3, bc3) = params
    # NCHW -> NHWC + bf16 once at the boundary; all layers run channels-last bf16.
    x = jnp.transpose(x_nchw, (0, 2, 3, 1)).astype(jnp.bfloat16)
    # features
    x = conv2d_nhwc(x, w1, b1, stride=4, padding=2, relu=True)
    x = maxpool2d_nhwc(x, 3, 2)
    x = conv2d_nhwc(x, w2, b2, stride=1, padding=2, relu=True)
    x = maxpool2d_nhwc(x, 3, 2)
    x = conv2d_nhwc(x, w3, b3, stride=1, padding=1, relu=True)
    x = conv2d_nhwc(x, w4, b4, stride=1, padding=1, relu=True)
    x = conv2d_nhwc(x, w5, b5, stride=1, padding=1, relu=True)
    # classifier
    x = conv2d_nhwc(x, wc1, bc1, stride=1, padding=0, relu=True)
    x = conv2d_nhwc(x, wc2, bc2, stride=1, padding=0, relu=True)
    f_map_nhwc = conv2d_nhwc(x, wc3, bc3, stride=1, padding=0, relu=False,
                             out_dtype=jnp.float32)
    out_nhwc = global_maxpool2d_nhwc(f_map_nhwc)          # (N, 1, 1, C)
    # back to PyTorch NCHW at the boundary
    output = jnp.transpose(out_nhwc, (0, 3, 1, 2))        # (N, C, 1, 1)
    f_map = jnp.transpose(f_map_nhwc, (0, 3, 1, 2))       # (N, C, Ho, Wo)
    return output, f_map


if __name__ == "__main__":
    key = jax.random.PRNGKey(0)
    pkey, xkey = jax.random.split(key)
    params = init_params(pkey, num_classes=20)

    # Smallest input for which the classifier's 3x3 valid conv still works:
    # 64x64 -> features -> 3x3 spatial -> classifier -> 1x1 -> global max -> (N, 20, 1, 1)
    x = jax.random.normal(xkey, (2, 3, 64, 64), jnp.float32)

    fwd = jax.jit(localizer_alexnet_forward)
    output, f_map = fwd(params, x)
    jax.block_until_ready((output, f_map))

    assert output.shape == (2, 20, 1, 1), output.shape
    assert f_map.shape[:2] == (2, 20), f_map.shape
    assert bool(jnp.all(jnp.isfinite(output)))
    print("KERNEL_OK")
</pallas_src>

<mosaic_0001>
module attributes {stable_mosaic.version = 11 : i64} {
  func.func @_mm_bias_single_kernel(%arg0: i32, %arg1: i32, %arg2: memref<240x384xbf16, #tpu.memory_space<vmem>>, %arg3: memref<384x128xbf16, #tpu.memory_space<vmem>>, %arg4: memref<1x128xf32, #tpu.memory_space<vmem>>, %arg5: memref<240x128xbf16, #tpu.memory_space<vmem>>) attributes {dimension_semantics = [#tpu.dimension_semantics<parallel>, #tpu.dimension_semantics<parallel>], iteration_bounds = array<i64: 2, 1>, scalar_prefetch = 0 : i64, scratch_operands = 0 : i64, tpu.core_type = #tpu.core_type<tc>, window_params = [{transform_indices = @transform_0, window_bounds = array<i64: 240, 384>}, {transform_indices = @transform_1, window_bounds = array<i64: 384, 128>}, {transform_indices = @transform_2, window_bounds = array<i64: 1, 128>}, {transform_indices = @transform_3, window_bounds = array<i64: 240, 128>}]} {
    %c0 = arith.constant 0 : index
    %c0_0 = arith.constant 0 : index
    %0 = vector.load %arg2[%c0, %c0_0] : memref<240x384xbf16, #tpu.memory_space<vmem>>, vector<240x384xbf16>
    %c0_1 = arith.constant 0 : index
    %c0_2 = arith.constant 0 : index
    %1 = vector.load %arg3[%c0_1, %c0_2] : memref<384x128xbf16, #tpu.memory_space<vmem>>, vector<384x128xbf16>
    %cst = arith.constant dense<0.000000e+00> : vector<240x128xf32>
    %2 = tpu.matmul %0, %1, %cst {dimension_numbers = #tpu.dot_dimension_numbers<[1], [0], [0], [1], [0, 0, 1, 1], [], []>} : vector<240x384xbf16>, vector<384x128xbf16>, vector<240x128xf32> -> vector<240x128xf32>
    %c0_3 = arith.constant 0 : index
    %c0_4 = arith.constant 0 : index
    %3 = vector.load %arg4[%c0_3, %c0_4] : memref<1x128xf32, #tpu.memory_space<vmem>>, vector<1x128xf32>
    %4 = vector.broadcast %3 : vector<1x128xf32> to vector<240x128xf32>
    %5 = arith.addf %2, %4 : vector<240x128xf32>
    %cst_5 = arith.constant 0.000000e+00 : f32
    %6 = vector.broadcast %cst_5 : f32 to vector<240x128xf32>
    %7 = arith.maximumf %5, %6 : vector<240x128xf32>
    %8 = arith.truncf %7 : vector<240x128xf32> to vector<240x128xbf16>
    %c0_6 = arith.constant 0 : index
    %c0_7 = arith.constant 0 : index
    %9 = vector.load %arg5[%c0_6, %c0_7] : memref<240x128xbf16, #tpu.memory_space<vmem>>, vector<240x128xbf16>
    tpu.vector_store %arg5[%c0_6, %c0_7], %8 {strides = array<i32>} : memref<240x128xbf16, #tpu.memory_space<vmem>>, vector<240x128xbf16>,
    return
  }
  func.func @transform_0(%arg0: i32, %arg1: i32) -> (i32, i32) {
    %c0_i32 = arith.constant 0 : i32
    %c0_i32_0 = arith.constant 0 : i32
    return %arg0, %c0_i32 : i32, i32
  }
  func.func @transform_1(%arg0: i32, %arg1: i32) -> (i32, i32) {
    %c0_i32 = arith.constant 0 : i32
    %c0_i32_0 = arith.constant 0 : i32
    return %c0_i32, %arg1 : i32, i32
  }
  func.func @transform_2(%arg0: i32, %arg1: i32) -> (i32, i32) {
    %c0_i32 = arith.constant 0 : i32
    %c0_i32_0 = arith.constant 0 : i32
    return %c0_i32, %arg1 : i32, i32
  }
  func.func @transform_3(%arg0: i32, %arg1: i32) -> (i32, i32) {
    %c0_i32 = arith.constant 0 : i32
    return %arg0, %arg1 : i32, i32
  }
}

module attributes {stable_mosaic.version = 11 : i64} {
  func.func @_maxpool3x3s2_kernel(%arg0: i32, %arg1: memref<2x1x8x128xbf16, #tpu.memory_space<vmem>>, %arg2: memref<2x1x8x128xbf16, #tpu.memory_space<vmem>>, %arg3: memref<2x1x8x128xbf16, #tpu.memory_space<vmem>>, %arg4: memref<2x1x7x64xbf16, #tpu.memory_space<vmem>>) attributes {dimension_semantics = [#tpu.dimension_semantics<parallel>], iteration_bounds = array<i64: 7>, scalar_prefetch = 0 : i64, scratch_operands = 0 : i64, tpu.core_type = #tpu.core_type<tc>, window_params = [{transform_indices = @transform_0, window_bounds = array<i64: 2, 1, 8, 128>}, {transform_indices = @transform_1, window_bounds = array<i64: 2, 1, 8, 128>}, {transform_indices = @transform_2, window_bounds = array<i64: 2, 1, 8, 128>}, {transform_indices = @transform_3, window_bounds = array<i64: 2, 1, 7, 64>}]} {
    %c0 = arith.constant 0 : index
    %c0_0 = arith.constant 0 : index
    %c0_1 = arith.constant 0 : index
    %c0_2 = arith.constant 0 : index
    %0 = vector.load %arg1[%c0, %c0_0, %c0_1, %c0_2] : memref<2x1x8x128xbf16, #tpu.memory_space<vmem>>, vector<2x1x8x128xbf16>
    %c0_3 = arith.constant 0 : index
    %c0_4 = arith.constant 0 : index
    %c0_5 = arith.constant 0 : index
    %c0_6 = arith.constant 0 : index
    %1 = vector.load %arg2[%c0_3, %c0_4, %c0_5, %c0_6] : memref<2x1x8x128xbf16, #tpu.memory_space<vmem>>, vector<2x1x8x128xbf16>
    %2 = arith.maximumf %0, %1 : vector<2x1x8x128xbf16>
    %c0_7 = arith.constant 0 : index
    %c0_8 = arith.constant 0 : index
    %c0_9 = arith.constant 0 : index
    %c0_10 = arith.constant 0 : index
    %3 = vector.load %arg3[%c0_7, %c0_8, %c0_9, %c0_10] : memref<2x1x8x128xbf16, #tpu.memory_space<vmem>>, vector<2x1x8x128xbf16>
    %4 = arith.maximumf %2, %3 : vector<2x1x8x128xbf16>
    %5 = vector.extract_strided_slice %4 {offsets = [0, 0, 0, 0], sizes = [2, 1, 8, 64], strides = [1, 1, 1, 1]} : vector<2x1x8x128xbf16> to vector<2x1x8x64xbf16>
    %6 = vector.extract_strided_slice %4 {offsets = [0, 0, 0, 64], sizes = [2, 1, 8, 64], strides = [1, 1, 1, 1]} : vector<2x1x8x128xbf16> to vector<2x1x8x64xbf16>
    %7 = vector.extract_strided_slice %5 {offsets = [0, 0, 0, 0], sizes = [2, 1, 7, 64], strides = [1, 1, 1, 1]} : vector<2x1x8x64xbf16> to vector<2x1x7x64xbf16>
    %8 = vector.extract_strided_slice %6 {offsets = [0, 0, 0, 0], sizes = [2, 1, 7, 64], strides = [1, 1, 1, 1]} : vector<2x1x8x64xbf16> to vector<2x1x7x64xbf16>
    %9 = arith.maximumf %7, %8 : vector<2x1x7x64xbf16>
    %10 = vector.extract_strided_slice %5 {offsets = [0, 0, 1, 0], sizes = [2, 1, 7, 64], strides = [1, 1, 1, 1]} : vector<2x1x8x64xbf16> to vector<2x1x7x64xbf16>
    %11 = arith.maximumf %9, %10 : vector<2x1x7x64xbf16>
    %c0_11 = arith.constant 0 : index
    %c0_12 = arith.constant 0 : index
    %c0_13 = arith.constant 0 : index
    %c0_14 = arith.constant 0 : index
    %12 = vector.load %arg4[%c0_11, %c0_12, %c0_13, %c0_14] : memref<2x1x7x64xbf16, #tpu.memory_space<vmem>>, vector<2x1x7x64xbf16>
    tpu.vector_store %arg4[%c0_11, %c0_12, %c0_13, %c0_14], %11 {strides = array<i32>} : memref<2x1x7x64xbf16, #tpu.memory_space<vmem>>, vector<2x1x7x64xbf16>,
    return
  }
  func.func @transform_0(%arg0: i32) -> (i32, i32, i32, i32) {
    %c2_i32 = arith.constant 2 : i32
    %0 = arith.muli %c2_i32, %arg0 : i32
    %c0_i32 = arith.constant 0 : i32
    %1 = arith.addi %0, %c0_i32 : i32
    %c0_i32_0 = arith.constant 0 : i32
    %c0_i32_1 = arith.constant 0 : i32
    %c0_i32_2 = arith.constant 0 : i32
    %c0_i32_3 = arith.constant 0 : i32
    return %c0_i32_0, %1, %c0_i32_1, %c0_i32_2 : i32, i32, i32, i32
  }
  func.func @transform_1(%arg0: i32) -> (i32, i32, i32, i32) {
    %c2_i32 = arith.constant 2 : i32
    %0 = arith.muli %c2_i32, %arg0 : i32
    %c1_i32 = arith.constant 1 : i32
    %1 = arith.addi %0, %c1_i32 : i32
    %c0_i32 = arith.constant 0 : i32
    %c0_i32_0 = arith.constant 0 : i32
    %c0_i32_1 = arith.constant 0 : i32
    %c0_i32_2 = arith.constant 0 : i32
    return %c0_i32, %1, %c0_i32_0, %c0_i32_1 : i32, i32, i32, i32
  }
  func.func @transform_2(%arg0: i32) -> (i32, i32, i32, i32) {
    %c2_i32 = arith.constant 2 : i32
    %0 = arith.muli %c2_i32, %arg0 : i32
    %c2_i32_0 = arith.constant 2 : i32
    %1 = arith.addi %0, %c2_i32_0 : i32
    %c0_i32 = arith.constant 0 : i32
    %c0_i32_1 = arith.constant 0 : i32
    %c0_i32_2 = arith.constant 0 : i32
    %c0_i32_3 = arith.constant 0 : i32
    return %c0_i32, %1, %c0_i32_1, %c0_i32_2 : i32, i32, i32, i32
  }
  func.func @transform_3(%arg0: i32) -> (i32, i32, i32, i32) {
    %c0_i32 = arith.constant 0 : i32
    %c0_i32_0 = arith.constant 0 : i32
    %c0_i32_1 = arith.constant 0 : i32
    %c0_i32_2 = arith.constant 0 : i32
    return %c0_i32, %arg0, %c0_i32_0, %c0_i32_1 : i32, i32, i32, i32
  }
}

module attributes {stable_mosaic.version = 11 : i64} {
  func.func @_mm_bias_acc_kernel(%arg0: i32, %arg1: i32, %arg2: i32, %arg3: memref<64x256xbf16, #tpu.memory_space<vmem>>, %arg4: memref<256x192xbf16, #tpu.memory_space<vmem>>, %arg5: memref<1x192xf32, #tpu.memory_space<vmem>>, %arg6: memref<64x192xbf16, #tpu.memory_space<vmem>>, %arg7: memref<64x192xf32, #tpu.memory_space<vmem>>) attributes {dimension_semantics = [#tpu.dimension_semantics<parallel>, #tpu.dimension_semantics<parallel>, #tpu.dimension_semantics<arbitrary>], iteration_bounds = array<i64: 2, 1, 7>, scalar_prefetch = 0 : i64, scratch_operands = 1 : i64, tpu.core_type = #tpu.core_type<tc>, window_params = [{transform_indices = @transform_0, window_bounds = array<i64: 64, 256>}, {transform_indices = @transform_1, window_bounds = array<i64: 256, 192>}, {transform_indices = @transform_2, window_bounds = array<i64: 1, 192>}, {transform_indices = @transform_3, window_bounds = array<i64: 64, 192>}]} {
    %c0_i32 = arith.constant 0 : i32
    %0 = arith.cmpi eq, %arg2, %c0_i32 : i32
    %1 = arith.extui %0 : i1 to i32
    %c0_i32_0 = arith.constant 0 : i32
    %2 = arith.cmpi ne, %1, %c0_i32_0 : i32
    scf.if %2 {
      %cst_9 = arith.constant 0.000000e+00 : f32
      %12 = vector.broadcast %cst_9 : f32 to vector<64x192xf32>
      %c0_10 = arith.constant 0 : index
      %c0_11 = arith.constant 0 : index
      %13 = vector.load %arg7[%c0_10, %c0_11] : memref<64x192xf32, #tpu.memory_space<vmem>>, vector<64x192xf32>
      tpu.vector_store %arg7[%c0_10, %c0_11], %12 {strides = array<i32>} : memref<64x192xf32, #tpu.memory_space<vmem>>, vector<64x192xf32>,
    } else {
    }
    %c0 = arith.constant 0 : index
    %c0_1 = arith.constant 0 : index
    %3 = vector.load %arg7[%c0, %c0_1] : memref<64x192xf32, #tpu.memory_space<vmem>>, vector<64x192xf32>
    %c0_2 = arith.constant 0 : index
    %c0_3 = arith.constant 0 : index
    %4 = vector.load %arg3[%c0_2, %c0_3] : memref<64x256xbf16, #tpu.memory_space<vmem>>, vector<64x256xbf16>
    %c0_4 = arith.constant 0 : index
    %c0_5 = arith.constant 0 : index
    %5 = vector.load %arg4[%c0_4, %c0_5] : memref<256x192xbf16, #tpu.memory_space<vmem>>, vector<256x192xbf16>
    %cst = arith.constant dense<0.000000e+00> : vector<64x192xf32>
    %6 = tpu.matmul %4, %5, %cst {dimension_numbers = #tpu.dot_dimension_numbers<[1], [0], [0], [1], [0, 0, 1, 1], [], []>} : vector<64x256xbf16>, vector<256x192xbf16>, vector<64x192xf32> -> vector<64x192xf32>
    %7 = arith.addf %3, %6 : vector<64x192xf32>
    %c0_6 = arith.constant 0 : index
    %c0_7 = arith.constant 0 : index
    %8 = vector.load %arg7[%c0_6, %c0_7] : memref<64x192xf32, #tpu.memory_space<vmem>>, vector<64x192xf32>
    tpu.vector_store %arg7[%c0_6, %c0_7], %7 {strides = array<i32>} : memref<64x192xf32, #tpu.memory_space<vmem>>, vector<64x192xf32>,
    %c6_i32 = arith.constant 6 : i32
    %9 = arith.cmpi eq, %arg2, %c6_i32 : i32
    %10 = arith.extui %9 : i1 to i32
    %c0_i32_8 = arith.constant 0 : i32
    %11 = arith.cmpi ne, %10, %c0_i32_8 : i32
    scf.if %11 {
      %c0_9 = arith.constant 0 : index
      %c0_10 = arith.constant 0 : index
      %12 = vector.load %arg7[%c0_9, %c0_10] : memref<64x192xf32, #tpu.memory_space<vmem>>, vector<64x192xf32>
      %c0_11 = arith.constant 0 : index
      %c0_12 = arith.constant 0 : index
      %13 = vector.load %arg5[%c0_11, %c0_12] : memref<1x192xf32, #tpu.memory_space<vmem>>, vector<1x192xf32>
      %14 = vector.broadcast %13 : vector<1x192xf32> to vector<64x192xf32>
      %15 = arith.addf %12, %14 : vector<64x192xf32>
      %cst_13 = arith.constant 0.000000e+00 : f32
      %16 = vector.broadcast %cst_13 : f32 to vector<64x192xf32>
      %17 = arith.maximumf %15, %16 : vector<64x192xf32>
      %18 = arith.truncf %17 : vector<64x192xf32> to vector<64x192xbf16>
      %c0_14 = arith.constant 0 : index
      %c0_15 = arith.constant 0 : index
      %19 = vector.load %arg6[%c0_14, %c0_15] : memref<64x192xbf16, #tpu.memory_space<vmem>>, vector<64x192xbf16>
      tpu.vector_store %arg6[%c0_14, %c0_15], %18 {strides = array<i32>} : memref<64x192xbf16, #tpu.memory_space<vmem>>, vector<64x192xbf16>,
    } else {
    }
    return
  }
  func.func @transform_0(%arg0: i32, %arg1: i32, %arg2: i32) -> (i32, i32) {
    %c0_i32 = arith.constant 0 : i32
    return %arg0, %arg2 : i32, i32
  }
  func.func @transform_1(%arg0: i32, %arg1: i32, %arg2: i32) -> (i32, i32) {
    %c0_i32 = arith.constant 0 : i32
    return %arg2, %arg1 : i32, i32
  }
  func.func @transform_2(%arg0: i32, %arg1: i32, %arg2: i32) -> (i32, i32) {
    %c0_i32 = arith.constant 0 : i32
    %c0_i32_0 = arith.constant 0 : i32
    return %c0_i32, %arg1 : i32, i32
  }
  func.func @transform_3(%arg0: i32, %arg1: i32, %arg2: i32) -> (i32, i32) {
    %c0_i32 = arith.constant 0 : i32
    return %arg0, %arg1 : i32, i32
  }
}

module attributes {stable_mosaic.version = 11 : i64} {
  func.func @_maxpool3x3s2_kernel(%arg0: i32, %arg1: memref<2x1x4x384xbf16, #tpu.memory_space<vmem>>, %arg2: memref<2x1x4x384xbf16, #tpu.memory_space<vmem>>, %arg3: memref<2x1x4x384xbf16, #tpu.memory_space<vmem>>, %arg4: memref<2x1x3x192xbf16, #tpu.memory_space<vmem>>) attributes {dimension_semantics = [#tpu.dimension_semantics<parallel>], iteration_bounds = array<i64: 3>, scalar_prefetch = 0 : i64, scratch_operands = 0 : i64, tpu.core_type = #tpu.core_type<tc>, window_params = [{transform_indices = @transform_0, window_bounds = array<i64: 2, 1, 4, 384>}, {transform_indices = @transform_1, window_bounds = array<i64: 2, 1, 4, 384>}, {transform_indices = @transform_2, window_bounds = array<i64: 2, 1, 4, 384>}, {transform_indices = @transform_3, window_bounds = array<i64: 2, 1, 3, 192>}]} {
    %c0 = arith.constant 0 : index
    %c0_0 = arith.constant 0 : index
    %c0_1 = arith.constant 0 : index
    %c0_2 = arith.constant 0 : index
    %0 = vector.load %arg1[%c0, %c0_0, %c0_1, %c0_2] : memref<2x1x4x384xbf16, #tpu.memory_space<vmem>>, vector<2x1x4x384xbf16>
    %c0_3 = arith.constant 0 : index
    %c0_4 = arith.constant 0 : index
    %c0_5 = arith.constant 0 : index
    %c0_6 = arith.constant 0 : index
    %1 = vector.load %arg2[%c0_3, %c0_4, %c0_5, %c0_6] : memref<2x1x4x384xbf16, #tpu.memory_space<vmem>>, vector<2x1x4x384xbf16>
    %2 = arith.maximumf %0, %1 : vector<2x1x4x384xbf16>
    %c0_7 = arith.constant 0 : index
    %c0_8 = arith.constant 0 : index
    %c0_9 = arith.constant 0 : index
    %c0_10 = arith.constant 0 : index
    %3 = vector.load %arg3[%c0_7, %c0_8, %c0_9, %c0_10] : memref<2x1x4x384xbf16, #tpu.memory_space<vmem>>, vector<2x1x4x384xbf16>
    %4 = arith.maximumf %2, %3 : vector<2x1x4x384xbf16>
    %5 = vector.extract_strided_slice %4 {offsets = [0, 0, 0, 0], sizes = [2, 1, 4, 192], strides = [1, 1, 1, 1]} : vector<2x1x4x384xbf16> to vector<2x1x4x192xbf16>
    %6 = vector.extract_strided_slice %4 {offsets = [0, 0, 0, 192], sizes = [2, 1, 4, 192], strides = [1, 1, 1, 1]} : vector<2x1x4x384xbf16> to vector<2x1x4x192xbf16>
    %7 = vector.extract_strided_slice %5 {offsets = [0, 0, 0, 0], sizes = [2, 1, 3, 192], strides = [1, 1, 1, 1]} : vector<2x1x4x192xbf16> to vector<2x1x3x192xbf16>
    %8 = vector.extract_strided_slice %6 {offsets = [0, 0, 0, 0], sizes = [2, 1, 3, 192], strides = [1, 1, 1, 1]} : vector<2x1x4x192xbf16> to vector<2x1x3x192xbf16>
    %9 = arith.maximumf %7, %8 : vector<2x1x3x192xbf16>
    %10 = vector.extract_strided_slice %5 {offsets = [0, 0, 1, 0], sizes = [2, 1, 3, 192], strides = [1, 1, 1, 1]} : vector<2x1x4x192xbf16> to vector<2x1x3x192xbf16>
    %11 = arith.maximumf %9, %10 : vector<2x1x3x192xbf16>
    %c0_11 = arith.constant 0 : index
    %c0_12 = arith.constant 0 : index
    %c0_13 = arith.constant 0 : index
    %c0_14 = arith.constant 0 : index
    %12 = vector.load %arg4[%c0_11, %c0_12, %c0_13, %c0_14] : memref<2x1x3x192xbf16, #tpu.memory_space<vmem>>, vector<2x1x3x192xbf16>
    tpu.vector_store %arg4[%c0_11, %c0_12, %c0_13, %c0_14], %11 {strides = array<i32>} : memref<2x1x3x192xbf16, #tpu.memory_space<vmem>>, vector<2x1x3x192xbf16>,
    return
  }
  func.func @transform_0(%arg0: i32) -> (i32, i32, i32, i32) {
    %c2_i32 = arith.constant 2 : i32
    %0 = arith.muli %c2_i32, %arg0 : i32
    %c0_i32 = arith.constant 0 : i32
    %1 = arith.addi %0, %c0_i32 : i32
    %c0_i32_0 = arith.constant 0 : i32
    %c0_i32_1 = arith.constant 0 : i32
    %c0_i32_2 = arith.constant 0 : i32
    %c0_i32_3 = arith.constant 0 : i32
    return %c0_i32_0, %1, %c0_i32_1, %c0_i32_2 : i32, i32, i32, i32
  }
  func.func @transform_1(%arg0: i32) -> (i32, i32, i32, i32) {
    %c2_i32 = arith.constant 2 : i32
    %0 = arith.muli %c2_i32, %arg0 : i32
    %c1_i32 = arith.constant 1 : i32
    %1 = arith.addi %0, %c1_i32 : i32
    %c0_i32 = arith.constant 0 : i32
    %c0_i32_0 = arith.constant 0 : i32
    %c0_i32_1 = arith.constant 0 : i32
    %c0_i32_2 = arith.constant 0 : i32
    return %c0_i32, %1, %c0_i32_0, %c0_i32_1 : i32, i32, i32, i32
  }
  func.func @transform_2(%arg0: i32) -> (i32, i32, i32, i32) {
    %c2_i32 = arith.constant 2 : i32
    %0 = arith.muli %c2_i32, %arg0 : i32
    %c2_i32_0 = arith.constant 2 : i32
    %1 = arith.addi %0, %c2_i32_0 : i32
    %c0_i32 = arith.constant 0 : i32
    %c0_i32_1 = arith.constant 0 : i32
    %c0_i32_2 = arith.constant 0 : i32
    %c0_i32_3 = arith.constant 0 : i32
    return %c0_i32, %1, %c0_i32_1, %c0_i32_2 : i32, i32, i32, i32
  }
  func.func @transform_3(%arg0: i32) -> (i32, i32, i32, i32) {
    %c0_i32 = arith.constant 0 : i32
    %c0_i32_0 = arith.constant 0 : i32
    %c0_i32_1 = arith.constant 0 : i32
    %c0_i32_2 = arith.constant 0 : i32
    return %c0_i32, %arg0, %c0_i32_0, %c0_i32_1 : i32, i32, i32, i32
  }
}

module attributes {stable_mosaic.version = 11 : i64} {
  func.func @_mm_bias_acc_kernel(%arg0: i32, %arg1: i32, %arg2: i32, %arg3: memref<16x384xbf16, #tpu.memory_space<vmem>>, %arg4: memref<384x384xbf16, #tpu.memory_space<vmem>>, %arg5: memref<1x384xf32, #tpu.memory_space<vmem>>, %arg6: memref<16x384xbf16, #tpu.memory_space<vmem>>, %arg7: memref<16x384xf32, #tpu.memory_space<vmem>>) attributes {dimension_semantics = [#tpu.dimension_semantics<parallel>, #tpu.dimension_semantics<parallel>, #tpu.dimension_semantics<arbitrary>], iteration_bounds = array<i64: 2, 1, 5>, scalar_prefetch = 0 : i64, scratch_operands = 1 : i64, tpu.core_type = #tpu.core_type<tc>, window_params = [{transform_indices = @transform_0, window_bounds = array<i64: 16, 384>}, {transform_indices = @transform_1, window_bounds = array<i64: 384, 384>}, {transform_indices = @transform_2, window_bounds = array<i64: 1, 384>}, {transform_indices = @transform_3, window_bounds = array<i64: 16, 384>}]} {
    %c0_i32 = arith.constant 0 : i32
    %0 = arith.cmpi eq, %arg2, %c0_i32 : i32
    %1 = arith.extui %0 : i1 to i32
    %c0_i32_0 = arith.constant 0 : i32
    %2 = arith.cmpi ne, %1, %c0_i32_0 : i32
    scf.if %2 {
      %cst_9 = arith.constant 0.000000e+00 : f32
      %12 = vector.broadcast %cst_9 : f32 to vector<16x384xf32>
      %c0_10 = arith.constant 0 : index
      %c0_11 = arith.constant 0 : index
      %13 = vector.load %arg7[%c0_10, %c0_11] : memref<16x384xf32, #tpu.memory_space<vmem>>, vector<16x384xf32>
      tpu.vector_store %arg7[%c0_10, %c0_11], %12 {strides = array<i32>} : memref<16x384xf32, #tpu.memory_space<vmem>>, vector<16x384xf32>,
    } else {
    }
    %c0 = arith.constant 0 : index
    %c0_1 = arith.constant 0 : index
    %3 = vector.load %arg7[%c0, %c0_1] : memref<16x384xf32, #tpu.memory_space<vmem>>, vector<16x384xf32>
    %c0_2 = arith.constant 0 : index
    %c0_3 = arith.constant 0 : index
    %4 = vector.load %arg3[%c0_2, %c0_3] : memref<16x384xbf16, #tpu.memory_space<vmem>>, vector<16x384xbf16>
    %c0_4 = arith.constant 0 : index
    %c0_5 = arith.constant 0 : index
    %5 = vector.load %arg4[%c0_4, %c0_5] : memref<384x384xbf16, #tpu.memory_space<vmem>>, vector<384x384xbf16>
    %cst = arith.constant dense<0.000000e+00> : vector<16x384xf32>
    %6 = tpu.matmul %4, %5, %cst {dimension_numbers = #tpu.dot_dimension_numbers<[1], [0], [0], [1], [0, 0, 1, 1], [], []>} : vector<16x384xbf16>, vector<384x384xbf16>, vector<16x384xf32> -> vector<16x384xf32>
    %7 = arith.addf %3, %6 : vector<16x384xf32>
    %c0_6 = arith.constant 0 : index
    %c0_7 = arith.constant 0 : index
    %8 = vector.load %arg7[%c0_6, %c0_7] : memref<16x384xf32, #tpu.memory_space<vmem>>, vector<16x384xf32>
    tpu.vector_store %arg7[%c0_6, %c0_7], %7 {strides = array<i32>} : memref<16x384xf32, #tpu.memory_space<vmem>>, vector<16x384xf32>,
    %c4_i32 = arith.constant 4 : i32
    %9 = arith.cmpi eq, %arg2, %c4_i32 : i32
    %10 = arith.extui %9 : i1 to i32
    %c0_i32_8 = arith.constant 0 : i32
    %11 = arith.cmpi ne, %10, %c0_i32_8 : i32
    scf.if %11 {
      %c0_9 = arith.constant 0 : index
      %c0_10 = arith.constant 0 : index
      %12 = vector.load %arg7[%c0_9, %c0_10] : memref<16x384xf32, #tpu.memory_space<vmem>>, vector<16x384xf32>
      %c0_11 = arith.constant 0 : index
      %c0_12 = arith.constant 0 : index
      %13 = vector.load %arg5[%c0_11, %c0_12] : memref<1x384xf32, #tpu.memory_space<vmem>>, vector<1x384xf32>
      %14 = vector.broadcast %13 : vector<1x384xf32> to vector<16x384xf32>
      %15 = arith.addf %12, %14 : vector<16x384xf32>
      %cst_13 = arith.constant 0.000000e+00 : f32
      %16 = vector.broadcast %cst_13 : f32 to vector<16x384xf32>
      %17 = arith.maximumf %15, %16 : vector<16x384xf32>
      %18 = arith.truncf %17 : vector<16x384xf32> to vector<16x384xbf16>
      %c0_14 = arith.constant 0 : index
      %c0_15 = arith.constant 0 : index
      %19 = vector.load %arg6[%c0_14, %c0_15] : memref<16x384xbf16, #tpu.memory_space<vmem>>, vector<16x384xbf16>
      tpu.vector_store %arg6[%c0_14, %c0_15], %18 {strides = array<i32>} : memref<16x384xbf16, #tpu.memory_space<vmem>>, vector<16x384xbf16>,
    } else {
    }
    return
  }
  func.func @transform_0(%arg0: i32, %arg1: i32, %arg2: i32) -> (i32, i32) {
    %c0_i32 = arith.constant 0 : i32
    return %arg0, %arg2 : i32, i32
  }
  func.func @transform_1(%arg0: i32, %arg1: i32, %arg2: i32) -> (i32, i32) {
    %c0_i32 = arith.constant 0 : i32
    return %arg2, %arg1 : i32, i32
  }
  func.func @transform_2(%arg0: i32, %arg1: i32, %arg2: i32) -> (i32, i32) {
    %c0_i32 = arith.constant 0 : i32
    %c0_i32_0 = arith.constant 0 : i32
    return %c0_i32, %arg1 : i32, i32
  }
  func.func @transform_3(%arg0: i32, %arg1: i32, %arg2: i32) -> (i32, i32) {
    %c0_i32 = arith.constant 0 : i32
    return %arg0, %arg1 : i32, i32
  }
}

module attributes {stable_mosaic.version = 11 : i64} {
  func.func @_mm_bias_acc_kernel(%arg0: i32, %arg1: i32, %arg2: i32, %arg3: memref<16x512xbf16, #tpu.memory_space<vmem>>, %arg4: memref<512x256xbf16, #tpu.memory_space<vmem>>, %arg5: memref<1x256xf32, #tpu.memory_space<vmem>>, %arg6: memref<16x256xbf16, #tpu.memory_space<vmem>>, %arg7: memref<16x256xf32, #tpu.memory_space<vmem>>) attributes {dimension_semantics = [#tpu.dimension_semantics<parallel>, #tpu.dimension_semantics<parallel>, #tpu.dimension_semantics<arbitrary>], iteration_bounds = array<i64: 2, 1, 7>, scalar_prefetch = 0 : i64, scratch_operands = 1 : i64, tpu.core_type = #tpu.core_type<tc>, window_params = [{transform_indices = @transform_0, window_bounds = array<i64: 16, 512>}, {transform_indices = @transform_1, window_bounds = array<i64: 512, 256>}, {transform_indices = @transform_2, window_bounds = array<i64: 1, 256>}, {transform_indices = @transform_3, window_bounds = array<i64: 16, 256>}]} {
    %c0_i32 = arith.constant 0 : i32
    %0 = arith.cmpi eq, %arg2, %c0_i32 : i32
    %1 = arith.extui %0 : i1 to i32
    %c0_i32_0 = arith.constant 0 : i32
    %2 = arith.cmpi ne, %1, %c0_i32_0 : i32
    scf.if %2 {
      %cst_9 = arith.constant 0.000000e+00 : f32
      %12 = vector.broadcast %cst_9 : f32 to vector<16x256xf32>
      %c0_10 = arith.constant 0 : index
      %c0_11 = arith.constant 0 : index
      %13 = vector.load %arg7[%c0_10, %c0_11] : memref<16x256xf32, #tpu.memory_space<vmem>>, vector<16x256xf32>
      tpu.vector_store %arg7[%c0_10, %c0_11], %12 {strides = array<i32>} : memref<16x256xf32, #tpu.memory_space<vmem>>, vector<16x256xf32>,
    } else {
    }
    %c0 = arith.constant 0 : index
    %c0_1 = arith.constant 0 : index
    %3 = vector.load %arg7[%c0, %c0_1] : memref<16x256xf32, #tpu.memory_space<vmem>>, vector<16x256xf32>
    %c0_2 = arith.constant 0 : index
    %c0_3 = arith.constant 0 : index
    %4 = vector.load %arg3[%c0_2, %c0_3] : memref<16x512xbf16, #tpu.memory_space<vmem>>, vector<16x512xbf16>
    %c0_4 = arith.constant 0 : index
    %c0_5 = arith.constant 0 : index
    %5 = vector.load %arg4[%c0_4, %c0_5] : memref<512x256xbf16, #tpu.memory_space<vmem>>, vector<512x256xbf16>
    %cst = arith.constant dense<0.000000e+00> : vector<16x256xf32>
    %6 = tpu.matmul %4, %5, %cst {dimension_numbers = #tpu.dot_dimension_numbers<[1], [0], [0], [1], [0, 0, 1, 1], [], []>} : vector<16x512xbf16>, vector<512x256xbf16>, vector<16x256xf32> -> vector<16x256xf32>
    %7 = arith.addf %3, %6 : vector<16x256xf32>
    %c0_6 = arith.constant 0 : index
    %c0_7 = arith.constant 0 : index
    %8 = vector.load %arg7[%c0_6, %c0_7] : memref<16x256xf32, #tpu.memory_space<vmem>>, vector<16x256xf32>
    tpu.vector_store %arg7[%c0_6, %c0_7], %7 {strides = array<i32>} : memref<16x256xf32, #tpu.memory_space<vmem>>, vector<16x256xf32>,
    %c6_i32 = arith.constant 6 : i32
    %9 = arith.cmpi eq, %arg2, %c6_i32 : i32
    %10 = arith.extui %9 : i1 to i32
    %c0_i32_8 = arith.constant 0 : i32
    %11 = arith.cmpi ne, %10, %c0_i32_8 : i32
    scf.if %11 {
      %c0_9 = arith.constant 0 : index
      %c0_10 = arith.constant 0 : index
      %12 = vector.load %arg7[%c0_9, %c0_10] : memref<16x256xf32, #tpu.memory_space<vmem>>, vector<16x256xf32>
      %c0_11 = arith.constant 0 : index
      %c0_12 = arith.constant 0 : index
      %13 = vector.load %arg5[%c0_11, %c0_12] : memref<1x256xf32, #tpu.memory_space<vmem>>, vector<1x256xf32>
      %14 = vector.broadcast %13 : vector<1x256xf32> to vector<16x256xf32>
      %15 = arith.addf %12, %14 : vector<16x256xf32>
      %cst_13 = arith.constant 0.000000e+00 : f32
      %16 = vector.broadcast %cst_13 : f32 to vector<16x256xf32>
      %17 = arith.maximumf %15, %16 : vector<16x256xf32>
      %18 = arith.truncf %17 : vector<16x256xf32> to vector<16x256xbf16>
      %c0_14 = arith.constant 0 : index
      %c0_15 = arith.constant 0 : index
      %19 = vector.load %arg6[%c0_14, %c0_15] : memref<16x256xbf16, #tpu.memory_space<vmem>>, vector<16x256xbf16>
      tpu.vector_store %arg6[%c0_14, %c0_15], %18 {strides = array<i32>} : memref<16x256xbf16, #tpu.memory_space<vmem>>, vector<16x256xbf16>,
    } else {
    }
    return
  }
  func.func @transform_0(%arg0: i32, %arg1: i32, %arg2: i32) -> (i32, i32) {
    %c0_i32 = arith.constant 0 : i32
    return %arg0, %arg2 : i32, i32
  }
  func.func @transform_1(%arg0: i32, %arg1: i32, %arg2: i32) -> (i32, i32) {
    %c0_i32 = arith.constant 0 : i32
    return %arg2, %arg1 : i32, i32
  }
  func.func @transform_2(%arg0: i32, %arg1: i32, %arg2: i32) -> (i32, i32) {
    %c0_i32 = arith.constant 0 : i32
    %c0_i32_0 = arith.constant 0 : i32
    return %c0_i32, %arg1 : i32, i32
  }
  func.func @transform_3(%arg0: i32, %arg1: i32, %arg2: i32) -> (i32, i32) {
    %c0_i32 = arith.constant 0 : i32
    return %arg0, %arg1 : i32, i32
  }
}

module attributes {stable_mosaic.version = 11 : i64} {
  func.func @_mm_bias_acc_kernel(%arg0: i32, %arg1: i32, %arg2: i32, %arg3: memref<16x512xbf16, #tpu.memory_space<vmem>>, %arg4: memref<512x256xbf16, #tpu.memory_space<vmem>>, %arg5: memref<1x256xf32, #tpu.memory_space<vmem>>, %arg6: memref<16x256xbf16, #tpu.memory_space<vmem>>, %arg7: memref<16x256xf32, #tpu.memory_space<vmem>>) attributes {dimension_semantics = [#tpu.dimension_semantics<parallel>, #tpu.dimension_semantics<parallel>, #tpu.dimension_semantics<arbitrary>], iteration_bounds = array<i64: 2, 1, 5>, scalar_prefetch = 0 : i64, scratch_operands = 1 : i64, tpu.core_type = #tpu.core_type<tc>, window_params = [{transform_indices = @transform_0, window_bounds = array<i64: 16, 512>}, {transform_indices = @transform_1, window_bounds = array<i64: 512, 256>}, {transform_indices = @transform_2, window_bounds = array<i64: 1, 256>}, {transform_indices = @transform_3, window_bounds = array<i64: 16, 256>}]} {
    %c0_i32 = arith.constant 0 : i32
    %0 = arith.cmpi eq, %arg2, %c0_i32 : i32
    %1 = arith.extui %0 : i1 to i32
    %c0_i32_0 = arith.constant 0 : i32
    %2 = arith.cmpi ne, %1, %c0_i32_0 : i32
    scf.if %2 {
      %cst_9 = arith.constant 0.000000e+00 : f32
      %12 = vector.broadcast %cst_9 : f32 to vector<16x256xf32>
      %c0_10 = arith.constant 0 : index
      %c0_11 = arith.constant 0 : index
      %13 = vector.load %arg7[%c0_10, %c0_11] : memref<16x256xf32, #tpu.memory_space<vmem>>, vector<16x256xf32>
      tpu.vector_store %arg7[%c0_10, %c0_11], %12 {strides = array<i32>} : memref<16x256xf32, #tpu.memory_space<vmem>>, vector<16x256xf32>,
    } else {
    }
    %c0 = arith.constant 0 : index
    %c0_1 = arith.constant 0 : index
    %3 = vector.load %arg7[%c0, %c0_1] : memref<16x256xf32, #tpu.memory_space<vmem>>, vector<16x256xf32>
    %c0_2 = arith.constant 0 : index
    %c0_3 = arith.constant 0 : index
    %4 = vector.load %arg3[%c0_2, %c0_3] : memref<16x512xbf16, #tpu.memory_space<vmem>>, vector<16x512xbf16>
    %c0_4 = arith.constant 0 : index
    %c0_5 = arith.constant 0 : index
    %5 = vector.load %arg4[%c0_4, %c0_5] : memref<512x256xbf16, #tpu.memory_space<vmem>>, vector<512x256xbf16>
    %cst = arith.constant dense<0.000000e+00> : vector<16x256xf32>
    %6 = tpu.matmul %4, %5, %cst {dimension_numbers = #tpu.dot_dimension_numbers<[1], [0], [0], [1], [0, 0, 1, 1], [], []>} : vector<16x512xbf16>, vector<512x256xbf16>, vector<16x256xf32> -> vector<16x256xf32>
    %7 = arith.addf %3, %6 : vector<16x256xf32>
    %c0_6 = arith.constant 0 : index
    %c0_7 = arith.constant 0 : index
    %8 = vector.load %arg7[%c0_6, %c0_7] : memref<16x256xf32, #tpu.memory_space<vmem>>, vector<16x256xf32>
    tpu.vector_store %arg7[%c0_6, %c0_7], %7 {strides = array<i32>} : memref<16x256xf32, #tpu.memory_space<vmem>>, vector<16x256xf32>,
    %c4_i32 = arith.constant 4 : i32
    %9 = arith.cmpi eq, %arg2, %c4_i32 : i32
    %10 = arith.extui %9 : i1 to i32
    %c0_i32_8 = arith.constant 0 : i32
    %11 = arith.cmpi ne, %10, %c0_i32_8 : i32
    scf.if %11 {
      %c0_9 = arith.constant 0 : index
      %c0_10 = arith.constant 0 : index
      %12 = vector.load %arg7[%c0_9, %c0_10] : memref<16x256xf32, #tpu.memory_space<vmem>>, vector<16x256xf32>
      %c0_11 = arith.constant 0 : index
      %c0_12 = arith.constant 0 : index
      %13 = vector.load %arg5[%c0_11, %c0_12] : memref<1x256xf32, #tpu.memory_space<vmem>>, vector<1x256xf32>
      %14 = vector.broadcast %13 : vector<1x256xf32> to vector<16x256xf32>
      %15 = arith.addf %12, %14 : vector<16x256xf32>
      %cst_13 = arith.constant 0.000000e+00 : f32
      %16 = vector.broadcast %cst_13 : f32 to vector<16x256xf32>
      %17 = arith.maximumf %15, %16 : vector<16x256xf32>
      %18 = arith.truncf %17 : vector<16x256xf32> to vector<16x256xbf16>
      %c0_14 = arith.constant 0 : index
      %c0_15 = arith.constant 0 : index
      %19 = vector.load %arg6[%c0_14, %c0_15] : memref<16x256xbf16, #tpu.memory_space<vmem>>, vector<16x256xbf16>
      tpu.vector_store %arg6[%c0_14, %c0_15], %18 {strides = array<i32>} : memref<16x256xbf16, #tpu.memory_space<vmem>>, vector<16x256xbf16>,
    } else {
    }
    return
  }
  func.func @transform_0(%arg0: i32, %arg1: i32, %arg2: i32) -> (i32, i32) {
    %c0_i32 = arith.constant 0 : i32
    return %arg0, %arg2 : i32, i32
  }
  func.func @transform_1(%arg0: i32, %arg1: i32, %arg2: i32) -> (i32, i32) {
    %c0_i32 = arith.constant 0 : i32
    return %arg2, %arg1 : i32, i32
  }
  func.func @transform_2(%arg0: i32, %arg1: i32, %arg2: i32) -> (i32, i32) {
    %c0_i32 = arith.constant 0 : i32
    %c0_i32_0 = arith.constant 0 : i32
    return %c0_i32, %arg1 : i32, i32
  }
  func.func @transform_3(%arg0: i32, %arg1: i32, %arg2: i32) -> (i32, i32) {
    %c0_i32 = arith.constant 0 : i32
    return %arg0, %arg1 : i32, i32
  }
}

module attributes {stable_mosaic.version = 11 : i64} {
  func.func @_mm_bias_acc_kernel(%arg0: i32, %arg1: i32, %arg2: i32, %arg3: memref<16x512xbf16, #tpu.memory_space<vmem>>, %arg4: memref<512x256xbf16, #tpu.memory_space<vmem>>, %arg5: memref<1x256xf32, #tpu.memory_space<vmem>>, %arg6: memref<16x256xbf16, #tpu.memory_space<vmem>>, %arg7: memref<16x256xf32, #tpu.memory_space<vmem>>) attributes {dimension_semantics = [#tpu.dimension_semantics<parallel>, #tpu.dimension_semantics<parallel>, #tpu.dimension_semantics<arbitrary>], iteration_bounds = array<i64: 1, 1, 5>, scalar_prefetch = 0 : i64, scratch_operands = 1 : i64, tpu.core_type = #tpu.core_type<tc>, window_params = [{transform_indices = @transform_0, window_bounds = array<i64: 16, 512>}, {transform_indices = @transform_1, window_bounds = array<i64: 512, 256>}, {transform_indices = @transform_2, window_bounds = array<i64: 1, 256>}, {transform_indices = @transform_3, window_bounds = array<i64: 16, 256>}]} {
    %c0_i32 = arith.constant 0 : i32
    %0 = arith.cmpi eq, %arg2, %c0_i32 : i32
    %1 = arith.extui %0 : i1 to i32
    %c0_i32_0 = arith.constant 0 : i32
    %2 = arith.cmpi ne, %1, %c0_i32_0 : i32
    scf.if %2 {
      %cst_9 = arith.constant 0.000000e+00 : f32
      %12 = vector.broadcast %cst_9 : f32 to vector<16x256xf32>
      %c0_10 = arith.constant 0 : index
      %c0_11 = arith.constant 0 : index
      %13 = vector.load %arg7[%c0_10, %c0_11] : memref<16x256xf32, #tpu.memory_space<vmem>>, vector<16x256xf32>
      tpu.vector_store %arg7[%c0_10, %c0_11], %12 {strides = array<i32>} : memref<16x256xf32, #tpu.memory_space<vmem>>, vector<16x256xf32>,
    } else {
    }
    %c0 = arith.constant 0 : index
    %c0_1 = arith.constant 0 : index
    %3 = vector.load %arg7[%c0, %c0_1] : memref<16x256xf32, #tpu.memory_space<vmem>>, vector<16x256xf32>
    %c0_2 = arith.constant 0 : index
    %c0_3 = arith.constant 0 : index
    %4 = vector.load %arg3[%c0_2, %c0_3] : memref<16x512xbf16, #tpu.memory_space<vmem>>, vector<16x512xbf16>
    %c0_4 = arith.constant 0 : index
    %c0_5 = arith.constant 0 : index
    %5 = vector.load %arg4[%c0_4, %c0_5] : memref<512x256xbf16, #tpu.memory_space<vmem>>, vector<512x256xbf16>
    %cst = arith.constant dense<0.000000e+00> : vector<16x256xf32>
    %6 = tpu.matmul %4, %5, %cst {dimension_numbers = #tpu.dot_dimension_numbers<[1], [0], [0], [1], [0, 0, 1, 1], [], []>} : vector<16x512xbf16>, vector<512x256xbf16>, vector<16x256xf32> -> vector<16x256xf32>
    %7 = arith.addf %3, %6 : vector<16x256xf32>
    %c0_6 = arith.constant 0 : index
    %c0_7 = arith.constant 0 : index
    %8 = vector.load %arg7[%c0_6, %c0_7] : memref<16x256xf32, #tpu.memory_space<vmem>>, vector<16x256xf32>
    tpu.vector_store %arg7[%c0_6, %c0_7], %7 {strides = array<i32>} : memref<16x256xf32, #tpu.memory_space<vmem>>, vector<16x256xf32>,
    %c4_i32 = arith.constant 4 : i32
    %9 = arith.cmpi eq, %arg2, %c4_i32 : i32
    %10 = arith.extui %9 : i1 to i32
    %c0_i32_8 = arith.constant 0 : i32
    %11 = arith.cmpi ne, %10, %c0_i32_8 : i32
    scf.if %11 {
      %c0_9 = arith.constant 0 : index
      %c0_10 = arith.constant 0 : index
      %12 = vector.load %arg7[%c0_9, %c0_10] : memref<16x256xf32, #tpu.memory_space<vmem>>, vector<16x256xf32>
      %c0_11 = arith.constant 0 : index
      %c0_12 = arith.constant 0 : index
      %13 = vector.load %arg5[%c0_11, %c0_12] : memref<1x256xf32, #tpu.memory_space<vmem>>, vector<1x256xf32>
      %14 = vector.broadcast %13 : vector<1x256xf32> to vector<16x256xf32>
      %15 = arith.addf %12, %14 : vector<16x256xf32>
      %cst_13 = arith.constant 0.000000e+00 : f32
      %16 = vector.broadcast %cst_13 : f32 to vector<16x256xf32>
      %17 = arith.maximumf %15, %16 : vector<16x256xf32>
      %18 = arith.truncf %17 : vector<16x256xf32> to vector<16x256xbf16>
      %c0_14 = arith.constant 0 : index
      %c0_15 = arith.constant 0 : index
      %19 = vector.load %arg6[%c0_14, %c0_15] : memref<16x256xbf16, #tpu.memory_space<vmem>>, vector<16x256xbf16>
      tpu.vector_store %arg6[%c0_14, %c0_15], %18 {strides = array<i32>} : memref<16x256xbf16, #tpu.memory_space<vmem>>, vector<16x256xbf16>,
    } else {
    }
    return
  }
  func.func @transform_0(%arg0: i32, %arg1: i32, %arg2: i32) -> (i32, i32) {
    %c0_i32 = arith.constant 0 : i32
    return %arg0, %arg2 : i32, i32
  }
  func.func @transform_1(%arg0: i32, %arg1: i32, %arg2: i32) -> (i32, i32) {
    %c0_i32 = arith.constant 0 : i32
    return %arg2, %arg1 : i32, i32
  }
  func.func @transform_2(%arg0: i32, %arg1: i32, %arg2: i32) -> (i32, i32) {
    %c0_i32 = arith.constant 0 : i32
    %c0_i32_0 = arith.constant 0 : i32
    return %c0_i32, %arg1 : i32, i32
  }
  func.func @transform_3(%arg0: i32, %arg1: i32, %arg2: i32) -> (i32, i32) {
    %c0_i32 = arith.constant 0 : i32
    return %arg0, %arg1 : i32, i32
  }
}

module attributes {stable_mosaic.version = 11 : i64} {
  func.func @_mm_bias_single_kernel(%arg0: i32, %arg1: i32, %arg2: memref<16x256xbf16, #tpu.memory_space<vmem>>, %arg3: memref<256x256xbf16, #tpu.memory_space<vmem>>, %arg4: memref<1x256xf32, #tpu.memory_space<vmem>>, %arg5: memref<16x256xbf16, #tpu.memory_space<vmem>>) attributes {dimension_semantics = [#tpu.dimension_semantics<parallel>, #tpu.dimension_semantics<parallel>], iteration_bounds = array<i64: 1, 1>, scalar_prefetch = 0 : i64, scratch_operands = 0 : i64, tpu.core_type = #tpu.core_type<tc>, window_params = [{transform_indices = @transform_0, window_bounds = array<i64: 16, 256>}, {transform_indices = @transform_1, window_bounds = array<i64: 256, 256>}, {transform_indices = @transform_2, window_bounds = array<i64: 1, 256>}, {transform_indices = @transform_3, window_bounds = array<i64: 16, 256>}]} {
    %c0 = arith.constant 0 : index
    %c0_0 = arith.constant 0 : index
    %0 = vector.load %arg2[%c0, %c0_0] : memref<16x256xbf16, #tpu.memory_space<vmem>>, vector<16x256xbf16>
    %c0_1 = arith.constant 0 : index
    %c0_2 = arith.constant 0 : index
    %1 = vector.load %arg3[%c0_1, %c0_2] : memref<256x256xbf16, #tpu.memory_space<vmem>>, vector<256x256xbf16>
    %cst = arith.constant dense<0.000000e+00> : vector<16x256xf32>
    %2 = tpu.matmul %0, %1, %cst {dimension_numbers = #tpu.dot_dimension_numbers<[1], [0], [0], [1], [0, 0, 1, 1], [], []>} : vector<16x256xbf16>, vector<256x256xbf16>, vector<16x256xf32> -> vector<16x256xf32>
    %c0_3 = arith.constant 0 : index
    %c0_4 = arith.constant 0 : index
    %3 = vector.load %arg4[%c0_3, %c0_4] : memref<1x256xf32, #tpu.memory_space<vmem>>, vector<1x256xf32>
    %4 = vector.broadcast %3 : vector<1x256xf32> to vector<16x256xf32>
    %5 = arith.addf %2, %4 : vector<16x256xf32>
    %cst_5 = arith.constant 0.000000e+00 : f32
    %6 = vector.broadcast %cst_5 : f32 to vector<16x256xf32>
    %7 = arith.maximumf %5, %6 : vector<16x256xf32>
    %8 = arith.truncf %7 : vector<16x256xf32> to vector<16x256xbf16>
    %c0_6 = arith.constant 0 : index
    %c0_7 = arith.constant 0 : index
    %9 = vector.load %arg5[%c0_6, %c0_7] : memref<16x256xbf16, #tpu.memory_space<vmem>>, vector<16x256xbf16>
    tpu.vector_store %arg5[%c0_6, %c0_7], %8 {strides = array<i32>} : memref<16x256xbf16, #tpu.memory_space<vmem>>, vector<16x256xbf16>,
    return
  }
  func.func @transform_0(%arg0: i32, %arg1: i32) -> (i32, i32) {
    %c0_i32 = arith.constant 0 : i32
    %c0_i32_0 = arith.constant 0 : i32
    return %arg0, %c0_i32 : i32, i32
  }
  func.func @transform_1(%arg0: i32, %arg1: i32) -> (i32, i32) {
    %c0_i32 = arith.constant 0 : i32
    %c0_i32_0 = arith.constant 0 : i32
    return %c0_i32, %arg1 : i32, i32
  }
  func.func @transform_2(%arg0: i32, %arg1: i32) -> (i32, i32) {
    %c0_i32 = arith.constant 0 : i32
    %c0_i32_0 = arith.constant 0 : i32
    return %c0_i32, %arg1 : i32, i32
  }
  func.func @transform_3(%arg0: i32, %arg1: i32) -> (i32, i32) {
    %c0_i32 = arith.constant 0 : i32
    return %arg0, %arg1 : i32, i32
  }
}

module attributes {stable_mosaic.version = 11 : i64} {
  func.func @_global_max_kernel(%arg0: i32, %arg1: memref<2x1x20xf32, #tpu.memory_space<vmem>>, %arg2: memref<2x1x20xf32, #tpu.memory_space<vmem>>) attributes {dimension_semantics = [#tpu.dimension_semantics<arbitrary>], iteration_bounds = array<i64: 1>, scalar_prefetch = 0 : i64, scratch_operands = 0 : i64, tpu.core_type = #tpu.core_type<tc>, window_params = [{pipeline_mode = #tpu.pipeline_mode<synchronous>, transform_indices = @transform_0, window_bounds = array<i64: 2, 1, 20>}, {pipeline_mode = #tpu.pipeline_mode<synchronous>, transform_indices = @transform_1, window_bounds = array<i64: 2, 1, 20>}]} {
    %c0 = arith.constant 0 : index
    %c0_0 = arith.constant 0 : index
    %c0_1 = arith.constant 0 : index
    %0 = vector.load %arg1[%c0, %c0_0, %c0_1] : memref<2x1x20xf32, #tpu.memory_space<vmem>>, vector<2x1x20xf32>
    %cst = arith.constant dense<0xFF800000> : vector<2x20xf32>
    %1 = vector.multi_reduction <maximumf>, %0, %cst [1] : vector<2x1x20xf32> to vector<2x20xf32>
    %2 = vector.shape_cast %1 : vector<2x20xf32> to vector<2x1x20xf32>
    %c0_2 = arith.constant 0 : index
    %c0_3 = arith.constant 0 : index
    %c0_4 = arith.constant 0 : index
    %3 = vector.load %arg2[%c0_2, %c0_3, %c0_4] : memref<2x1x20xf32, #tpu.memory_space<vmem>>, vector<2x1x20xf32>
    tpu.vector_store %arg2[%c0_2, %c0_3, %c0_4], %2 {strides = array<i32>} : memref<2x1x20xf32, #tpu.memory_space<vmem>>, vector<2x1x20xf32>,
    return
  }
  func.func @transform_0(%arg0: i32) -> (i32, i32, i32) {
    %c0_i32 = arith.constant 0 : i32
    %c0_i32_0 = arith.constant 0 : i32
    %c0_i32_1 = arith.constant 0 : i32
    %c0_i32_2 = arith.constant 0 : i32
    return %c0_i32, %c0_i32_0, %c0_i32_1 : i32, i32, i32
  }
  func.func @transform_1(%arg0: i32) -> (i32, i32, i32) {
    %c0_i32 = arith.constant 0 : i32
    %c0_i32_0 = arith.constant 0 : i32
    %c0_i32_1 = arith.constant 0 : i32
    %c0_i32_2 = arith.constant 0 : i32
    return %c0_i32, %c0_i32_0, %c0_i32_1 : i32, i32, i32
  }
}

module attributes {stable_mosaic.version = 11 : i64} {
  func.func @_mm_bias_single_kernel(%arg0: i32, %arg1: i32, %arg2: memref<16x256xbf16, #tpu.memory_space<vmem>>, %arg3: memref<256x128xbf16, #tpu.memory_space<vmem>>, %arg4: memref<1x128xf32, #tpu.memory_space<vmem>>, %arg5: memref<16x128xf32, #tpu.memory_space<vmem>>) attributes {dimension_semantics = [#tpu.dimension_semantics<parallel>, #tpu.dimension_semantics<parallel>], iteration_bounds = array<i64: 1, 1>, scalar_prefetch = 0 : i64, scratch_operands = 0 : i64, tpu.core_type = #tpu.core_type<tc>, window_params = [{transform_indices = @transform_0, window_bounds = array<i64: 16, 256>}, {transform_indices = @transform_1, window_bounds = array<i64: 256, 128>}, {transform_indices = @transform_2, window_bounds = array<i64: 1, 128>}, {transform_indices = @transform_3, window_bounds = array<i64: 16, 128>}]} {
    %c0 = arith.constant 0 : index
    %c0_0 = arith.constant 0 : index
    %0 = vector.load %arg2[%c0, %c0_0] : memref<16x256xbf16, #tpu.memory_space<vmem>>, vector<16x256xbf16>
    %c0_1 = arith.constant 0 : index
    %c0_2 = arith.constant 0 : index
    %1 = vector.load %arg3[%c0_1, %c0_2] : memref<256x128xbf16, #tpu.memory_space<vmem>>, vector<256x128xbf16>
    %cst = arith.constant dense<0.000000e+00> : vector<16x128xf32>
    %2 = tpu.matmul %0, %1, %cst {dimension_numbers = #tpu.dot_dimension_numbers<[1], [0], [0], [1], [0, 0, 1, 1], [], []>} : vector<16x256xbf16>, vector<256x128xbf16>, vector<16x128xf32> -> vector<16x128xf32>
    %c0_3 = arith.constant 0 : index
    %c0_4 = arith.constant 0 : index
    %3 = vector.load %arg4[%c0_3, %c0_4] : memref<1x128xf32, #tpu.memory_space<vmem>>, vector<1x128xf32>
    %4 = vector.broadcast %3 : vector<1x128xf32> to vector<16x128xf32>
    %5 = arith.addf %2, %4 : vector<16x128xf32>
    %c0_5 = arith.constant 0 : index
    %c0_6 = arith.constant 0 : index
    %6 = vector.load %arg5[%c0_5, %c0_6] : memref<16x128xf32, #tpu.memory_space<vmem>>, vector<16x128xf32>
    tpu.vector_store %arg5[%c0_5, %c0_6], %5 {strides = array<i32>} : memref<16x128xf32, #tpu.memory_space<vmem>>, vector<16x128xf32>,
    return
  }
  func.func @transform_0(%arg0: i32, %arg1: i32) -> (i32, i32) {
    %c0_i32 = arith.constant 0 : i32
    %c0_i32_0 = arith.constant 0 : i32
    return %arg0, %c0_i32 : i32, i32
  }
  func.func @transform_1(%arg0: i32, %arg1: i32) -> (i32, i32) {
    %c0_i32 = arith.constant 0 : i32
    %c0_i32_0 = arith.constant 0 : i32
    return %c0_i32, %arg1 : i32, i32
  }
  func.func @transform_2(%arg0: i32, %arg1: i32) -> (i32, i32) {
    %c0_i32 = arith.constant 0 : i32
    %c0_i32_0 = arith.constant 0 : i32
    return %c0_i32, %arg1 : i32, i32
  }
  func.func @transform_3(%arg0: i32, %arg1: i32) -> (i32, i32) {
    %c0_i32 = arith.constant 0 : i32
    return %arg0, %arg1 : i32, i32
  }
}

</mosaic_0001>

<llo_original>
// kernel: localizer_alexnet_forward.11
$region0: #{localizer_alexnet_forward.11}
  #allocation0 [shape = 'u32[]', space=smem, size = 0x4, offset = 0x4, fixed_abs, tag = 'smem constant byte address 0x4 - core index']
  #allocation1 [shape = 'u32[144,128]{1,0:T(1,128)}', space=vmem, size = 0x12000, scoped, tag = 'internal scratch']
  %s0 = inlined_call_operand.vmem [shape: bf16[480,384], index: 0, kind: input, shape index: {}]
  %s1 = inlined_call_operand.vmem [shape: bf16[384,128], index: 1, kind: input, shape index: {}]
  %s2 = inlined_call_operand.vmem [shape: f32[1,128], index: 2, kind: input, shape index: {}]
  %s3 = inlined_call_operand.vmem [shape: bf16[480,128], index: 3, kind: output, shape index: {}]
  %s4 = sld [smem:[#allocation0]]
  $region45: #{localizer_alexnet_forward.11} parent=0
    _
  %s6 = ssub.s32 1, %s4
  %s7 = scalar_select 0, %s6, %s4
  loop: start=0, step=1, limit=4
  $region2: #{localizer_alexnet_forward.11} parent=0 // loop_pre_header
    _
  $region3: #{localizer_alexnet_forward.11} parent=0 // loop_header
    %s9 = sphi 0, %s13
    %p10 = scmp.ge.s32.totalorder %s9, 4
    %s16 = sphi 0, %s28
    %s17 = sphi 0, %s24
    %s18 = sphi 0, %s16
    %s19 = sphi 0, %s17
    %s20 = sphi 0, %s18
    %s21 = sphi 0, %s19
    %s31 = sphi 0, %s33
    %s34 = sphi 0, %s31
    %s35 = sphi 0, %s34
    %s51 = sphi 0, %s35
    %s57 = sphi 0, %s59
    %s60 = sphi 0, %s57
    %s61 = sphi 0, %s60
    %s77 = sphi 0, %s61
    %s83 = sphi 0, %s85
    %s86 = sphi 0, %s83
    %s87 = sphi 0, %s86
    %s103 = sphi 0, %s87
    %s111 = sphi 0, %s113
    %s114 = sphi 0, %s111
    %s115 = sphi 0, %s114
    %s131 = sphi 0, %s115
  $region4: #{localizer_alexnet_forward.11} parent=0 // loop_header_branch
    %12 = sbr.rel (%p10) target = $region8
  $region5: #{localizer_alexnet_forward.11} parent=0 // loop_body
    %s14 = ssub.s32 %s9, 1
    %s15 = ssub.s32 %s9, 2
    %s22 = sadd.s32 1, %s17
    %p23 = scmp.ge.s32.totalorder %s22, 1
    %s24 = scalar_select %p23, 0, %s22
    %s25 = sadd.s32 1, %s16
    %s26 = scalar_select %p23, %s25, %s16
    %p27 = scmp.ge.s32.totalorder %s26, 2
    %s28 = scalar_select %p27, 0, %s26
    %s29 = ssub.s32 %s16, %s28
    %p30 = scmp.eq.s32.totalorder %s29, 0
    %s32 = sadd.s32 %s31, 1
    %s33 = scalar_select %p30, %s31, %s32
    %p36 = pneg %p30
    %p37 = scmp.eq.s32.totalorder %s9, 1
    %p38 = por %p36, %p37
    %p39 = scmp.ne.s32.totalorder %s31, %s34
    %p40 = scmp.eq.s32.totalorder %s9, 0
    %p41 = por %p39, %p40
    %p42 = scmp.ne.s32.totalorder %s31, %s34
    %p43 = scmp.eq.s32.totalorder %s14, 1
    %p44 = por %p42, %p43
    %p45 = scmp.ne.s32.totalorder %s34, %s35
    %p46 = scmp.eq.s32.totalorder %s14, 0
    %p47 = por %p45, %p46
    %p48 = scmp.ne.s32.totalorder %s34, %s35
    %p49 = scmp.eq.s32.totalorder %s15, 1
    %p50 = por %p48, %p49
    %p52 = scmp.ne.s32.totalorder %s35, %s51
    %p53 = scmp.eq.s32.totalorder %s15, 0
    %p54 = por %p52, %p53
    %s55 = ssub.s32 %s17, %s24
    %p56 = scmp.eq.s32.totalorder %s55, 0
    %s58 = sadd.s32 %s57, 1
    %s59 = scalar_select %p56, %s57, %s58
    %p62 = pneg %p56
    %p63 = scmp.eq.s32.totalorder %s9, 1
    %p64 = por %p62, %p63
    %p65 = scmp.ne.s32.totalorder %s57, %s60
    %p66 = scmp.eq.s32.totalorder %s9, 0
    %p67 = por %p65, %p66
    %p68 = scmp.ne.s32.totalorder %s57, %s60
    %p69 = scmp.eq.s32.totalorder %s14, 1
    %p70 = por %p68, %p69
    %p71 = scmp.ne.s32.totalorder %s60, %s61
    %p72 = scmp.eq.s32.totalorder %s14, 0
    %p73 = por %p71, %p72
    %p74 = scmp.ne.s32.totalorder %s60, %s61
    %p75 = scmp.eq.s32.totalorder %s15, 1
    %p76 = por %p74, %p75
    %p78 = scmp.ne.s32.totalorder %s61, %s77
    %p79 = scmp.eq.s32.totalorder %s15, 0
    %p80 = por %p78, %p79
    %s81 = ssub.s32 %s17, %s24
    %p82 = scmp.eq.s32.totalorder %s81, 0
    %s84 = sadd.s32 %s83, 1
    %s85 = scalar_select %p82, %s83, %s84
    %p88 = pneg %p82
    %p89 = scmp.eq.s32.totalorder %s9, 1
    %p90 = por %p88, %p89
    %p91 = scmp.ne.s32.totalorder %s83, %s86
    %p92 = scmp.eq.s32.totalorder %s9, 0
    %p93 = por %p91, %p92
    %p94 = scmp.ne.s32.totalorder %s83, %s86
    %p95 = scmp.eq.s32.totalorder %s14, 1
    %p96 = por %p94, %p95
    %p97 = scmp.ne.s32.totalorder %s86, %s87
    %p98 = scmp.eq.s32.totalorder %s14, 0
    %p99 = por %p97, %p98
    %p100 = scmp.ne.s32.totalorder %s86, %s87
    %p101 = scmp.eq.s32.totalorder %s15, 1
    %p102 = por %p100, %p101
    %p104 = scmp.ne.s32.totalorder %s87, %s103
    %p105 = scmp.eq.s32.totalorder %s15, 0
    %p106 = por %p104, %p105
    %s107 = ssub.s32 %s16, %s28
    %s108 = ssub.s32 %s17, %s24
    %s109 = sor.u32 %s107, %s108
    %p110 = scmp.eq.s32.totalorder %s109, 0
    %s112 = sadd.s32 %s111, 1
    %s113 = scalar_select %p110, %s111, %s112
    %p116 = pneg %p110
    %p117 = scmp.eq.s32.totalorder %s9, 1
    %p118 = por %p116, %p117
    %p119 = scmp.ne.s32.totalorder %s111, %s114
    %p120 = scmp.eq.s32.totalorder %s9, 0
    %p121 = por %p119, %p120
    %p122 = scmp.ne.s32.totalorder %s111, %s114
    %p123 = scmp.eq.s32.totalorder %s14, 1
    %p124 = por %p122, %p123
    %p125 = scmp.ne.s32.totalorder %s114, %s115
    %p126 = scmp.eq.s32.totalorder %s14, 0
    %p127 = por %p125, %p126
    %p128 = scmp.ne.s32.totalorder %s114, %s115
    %p129 = scmp.eq.s32.totalorder %s15, 1
    %p130 = por %p128, %p129
    %p132 = scmp.ne.s32.totalorder %s115, %s131
    %p133 = scmp.eq.s32.totalorder %s15, 0
    %p134 = por %p132, %p133
    %p135 = scmp.le.s32.totalorder 1, %s9
    %p136 = scmp.lt.s32.totalorder %s9, 3
    %p137 = pnand %p135, %p136
    %p138 = pneg %p137
    // Predicated region
    $region9: #{localizer_alexnet_forward.11} parent=5 // pred_check
      _
    $region10: #{localizer_alexnet_forward.11} parent=5 // pred_check_branch
      %140 = sbr.rel (%p137) target = $region12
    $region11: #{localizer_alexnet_forward.11} parent=5 // pred_region
      %s141 = ssub.s32 %s9, 1
      // Predicated region
      $region13: #{localizer_alexnet_forward.11} parent=11 // pred_check
        %p142 = pneg %p73
      $region14: #{localizer_alexnet_forward.11} parent=11 // pred_check_branch
        %144 = sbr.rel (%p142) target = $region16
      $region15: #{localizer_alexnet_forward.11} parent=11 // pred_region
        %p145 = scmp.lt.s32.totalorder %s19, 0
        %s146 = scalar_select %p145, %s19, 0
        %s147 = smul.addr %s146, 4
        %s148 = scalar_lea.vmem %s1, %s147
      $region16: #{localizer_alexnet_forward.11} parent=11 // pred_fallthru
        _
      // Predicated region
      $region17: #{localizer_alexnet_forward.11} parent=11 // pred_check
        %p149 = pneg %p99
      $region18: #{localizer_alexnet_forward.11} parent=11 // pred_check_branch
        %151 = sbr.rel (%p149) target = $region20
      $region19: #{localizer_alexnet_forward.11} parent=11 // pred_region
        %p152 = scmp.lt.s32.totalorder %s19, 0
        %s153 = scalar_select %p152, %s19, 0
        %s154 = scalar_lea.vmem %s2, %s153
      $region20: #{localizer_alexnet_forward.11} parent=11 // pred_fallthru
        _
    $region12: #{localizer_alexnet_forward.11} parent=5 // pred_fallthru
      _
    %p155 = scmp.lt.s32.totalorder %s9, 2
    // Predicated region
    $region21: #{localizer_alexnet_forward.11} parent=5 // pred_check
      %p156 = pneg %p155
    $region22: #{localizer_alexnet_forward.11} parent=5 // pred_check_branch
      %158 = sbr.rel (%p156) target = $region24
    $region23: #{localizer_alexnet_forward.11} parent=5 // pred_region
      // Predicated region
      $region25: #{localizer_alexnet_forward.11} parent=23 // pred_check
        %p159 = pneg %p41
      $region26: #{localizer_alexnet_forward.11} parent=23 // pred_check_branch
        %161 = sbr.rel (%p159) target = $region28
      $region27: #{localizer_alexnet_forward.11} parent=23 // pred_region
        %s162 = smul.u32 30, %s16
        %p163 = scmp.lt.s32.totalorder %s162, 59
        %s164 = scalar_select %p163, %s162, 59
        %s165 = smul.addr %s164, 3
        %s166 = smul.addr %s165, 4
        %s167 = scalar_lea.vmem %s0, %s166
        %s168 = smul.u32 30, %s16
      $region28: #{localizer_alexnet_forward.11} parent=23 // pred_fallthru
        _
    $region24: #{localizer_alexnet_forward.11} parent=5 // pred_fallthru
      _
    %p169 = scmp.le.s32.totalorder 1, %s9
    %p170 = scmp.lt.s32.totalorder %s9, 3
    %p171 = pnand %p169, %p170
    %p172 = pneg %p171
    // Predicated region
    $region29: #{localizer_alexnet_forward.11} parent=5 // pred_check
      _
    $region30: #{localizer_alexnet_forward.11} parent=5 // pred_check_branch
      %174 = sbr.rel (%p171) target = $region32
    $region31: #{localizer_alexnet_forward.11} parent=5 // pred_region
      %s175 = ssub.s32 %s9, 1
      %s176 = smul.u32 30, %s18
      %p177 = scmp.lt.s32.totalorder %s176, 59
      %s178 = scalar_select %p177, %s176, 59
      %s179 = smul.addr %s178, 3
      %s180 = smul.addr %s179, 4
      %s181 = scalar_lea.vmem %s0, %s180
      %p182 = pneg %p47
      %p183 = pneg %p44
      %p184 = scmp.lt.s32.totalorder %s19, 0
      %s185 = scalar_select %p184, %s19, 0
      %s186 = smul.addr %s185, 4
      %s187 = scalar_lea.vmem %s1, %s186
      %p188 = pneg %p73
      %p189 = pneg %p70
      %p190 = scmp.lt.s32.totalorder %s19, 0
      %s191 = scalar_select %p190, %s19, 0
      %s192 = scalar_lea.vmem %s2, %s191
      %p193 = pneg %p99
      %p194 = pneg %p96
      %p195 = pneg %p127
      %p196 = pneg %p124
      %s197 = smul.u32 30, %s18
      %p198 = scmp.lt.s32.totalorder %s197, 59
      %s199 = scalar_select %p198, %s197, 59
      %p200 = scmp.lt.s32.totalorder %s19, 0
      %s201 = scalar_select %p200, %s19, 0
      %s202 = sadd.s32 %s201, %s199
      %s203 = smul.addr %s202, 4
      %s204 = scalar_lea.vmem %s3, %s203
      %s205 = smul.u32 30, %s18
      %p206 = scmp.lt.s32.totalorder %s205, 59
      %s207 = scalar_select %p206, %s205, 59
      %s208 = smul.addr %s207, 3
      %s209 = smul.addr %s208, 4
      %s210 = scalar_lea.vmem %s0, %s209
      %s211 = smul.u32 30, %s18
      %p212 = scmp.lt.s32.totalorder %s19, 0
      %s213 = scalar_select %p212, %s19, 0
      %s214 = smul.addr %s213, 4
      %s215 = scalar_lea.vmem %s1, %s214
      %p216 = scmp.lt.s32.totalorder %s19, 0
      %s217 = scalar_select %p216, %s19, 0
      %s218 = scalar_lea.vmem %s2, %s217
      %s219 = smul.u32 30, %s18
      %p220 = scmp.lt.s32.totalorder %s219, 59
      %s221 = scalar_select %p220, %s219, 59
      %p222 = scmp.lt.s32.totalorder %s19, 0
      %s223 = scalar_select %p222, %s19, 0
      %s224 = sadd.s32 %s223, %s221
      %s225 = smul.addr %s224, 4
      %s226 = scalar_lea.vmem %s3, %s225
      %s227 = smul.u32 30, %s18
      %v229 = vld [vmem:[%s210] sm:$0xff]
      %v230 = vld [vmem:[%s210 + $0x8] sm:$0xf]
      %v231 = vld [vmem:[%s210 + $0xc] sm:$0xff]
      %v232 = vld [vmem:[%s210 + $0x14] sm:$0xf]
      %v233 = vld [vmem:[%s210 + $0x18] sm:$0xff]
      %v234 = vld [vmem:[%s210 + $0x20] sm:$0xf]
      %v235 = vld [vmem:[%s210 + $0x24] sm:$0xff]
      %v236 = vld [vmem:[%s210 + $0x2c] sm:$0xf]
      %v237 = vld [vmem:[%s210 + $0x30] sm:$0xff]
      %v238 = vld [vmem:[%s210 + $0x38] sm:$0xf]
      %v239 = vld [vmem:[%s210 + $0x3c] sm:$0xff]
      %v240 = vld [vmem:[%s210 + $0x44] sm:$0xf]
      %v241 = vld [vmem:[%s210 + $0x48] sm:$0xff]
      %v242 = vld [vmem:[%s210 + $0x50] sm:$0xf]
      %v243 = vld [vmem:[%s210 + $0x54] sm:$0xff]
      %v244 = vld [vmem:[%s210 + $0x5c] sm:$0xf]
      %v245 = vld [vmem:[%s210 + $0x60] sm:$0xff]
      %v246 = vld [vmem:[%s210 + $0x68] sm:$0xf]
      %v247 = vld [vmem:[%s210 + $0x6c] sm:$0xff]
      %v248 = vld [vmem:[%s210 + $0x74] sm:$0xf]
      %v249 = vld [vmem:[%s210 + $0x78] sm:$0xff]
      %v250 = vld [vmem:[%s210 + $0x80] sm:$0xf]
      %v251 = vld [vmem:[%s210 + $0x84] sm:$0xff]
      %v252 = vld [vmem:[%s210 + $0x8c] sm:$0xf]
      %v253 = vld [vmem:[%s210 + $0x90] sm:$0xff]
      %v254 = vld [vmem:[%s210 + $0x98] sm:$0xf]
      %v255 = vld [vmem:[%s210 + $0x9c] sm:$0xff]
      %v256 = vld [vmem:[%s210 + $0xa4] sm:$0xf]
      %v257 = vld [vmem:[%s210 + $0xa8] sm:$0xff]
      %v258 = vld [vmem:[%s210 + $0xb0] sm:$0xf]
      %v259 = vld [vmem:[%s210 + $0xb4] sm:$0xff]
      %v260 = vld [vmem:[%s210 + $0xbc] sm:$0xf]
      %v261 = vld [vmem:[%s210 + $0xc0] sm:$0xff]
      %v262 = vld [vmem:[%s210 + $0xc8] sm:$0xf]
      %v263 = vld [vmem:[%s210 + $0xcc] sm:$0xff]
      %v264 = vld [vmem:[%s210 + $0xd4] sm:$0xf]
      %v265 = vld [vmem:[%s210 + $0xd8] sm:$0xff]
      %v266 = vld [vmem:[%s210 + $0xe0] sm:$0xf]
      %v267 = vld [vmem:[%s210 + $0xe4] sm:$0xff]
      %v268 = vld [vmem:[%s210 + $0xec] sm:$0xf]
      %v269 = vld [vmem:[%s210 + $0xf0] sm:$0xff]
      %v270 = vld [vmem:[%s210 + $0xf8] sm:$0xf]
      %v271 = vld [vmem:[%s210 + $0xfc] sm:$0xff]
      %v272 = vld [vmem:[%s210 + $0x104] sm:$0xf]
      %v273 = vld [vmem:[%s210 + $0x108] sm:$0xff]
      %v274 = vld [vmem:[%s210 + $0x110] sm:$0xf]
      %v275 = vld [vmem:[%s210 + $0x114] sm:$0xff]
      %v276 = vld [vmem:[%s210 + $0x11c] sm:$0xf]
      %v277 = vld [vmem:[%s210 + $0x120] sm:$0xff]
      %v278 = vld [vmem:[%s210 + $0x128] sm:$0xf]
      %v279 = vld [vmem:[%s210 + $0x12c] sm:$0xff]
      %v280 = vld [vmem:[%s210 + $0x134] sm:$0xf]
      %v281 = vld [vmem:[%s210 + $0x138] sm:$0xff]
      %v282 = vld [vmem:[%s210 + $0x140] sm:$0xf]
      %v283 = vld [vmem:[%s210 + $0x144] sm:$0xff]
      %v284 = vld [vmem:[%s210 + $0x14c] sm:$0xf]
      %v285 = vld [vmem:[%s210 + $0x150] sm:$0xff]
      %v286 = vld [vmem:[%s210 + $0x158] sm:$0xf]
      %v287 = vld [vmem:[%s210 + $0x15c] sm:$0xff]
      %v288 = vld [vmem:[%s210 + $0x164] sm:$0xf]
      %v289 = vld [vmem:[%s215] sm:$0xf]
      %v290 = vld [vmem:[%s215 + $0x4] sm:$0xf]
      %v291 = vld [vmem:[%s215 + $0x8] sm:$0xf]
      %v292 = vld [vmem:[%s215 + $0xc] sm:$0xf]
      %v293 = vld [vmem:[%s215 + $0x10] sm:$0xf]
      %v294 = vld [vmem:[%s215 + $0x14] sm:$0xf]
      %v295 = vld [vmem:[%s215 + $0x18] sm:$0xf]
      %v296 = vld [vmem:[%s215 + $0x1c] sm:$0xf]
      %v297 = vld [vmem:[%s215 + $0x20] sm:$0xf]
      %v298 = vld [vmem:[%s215 + $0x24] sm:$0xf]
      %v299 = vld [vmem:[%s215 + $0x28] sm:$0xf]
      %v300 = vld [vmem:[%s215 + $0x2c] sm:$0xf]
      %v301 = vld [vmem:[%s215 + $0x30] sm:$0xf]
      %v302 = vld [vmem:[%s215 + $0x34] sm:$0xf]
      %v303 = vld [vmem:[%s215 + $0x38] sm:$0xf]
      %v304 = vld [vmem:[%s215 + $0x3c] sm:$0xf]
      %v305 = vld [vmem:[%s215 + $0x40] sm:$0xf]
      %v306 = vld [vmem:[%s215 + $0x44] sm:$0xf]
      %v307 = vld [vmem:[%s215 + $0x48] sm:$0xf]
      %v308 = vld [vmem:[%s215 + $0x4c] sm:$0xf]
      %v309 = vld [vmem:[%s215 + $0x50] sm:$0xf]
      %v310 = vld [vmem:[%s215 + $0x54] sm:$0xf]
      %v311 = vld [vmem:[%s215 + $0x58] sm:$0xf]
      %v312 = vld [vmem:[%s215 + $0x5c] sm:$0xf]
      %v313 = vld [vmem:[%s215 + $0x60] sm:$0xf]
      %v314 = vld [vmem:[%s215 + $0x64] sm:$0xf]
      %v315 = vld [vmem:[%s215 + $0x68] sm:$0xf]
      %v316 = vld [vmem:[%s215 + $0x6c] sm:$0xf]
      %v317 = vld [vmem:[%s215 + $0x70] sm:$0xf]
      %v318 = vld [vmem:[%s215 + $0x74] sm:$0xf]
      %v319 = vld [vmem:[%s215 + $0x78] sm:$0xf]
      %v320 = vld [vmem:[%s215 + $0x7c] sm:$0xf]
      %v321 = vld [vmem:[%s215 + $0x80] sm:$0xf]
      %v322 = vld [vmem:[%s215 + $0x84] sm:$0xf]
      %v323 = vld [vmem:[%s215 + $0x88] sm:$0xf]
      %v324 = vld [vmem:[%s215 + $0x8c] sm:$0xf]
      %v325 = vld [vmem:[%s215 + $0x90] sm:$0xf]
      %v326 = vld [vmem:[%s215 + $0x94] sm:$0xf]
      %v327 = vld [vmem:[%s215 + $0x98] sm:$0xf]
      %v328 = vld [vmem:[%s215 + $0x9c] sm:$0xf]
      %v329 = vld [vmem:[%s215 + $0xa0] sm:$0xf]
      %v330 = vld [vmem:[%s215 + $0xa4] sm:$0xf]
      %v331 = vld [vmem:[%s215 + $0xa8] sm:$0xf]
      %v332 = vld [vmem:[%s215 + $0xac] sm:$0xf]
      %v333 = vld [vmem:[%s215 + $0xb0] sm:$0xf]
      %v334 = vld [vmem:[%s215 + $0xb4] sm:$0xf]
      %v335 = vld [vmem:[%s215 + $0xb8] sm:$0xf]
      %v336 = vld [vmem:[%s215 + $0xbc] sm:$0xf]
      %v337 = vld [vmem:[%s218] sm:$0x1]
      %v339 = vlaneseq
      %v340 = vshrl.u32 %v339, 7
      %v341 = vsub.s32 0, %v340
      %v342 = vrot.slane %v337, %v341
      %v404 = vunpack.c.l.b16 %v229
      %v405 = vunpack.c.h.b16 %v229
      %v406 = vunpack.c.l.b16 %v230
      %v407 = vunpack.c.l.b16 %v231
      %v408 = vunpack.c.h.b16 %v231
      %v409 = vunpack.c.l.b16 %v232
      %v410 = vunpack.c.l.b16 %v233
      %v411 = vunpack.c.h.b16 %v233
      %v412 = vunpack.c.l.b16 %v234
      %v413 = vunpack.c.l.b16 %v235
      %v414 = vunpack.c.h.b16 %v235
      %v415 = vunpack.c.l.b16 %v236
      %v416 = vunpack.c.l.b16 %v237
      %v417 = vunpack.c.h.b16 %v237
      %v418 = vunpack.c.l.b16 %v238
      %v419 = vunpack.c.l.b16 %v239
      %v420 = vunpack.c.h.b16 %v239
      %v421 = vunpack.c.l.b16 %v240
      %v422 = vunpack.c.l.b16 %v241
      %v423 = vunpack.c.h.b16 %v241
      %v424 = vunpack.c.l.b16 %v242
      %v425 = vunpack.c.l.b16 %v243
      %v426 = vunpack.c.h.b16 %v243
      %v427 = vunpack.c.l.b16 %v244
      %v428 = vunpack.c.l.b16 %v245
      %v429 = vunpack.c.h.b16 %v245
      %v430 = vunpack.c.l.b16 %v246
      %v431 = vunpack.c.l.b16 %v247
      %v432 = vunpack.c.h.b16 %v247
      %v433 = vunpack.c.l.b16 %v248
      %v434 = vunpack.c.l.b16 %v249
      %v435 = vunpack.c.h.b16 %v249
      %v436 = vunpack.c.l.b16 %v250
      %v437 = vunpack.c.l.b16 %v251
      %v438 = vunpack.c.h.b16 %v251
      %v439 = vunpack.c.l.b16 %v252
      %v440 = vunpack.c.l.b16 %v253
      %v441 = vunpack.c.h.b16 %v253
      %v442 = vunpack.c.l.b16 %v254
      %v443 = vunpack.c.l.b16 %v255
      %v444 = vunpack.c.h.b16 %v255
      %v445 = vunpack.c.l.b16 %v256
      %v446 = vunpack.c.l.b16 %v257
      %v447 = vunpack.c.h.b16 %v257
      %v448 = vunpack.c.l.b16 %v258
      %v449 = vunpack.c.l.b16 %v259
      %v450 = vunpack.c.h.b16 %v259
      %v451 = vunpack.c.l.b16 %v260
      %v452 = vunpack.c.l.b16 %v261
      %v453 = vunpack.c.h.b16 %v261
      %v454 = vunpack.c.l.b16 %v262
      %v455 = vunpack.c.l.b16 %v263
      %v456 = vunpack.c.h.b16 %v263
      %v457 = vunpack.c.l.b16 %v264
      %v458 = vunpack.c.l.b16 %v265
      %v459 = vunpack.c.h.b16 %v265
      %v460 = vunpack.c.l.b16 %v266
      %v461 = vunpack.c.l.b16 %v267
      %v462 = vunpack.c.h.b16 %v267
      %v463 = vunpack.c.l.b16 %v268
      %v464 = vunpack.c.l.b16 %v269
      %v465 = vunpack.c.h.b16 %v269
      %v466 = vunpack.c.l.b16 %v270
      %v467 = vunpack.c.l.b16 %v271
      %v468 = vunpack.c.h.b16 %v271
      %v469 = vunpack.c.l.b16 %v272
      %v470 = vunpack.c.l.b16 %v273
      %v471 = vunpack.c.h.b16 %v273
      %v472 = vunpack.c.l.b16 %v274
      %v473 = vunpack.c.l.b16 %v275
      %v474 = vunpack.c.h.b16 %v275
      %v475 = vunpack.c.l.b16 %v276
      %v476 = vunpack.c.l.b16 %v277
      %v477 = vunpack.c.h.b16 %v277
      %v478 = vunpack.c.l.b16 %v278
      %v479 = vunpack.c.l.b16 %v279
      %v480 = vunpack.c.h.b16 %v279
      %v481 = vunpack.c.l.b16 %v280
      %v482 = vunpack.c.l.b16 %v281
      %v483 = vunpack.c.h.b16 %v281
      %v484 = vunpack.c.l.b16 %v282
      %v485 = vunpack.c.l.b16 %v283
      %v486 = vunpack.c.h.b16 %v283
      %v487 = vunpack.c.l.b16 %v284
      %v488 = vunpack.c.l.b16 %v285
      %v489 = vunpack.c.h.b16 %v285
      %v490 = vunpack.c.l.b16 %v286
      %v491 = vunpack.c.l.b16 %v287
      %v492 = vunpack.c.h.b16 %v287
      %v493 = vunpack.c.l.b16 %v288
      %v494 = vpack.c.b16 %v407, %v404
      %v495 = vpack.c.b16 %v408, %v405
      %v496 = vpack.c.b16 %v409, %v406
      %v497 = vpack.c.b16 %v413, %v410
      %v498 = vpack.c.b16 %v414, %v411
      %v499 = vpack.c.b16 %v415, %v412
      %v500 = vpack.c.b16 %v419, %v416
      %v501 = vpack.c.b16 %v420, %v417
      %v502 = vpack.c.b16 %v421, %v418
      %v503 = vpack.c.b16 %v425, %v422
      %v504 = vpack.c.b16 %v426, %v423
      %v505 = vpack.c.b16 %v427, %v424
      %v506 = vpack.c.b16 %v431, %v428
      %v507 = vpack.c.b16 %v432, %v429
      %v508 = vpack.c.b16 %v433, %v430
      %v509 = vpack.c.b16 %v437, %v434
      %v510 = vpack.c.b16 %v438, %v435
      %v511 = vpack.c.b16 %v439, %v436
      %v512 = vpack.c.b16 %v443, %v440
      %v513 = vpack.c.b16 %v444, %v441
      %v514 = vpack.c.b16 %v445, %v442
      %v515 = vpack.c.b16 %v449, %v446
      %v516 = vpack.c.b16 %v450, %v447
      %v517 = vpack.c.b16 %v451, %v448
      %v518 = vpack.c.b16 %v455, %v452
      %v519 = vpack.c.b16 %v456, %v453
      %v520 = vpack.c.b16 %v457, %v454
      %v521 = vpack.c.b16 %v461, %v458
      %v522 = vpack.c.b16 %v462, %v459
      %v523 = vpack.c.b16 %v463, %v460
      %v524 = vpack.c.b16 %v467, %v464
      %v525 = vpack.c.b16 %v468, %v465
      %v526 = vpack.c.b16 %v469, %v466
      %v527 = vpack.c.b16 %v473, %v470
      %v528 = vpack.c.b16 %v474, %v471
      %v529 = vpack.c.b16 %v475, %v472
      %v530 = vpack.c.b16 %v479, %v476
      %v531 = vpack.c.b16 %v480, %v477
      %v532 = vpack.c.b16 %v481, %v478
      %v533 = vpack.c.b16 %v485, %v482
      %v534 = vpack.c.b16 %v486, %v483
      %v535 = vpack.c.b16 %v487, %v484
      %v536 = vpack.c.b16 %v491, %v488
      %v537 = vpack.c.b16 %v492, %v489
      %v538 = vpack.c.b16 %v493, %v490
      %v632 = vunpack.c.l.b16 %v289
      %v633 = vunpack.c.l.b16 %v290
      %v634 = vunpack.c.l.b16 %v291
      %v635 = vunpack.c.l.b16 %v292
      %v636 = vunpack.c.l.b16 %v293
      %v637 = vunpack.c.l.b16 %v294
      %v638 = vunpack.c.l.b16 %v295
      %v639 = vunpack.c.l.b16 %v296
      %v640 = vunpack.c.l.b16 %v297
      %v641 = vunpack.c.l.b16 %v298
      %v642 = vunpack.c.l.b16 %v299
      %v643 = vunpack.c.l.b16 %v300
      %v644 = vunpack.c.l.b16 %v301
      %v645 = vunpack.c.l.b16 %v302
      %v646 = vunpack.c.l.b16 %v303
      %v647 = vunpack.c.l.b16 %v304
      %v648 = vunpack.c.l.b16 %v305
      %v649 = vunpack.c.l.b16 %v306
      %v650 = vunpack.c.l.b16 %v307
      %v651 = vunpack.c.l.b16 %v308
      %v652 = vunpack.c.l.b16 %v309
      %v653 = vunpack.c.l.b16 %v310
      %v654 = vunpack.c.l.b16 %v311
      %v655 = vunpack.c.l.b16 %v312
      %v656 = vunpack.c.l.b16 %v313
      %v657 = vunpack.c.l.b16 %v314
      %v658 = vunpack.c.l.b16 %v315
      %v659 = vunpack.c.l.b16 %v316
      %v660 = vunpack.c.l.b16 %v317
      %v661 = vunpack.c.l.b16 %v318
      %v662 = vunpack.c.l.b16 %v319
      %v663 = vunpack.c.l.b16 %v320
      %v664 = vunpack.c.l.b16 %v321
      %v665 = vunpack.c.l.b16 %v322
      %v666 = vunpack.c.l.b16 %v323
      %v667 = vunpack.c.l.b16 %v324
      %v668 = vunpack.c.l.b16 %v325
      %v669 = vunpack.c.l.b16 %v326
      %v670 = vunpack.c.l.b16 %v327
      %v671 = vunpack.c.l.b16 %v328
      %v672 = vunpack.c.l.b16 %v329
      %v673 = vunpack.c.l.b16 %v330
      %v674 = vunpack.c.l.b16 %v331
      %v675 = vunpack.c.l.b16 %v332
      %v676 = vunpack.c.l.b16 %v333
      %v677 = vunpack.c.l.b16 %v334
      %v678 = vunpack.c.l.b16 %v335
      %v679 = vunpack.c.l.b16 %v336
      %v680 = vpack.c.b16 %v633, %v632
      %v681 = vpack.c.b16 %v635, %v634
      %v682 = vpack.c.b16 %v637, %v636
      %v683 = vpack.c.b16 %v639, %v638
      %v684 = vpack.c.b16 %v641, %v640
      %v685 = vpack.c.b16 %v643, %v642
      %v686 = vpack.c.b16 %v645, %v644
      %v687 = vpack.c.b16 %v647, %v646
      %v688 = vpack.c.b16 %v649, %v648
      %v689 = vpack.c.b16 %v651, %v650
      %v690 = vpack.c.b16 %v653, %v652
      %v691 = vpack.c.b16 %v655, %v654
      %v692 = vpack.c.b16 %v657, %v656
      %v693 = vpack.c.b16 %v659, %v658
      %v694 = vpack.c.b16 %v661, %v660
      %v695 = vpack.c.b16 %v663, %v662
      %v696 = vpack.c.b16 %v665, %v664
      %v697 = vpack.c.b16 %v667, %v666
      %v698 = vpack.c.b16 %v669, %v668
      %v699 = vpack.c.b16 %v671, %v670
      %v700 = vpack.c.b16 %v673, %v672
      %v701 = vpack.c.b16 %v675, %v674
      %v702 = vpack.c.b16 %v677, %v676
      %v703 = vpack.c.b16 %v679, %v678
      %728 = vmatprep.subr.bf16.mxu0 0
      %729 = vmatpush1.bf16.msra.mxu0 %v680
      %730 = vmatprep.subr.bf16.mxu0 0
      %731 = vmatpush1.bf16.msra.mxu0 %v681
      %732 = vmatprep.subr.bf16.mxu0 0
      %733 = vmatpush1.bf16.msra.mxu0 %v682
      %734 = vmatprep.subr.bf16.mxu0 0
      %735 = vmatpush1.bf16.msra.mxu0 %v683
      %736 = vmatprep.subr.bf16.mxu0 0
      %737 = vmatpush1.bf16.msra.mxu0 %v684
      %738 = vmatprep.subr.bf16.mxu0 0
      %739 = vmatpush1.bf16.msra.mxu0 %v685
      %740 = vmatprep.subr.bf16.mxu0 0
      %741 = vmatpush1.bf16.msra.mxu0 %v686
      %742 = vmatprep.subr.bf16.mxu0 0
      %743 = vmatpush1.bf16.msra.mxu0 %v687
      %744 = vmatprep.subr.bf16.mxu0 0
      %745 = vmatpush1.bf16.msra.mxu0 %v688
      %746 = vmatprep.subr.bf16.mxu0 0
      %747 = vmatpush1.bf16.msra.mxu0 %v689
      %748 = vmatprep.subr.bf16.mxu0 0
      %749 = vmatpush1.bf16.msra.mxu0 %v690
      %750 = vmatprep.subr.bf16.mxu0 0
      %751 = vmatpush1.bf16.msra.mxu0 %v691
      %752 = vmatprep.subr.bf16.mxu0 0
      %753 = vmatpush1.bf16.msra.mxu0 %v692
      %754 = vmatprep.subr.bf16.mxu0 0
      %755 = vmatpush1.bf16.msra.mxu0 %v693
      %756 = vmatprep.subr.bf16.mxu0 0
      %757 = vmatpush1.bf16.msra.mxu0 %v694
      %758 = vmatprep.subr.bf16.mxu0 0
      %759 = vmatpush1.bf16.msra.mxu0 %v695
      %760 = vmatprep.mubr.bf16.mxu0 %v495
      %761 = vmatmul.mubr.bf16.gmra.mrb[0].mxu0 %v494
      %v762 = vpop.f32.mrb[0].mxu0
      %v763 = vadd.f32 %v342, %v762
      %v764 = vpop.f32.mrb[0].mxu0
      %v765 = vpop.f32.mrb[0].mxu0
      %v766 = vadd.f32 %v342, %v765
      %v767 = vpop.f32.mrb[0].mxu0
      %768 = vmatprep.mubr.bf16.mxu0 %v498
      %769 = vmatmul.mubr.bf16.gmra.mrb[0].mxu0 %v497
      %v770 = vpop.f32.mrb[0].mxu0
      %v771 = vadd.f32 %v342, %v770
      %v772 = vpop.f32.mrb[0].mxu0
      %v773 = vpop.f32.mrb[0].mxu0
      %v774 = vadd.f32 %v342, %v773
      %v775 = vpop.f32.mrb[0].mxu0
      %776 = vmatprep.mubr.bf16.mxu0 %v501
      %777 = vmatmul.mubr.bf16.gmra.mrb[0].mxu0 %v500
      %v778 = vpop.f32.mrb[0].mxu0
      %v779 = vadd.f32 %v342, %v778
      %v780 = vpop.f32.mrb[0].mxu0
      %v781 = vpop.f32.mrb[0].mxu0
      %v782 = vadd.f32 %v342, %v781
      %v783 = vpop.f32.mrb[0].mxu0
      %784 = vmatprep.mubr.bf16.mxu0 %v504
      %785 = vmatmul.mubr.bf16.gmra.mrb[0].mxu0 %v503
      %v786 = vpop.f32.mrb[0].mxu0
      %v787 = vadd.f32 %v342, %v786
      %v788 = vpop.f32.mrb[0].mxu0
      %v789 = vpop.f32.mrb[0].mxu0
      %v790 = vadd.f32 %v342, %v789
      %v791 = vpop.f32.mrb[0].mxu0
      %792 = vmatprep.mubr.bf16.mxu0 %v507
      %793 = vmatmul.mubr.bf16.gmra.mrb[0].mxu0 %v506
      %v794 = vpop.f32.mrb[0].mxu0
      %v795 = vadd.f32 %v342, %v794
      %v796 = vpop.f32.mrb[0].mxu0
      %v797 = vpop.f32.mrb[0].mxu0
      %v798 = vadd.f32 %v342, %v797
      %v799 = vpop.f32.mrb[0].mxu0
      %800 = vmatprep.mubr.bf16.mxu0 %v510
      %801 = vmatmul.mubr.bf16.gmra.mrb[0].mxu0 %v509
      %v802 = vpop.f32.mrb[0].mxu0
      %v803 = vadd.f32 %v342, %v802
      %v804 = vpop.f32.mrb[0].mxu0
      %v805 = vpop.f32.mrb[0].mxu0
      %v806 = vadd.f32 %v342, %v805
      %v807 = vpop.f32.mrb[0].mxu0
      %808 = vmatprep.mubr.bf16.mxu0 %v513
      %809 = vmatmul.mubr.bf16.gmra.mrb[0].mxu0 %v512
      %v810 = vpop.f32.mrb[0].mxu0
      %v811 = vadd.f32 %v342, %v810
      %v812 = vpop.f32.mrb[0].mxu0
      %v813 = vpop.f32.mrb[0].mxu0
      %v814 = vadd.f32 %v342, %v813
      %v815 = vpop.f32.mrb[0].mxu0
      %816 = vmatprep.mubr.bf16.mxu0 %v516
      %817 = vmatmul.mubr.bf16.gmra.mrb[0].mxu0 %v515
      %v818 = vpop.f32.mrb[0].mxu0
      %v819 = vadd.f32 %v342, %v818
      %v820 = vpop.f32.mrb[0].mxu0
      %v821 = vpop.f32.mrb[0].mxu0
      %v822 = vadd.f32 %v342, %v821
      %v823 = vpop.f32.mrb[0].mxu0
      %824 = vmatprep.mubr.bf16.mxu0 %v519
      %825 = vmatmul.mubr.bf16.gmra.mrb[0].mxu0 %v518
      %v826 = vpop.f32.mrb[0].mxu0
      %v827 = vadd.f32 %v342, %v826
      %v828 = vpop.f32.mrb[0].mxu0
      %v829 = vpop.f32.mrb[0].mxu0
      %v830 = vadd.f32 %v342, %v829
      %v831 = vpop.f32.mrb[0].mxu0
      %832 = vmatprep.mubr.bf16.mxu0 %v522
      %833 = vmatmul.mubr.bf16.gmra.mrb[0].mxu0 %v521
      %v834 = vpop.f32.mrb[0].mxu0
      %v835 = vadd.f32 %v342, %v834
      %v836 = vpop.f32.mrb[0].mxu0
      %v837 = vpop.f32.mrb[0].mxu0
      %v838 = vadd.f32 %v342, %v837
      %v839 = vpop.f32.mrb[0].mxu0
      %840 = vmatprep.mubr.bf16.mxu0 %v525
      %841 = vmatmul.mubr.bf16.gmra.mrb[0].mxu0 %v524
      %v842 = vpop.f32.mrb[0].mxu0
      %v843 = vadd.f32 %v342, %v842
      %v844 = vpop.f32.mrb[0].mxu0
      %v845 = vpop.f32.mrb[0].mxu0
      %v846 = vadd.f32 %v342, %v845
      %v847 = vpop.f32.mrb[0].mxu0
      %848 = vmatprep.mubr.bf16.mxu0 %v528
      %849 = vmatmul.mubr.bf16.gmra.mrb[0].mxu0 %v527
      %v850 = vpop.f32.mrb[0].mxu0
      %v851 = vadd.f32 %v342, %v850
      %v852 = vpop.f32.mrb[0].mxu0
      %v853 = vpop.f32.mrb[0].mxu0
      %v854 = vadd.f32 %v342, %v853
      %v855 = vpop.f32.mrb[0].mxu0
      %856 = vmatprep.mubr.bf16.mxu0 %v531
      %857 = vmatmul.mubr.bf16.gmra.mrb[0].mxu0 %v530
      %v858 = vpop.f32.mrb[0].mxu0
      %v859 = vadd.f32 %v342, %v858
      %v860 = vpop.f32.mrb[0].mxu0
      %v861 = vpop.f32.mrb[0].mxu0
      %v862 = vadd.f32 %v342, %v861
      %v863 = vpop.f32.mrb[0].mxu0
      %864 = vmatprep.mubr.bf16.mxu0 %v534
      %865 = vmatmul.mubr.bf16.gmra.mrb[0].mxu0 %v533
      %v866 = vpop.f32.mrb[0].mxu0
      %v867 = vadd.f32 %v342, %v866
      %v868 = vpop.f32.mrb[0].mxu0
      %v869 = vpop.f32.mrb[0].mxu0
      %v870 = vadd.f32 %v342, %v869
      %v871 = vpop.f32.mrb[0].mxu0
      %872 = vmatprep.mubr.bf16.mxu0 %v537
      %873 = vmatmul.mubr.bf16.gmra.mrb[0].mxu0 %v536
      %v874 = vpop.f32.mrb[0].mxu0
      %v875 = vadd.f32 %v342, %v874
      %v876 = vpop.f32.mrb[0].mxu0
      %v877 = vpop.f32.mrb[0].mxu0
      %v878 = vadd.f32 %v342, %v877
      %v879 = vpop.f32.mrb[0].mxu0
      %880 = vdwg.mxu0
      %881 = vmatprep.subr.bf16.mxu0 0
      %882 = vmatpush1.bf16.msra.mxu0 %v696
      %883 = vmatprep.subr.bf16.mxu0 0
      %884 = vmatpush1.bf16.msra.mxu0 %v697
      %885 = vmatprep.subr.bf16.mxu0 0
      %886 = vmatpush1.bf16.msra.mxu0 %v698
      %887 = vmatprep.subr.bf16.mxu0 0
      %888 = vmatpush1.bf16.msra.mxu0 %v699
      %889 = vmatprep.subr.bf16.mxu0 0
      %890 = vmatpush1.bf16.msra.mxu0 %v700
      %891 = vmatprep.subr.bf16.mxu0 0
      %892 = vmatpush1.bf16.msra.mxu0 %v701
      %893 = vmatprep.subr.bf16.mxu0 0
      %894 = vmatpush1.bf16.msra.mxu0 %v702
      %895 = vmatprep.subr.bf16.mxu0 0
      %896 = vmatpush1.bf16.msra.mxu0 %v703
      %897 = vmatprep.subr.bf16.mxu0 0
      %898 = vmatpush1.bf16.msra.mxu0 0
      %899 = vmatprep.subr.bf16.mxu0 0
      %900 = vmatpush1.bf16.msra.mxu0 0
      %901 = vmatprep.subr.bf16.mxu0 0
      %902 = vmatpush1.bf16.msra.mxu0 0
      %903 = vmatprep.subr.bf16.mxu0 0
      %904 = vmatpush1.bf16.msra.mxu0 0
      %905 = vmatprep.subr.bf16.mxu0 0
      %906 = vmatpush1.bf16.msra.mxu0 0
      %907 = vmatprep.subr.bf16.mxu0 0
      %908 = vmatpush1.bf16.msra.mxu0 0
      %909 = vmatprep.subr.bf16.mxu0 0
      %910 = vmatpush1.bf16.msra.mxu0 0
      %911 = vmatprep.subr.bf16.mxu0 0
      %912 = vmatpush1.bf16.msra.mxu0 0
      %913 = vmatprep.mubr.bf16.mxu0 0
      %914 = vmatmul.mubr.bf16.gmra.mrb[0].mxu0 %v496
      %v915 = vpop.f32.mrb[0].mxu0
      %v916 = vadd.f32 %v763, %v915
      %v917 = vpop.f32.mrb[0].mxu0
      %v918 = vpop.f32.mrb[0].mxu0
      %v919 = vadd.f32 %v766, %v918
      %v920 = vpop.f32.mrb[0].mxu0
      %921 = vmatprep.mubr.bf16.mxu0 0
      %922 = vmatmul.mubr.bf16.gmra.mrb[0].mxu0 %v499
      %v923 = vpop.f32.mrb[0].mxu0
      %v924 = vadd.f32 %v771, %v923
      %v925 = vpop.f32.mrb[0].mxu0
      %v926 = vpop.f32.mrb[0].mxu0
      %v927 = vadd.f32 %v774, %v926
      %v928 = vpop.f32.mrb[0].mxu0
      %929 = vmatprep.mubr.bf16.mxu0 0
      %930 = vmatmul.mubr.bf16.gmra.mrb[0].mxu0 %v502
      %v931 = vpop.f32.mrb[0].mxu0
      %v932 = vadd.f32 %v779, %v931
      %v933 = vpop.f32.mrb[0].mxu0
      %v934 = vpop.f32.mrb[0].mxu0
      %v935 = vadd.f32 %v782, %v934
      %v936 = vpop.f32.mrb[0].mxu0
      %937 = vmatprep.mubr.bf16.mxu0 0
      %938 = vmatmul.mubr.bf16.gmra.mrb[0].mxu0 %v505
      %v939 = vpop.f32.mrb[0].mxu0
      %v940 = vadd.f32 %v787, %v939
      %v941 = vpop.f32.mrb[0].mxu0
      %v942 = vpop.f32.mrb[0].mxu0
      %v943 = vadd.f32 %v790, %v942
      %v944 = vpop.f32.mrb[0].mxu0
      %945 = vmatprep.mubr.bf16.mxu0 0
      %946 = vmatmul.mubr.bf16.gmra.mrb[0].mxu0 %v508
      %v947 = vpop.f32.mrb[0].mxu0
      %v948 = vadd.f32 %v795, %v947
      %v949 = vpop.f32.mrb[0].mxu0
      %v950 = vpop.f32.mrb[0].mxu0
      %v951 = vadd.f32 %v798, %v950
      %v952 = vpop.f32.mrb[0].mxu0
      %953 = vmatprep.mubr.bf16.mxu0 0
      %954 = vmatmul.mubr.bf16.gmra.mrb[0].mxu0 %v511
      %v955 = vpop.f32.mrb[0].mxu0
      %v956 = vadd.f32 %v803, %v955
      %v957 = vpop.f32.mrb[0].mxu0
      %v958 = vpop.f32.mrb[0].mxu0
      %v959 = vadd.f32 %v806, %v958
      %v960 = vpop.f32.mrb[0].mxu0
      %961 = vmatprep.mubr.bf16.mxu0 0
      %962 = vmatmul.mubr.bf16.gmra.mrb[0].mxu0 %v514
      %v963 = vpop.f32.mrb[0].mxu0
      %v964 = vadd.f32 %v811, %v963
      %v965 = vpop.f32.mrb[0].mxu0
      %v966 = vpop.f32.mrb[0].mxu0
      %v967 = vadd.f32 %v814, %v966
      %v968 = vpop.f32.mrb[0].mxu0
      %969 = vmatprep.mubr.bf16.mxu0 0
      %970 = vmatmul.mubr.bf16.gmra.mrb[0].mxu0 %v517
      %v971 = vpop.f32.mrb[0].mxu0
      %v972 = vadd.f32 %v819, %v971
      %v973 = vpop.f32.mrb[0].mxu0
      %v974 = vpop.f32.mrb[0].mxu0
      %v975 = vadd.f32 %v822, %v974
      %v976 = vpop.f32.mrb[0].mxu0
      %977 = vmatprep.mubr.bf16.mxu0 0
      %978 = vmatmul.mubr.bf16.gmra.mrb[0].mxu0 %v520
      %v979 = vpop.f32.mrb[0].mxu0
      %v980 = vadd.f32 %v827, %v979
      %v981 = vpop.f32.mrb[0].mxu0
      %v982 = vpop.f32.mrb[0].mxu0
      %v983 = vadd.f32 %v830, %v982
      %v984 = vpop.f32.mrb[0].mxu0
      %985 = vmatprep.mubr.bf16.mxu0 0
      %986 = vmatmul.mubr.bf16.gmra.mrb[0].mxu0 %v523
      %v987 = vpop.f32.mrb[0].mxu0
      %v988 = vadd.f32 %v835, %v987
      %v989 = vpop.f32.mrb[0].mxu0
      %v990 = vpop.f32.mrb[0].mxu0
      %v991 = vadd.f32 %v838, %v990
      %v992 = vpop.f32.mrb[0].mxu0
      %993 = vmatprep.mubr.bf16.mxu0 0
      %994 = vmatmul.mubr.bf16.gmra.mrb[0].mxu0 %v526
      %v995 = vpop.f32.mrb[0].mxu0
      %v996 = vadd.f32 %v843, %v995
      %v997 = vpop.f32.mrb[0].mxu0
      %v998 = vpop.f32.mrb[0].mxu0
      %v999 = vadd.f32 %v846, %v998
      %v1000 = vpop.f32.mrb[0].mxu0
      %1001 = vmatprep.mubr.bf16.mxu0 0
      %1002 = vmatmul.mubr.bf16.gmra.mrb[0].mxu0 %v529
      %v1003 = vpop.f32.mrb[0].mxu0
      %v1004 = vadd.f32 %v851, %v1003
      %v1005 = vpop.f32.mrb[0].mxu0
      %v1006 = vpop.f32.mrb[0].mxu0
      %v1007 = vadd.f32 %v854, %v1006
      %v1008 = vpop.f32.mrb[0].mxu0
      %1009 = vmatprep.mubr.bf16.mxu0 0
      %1010 = vmatmul.mubr.bf16.gmra.mrb[0].mxu0 %v532
      %v1011 = vpop.f32.mrb[0].mxu0
      %v1012 = vadd.f32 %v859, %v1011
      %v1013 = vpop.f32.mrb[0].mxu0
      %v1014 = vpop.f32.mrb[0].mxu0
      %v1015 = vadd.f32 %v862, %v1014
      %v1016 = vpop.f32.mrb[0].mxu0
      %1017 = vmatprep.mubr.bf16.mxu0 0
      %1018 = vmatmul.mubr.bf16.gmra.mrb[0].mxu0 %v535
      %v1019 = vpop.f32.mrb[0].mxu0
      %v1020 = vadd.f32 %v867, %v1019
      %v1021 = vpop.f32.mrb[0].mxu0
      %v1022 = vpop.f32.mrb[0].mxu0
      %v1023 = vadd.f32 %v870, %v1022
      %v1024 = vpop.f32.mrb[0].mxu0
      %1025 = vmatprep.mubr.bf16.mxu0 0
      %1026 = vmatmul.mubr.bf16.gmra.mrb[0].mxu0 %v538
      %v1027 = vpop.f32.mrb[0].mxu0
      %v1028 = vadd.f32 %v875, %v1027
      %v1029 = vpop.f32.mrb[0].mxu0
      %v1030 = vpop.f32.mrb[0].mxu0
      %v1031 = vadd.f32 %v878, %v1030
      %v1032 = vpop.f32.mrb[0].mxu0
      %1033 = vdwg.mxu0
      %v1034 = vmax.f32 %v916, 0.0
      %v1035 = vmax.f32 %v919, 0.0
      %v1036 = vmax.f32 %v924, 0.0
      %v1037 = vmax.f32 %v927, 0.0
      %v1038 = vmax.f32 %v932, 0.0
      %v1039 = vmax.f32 %v935, 0.0
      %v1040 = vmax.f32 %v940, 0.0
      %v1041 = vmax.f32 %v943, 0.0
      %v1042 = vmax.f32 %v948, 0.0
      %v1043 = vmax.f32 %v951, 0.0
      %v1044 = vmax.f32 %v956, 0.0
      %v1045 = vmax.f32 %v959, 0.0
      %v1046 = vmax.f32 %v964, 0.0
      %v1047 = vmax.f32 %v967, 0.0
      %v1048 = vmax.f32 %v972, 0.0
      %v1049 = vmax.f32 %v975, 0.0
      %v1050 = vmax.f32 %v980, 0.0
      %v1051 = vmax.f32 %v983, 0.0
      %v1052 = vmax.f32 %v988, 0.0
      %v1053 = vmax.f32 %v991, 0.0
      %v1054 = vmax.f32 %v996, 0.0
      %v1055 = vmax.f32 %v999, 0.0
      %v1056 = vmax.f32 %v1004, 0.0
      %v1057 = vmax.f32 %v1007, 0.0
      %v1058 = vmax.f32 %v1012, 0.0
      %v1059 = vmax.f32 %v1015, 0.0
      %v1060 = vmax.f32 %v1020, 0.0
      %v1061 = vmax.f32 %v1023, 0.0
      %v1062 = vmax.f32 %v1028, 0.0
      %v1063 = vmax.f32 %v1031, 0.0
      %v1064 = vpack.c.bf16 %v1035, %v1034
      %v1065 = vpack.c.bf16 %v1037, %v1036
      %v1066 = vpack.c.bf16 %v1039, %v1038
      %v1067 = vpack.c.bf16 %v1041, %v1040
      %v1068 = vpack.c.bf16 %v1043, %v1042
      %v1069 = vpack.c.bf16 %v1045, %v1044
      %v1070 = vpack.c.bf16 %v1047, %v1046
      %v1071 = vpack.c.bf16 %v1049, %v1048
      %v1072 = vpack.c.bf16 %v1051, %v1050
      %v1073 = vpack.c.bf16 %v1053, %v1052
      %v1074 = vpack.c.bf16 %v1055, %v1054
      %v1075 = vpack.c.bf16 %v1057, %v1056
      %v1076 = vpack.c.bf16 %v1059, %v1058
      %v1077 = vpack.c.bf16 %v1061, %v1060
      %v1078 = vpack.c.bf16 %v1063, %v1062
      %v1094 = vunpack.c.l.b16 %v1064
      %v1095 = vunpack.c.h.b16 %v1064
      %v1096 = vunpack.c.l.b16 %v1065
      %v1097 = vunpack.c.h.b16 %v1065
      %v1098 = vunpack.c.l.b16 %v1066
      %v1099 = vunpack.c.h.b16 %v1066
      %v1100 = vunpack.c.l.b16 %v1067
      %v1101 = vunpack.c.h.b16 %v1067
      %v1102 = vunpack.c.l.b16 %v1068
      %v1103 = vunpack.c.h.b16 %v1068
      %v1104 = vunpack.c.l.b16 %v1069
      %v1105 = vunpack.c.h.b16 %v1069
      %v1106 = vunpack.c.l.b16 %v1070
      %v1107 = vunpack.c.h.b16 %v1070
      %v1108 = vunpack.c.l.b16 %v1071
      %v1109 = vunpack.c.h.b16 %v1071
      %v1110 = vunpack.c.l.b16 %v1072
      %v1111 = vunpack.c.h.b16 %v1072
      %v1112 = vunpack.c.l.b16 %v1073
      %v1113 = vunpack.c.h.b16 %v1073
      %v1114 = vunpack.c.l.b16 %v1074
      %v1115 = vunpack.c.h.b16 %v1074
      %v1116 = vunpack.c.l.b16 %v1075
      %v1117 = vunpack.c.h.b16 %v1075
      %v1118 = vunpack.c.l.b16 %v1076
      %v1119 = vunpack.c.h.b16 %v1076
      %v1120 = vunpack.c.l.b16 %v1077
      %v1121 = vunpack.c.h.b16 %v1077
      %v1122 = vunpack.c.l.b16 %v1078
      %v1123 = vunpack.c.h.b16 %v1078
      %v1124 = vpack.c.b16 %v1094, %v1094
      %v1125 = vpack.c.b16 %v1095, %v1095
      %v1126 = vpack.c.b16 %v1096, %v1096
      %v1127 = vpack.c.b16 %v1097, %v1097
      %v1128 = vpack.c.b16 %v1098, %v1098
      %v1129 = vpack.c.b16 %v1099, %v1099
      %v1130 = vpack.c.b16 %v1100, %v1100
      %v1131 = vpack.c.b16 %v1101, %v1101
      %v1132 = vpack.c.b16 %v1102, %v1102
      %v1133 = vpack.c.b16 %v1103, %v1103
      %v1134 = vpack.c.b16 %v1104, %v1104
      %v1135 = vpack.c.b16 %v1105, %v1105
      %v1136 = vpack.c.b16 %v1106, %v1106
      %v1137 = vpack.c.b16 %v1107, %v1107
      %v1138 = vpack.c.b16 %v1108, %v1108
      %v1139 = vpack.c.b16 %v1109, %v1109
      %v1140 = vpack.c.b16 %v1110, %v1110
      %v1141 = vpack.c.b16 %v1111, %v1111
      %v1142 = vpack.c.b16 %v1112, %v1112
      %v1143 = vpack.c.b16 %v1113, %v1113
      %v1144 = vpack.c.b16 %v1114, %v1114
      %v1145 = vpack.c.b16 %v1115, %v1115
      %v1146 = vpack.c.b16 %v1116, %v1116
      %v1147 = vpack.c.b16 %v1117, %v1117
      %v1148 = vpack.c.b16 %v1118, %v1118
      %v1149 = vpack.c.b16 %v1119, %v1119
      %v1150 = vpack.c.b16 %v1120, %v1120
      %v1151 = vpack.c.b16 %v1121, %v1121
      %v1152 = vpack.c.b16 %v1122, %v1122
      %v1153 = vpack.c.b16 %v1123, %v1123
      %1184 = vst [vmem:[%s226] sm:$0xf] %v1124
      %1185 = vst [vmem:[%s226 + $0x4] sm:$0xf] %v1125
      %1186 = vst [vmem:[%s226 + $0x8] sm:$0xf] %v1126
      %1187 = vst [vmem:[%s226 + $0xc] sm:$0xf] %v1127
      %1188 = vst [vmem:[%s226 + $0x10] sm:$0xf] %v1128
      %1189 = vst [vmem:[%s226 + $0x14] sm:$0xf] %v1129
      %1190 = vst [vmem:[%s226 + $0x18] sm:$0xf] %v1130
      %1191 = vst [vmem:[%s226 + $0x1c] sm:$0xf] %v1131
      %1192 = vst [vmem:[%s226 + $0x20] sm:$0xf] %v1132
      %1193 = vst [vmem:[%s226 + $0x24] sm:$0xf] %v1133
      %1194 = vst [vmem:[%s226 + $0x28] sm:$0xf] %v1134
      %1195 = vst [vmem:[%s226 + $0x2c] sm:$0xf] %v1135
      %1196 = vst [vmem:[%s226 + $0x30] sm:$0xf] %v1136
      %1197 = vst [vmem:[%s226 + $0x34] sm:$0xf] %v1137
      %1198 = vst [vmem:[%s226 + $0x38] sm:$0xf] %v1138
      %1199 = vst [vmem:[%s226 + $0x3c] sm:$0xf] %v1139
      %1200 = vst [vmem:[%s226 + $0x40] sm:$0xf] %v1140
      %1201 = vst [vmem:[%s226 + $0x44] sm:$0xf] %v1141
      %1202 = vst [vmem:[%s226 + $0x48] sm:$0xf] %v1142
      %1203 = vst [vmem:[%s226 + $0x4c] sm:$0xf] %v1143
      %1204 = vst [vmem:[%s226 + $0x50] sm:$0xf] %v1144
      %1205 = vst [vmem:[%s226 + $0x54] sm:$0xf] %v1145
      %1206 = vst [vmem:[%s226 + $0x58] sm:$0xf] %v1146
      %1207 = vst [vmem:[%s226 + $0x5c] sm:$0xf] %v1147
      %1208 = vst [vmem:[%s226 + $0x60] sm:$0xf] %v1148
      %1209 = vst [vmem:[%s226 + $0x64] sm:$0xf] %v1149
      %1210 = vst [vmem:[%s226 + $0x68] sm:$0xf] %v1150
      %1211 = vst [vmem:[%s226 + $0x6c] sm:$0xf] %v1151
      %1212 = vst [vmem:[%s226 + $0x70] sm:$0xf] %v1152
      %1213 = vst [vmem:[%s226 + $0x74] sm:$0xf] %v1153
      %s1214 = smul.u32 30, %s18
      %p1215 = scmp.lt.s32.totalorder %s1214, 59
      %s1216 = scalar_select %p1215, %s1214, 59
      %p1217 = scmp.lt.s32.totalorder %s19, 0
      %s1218 = scalar_select %p1217, %s19, 0
      %s1219 = sadd.s32 %s1218, %s1216
      %s1220 = smul.addr %s1219, 4
      %s1221 = scalar_lea.vmem %s3, %s1220
      // Predicated region
      $region33: #{localizer_alexnet_forward.11} parent=31 // pred_check
        %p1222 = pneg %p124
      $region34: #{localizer_alexnet_forward.11} parent=31 // pred_check_branch
        %1224 = sbr.rel (%p1222) target = $region36
      $region35: #{localizer_alexnet_forward.11} parent=31 // pred_region
        %s1225 = smul.u32 30, %s18
      $region36: #{localizer_alexnet_forward.11} parent=31 // pred_fallthru
        _
    $region32: #{localizer_alexnet_forward.11} parent=5 // pred_fallthru
      _
    %p1226 = scmp.le.s32.totalorder 2, %s9
    // Predicated region
    $region37: #{localizer_alexnet_forward.11} parent=5 // pred_check
      %p1227 = pneg %p1226
    $region38: #{localizer_alexnet_forward.11} parent=5 // pred_check_branch
      %1229 = sbr.rel (%p1227) target = $region40
    $region39: #{localizer_alexnet_forward.11} parent=5 // pred_region
      %s1230 = ssub.s32 %s9, 2
      // Predicated region
      $region41: #{localizer_alexnet_forward.11} parent=39 // pred_check
        %p1231 = pneg %p130
      $region42: #{localizer_alexnet_forward.11} parent=39 // pred_check_branch
        %1233 = sbr.rel (%p1231) target = $region44
      $region43: #{localizer_alexnet_forward.11} parent=39 // pred_region
        %s1234 = smul.u32 30, %s20
        %p1235 = scmp.lt.s32.totalorder %s1234, 59
        %s1236 = scalar_select %p1235, %s1234, 59
        %p1237 = scmp.lt.s32.totalorder %s21, 0
        %s1238 = scalar_select %p1237, %s21, 0
        %s1239 = sadd.s32 %s1238, %s1236
        %s1240 = smul.addr %s1239, 4
        %s1241 = scalar_lea.vmem %s3, %s1240
      $region44: #{localizer_alexnet_forward.11} parent=39 // pred_fallthru
        _
    $region40: #{localizer_alexnet_forward.11} parent=5 // pred_fallthru
      _
  $region6: #{localizer_alexnet_forward.11} parent=0 // loop_footer
    %s13 = sadd.s32 1, %s9
  $region7: #{localizer_alexnet_forward.11} parent=0 // loop_footer_branch
    %8 = sbr.rel target = $region3
  $region8: #{localizer_alexnet_forward.11} parent=0 // loop_exit
    _

// kernel: localizer_alexnet_forward.12
$region0: #{localizer_alexnet_forward.12}
  #allocation0 [shape = 'u32[]', space=smem, size = 0x4, offset = 0x4, fixed_abs, tag = 'smem constant byte address 0x4 - core index']
  #allocation1 [shape = 'u32[144,128]{1,0:T(1,128)}', space=vmem, size = 0x12000, scoped, tag = 'internal scratch']
  %s0 = inlined_call_operand.vmem [shape: bf16[2,15,8,128], index: 0, kind: input, shape index: {}, may-alias: {0,1,2}]
  %s1 = inlined_call_operand.vmem [shape: bf16[2,15,8,128], index: 1, kind: input, shape index: {}, may-alias: {0,1,2}]
  %s2 = inlined_call_operand.vmem [shape: bf16[2,15,8,128], index: 2, kind: input, shape index: {}, may-alias: {0,1,2}]
  %s3 = inlined_call_operand.vmem [shape: bf16[2,7,7,64], index: 3, kind: output, shape index: {}]
  %s4 = sld [smem:[#allocation0]]
  $region205: #{localizer_alexnet_forward.12} parent=0
    _
  %s6 = ssub.s32 1, %s4
  %s7 = scalar_select 0, %s6, %s4
  $region1: #{localizer_alexnet_forward.12} parent=0
    #allocation2 [shape = 'u8[8192]{0}', space=vmem, size = 0x2000, scoped, tag = 'input window, operand 0']
    #allocation3 [shape = 'u8[8192]{0}', space=vmem, size = 0x2000, scoped, tag = 'input window, operand 1']
    #allocation4 [shape = 'u8[8192]{0}', space=vmem, size = 0x2000, scoped, tag = 'input window, operand 2']
    #allocation5 [shape = 'u8[8192]{0}', space=vmem, size = 0x2000, scoped, tag = 'output window, operand 0']
    loop: start=0, step=1, limit=9
    $region2: #{localizer_alexnet_forward.12} parent=1 // loop_pre_header
      _
    $region3: #{localizer_alexnet_forward.12} parent=1 // loop_header
      %s9 = sphi 0, %s13
      %p10 = scmp.ge.s32.totalorder %s9, 9
      %s21 = sphi 0, %s23
      %s24 = sphi 0, %s21
      %s25 = sphi 0, %s24
      %s41 = sphi 0, %s25
      %s51 = sphi 0, %s53
      %s54 = sphi 0, %s51
      %s55 = sphi 0, %s54
      %s71 = sphi 0, %s55
      %s81 = sphi 0, %s83
      %s84 = sphi 0, %s81
      %s85 = sphi 0, %s84
      %s101 = sphi 0, %s85
      %s107 = sphi 0, %s109
      %s110 = sphi 0, %s107
      %s111 = sphi 0, %s110
      %s127 = sphi 0, %s111
    $region4: #{localizer_alexnet_forward.12} parent=1 // loop_header_branch
      %12 = sbr.rel (%p10) target = $region8
    $region5: #{localizer_alexnet_forward.12} parent=1 // loop_body
      %s14 = ssub.s32 %s9, 1
      %s15 = ssub.s32 %s9, 2
      %s16 = sadd.s32 %s9, 1
      %s17 = smul.u32 %s9, 2
      %s18 = smul.u32 %s16, 2
      %s19 = ssub.s32 %s17, %s18
      %p20 = scmp.eq.s32.totalorder %s19, 0
      %s22 = sadd.s32 %s21, 1
      %s23 = scalar_select %p20, %s21, %s22
      %p26 = pneg %p20
      %p27 = scmp.eq.s32.totalorder %s9, 6
      %p28 = por %p26, %p27
      %p29 = scmp.ne.s32.totalorder %s21, %s24
      %p30 = scmp.eq.s32.totalorder %s9, 0
      %p31 = por %p29, %p30
      %p32 = scmp.ne.s32.totalorder %s21, %s24
      %p33 = scmp.eq.s32.totalorder %s14, 6
      %p34 = por %p32, %p33
      %p35 = scmp.ne.s32.totalorder %s24, %s25
      %p36 = scmp.eq.s32.totalorder %s14, 0
      %p37 = por %p35, %p36
      %p38 = scmp.ne.s32.totalorder %s24, %s25
      %p39 = scmp.eq.s32.totalorder %s15, 6
      %p40 = por %p38, %p39
      %p42 = scmp.ne.s32.totalorder %s25, %s41
      %p43 = scmp.eq.s32.totalorder %s15, 0
      %p44 = por %p42, %p43
      %s45 = smul.u32 %s9, 2
      %s46 = sadd.s32 %s45, 1
      %s47 = smul.u32 %s16, 2
      %s48 = sadd.s32 %s47, 1
      %s49 = ssub.s32 %s46, %s48
      %p50 = scmp.eq.s32.totalorder %s49, 0
      %s52 = sadd.s32 %s51, 1
      %s53 = scalar_select %p50, %s51, %s52
      %p56 = pneg %p50
      %p57 = scmp.eq.s32.totalorder %s9, 6
      %p58 = por %p56, %p57
      %p59 = scmp.ne.s32.totalorder %s51, %s54
      %p60 = scmp.eq.s32.totalorder %s9, 0
      %p61 = por %p59, %p60
      %p62 = scmp.ne.s32.totalorder %s51, %s54
      %p63 = scmp.eq.s32.totalorder %s14, 6
      %p64 = por %p62, %p63
      %p65 = scmp.ne.s32.totalorder %s54, %s55
      %p66 = scmp.eq.s32.totalorder %s14, 0
      %p67 = por %p65, %p66
      %p68 = scmp.ne.s32.totalorder %s54, %s55
      %p69 = scmp.eq.s32.totalorder %s15, 6
      %p70 = por %p68, %p69
      %p72 = scmp.ne.s32.totalorder %s55, %s71
      %p73 = scmp.eq.s32.totalorder %s15, 0
      %p74 = por %p72, %p73
      %s75 = smul.u32 %s9, 2
      %s76 = sadd.s32 %s75, 2
      %s77 = smul.u32 %s16, 2
      %s78 = sadd.s32 %s77, 2
      %s79 = ssub.s32 %s76, %s78
      %p80 = scmp.eq.s32.totalorder %s79, 0
      %s82 = sadd.s32 %s81, 1
      %s83 = scalar_select %p80, %s81, %s82
      %p86 = pneg %p80
      %p87 = scmp.eq.s32.totalorder %s9, 6
      %p88 = por %p86, %p87
      %p89 = scmp.ne.s32.totalorder %s81, %s84
      %p90 = scmp.eq.s32.totalorder %s9, 0
      %p91 = por %p89, %p90
      %p92 = scmp.ne.s32.totalorder %s81, %s84
      %p93 = scmp.eq.s32.totalorder %s14, 6
      %p94 = por %p92, %p93
      %p95 = scmp.ne.s32.totalorder %s84, %s85
      %p96 = scmp.eq.s32.totalorder %s14, 0
      %p97 = por %p95, %p96
      %p98 = scmp.ne.s32.totalorder %s84, %s85
      %p99 = scmp.eq.s32.totalorder %s15, 6
      %p100 = por %p98, %p99
      %p102 = scmp.ne.s32.totalorder %s85, %s101
      %p103 = scmp.eq.s32.totalorder %s15, 0
      %p104 = por %p102, %p103
      %s105 = ssub.s32 %s9, %s16
      %p106 = scmp.eq.s32.totalorder %s105, 0
      %s108 = sadd.s32 %s107, 1
      %s109 = scalar_select %p106, %s107, %s108
      %p112 = pneg %p106
      %p113 = scmp.eq.s32.totalorder %s9, 6
      %p114 = por %p112, %p113
      %p115 = scmp.ne.s32.totalorder %s107, %s110
      %p116 = scmp.eq.s32.totalorder %s9, 0
      %p117 = por %p115, %p116
      %p118 = scmp.ne.s32.totalorder %s107, %s110
      %p119 = scmp.eq.s32.totalorder %s14, 6
      %p120 = por %p118, %p119
      %p121 = scmp.ne.s32.totalorder %s110, %s111
      %p122 = scmp.eq.s32.totalorder %s14, 0
      %p123 = por %p121, %p122
      %p124 = scmp.ne.s32.totalorder %s110, %s111
      %p125 = scmp.eq.s32.totalorder %s15, 6
      %p126 = por %p124, %p125
      %p128 = scmp.ne.s32.totalorder %s111, %s127
      %p129 = scmp.eq.s32.totalorder %s15, 0
      %p130 = por %p128, %p129
      %p131 = scmp.le.s32.totalorder 1, %s9
      %p132 = scmp.lt.s32.totalorder %s9, 8
      %p133 = pnand %p131, %p132
      %p134 = pneg %p133
      // Predicated region
      $region9: #{localizer_alexnet_forward.12} parent=5 // pred_check
        _
      $region10: #{localizer_alexnet_forward.12} parent=5 // pred_check_branch
        %136 = sbr.rel (%p133) target = $region12
      $region11: #{localizer_alexnet_forward.12} parent=5 // pred_region
        %s137 = ssub.s32 %s9, 1
      $region12: #{localizer_alexnet_forward.12} parent=5 // pred_fallthru
        _
      %p138 = scmp.lt.s32.totalorder %s9, 7
      // Predicated region
      $region13: #{localizer_alexnet_forward.12} parent=5 // pred_check
        %p139 = pneg %p138
      $region14: #{localizer_alexnet_forward.12} parent=5 // pred_check_branch
        %141 = sbr.rel (%p139) target = $region16
      $region15: #{localizer_alexnet_forward.12} parent=5 // pred_region
        // Predicated region
        $region17: #{localizer_alexnet_forward.12} parent=15 // pred_check
          %p142 = pneg %p31
        $region18: #{localizer_alexnet_forward.12} parent=15 // pred_check_branch
          %144 = sbr.rel (%p142) target = $region20
        $region19: #{localizer_alexnet_forward.12} parent=15 // pred_region
          %s145 = sand.u32 %s21, 1
          %s146 = sand.u32 %s21, 1
          %s147 = smul.addr %s146, 8
          %s148 = scalar_lea.vmem [#allocation2], %s147
          %s149 = smul.u32 %s9, 2
          %s150 = smul.addr %s149, 4
          %s151 = scalar_lea.vmem %s0, %s150
          // Predicated region
          $region21: #{localizer_alexnet_forward.12} parent=19 // pred_check
            _
          $region22: #{localizer_alexnet_forward.12} parent=19 // pred_check_branch
            %153 = sbr.rel (0) target = $region24
          $region23: #{localizer_alexnet_forward.12} parent=19 // pred_region
            // Predicated region
            $region25: #{localizer_alexnet_forward.12} parent=23 // pred_check
              _
            $region26: #{localizer_alexnet_forward.12} parent=23 // pred_check_branch
              %155 = sbr.rel target = $region28
            $region27: #{localizer_alexnet_forward.12} parent=23 // pred_region
              // Predicated region
              $region40: #{localizer_alexnet_forward.12} parent=27 // pred_check
                _
              $region41: #{localizer_alexnet_forward.12} parent=27 // pred_check_branch
                %172 = sbr.rel (0) target = $region43
              $region42: #{localizer_alexnet_forward.12} parent=27 // pred_region
                loop: start=0, step=1, limit=1
                $region44: #{localizer_alexnet_forward.12} parent=42 // loop_pre_header
                  _
                $region45: #{localizer_alexnet_forward.12} parent=42 // loop_header
                  %s174 = sphi 0, %s178
                  %p175 = scmp.ge.s32.totalorder %s174, 1
                  %s179 = sphi %s151, %s151
                  %s180 = sphi %s148, %s148
                $region46: #{localizer_alexnet_forward.12} parent=42 // loop_header_branch
                  %177 = sbr.rel (%p175) target = $region50
                $region47: #{localizer_alexnet_forward.12} parent=42 // loop_body
                  _
                $region48: #{localizer_alexnet_forward.12} parent=42 // loop_footer
                  %s178 = sadd.s32 1, %s174
                $region49: #{localizer_alexnet_forward.12} parent=42 // loop_footer_branch
                  %173 = sbr.rel target = $region45
                $region50: #{localizer_alexnet_forward.12} parent=42 // loop_exit
                  _
                loop: start=0, step=1, limit=1
                $region51: #{localizer_alexnet_forward.12} parent=42 // loop_pre_header
                  _
                $region52: #{localizer_alexnet_forward.12} parent=42 // loop_header
                  %s183 = sphi 0, %s187
                  %p184 = scmp.ge.s32.totalorder %s183, 1
                  %s188 = sphi %s151, %s151
                  %s189 = sphi %s148, %s148
                $region53: #{localizer_alexnet_forward.12} parent=42 // loop_header_branch
                  %186 = sbr.rel (%p184) target = $region57
                $region54: #{localizer_alexnet_forward.12} parent=42 // loop_body
                  %v190 = vld [vmem:[%s188] sm:$0xf]
                  %191 = vst [vmem:[%s189] sm:$0xf] %v190
                  %v192 = vld [vmem:[%s188 + $0x3c] sm:$0xf]
                  %193 = vst [vmem:[%s189 + $0x4] sm:$0xf] %v192
                $region55: #{localizer_alexnet_forward.12} parent=42 // loop_footer
                  %s187 = sadd.s32 1, %s183
                $region56: #{localizer_alexnet_forward.12} parent=42 // loop_footer_branch
                  %182 = sbr.rel target = $region52
                $region57: #{localizer_alexnet_forward.12} parent=42 // loop_exit
                  _
              $region43: #{localizer_alexnet_forward.12} parent=27 // pred_fallthru
                _
            $region28: #{localizer_alexnet_forward.12} parent=23 // pred_fallthru
              _
            // Predicated region
            $region29: #{localizer_alexnet_forward.12} parent=23 // pred_check
              _
            $region30: #{localizer_alexnet_forward.12} parent=23 // pred_check_branch
              %157 = sbr.rel (0) target = $region32
            $region31: #{localizer_alexnet_forward.12} parent=23 // pred_region
              loop: start=0, step=1, limit=1
              $region33: #{localizer_alexnet_forward.12} parent=31 // loop_pre_header
                _
              $region34: #{localizer_alexnet_forward.12} parent=31 // loop_header
                %s160 = sphi 0, %s164
                %p161 = scmp.ge.s32.totalorder %s160, 1
                %s165 = sphi %s151, %s151
                %s166 = sphi %s148, %s148
              $region35: #{localizer_alexnet_forward.12} parent=31 // loop_header_branch
                %163 = sbr.rel (%p161) target = $region39
              $region36: #{localizer_alexnet_forward.12} parent=31 // loop_body
                %v167 = vld [vmem:[%s165] sm:$0xf]
                %168 = vst [vmem:[%s166] sm:$0xf] %v167
                %v169 = vld [vmem:[%s165 + $0x3c] sm:$0xf]
                %170 = vst [vmem:[%s166 + $0x4] sm:$0xf] %v169
              $region37: #{localizer_alexnet_forward.12} parent=31 // loop_footer
                %s164 = sadd.s32 1, %s160
              $region38: #{localizer_alexnet_forward.12} parent=31 // loop_footer_branch
                %159 = sbr.rel target = $region34
              $region39: #{localizer_alexnet_forward.12} parent=31 // loop_exit
                _
            $region32: #{localizer_alexnet_forward.12} parent=23 // pred_fallthru
              _
          $region24: #{localizer_alexnet_forward.12} parent=19 // pred_fallthru
            _
          %194 = vnop
        $region20: #{localizer_alexnet_forward.12} parent=15 // pred_fallthru
          _
        // Predicated region
        $region58: #{localizer_alexnet_forward.12} parent=15 // pred_check
          %p195 = pneg %p61
        $region59: #{localizer_alexnet_forward.12} parent=15 // pred_check_branch
          %197 = sbr.rel (%p195) target = $region61
        $region60: #{localizer_alexnet_forward.12} parent=15 // pred_region
          %s198 = sand.u32 %s51, 1
          %s199 = sand.u32 %s51, 1
          %s200 = smul.addr %s199, 8
          %s201 = scalar_lea.vmem [#allocation3], %s200
          %s202 = smul.u32 %s9, 2
          %s203 = sadd.s32 %s202, 1
          %s204 = smul.addr %s203, 4
          %s205 = scalar_lea.vmem %s1, %s204
          // Predicated region
          $region62: #{localizer_alexnet_forward.12} parent=60 // pred_check
            _
          $region63: #{localizer_alexnet_forward.12} parent=60 // pred_check_branch
            %207 = sbr.rel (0) target = $region65
          $region64: #{localizer_alexnet_forward.12} parent=60 // pred_region
            // Predicated region
            $region66: #{localizer_alexnet_forward.12} parent=64 // pred_check
              _
            $region67: #{localizer_alexnet_forward.12} parent=64 // pred_check_branch
              %209 = sbr.rel target = $region69
            $region68: #{localizer_alexnet_forward.12} parent=64 // pred_region
              // Predicated region
              $region81: #{localizer_alexnet_forward.12} parent=68 // pred_check
                _
              $region82: #{localizer_alexnet_forward.12} parent=68 // pred_check_branch
                %226 = sbr.rel (0) target = $region84
              $region83: #{localizer_alexnet_forward.12} parent=68 // pred_region
                loop: start=0, step=1, limit=1
                $region85: #{localizer_alexnet_forward.12} parent=83 // loop_pre_header
                  _
                $region86: #{localizer_alexnet_forward.12} parent=83 // loop_header
                  %s228 = sphi 0, %s232
                  %p229 = scmp.ge.s32.totalorder %s228, 1
                  %s233 = sphi %s205, %s205
                  %s234 = sphi %s201, %s201
                $region87: #{localizer_alexnet_forward.12} parent=83 // loop_header_branch
                  %231 = sbr.rel (%p229) target = $region91
                $region88: #{localizer_alexnet_forward.12} parent=83 // loop_body
                  _
                $region89: #{localizer_alexnet_forward.12} parent=83 // loop_footer
                  %s232 = sadd.s32 1, %s228
                $region90: #{localizer_alexnet_forward.12} parent=83 // loop_footer_branch
                  %227 = sbr.rel target = $region86
                $region91: #{localizer_alexnet_forward.12} parent=83 // loop_exit
                  _
                loop: start=0, step=1, limit=1
                $region92: #{localizer_alexnet_forward.12} parent=83 // loop_pre_header
                  _
                $region93: #{localizer_alexnet_forward.12} parent=83 // loop_header
                  %s237 = sphi 0, %s241
                  %p238 = scmp.ge.s32.totalorder %s237, 1
                  %s242 = sphi %s205, %s205
                  %s243 = sphi %s201, %s201
                $region94: #{localizer_alexnet_forward.12} parent=83 // loop_header_branch
                  %240 = sbr.rel (%p238) target = $region98
                $region95: #{localizer_alexnet_forward.12} parent=83 // loop_body
                  %v244 = vld [vmem:[%s242] sm:$0xf]
                  %245 = vst [vmem:[%s243] sm:$0xf] %v244
                  %v246 = vld [vmem:[%s242 + $0x3c] sm:$0xf]
                  %247 = vst [vmem:[%s243 + $0x4] sm:$0xf] %v246
                $region96: #{localizer_alexnet_forward.12} parent=83 // loop_footer
                  %s241 = sadd.s32 1, %s237
                $region97: #{localizer_alexnet_forward.12} parent=83 // loop_footer_branch
                  %236 = sbr.rel target = $region93
                $region98: #{localizer_alexnet_forward.12} parent=83 // loop_exit
                  _
              $region84: #{localizer_alexnet_forward.12} parent=68 // pred_fallthru
                _
            $region69: #{localizer_alexnet_forward.12} parent=64 // pred_fallthru
              _
            // Predicated region
            $region70: #{localizer_alexnet_forward.12} parent=64 // pred_check
              _
            $region71: #{localizer_alexnet_forward.12} parent=64 // pred_check_branch
              %211 = sbr.rel (0) target = $region73
            $region72: #{localizer_alexnet_forward.12} parent=64 // pred_region
              loop: start=0, step=1, limit=1
              $region74: #{localizer_alexnet_forward.12} parent=72 // loop_pre_header
                _
              $region75: #{localizer_alexnet_forward.12} parent=72 // loop_header
                %s214 = sphi 0, %s218
                %p215 = scmp.ge.s32.totalorder %s214, 1
                %s219 = sphi %s205, %s205
                %s220 = sphi %s201, %s201
              $region76: #{localizer_alexnet_forward.12} parent=72 // loop_header_branch
                %217 = sbr.rel (%p215) target = $region80
              $region77: #{localizer_alexnet_forward.12} parent=72 // loop_body
                %v221 = vld [vmem:[%s219] sm:$0xf]
                %222 = vst [vmem:[%s220] sm:$0xf] %v221
                %v223 = vld [vmem:[%s219 + $0x3c] sm:$0xf]
                %224 = vst [vmem:[%s220 + $0x4] sm:$0xf] %v223
              $region78: #{localizer_alexnet_forward.12} parent=72 // loop_footer
                %s218 = sadd.s32 1, %s214
              $region79: #{localizer_alexnet_forward.12} parent=72 // loop_footer_branch
                %213 = sbr.rel target = $region75
              $region80: #{localizer_alexnet_forward.12} parent=72 // loop_exit
                _
            $region73: #{localizer_alexnet_forward.12} parent=64 // pred_fallthru
              _
          $region65: #{localizer_alexnet_forward.12} parent=60 // pred_fallthru
            _
          %248 = vnop
        $region61: #{localizer_alexnet_forward.12} parent=15 // pred_fallthru
          _
        // Predicated region
        $region99: #{localizer_alexnet_forward.12} parent=15 // pred_check
          %p249 = pneg %p91
        $region100: #{localizer_alexnet_forward.12} parent=15 // pred_check_branch
          %251 = sbr.rel (%p249) target = $region102
        $region101: #{localizer_alexnet_forward.12} parent=15 // pred_region
          %s252 = sand.u32 %s81, 1
          %s253 = sand.u32 %s81, 1
          %s254 = smul.addr %s253, 8
          %s255 = scalar_lea.vmem [#allocation4], %s254
          %s256 = smul.u32 %s9, 2
          %s257 = sadd.s32 %s256, 2
          %s258 = smul.addr %s257, 4
          %s259 = scalar_lea.vmem %s2, %s258
          // Predicated region
          $region103: #{localizer_alexnet_forward.12} parent=101 // pred_check
            _
          $region104: #{localizer_alexnet_forward.12} parent=101 // pred_check_branch
            %261 = sbr.rel (0) target = $region106
          $region105: #{localizer_alexnet_forward.12} parent=101 // pred_region
            // Predicated region
            $region107: #{localizer_alexnet_forward.12} parent=105 // pred_check
              _
            $region108: #{localizer_alexnet_forward.12} parent=105 // pred_check_branch
              %263 = sbr.rel target = $region110
            $region109: #{localizer_alexnet_forward.12} parent=105 // pred_region
              // Predicated region
              $region122: #{localizer_alexnet_forward.12} parent=109 // pred_check
                _
              $region123: #{localizer_alexnet_forward.12} parent=109 // pred_check_branch
                %280 = sbr.rel (0) target = $region125
              $region124: #{localizer_alexnet_forward.12} parent=109 // pred_region
                loop: start=0, step=1, limit=1
                $region126: #{localizer_alexnet_forward.12} parent=124 // loop_pre_header
                  _
                $region127: #{localizer_alexnet_forward.12} parent=124 // loop_header
                  %s282 = sphi 0, %s286
                  %p283 = scmp.ge.s32.totalorder %s282, 1
                  %s287 = sphi %s259, %s259
                  %s288 = sphi %s255, %s255
                $region128: #{localizer_alexnet_forward.12} parent=124 // loop_header_branch
                  %285 = sbr.rel (%p283) target = $region132
                $region129: #{localizer_alexnet_forward.12} parent=124 // loop_body
                  _
                $region130: #{localizer_alexnet_forward.12} parent=124 // loop_footer
                  %s286 = sadd.s32 1, %s282
                $region131: #{localizer_alexnet_forward.12} parent=124 // loop_footer_branch
                  %281 = sbr.rel target = $region127
                $region132: #{localizer_alexnet_forward.12} parent=124 // loop_exit
                  _
                loop: start=0, step=1, limit=1
                $region133: #{localizer_alexnet_forward.12} parent=124 // loop_pre_header
                  _
                $region134: #{localizer_alexnet_forward.12} parent=124 // loop_header
                  %s291 = sphi 0, %s295
                  %p292 = scmp.ge.s32.totalorder %s291, 1
                  %s296 = sphi %s259, %s259
                  %s297 = sphi %s255, %s255
                $region135: #{localizer_alexnet_forward.12} parent=124 // loop_header_branch
                  %294 = sbr.rel (%p292) target = $region139
                $region136: #{localizer_alexnet_forward.12} parent=124 // loop_body
                  %v298 = vld [vmem:[%s296] sm:$0xf]
                  %299 = vst [vmem:[%s297] sm:$0xf] %v298
                  %v300 = vld [vmem:[%s296 + $0x3c] sm:$0xf]
                  %301 = vst [vmem:[%s297 + $0x4] sm:$0xf] %v300
                $region137: #{localizer_alexnet_forward.12} parent=124 // loop_footer
                  %s295 = sadd.s32 1, %s291
                $region138: #{localizer_alexnet_forward.12} parent=124 // loop_footer_branch
                  %290 = sbr.rel target = $region134
                $region139: #{localizer_alexnet_forward.12} parent=124 // loop_exit
                  _
              $region125: #{localizer_alexnet_forward.12} parent=109 // pred_fallthru
                _
            $region110: #{localizer_alexnet_forward.12} parent=105 // pred_fallthru
              _
            // Predicated region
            $region111: #{localizer_alexnet_forward.12} parent=105 // pred_check
              _
            $region112: #{localizer_alexnet_forward.12} parent=105 // pred_check_branch
              %265 = sbr.rel (0) target = $region114
            $region113: #{localizer_alexnet_forward.12} parent=105 // pred_region
              loop: start=0, step=1, limit=1
              $region115: #{localizer_alexnet_forward.12} parent=113 // loop_pre_header
                _
              $region116: #{localizer_alexnet_forward.12} parent=113 // loop_header
                %s268 = sphi 0, %s272
                %p269 = scmp.ge.s32.totalorder %s268, 1
                %s273 = sphi %s259, %s259
                %s274 = sphi %s255, %s255
              $region117: #{localizer_alexnet_forward.12} parent=113 // loop_header_branch
                %271 = sbr.rel (%p269) target = $region121
              $region118: #{localizer_alexnet_forward.12} parent=113 // loop_body
                %v275 = vld [vmem:[%s273] sm:$0xf]
                %276 = vst [vmem:[%s274] sm:$0xf] %v275
                %v277 = vld [vmem:[%s273 + $0x3c] sm:$0xf]
                %278 = vst [vmem:[%s274 + $0x4] sm:$0xf] %v277
              $region119: #{localizer_alexnet_forward.12} parent=113 // loop_footer
                %s272 = sadd.s32 1, %s268
              $region120: #{localizer_alexnet_forward.12} parent=113 // loop_footer_branch
                %267 = sbr.rel target = $region116
              $region121: #{localizer_alexnet_forward.12} parent=113 // loop_exit
                _
            $region114: #{localizer_alexnet_forward.12} parent=105 // pred_fallthru
              _
          $region106: #{localizer_alexnet_forward.12} parent=101 // pred_fallthru
            _
          %302 = vnop
        $region102: #{localizer_alexnet_forward.12} parent=15 // pred_fallthru
          _
      $region16: #{localizer_alexnet_forward.12} parent=5 // pred_fallthru
        _
      %p303 = scmp.le.s32.totalorder 1, %s9
      %p304 = scmp.lt.s32.totalorder %s9, 8
      %p305 = pnand %p303, %p304
      %p306 = pneg %p305
      // Predicated region
      $region140: #{localizer_alexnet_forward.12} parent=5 // pred_check
        _
      $region141: #{localizer_alexnet_forward.12} parent=5 // pred_check_branch
        %308 = sbr.rel (%p305) target = $region143
      $region142: #{localizer_alexnet_forward.12} parent=5 // pred_region
        %s309 = ssub.s32 %s9, 1
        %s310 = sand.u32 %s24, 1
        %s311 = sand.u32 %s24, 1
        %s312 = smul.addr %s311, 8
        %s313 = scalar_lea.vmem [#allocation2], %s312
        // Predicated region
        $region144: #{localizer_alexnet_forward.12} parent=142 // pred_check
          %p314 = pneg %p37
        $region145: #{localizer_alexnet_forward.12} parent=142 // pred_check_branch
          %316 = sbr.rel (%p314) target = $region147
        $region146: #{localizer_alexnet_forward.12} parent=142 // pred_region
          _
        $region147: #{localizer_alexnet_forward.12} parent=142 // pred_fallthru
          _
        %s317 = sand.u32 %s54, 1
        %s318 = sand.u32 %s54, 1
        %s319 = smul.addr %s318, 8
        %s320 = scalar_lea.vmem [#allocation3], %s319
        // Predicated region
        $region148: #{localizer_alexnet_forward.12} parent=142 // pred_check
          %p321 = pneg %p67
        $region149: #{localizer_alexnet_forward.12} parent=142 // pred_check_branch
          %323 = sbr.rel (%p321) target = $region151
        $region150: #{localizer_alexnet_forward.12} parent=142 // pred_region
          _
        $region151: #{localizer_alexnet_forward.12} parent=142 // pred_fallthru
          _
        %s324 = sand.u32 %s84, 1
        %s325 = sand.u32 %s84, 1
        %s326 = smul.addr %s325, 8
        %s327 = scalar_lea.vmem [#allocation4], %s326
        // Predicated region
        $region152: #{localizer_alexnet_forward.12} parent=142 // pred_check
          %p328 = pneg %p97
        $region153: #{localizer_alexnet_forward.12} parent=142 // pred_check_branch
          %330 = sbr.rel (%p328) target = $region155
        $region154: #{localizer_alexnet_forward.12} parent=142 // pred_region
          _
        $region155: #{localizer_alexnet_forward.12} parent=142 // pred_fallthru
          _
        %s331 = sand.u32 %s24, 1
        %s332 = sand.u32 %s24, 1
        %s333 = smul.addr %s332, 8
        %s334 = scalar_lea.vmem [#allocation2], %s333
        %p335 = pneg %p37
        %p336 = pneg %p34
        %s337 = sand.u32 %s54, 1
        %s338 = sand.u32 %s54, 1
        %s339 = smul.addr %s338, 8
        %s340 = scalar_lea.vmem [#allocation3], %s339
        %p341 = pneg %p67
        %p342 = pneg %p64
        %s343 = sand.u32 %s84, 1
        %s344 = sand.u32 %s84, 1
        %s345 = smul.addr %s344, 8
        %s346 = scalar_lea.vmem [#allocation4], %s345
        %p347 = pneg %p97
        %p348 = pneg %p94
        %p349 = pneg %p123
        %p350 = pneg %p120
        %s351 = sand.u32 %s110, 1
        %s352 = sand.u32 %s110, 1
        %s353 = smul.addr %s352, 8
        %s354 = scalar_lea.vmem [#allocation5], %s353
        %s355 = smul.u32 %s14, 2
        %s356 = smul.u32 %s14, 2
        %s357 = sadd.s32 %s356, 1
        %s358 = smul.u32 %s14, 2
        %s359 = sadd.s32 %s358, 2
        %v360 = vld [vmem:[%s313] sm:$0xf]
        %v361 = vld [vmem:[%s313 + $0x4] sm:$0xf]
        %v362 = vld [vmem:[%s320] sm:$0xf]
        %v363 = vld [vmem:[%s320 + $0x4] sm:$0xf]
        %v364 = vmax.bf16 %v360, %v362
        %v365 = vmax.bf16 %v361, %v363
        %v366 = vld [vmem:[%s327] sm:$0xf]
        %v367 = vld [vmem:[%s327 + $0x4] sm:$0xf]
        %v368 = vmax.bf16 %v364, %v366
        %v369 = vmax.bf16 %v365, %v367
        %372 = vrot.lane.b32.xlu0 %v368, 64
        %v373 = vpop.permute.xlu0 %372
        %374 = vrot.lane.b32.xlu0 %v369, 64
        %v375 = vpop.permute.xlu0 %374
        %v378 = vmax.bf16 %v368, %v373
        %v379 = vmax.bf16 %v369, %v375
        %v381 = vshrl.u32 %v368, 16
        %v383 = vrot.slane %v381, 4
        %v384 = vshll.u32 %v368, 16
        %v386 = vrot.slane %v384, 5
        %v387 = vor.u32 %v383, %v386
        %v388 = vrot.slane %v387, 4
        %v390 = vshrl.u32 %v369, 16
        %v392 = vrot.slane %v390, 4
        %v393 = vshll.u32 %v369, 16
        %v395 = vrot.slane %v393, 5
        %v396 = vor.u32 %v392, %v395
        %v397 = vrot.slane %v396, 4
        %v400 = vmax.bf16 %v378, %v388
        %v401 = vmax.bf16 %v379, %v397
        %vm402 = vcmask 519168
        %vm403 = vsmask.f32 3328
        %vm404 = vmand %vm402, %vm403
        %v405 = vld [vmem:[%s354] sm:$0xf]
        %v406 = vsel %vm404, %v400, %v405
        %407 = vst [vmem:[%s354] sm:$0xf] %v406
        %v408 = vld [vmem:[%s354 + $0x4] sm:$0xf]
        %v409 = vsel %vm404, %v401, %v408
        %410 = vst [vmem:[%s354 + $0x4] sm:$0xf] %v409
        %s411 = sand.u32 %s110, 1
        %s412 = sand.u32 %s110, 1
        %s413 = smul.addr %s412, 8
        %s414 = scalar_lea.vmem [#allocation5], %s413
        // Predicated region
        $region156: #{localizer_alexnet_forward.12} parent=142 // pred_check
          %p415 = pneg %p120
        $region157: #{localizer_alexnet_forward.12} parent=142 // pred_check_branch
          %417 = sbr.rel (%p415) target = $region159
        $region158: #{localizer_alexnet_forward.12} parent=142 // pred_region
          %s418 = smul.addr %s14, 4
          %s419 = scalar_lea.vmem %s3, %s418
          // Predicated region
          $region160: #{localizer_alexnet_forward.12} parent=158 // pred_check
            _
          $region161: #{localizer_alexnet_forward.12} parent=158 // pred_check_branch
            %421 = sbr.rel (0) target = $region163
          $region162: #{localizer_alexnet_forward.12} parent=158 // pred_region
            // Predicated region
            $region164: #{localizer_alexnet_forward.12} parent=162 // pred_check
              _
            $region165: #{localizer_alexnet_forward.12} parent=162 // pred_check_branch
              %423 = sbr.rel target = $region167
            $region166: #{localizer_alexnet_forward.12} parent=162 // pred_region
              // Predicated region
              $region179: #{localizer_alexnet_forward.12} parent=166 // pred_check
                _
              $region180: #{localizer_alexnet_forward.12} parent=166 // pred_check_branch
                %440 = sbr.rel (0) target = $region182
              $region181: #{localizer_alexnet_forward.12} parent=166 // pred_region
                loop: start=0, step=1, limit=1
                $region183: #{localizer_alexnet_forward.12} parent=181 // loop_pre_header
                  _
                $region184: #{localizer_alexnet_forward.12} parent=181 // loop_header
                  %s442 = sphi 0, %s446
                  %p443 = scmp.ge.s32.totalorder %s442, 1
                  %s447 = sphi %s414, %s414
                  %s448 = sphi %s419, %s419
                $region185: #{localizer_alexnet_forward.12} parent=181 // loop_header_branch
                  %445 = sbr.rel (%p443) target = $region189
                $region186: #{localizer_alexnet_forward.12} parent=181 // loop_body
                  _
                $region187: #{localizer_alexnet_forward.12} parent=181 // loop_footer
                  %s446 = sadd.s32 1, %s442
                $region188: #{localizer_alexnet_forward.12} parent=181 // loop_footer_branch
                  %441 = sbr.rel target = $region184
                $region189: #{localizer_alexnet_forward.12} parent=181 // loop_exit
                  _
                loop: start=0, step=1, limit=1
                $region190: #{localizer_alexnet_forward.12} parent=181 // loop_pre_header
                  _
                $region191: #{localizer_alexnet_forward.12} parent=181 // loop_header
                  %s451 = sphi 0, %s455
                  %p452 = scmp.ge.s32.totalorder %s451, 1
                  %s456 = sphi %s414, %s414
                  %s457 = sphi %s419, %s419
                $region192: #{localizer_alexnet_forward.12} parent=181 // loop_header_branch
                  %454 = sbr.rel (%p452) target = $region196
                $region193: #{localizer_alexnet_forward.12} parent=181 // loop_body
                  %v458 = vld [vmem:[%s456] sm:$0xf]
                  %459 = vst [vmem:[%s457] sm:$0xf] %v458
                  %v460 = vld [vmem:[%s456 + $0x4] sm:$0xf]
                  %461 = vst [vmem:[%s457 + $0x1c] sm:$0xf] %v460
                $region194: #{localizer_alexnet_forward.12} parent=181 // loop_footer
                  %s455 = sadd.s32 1, %s451
                $region195: #{localizer_alexnet_forward.12} parent=181 // loop_footer_branch
                  %450 = sbr.rel target = $region191
                $region196: #{localizer_alexnet_forward.12} parent=181 // loop_exit
                  _
              $region182: #{localizer_alexnet_forward.12} parent=166 // pred_fallthru
                _
            $region167: #{localizer_alexnet_forward.12} parent=162 // pred_fallthru
              _
            // Predicated region
            $region168: #{localizer_alexnet_forward.12} parent=162 // pred_check
              _
            $region169: #{localizer_alexnet_forward.12} parent=162 // pred_check_branch
              %425 = sbr.rel (0) target = $region171
            $region170: #{localizer_alexnet_forward.12} parent=162 // pred_region
              loop: start=0, step=1, limit=1
              $region172: #{localizer_alexnet_forward.12} parent=170 // loop_pre_header
                _
              $region173: #{localizer_alexnet_forward.12} parent=170 // loop_header
                %s428 = sphi 0, %s432
                %p429 = scmp.ge.s32.totalorder %s428, 1
                %s433 = sphi %s414, %s414
                %s434 = sphi %s419, %s419
              $region174: #{localizer_alexnet_forward.12} parent=170 // loop_header_branch
                %431 = sbr.rel (%p429) target = $region178
              $region175: #{localizer_alexnet_forward.12} parent=170 // loop_body
                %v435 = vld [vmem:[%s433] sm:$0xf]
                %436 = vst [vmem:[%s434] sm:$0xf] %v435
                %v437 = vld [vmem:[%s433 + $0x4] sm:$0xf]
                %438 = vst [vmem:[%s434 + $0x1c] sm:$0xf] %v437
              $region176: #{localizer_alexnet_forward.12} parent=170 // loop_footer
                %s432 = sadd.s32 1, %s428
              $region177: #{localizer_alexnet_forward.12} parent=170 // loop_footer_branch
                %427 = sbr.rel target = $region173
              $region178: #{localizer_alexnet_forward.12} parent=170 // loop_exit
                _
            $region171: #{localizer_alexnet_forward.12} parent=162 // pred_fallthru
              _
          $region163: #{localizer_alexnet_forward.12} parent=158 // pred_fallthru
            _
          %462 = vnop
        $region159: #{localizer_alexnet_forward.12} parent=142 // pred_fallthru
          _
      $region143: #{localizer_alexnet_forward.12} parent=5 // pred_fallthru
        _
      %p463 = scmp.le.s32.totalorder 2, %s9
      // Predicated region
      $region197: #{localizer_alexnet_forward.12} parent=5 // pred_check
        %p464 = pneg %p463
      $region198: #{localizer_alexnet_forward.12} parent=5 // pred_check_branch
        %466 = sbr.rel (%p464) target = $region200
      $region199: #{localizer_alexnet_forward.12} parent=5 // pred_region
        %s467 = ssub.s32 %s9, 2
        // Predicated region
        $region201: #{localizer_alexnet_forward.12} parent=199 // pred_check
          %p468 = pneg %p126
        $region202: #{localizer_alexnet_forward.12} parent=199 // pred_check_branch
          %470 = sbr.rel (%p468) target = $region204
        $region203: #{localizer_alexnet_forward.12} parent=199 // pred_region
          %s471 = sand.u32 %s111, 1
          %s472 = sand.u32 %s111, 1
          %s473 = smul.addr %s472, 8
          %s474 = scalar_lea.vmem [#allocation5], %s473
        $region204: #{localizer_alexnet_forward.12} parent=199 // pred_fallthru
          _
      $region200: #{localizer_alexnet_forward.12} parent=5 // pred_fallthru
        _
    $region6: #{localizer_alexnet_forward.12} parent=1 // loop_footer
      %s13 = sadd.s32 1, %s9
    $region7: #{localizer_alexnet_forward.12} parent=1 // loop_footer_branch
      %8 = sbr.rel target = $region3
    $region8: #{localizer_alexnet_forward.12} parent=1 // loop_exit
      _

// kernel: localizer_alexnet_forward.13
$region0: #{localizer_alexnet_forward.13}
  #allocation0 [shape = 'u32[]', space=smem, size = 0x4, offset = 0x4, fixed_abs, tag = 'smem constant byte address 0x4 - core index']
  #allocation1 [shape = 'u32[144,128]{1,0:T(1,128)}', space=vmem, size = 0x12000, scoped, tag = 'internal scratch']
  #allocation2 [shape = 'f32[64,192]{1,0:T(8,128)}', space=vmem, size = 0x10000, scoped, tag = 'scratch operand']
  %s0 = inlined_call_operand.vmem [shape: bf16[128,1792], index: 0, kind: input, shape index: {}]
  %s1 = inlined_call_operand.vmem [shape: bf16[1792,192], index: 1, kind: input, shape index: {}]
  %s2 = inlined_call_operand.vmem [shape: f32[1,192], index: 2, kind: input, shape index: {}]
  %s3 = inlined_call_operand.vmem [shape: bf16[128,192], index: 3, kind: output, shape index: {}]
  %s4 = sld [smem:[#allocation0]]
  $region91: #{localizer_alexnet_forward.13} parent=0
    _
  %s6 = ssub.s32 1, %s4
  %s7 = scalar_select 0, %s6, %s4
  $region1: #{localizer_alexnet_forward.13} parent=0
    #allocation3 [shape = 'u8[65536]{0}', space=vmem, size = 0x10000, scoped, tag = 'input window, operand 0']
    loop: start=0, step=1, limit=16
    $region2: #{localizer_alexnet_forward.13} parent=1 // loop_pre_header
      _
    $region3: #{localizer_alexnet_forward.13} parent=1 // loop_header
      %s9 = sphi 0, %s13
      %p10 = scmp.ge.s32.totalorder %s9, 16
      %s16 = sphi 0, %s35
      %s17 = sphi 0, %s31
      %s18 = sphi 0, %s27
      %s19 = sphi 0, %s16
      %s20 = sphi 0, %s17
      %s21 = sphi 0, %s18
      %s22 = sphi 0, %s19
      %s23 = sphi 0, %s20
      %s24 = sphi 0, %s21
      %s40 = sphi 0, %s42
      %s43 = sphi 0, %s40
      %s44 = sphi 0, %s43
      %s60 = sphi 0, %s44
      %s68 = sphi 0, %s70
      %s71 = sphi 0, %s68
      %s72 = sphi 0, %s71
      %s88 = sphi 0, %s72
      %s94 = sphi 0, %s96
      %s97 = sphi 0, %s94
      %s98 = sphi 0, %s97
      %s114 = sphi 0, %s98
      %s122 = sphi 0, %s124
      %s125 = sphi 0, %s122
      %s126 = sphi 0, %s125
      %s142 = sphi 0, %s126
    $region4: #{localizer_alexnet_forward.13} parent=1 // loop_header_branch
      %12 = sbr.rel (%p10) target = $region8
    $region5: #{localizer_alexnet_forward.13} parent=1 // loop_body
      %s14 = ssub.s32 %s9, 1
      %s15 = ssub.s32 %s9, 2
      %s25 = sadd.s32 1, %s18
      %p26 = scmp.ge.s32.totalorder %s25, 7
      %s27 = scalar_select %p26, 0, %s25
      %s28 = sadd.s32 1, %s17
      %s29 = scalar_select %p26, %s28, %s17
      %p30 = scmp.ge.s32.totalorder %s29, 1
      %s31 = scalar_select %p30, 0, %s29
      %s32 = sadd.s32 1, %s16
      %s33 = scalar_select %p30, %s32, %s16
      %p34 = scmp.ge.s32.totalorder %s33, 2
      %s35 = scalar_select %p34, 0, %s33
      %s36 = ssub.s32 %s16, %s35
      %s37 = ssub.s32 %s18, %s27
      %s38 = sor.u32 %s36, %s37
      %p39 = scmp.eq.s32.totalorder %s38, 0
      %s41 = sadd.s32 %s40, 1
      %s42 = scalar_select %p39, %s40, %s41
      %p45 = pneg %p39
      %p46 = scmp.eq.s32.totalorder %s9, 13
      %p47 = por %p45, %p46
      %p48 = scmp.ne.s32.totalorder %s40, %s43
      %p49 = scmp.eq.s32.totalorder %s9, 0
      %p50 = por %p48, %p49
      %p51 = scmp.ne.s32.totalorder %s40, %s43
      %p52 = scmp.eq.s32.totalorder %s14, 13
      %p53 = por %p51, %p52
      %p54 = scmp.ne.s32.totalorder %s43, %s44
      %p55 = scmp.eq.s32.totalorder %s14, 0
      %p56 = por %p54, %p55
      %p57 = scmp.ne.s32.totalorder %s43, %s44
      %p58 = scmp.eq.s32.totalorder %s15, 13
      %p59 = por %p57, %p58
      %p61 = scmp.ne.s32.totalorder %s44, %s60
      %p62 = scmp.eq.s32.totalorder %s15, 0
      %p63 = por %p61, %p62
      %s64 = ssub.s32 %s18, %s27
      %s65 = ssub.s32 %s17, %s31
      %s66 = sor.u32 %s64, %s65
      %p67 = scmp.eq.s32.totalorder %s66, 0
      %s69 = sadd.s32 %s68, 1
      %s70 = scalar_select %p67, %s68, %s69
      %p73 = pneg %p67
      %p74 = scmp.eq.s32.totalorder %s9, 13
      %p75 = por %p73, %p74
      %p76 = scmp.ne.s32.totalorder %s68, %s71
      %p77 = scmp.eq.s32.totalorder %s9, 0
      %p78 = por %p76, %p77
      %p79 = scmp.ne.s32.totalorder %s68, %s71
      %p80 = scmp.eq.s32.totalorder %s14, 13
      %p81 = por %p79, %p80
      %p82 = scmp.ne.s32.totalorder %s71, %s72
      %p83 = scmp.eq.s32.totalorder %s14, 0
      %p84 = por %p82, %p83
      %p85 = scmp.ne.s32.totalorder %s71, %s72
      %p86 = scmp.eq.s32.totalorder %s15, 13
      %p87 = por %p85, %p86
      %p89 = scmp.ne.s32.totalorder %s72, %s88
      %p90 = scmp.eq.s32.totalorder %s15, 0
      %p91 = por %p89, %p90
      %s92 = ssub.s32 %s17, %s31
      %p93 = scmp.eq.s32.totalorder %s92, 0
      %s95 = sadd.s32 %s94, 1
      %s96 = scalar_select %p93, %s94, %s95
      %p99 = pneg %p93
      %p100 = scmp.eq.s32.totalorder %s9, 13
      %p101 = por %p99, %p100
      %p102 = scmp.ne.s32.totalorder %s94, %s97
      %p103 = scmp.eq.s32.totalorder %s9, 0
      %p104 = por %p102, %p103
      %p105 = scmp.ne.s32.totalorder %s94, %s97
      %p106 = scmp.eq.s32.totalorder %s14, 13
      %p107 = por %p105, %p106
      %p108 = scmp.ne.s32.totalorder %s97, %s98
      %p109 = scmp.eq.s32.totalorder %s14, 0
      %p110 = por %p108, %p109
      %p111 = scmp.ne.s32.totalorder %s97, %s98
      %p112 = scmp.eq.s32.totalorder %s15, 13
      %p113 = por %p111, %p112
      %p115 = scmp.ne.s32.totalorder %s98, %s114
      %p116 = scmp.eq.s32.totalorder %s15, 0
      %p117 = por %p115, %p116
      %s118 = ssub.s32 %s16, %s35
      %s119 = ssub.s32 %s17, %s31
      %s120 = sor.u32 %s118, %s119
      %p121 = scmp.eq.s32.totalorder %s120, 0
      %s123 = sadd.s32 %s122, 1
      %s124 = scalar_select %p121, %s122, %s123
      %p127 = pneg %p121
      %p128 = scmp.eq.s32.totalorder %s9, 13
      %p129 = por %p127, %p128
      %p130 = scmp.ne.s32.totalorder %s122, %s125
      %p131 = scmp.eq.s32.totalorder %s9, 0
      %p132 = por %p130, %p131
      %p133 = scmp.ne.s32.totalorder %s122, %s125
      %p134 = scmp.eq.s32.totalorder %s14, 13
      %p135 = por %p133, %p134
      %p136 = scmp.ne.s32.totalorder %s125, %s126
      %p137 = scmp.eq.s32.totalorder %s14, 0
      %p138 = por %p136, %p137
      %p139 = scmp.ne.s32.totalorder %s125, %s126
      %p140 = scmp.eq.s32.totalorder %s15, 13
      %p141 = por %p139, %p140
      %p143 = scmp.ne.s32.totalorder %s126, %s142
      %p144 = scmp.eq.s32.totalorder %s15, 0
      %p145 = por %p143, %p144
      %p146 = scmp.le.s32.totalorder 1, %s9
      %p147 = scmp.lt.s32.totalorder %s9, 15
      %p148 = pnand %p146, %p147
      %p149 = pneg %p148
      // Predicated region
      $region9: #{localizer_alexnet_forward.13} parent=5 // pred_check
        _
      $region10: #{localizer_alexnet_forward.13} parent=5 // pred_check_branch
        %151 = sbr.rel (%p148) target = $region12
      $region11: #{localizer_alexnet_forward.13} parent=5 // pred_region
        %s152 = ssub.s32 %s9, 1
        // Predicated region
        $region13: #{localizer_alexnet_forward.13} parent=11 // pred_check
          %p153 = pneg %p110
        $region14: #{localizer_alexnet_forward.13} parent=11 // pred_check_branch
          %155 = sbr.rel (%p153) target = $region16
        $region15: #{localizer_alexnet_forward.13} parent=11 // pred_region
          %s156 = smul.u32 2, %s20
          %p157 = scmp.lt.s32.totalorder %s156, 1
          %s158 = scalar_select %p157, %s156, 1
          %s159 = scalar_lea.vmem %s2, %s158
          %s160 = smul.u32 2, %s20
        $region16: #{localizer_alexnet_forward.13} parent=11 // pred_fallthru
          _
      $region12: #{localizer_alexnet_forward.13} parent=5 // pred_fallthru
        _
      %p161 = scmp.lt.s32.totalorder %s9, 14
      // Predicated region
      $region17: #{localizer_alexnet_forward.13} parent=5 // pred_check
        %p162 = pneg %p161
      $region18: #{localizer_alexnet_forward.13} parent=5 // pred_check_branch
        %164 = sbr.rel (%p162) target = $region20
      $region19: #{localizer_alexnet_forward.13} parent=5 // pred_region
        // Predicated region
        $region21: #{localizer_alexnet_forward.13} parent=19 // pred_check
          %p165 = pneg %p50
        $region22: #{localizer_alexnet_forward.13} parent=19 // pred_check_branch
          %167 = sbr.rel (%p165) target = $region24
        $region23: #{localizer_alexnet_forward.13} parent=19 // pred_region
          %s168 = sand.u32 %s40, 1
          %s169 = sand.u32 %s40, 1
          %s170 = smul.addr %s169, 64
          %s171 = scalar_lea.vmem [#allocation3], %s170
          %s172 = smul.u32 8, %s16
          %s173 = smul.u32 2, %s18
          %s174 = smul.addr %s172, 14
          %s175 = sadd.s32 %s173, %s174
          %s176 = smul.addr %s175, 4
          %s177 = scalar_lea.vmem %s0, %s176
          // Predicated region
          $region25: #{localizer_alexnet_forward.13} parent=23 // pred_check
            _
          $region26: #{localizer_alexnet_forward.13} parent=23 // pred_check_branch
            %179 = sbr.rel (0) target = $region28
          $region27: #{localizer_alexnet_forward.13} parent=23 // pred_region
            // Predicated region
            $region29: #{localizer_alexnet_forward.13} parent=27 // pred_check
              _
            $region30: #{localizer_alexnet_forward.13} parent=27 // pred_check_branch
              %181 = sbr.rel (0) target = $region32
            $region31: #{localizer_alexnet_forward.13} parent=27 // pred_region
              // Predicated region
              $region44: #{localizer_alexnet_forward.13} parent=31 // pred_check
                _
              $region45: #{localizer_alexnet_forward.13} parent=31 // pred_check_branch
                %210 = sbr.rel (0) target = $region47
              $region46: #{localizer_alexnet_forward.13} parent=31 // pred_region
                loop: start=0, step=1, limit=1
                $region48: #{localizer_alexnet_forward.13} parent=46 // loop_pre_header
                  _
                $region49: #{localizer_alexnet_forward.13} parent=46 // loop_header
                  %s212 = sphi 0, %s216
                  %p213 = scmp.ge.s32.totalorder %s212, 1
                  %s217 = sphi %s177, %s177
                  %s218 = sphi %s171, %s171
                $region50: #{localizer_alexnet_forward.13} parent=46 // loop_header_branch
                  %215 = sbr.rel (%p213) target = $region54
                $region51: #{localizer_alexnet_forward.13} parent=46 // loop_body
                  %v219 = vld [vmem:[%s217] sm:$0xff]
                  %220 = vst [vmem:[%s218] sm:$0xff] %v219
                  %v221 = vld [vmem:[%s217 + $0x38] sm:$0xff]
                  %222 = vst [vmem:[%s218 + $0x8] sm:$0xff] %v221
                  %v223 = vld [vmem:[%s217 + $0x70] sm:$0xff]
                  %224 = vst [vmem:[%s218 + $0x10] sm:$0xff] %v223
                  %v225 = vld [vmem:[%s217 + $0xa8] sm:$0xff]
                  %226 = vst [vmem:[%s218 + $0x18] sm:$0xff] %v225
                  %v227 = vld [vmem:[%s217 + $0xe0] sm:$0xff]
                  %228 = vst [vmem:[%s218 + $0x20] sm:$0xff] %v227
                  %v229 = vld [vmem:[%s217 + $0x118] sm:$0xff]
                  %230 = vst [vmem:[%s218 + $0x28] sm:$0xff] %v229
                  %v231 = vld [vmem:[%s217 + $0x150] sm:$0xff]
                  %232 = vst [vmem:[%s218 + $0x30] sm:$0xff] %v231
                  %v233 = vld [vmem:[%s217 + $0x188] sm:$0xff]
                  %234 = vst [vmem:[%s218 + $0x38] sm:$0xff] %v233
                $region52: #{localizer_alexnet_forward.13} parent=46 // loop_footer
                  %s216 = sadd.s32 1, %s212
                $region53: #{localizer_alexnet_forward.13} parent=46 // loop_footer_branch
                  %211 = sbr.rel target = $region49
                $region54: #{localizer_alexnet_forward.13} parent=46 // loop_exit
                  _
              $region47: #{localizer_alexnet_forward.13} parent=31 // pred_fallthru
                _
              // Predicated region
              $region55: #{localizer_alexnet_forward.13} parent=31 // pred_check
                _
              $region56: #{localizer_alexnet_forward.13} parent=31 // pred_check_branch
                %236 = sbr.rel target = $region58
              $region57: #{localizer_alexnet_forward.13} parent=31 // pred_region
                _
              $region58: #{localizer_alexnet_forward.13} parent=31 // pred_fallthru
                _
            $region32: #{localizer_alexnet_forward.13} parent=27 // pred_fallthru
              _
            // Predicated region
            $region33: #{localizer_alexnet_forward.13} parent=27 // pred_check
              _
            $region34: #{localizer_alexnet_forward.13} parent=27 // pred_check_branch
              %183 = sbr.rel target = $region36
            $region35: #{localizer_alexnet_forward.13} parent=27 // pred_region
              loop: start=0, step=1, limit=1
              $region37: #{localizer_alexnet_forward.13} parent=35 // loop_pre_header
                _
              $region38: #{localizer_alexnet_forward.13} parent=35 // loop_header
                %s186 = sphi 0, %s190
                %p187 = scmp.ge.s32.totalorder %s186, 1
                %s191 = sphi %s177, %s177
                %s192 = sphi %s171, %s171
              $region39: #{localizer_alexnet_forward.13} parent=35 // loop_header_branch
                %189 = sbr.rel (%p187) target = $region43
              $region40: #{localizer_alexnet_forward.13} parent=35 // loop_body
                %v193 = vld [vmem:[%s191] sm:$0xff]
                %194 = vst [vmem:[%s192] sm:$0xff] %v193
                %v195 = vld [vmem:[%s191 + $0x38] sm:$0xff]
                %196 = vst [vmem:[%s192 + $0x8] sm:$0xff] %v195
                %v197 = vld [vmem:[%s191 + $0x70] sm:$0xff]
                %198 = vst [vmem:[%s192 + $0x10] sm:$0xff] %v197
                %v199 = vld [vmem:[%s191 + $0xa8] sm:$0xff]
                %200 = vst [vmem:[%s192 + $0x18] sm:$0xff] %v199
                %v201 = vld [vmem:[%s191 + $0xe0] sm:$0xff]
                %202 = vst [vmem:[%s192 + $0x20] sm:$0xff] %v201
                %v203 = vld [vmem:[%s191 + $0x118] sm:$0xff]
                %204 = vst [vmem:[%s192 + $0x28] sm:$0xff] %v203
                %v205 = vld [vmem:[%s191 + $0x150] sm:$0xff]
                %206 = vst [vmem:[%s192 + $0x30] sm:$0xff] %v205
                %v207 = vld [vmem:[%s191 + $0x188] sm:$0xff]
                %208 = vst [vmem:[%s192 + $0x38] sm:$0xff] %v207
              $region41: #{localizer_alexnet_forward.13} parent=35 // loop_footer
                %s190 = sadd.s32 1, %s186
              $region42: #{localizer_alexnet_forward.13} parent=35 // loop_footer_branch
                %185 = sbr.rel target = $region38
              $region43: #{localizer_alexnet_forward.13} parent=35 // loop_exit
                _
            $region36: #{localizer_alexnet_forward.13} parent=27 // pred_fallthru
              _
          $region28: #{localizer_alexnet_forward.13} parent=23 // pred_fallthru
            _
          %237 = vnop
        $region24: #{localizer_alexnet_forward.13} parent=19 // pred_fallthru
          _
        // Predicated region
        $region59: #{localizer_alexnet_forward.13} parent=19 // pred_check
          %p238 = pneg %p78
        $region60: #{localizer_alexnet_forward.13} parent=19 // pred_check_branch
          %240 = sbr.rel (%p238) target = $region62
        $region61: #{localizer_alexnet_forward.13} parent=19 // pred_region
          %s241 = smul.u32 32, %s18
          %s242 = smul.u32 2, %s17
          %p243 = scmp.lt.s32.totalorder %s241, 223
          %s244 = scalar_select %p243, %s241, 223
          %p245 = scmp.lt.s32.totalorder %s242, 1
          %s246 = scalar_select %p245, %s242, 1
          %s247 = smul.addr %s244, 2
          %s248 = sadd.s32 %s246, %s247
          %s249 = smul.addr %s248, 4
          %s250 = scalar_lea.vmem %s1, %s249
          %s251 = smul.u32 32, %s18
          %s252 = smul.u32 2, %s17
        $region62: #{localizer_alexnet_forward.13} parent=19 // pred_fallthru
          _
      $region20: #{localizer_alexnet_forward.13} parent=5 // pred_fallthru
        _
      %p253 = scmp.le.s32.totalorder 1, %s9
      %p254 = scmp.lt.s32.totalorder %s9, 15
      %p255 = pnand %p253, %p254
      %p256 = pneg %p255
      // Predicated region
      $region63: #{localizer_alexnet_forward.13} parent=5 // pred_check
        _
      $region64: #{localizer_alexnet_forward.13} parent=5 // pred_check_branch
        %258 = sbr.rel (%p255) target = $region66
      $region65: #{localizer_alexnet_forward.13} parent=5 // pred_region
        %s259 = ssub.s32 %s9, 1
        %s260 = sand.u32 %s43, 1
        %s261 = sand.u32 %s43, 1
        %s262 = smul.addr %s261, 64
        %s263 = scalar_lea.vmem [#allocation3], %s262
        // Predicated region
        $region67: #{localizer_alexnet_forward.13} parent=65 // pred_check
          %p264 = pneg %p56
        $region68: #{localizer_alexnet_forward.13} parent=65 // pred_check_branch
          %266 = sbr.rel (%p264) target = $region70
        $region69: #{localizer_alexnet_forward.13} parent=65 // pred_region
          _
        $region70: #{localizer_alexnet_forward.13} parent=65 // pred_fallthru
          _
        %s267 = sand.u32 %s43, 1
        %s268 = sand.u32 %s43, 1
        %s269 = smul.addr %s268, 64
        %s270 = scalar_lea.vmem [#allocation3], %s269
        %p271 = pneg %p56
        %p272 = pneg %p53
        %s273 = smul.u32 32, %s21
        %s274 = smul.u32 2, %s20
        %p275 = scmp.lt.s32.totalorder %s273, 223
        %s276 = scalar_select %p275, %s273, 223
        %p277 = scmp.lt.s32.totalorder %s274, 1
        %s278 = scalar_select %p277, %s274, 1
        %s279 = smul.addr %s276, 2
        %s280 = sadd.s32 %s278, %s279
        %s281 = smul.addr %s280, 4
        %s282 = scalar_lea.vmem %s1, %s281
        %p283 = pneg %p84
        %p284 = pneg %p81
        %s285 = smul.u32 2, %s20
        %p286 = scmp.lt.s32.totalorder %s285, 1
        %s287 = scalar_select %p286, %s285, 1
        %s288 = scalar_lea.vmem %s2, %s287
        %p289 = pneg %p110
        %p290 = pneg %p107
        %p291 = pneg %p138
        %p292 = pneg %p135
        %s293 = smul.u32 8, %s19
        %s294 = smul.u32 2, %s20
        %p295 = scmp.lt.s32.totalorder %s293, 15
        %s296 = scalar_select %p295, %s293, 15
        %p297 = scmp.lt.s32.totalorder %s294, 1
        %s298 = scalar_select %p297, %s294, 1
        %s299 = smul.addr %s296, 2
        %s300 = sadd.s32 %s298, %s299
        %s301 = smul.addr %s300, 4
        %s302 = scalar_lea.vmem %s3, %s301
        %s303 = smul.u32 8, %s19
        %s304 = smul.u32 2, %s21
        %s305 = smul.u32 32, %s21
        %s306 = smul.u32 2, %s20
        %p307 = scmp.lt.s32.totalorder %s305, 223
        %s308 = scalar_select %p307, %s305, 223
        %p309 = scmp.lt.s32.totalorder %s306, 1
        %s310 = scalar_select %p309, %s306, 1
        %s311 = smul.addr %s308, 2
        %s312 = sadd.s32 %s310, %s311
        %s313 = smul.addr %s312, 4
        %s314 = scalar_lea.vmem %s1, %s313
        %s315 = smul.u32 32, %s21
        %s316 = smul.u32 2, %s20
        %s317 = smul.u32 2, %s20
        %p318 = scmp.lt.s32.totalorder %s317, 1
        %s319 = scalar_select %p318, %s317, 1
        %s320 = scalar_lea.vmem %s2, %s319
        %s321 = smul.u32 2, %s20
        %s322 = smul.u32 8, %s19
        %s323 = smul.u32 2, %s20
        %p324 = scmp.lt.s32.totalorder %s322, 15
        %s325 = scalar_select %p324, %s322, 15
        %p326 = scmp.lt.s32.totalorder %s323, 1
        %s327 = scalar_select %p326, %s323, 1
        %s328 = smul.addr %s325, 2
        %s329 = sadd.s32 %s327, %s328
        %s330 = smul.addr %s329, 4
        %s331 = scalar_lea.vmem %s3, %s330
        %s332 = smul.u32 8, %s19
        %s333 = smul.u32 2, %s20
        %p334 = scmp.eq.s32.totalorder %s21, 0
        // Predicated region
        $region71: #{localizer_alexnet_forward.13} parent=65 // pred_check
          %p335 = pneg %p334
        $region72: #{localizer_alexnet_forward.13} parent=65 // pred_check_branch
          %337 = sbr.rel (%p335) target = $region74
        $region73: #{localizer_alexnet_forward.13} parent=65 // pred_region
          %338 = vst [vmem:[#allocation2] sm:$0xff] 0.0
          %vm339 = vcmask 523264
          %340 = vst.msk [vmem:[#allocation2 + $0x8] sm:$0xff] %vm339, 0.0
          %341 = vst [vmem:[#allocation2 + $0x10] sm:$0xff] 0.0
          %342 = vst.msk [vmem:[#allocation2 + $0x18] sm:$0xff] %vm339, 0.0
          %343 = vst [vmem:[#allocation2 + $0x20] sm:$0xff] 0.0
          %344 = vst.msk [vmem:[#allocation2 + $0x28] sm:$0xff] %vm339, 0.0
          %345 = vst [vmem:[#allocation2 + $0x30] sm:$0xff] 0.0
          %346 = vst.msk [vmem:[#allocation2 + $0x38] sm:$0xff] %vm339, 0.0
          %347 = vst [vmem:[#allocation2 + $0x40] sm:$0xff] 0.0
          %348 = vst.msk [vmem:[#allocation2 + $0x48] sm:$0xff] %vm339, 0.0
          %349 = vst [vmem:[#allocation2 + $0x50] sm:$0xff] 0.0
          %350 = vst.msk [vmem:[#allocation2 + $0x58] sm:$0xff] %vm339, 0.0
          %351 = vst [vmem:[#allocation2 + $0x60] sm:$0xff] 0.0
          %352 = vst.msk [vmem:[#allocation2 + $0x68] sm:$0xff] %vm339, 0.0
          %353 = vst [vmem:[#allocation2 + $0x70] sm:$0xff] 0.0
          %354 = vst.msk [vmem:[#allocation2 + $0x78] sm:$0xff] %vm339, 0.0
        $region74: #{localizer_alexnet_forward.13} parent=65 // pred_fallthru
          _
        %v355 = vld [vmem:[#allocation2] sm:$0xff]
        %v356 = vld [vmem:[#allocation2 + $0x8] sm:$0xff]
        %v357 = vld [vmem:[#allocation2 + $0x10] sm:$0xff]
        %v358 = vld [vmem:[#allocation2 + $0x18] sm:$0xff]
        %v359 = vld [vmem:[#allocation2 + $0x20] sm:$0xff]
        %v360 = vld [vmem:[#allocation2 + $0x28] sm:$0xff]
        %v361 = vld [vmem:[#allocation2 + $0x30] sm:$0xff]
        %v362 = vld [vmem:[#allocation2 + $0x38] sm:$0xff]
        %v363 = vld [vmem:[#allocation2 + $0x40] sm:$0xff]
        %v364 = vld [vmem:[#allocation2 + $0x48] sm:$0xff]
        %v365 = vld [vmem:[#allocation2 + $0x50] sm:$0xff]
        %v366 = vld [vmem:[#allocation2 + $0x58] sm:$0xff]
        %v367 = vld [vmem:[#allocation2 + $0x60] sm:$0xff]
        %v368 = vld [vmem:[#allocation2 + $0x68] sm:$0xff]
        %v369 = vld [vmem:[#allocation2 + $0x70] sm:$0xff]
        %v370 = vld [vmem:[#allocation2 + $0x78] sm:$0xff]
        %v371 = vld [vmem:[%s263] sm:$0xff]
        %v372 = vld [vmem:[%s263 + $0x8] sm:$0xff]
        %v373 = vld [vmem:[%s263 + $0x10] sm:$0xff]
        %v374 = vld [vmem:[%s263 + $0x18] sm:$0xff]
        %v375 = vld [vmem:[%s263 + $0x20] sm:$0xff]
        %v376 = vld [vmem:[%s263 + $0x28] sm:$0xff]
        %v377 = vld [vmem:[%s263 + $0x30] sm:$0xff]
        %v378 = vld [vmem:[%s263 + $0x38] sm:$0xff]
        %v379 = vld [vmem:[%s314] sm:$0xff]
        %v380 = vld [vmem:[%s314 + $0x8] sm:$0xff]
        %v381 = vld [vmem:[%s314 + $0x10] sm:$0xff]
        %v382 = vld [vmem:[%s314 + $0x18] sm:$0xff]
        %v383 = vld [vmem:[%s314 + $0x20] sm:$0xff]
        %v384 = vld [vmem:[%s314 + $0x28] sm:$0xff]
        %v385 = vld [vmem:[%s314 + $0x30] sm:$0xff]
        %v386 = vld [vmem:[%s314 + $0x38] sm:$0xff]
        %v387 = vld [vmem:[%s314 + $0x40] sm:$0xff]
        %v388 = vld [vmem:[%s314 + $0x48] sm:$0xff]
        %v389 = vld [vmem:[%s314 + $0x50] sm:$0xff]
        %v390 = vld [vmem:[%s314 + $0x58] sm:$0xff]
        %v391 = vld [vmem:[%s314 + $0x60] sm:$0xff]
        %v392 = vld [vmem:[%s314 + $0x68] sm:$0xff]
        %v393 = vld [vmem:[%s314 + $0x70] sm:$0xff]
        %v394 = vld [vmem:[%s314 + $0x78] sm:$0xff]
        %v395 = vld [vmem:[%s314 + $0x80] sm:$0xff]
        %v396 = vld [vmem:[%s314 + $0x88] sm:$0xff]
        %v397 = vld [vmem:[%s314 + $0x90] sm:$0xff]
        %v398 = vld [vmem:[%s314 + $0x98] sm:$0xff]
        %v399 = vld [vmem:[%s314 + $0xa0] sm:$0xff]
        %v400 = vld [vmem:[%s314 + $0xa8] sm:$0xff]
        %v401 = vld [vmem:[%s314 + $0xb0] sm:$0xff]
        %v402 = vld [vmem:[%s314 + $0xb8] sm:$0xff]
        %v403 = vld [vmem:[%s314 + $0xc0] sm:$0xff]
        %v404 = vld [vmem:[%s314 + $0xc8] sm:$0xff]
        %v405 = vld [vmem:[%s314 + $0xd0] sm:$0xff]
        %v406 = vld [vmem:[%s314 + $0xd8] sm:$0xff]
        %v407 = vld [vmem:[%s314 + $0xe0] sm:$0xff]
        %v408 = vld [vmem:[%s314 + $0xe8] sm:$0xff]
        %v409 = vld [vmem:[%s314 + $0xf0] sm:$0xff]
        %v410 = vld [vmem:[%s314 + $0xf8] sm:$0xff]
        %v419 = vunpack.c.l.b16 %v371
        %v420 = vunpack.c.h.b16 %v371
        %v421 = vunpack.c.l.b16 %v372
        %v422 = vunpack.c.h.b16 %v372
        %v423 = vunpack.c.l.b16 %v373
        %v424 = vunpack.c.h.b16 %v373
        %v425 = vunpack.c.l.b16 %v374
        %v426 = vunpack.c.h.b16 %v374
        %v427 = vunpack.c.l.b16 %v375
        %v428 = vunpack.c.h.b16 %v375
        %v429 = vunpack.c.l.b16 %v376
        %v430 = vunpack.c.h.b16 %v376
        %v431 = vunpack.c.l.b16 %v377
        %v432 = vunpack.c.h.b16 %v377
        %v433 = vunpack.c.l.b16 %v378
        %v434 = vunpack.c.h.b16 %v378
        %v435 = vpack.c.b16 %v421, %v419
        %v436 = vpack.c.b16 %v422, %v420
        %v437 = vpack.c.b16 %v425, %v423
        %v438 = vpack.c.b16 %v426, %v424
        %v439 = vpack.c.b16 %v429, %v427
        %v440 = vpack.c.b16 %v430, %v428
        %v441 = vpack.c.b16 %v433, %v431
        %v442 = vpack.c.b16 %v434, %v432
        %v483 = vunpack.c.l.b16 %v379
        %v484 = vunpack.c.h.b16 %v379
        %v485 = vunpack.c.l.b16 %v380
        %v486 = vunpack.c.h.b16 %v380
        %v487 = vunpack.c.l.b16 %v381
        %v488 = vunpack.c.h.b16 %v381
        %v489 = vunpack.c.l.b16 %v382
        %v490 = vunpack.c.h.b16 %v382
        %v491 = vunpack.c.l.b16 %v383
        %v492 = vunpack.c.h.b16 %v383
        %v493 = vunpack.c.l.b16 %v384
        %v494 = vunpack.c.h.b16 %v384
        %v495 = vunpack.c.l.b16 %v385
        %v496 = vunpack.c.h.b16 %v385
        %v497 = vunpack.c.l.b16 %v386
        %v498 = vunpack.c.h.b16 %v386
        %v499 = vunpack.c.l.b16 %v387
        %v500 = vunpack.c.h.b16 %v387
        %v501 = vunpack.c.l.b16 %v388
        %v502 = vunpack.c.h.b16 %v388
        %v503 = vunpack.c.l.b16 %v389
        %v504 = vunpack.c.h.b16 %v389
        %v505 = vunpack.c.l.b16 %v390
        %v506 = vunpack.c.h.b16 %v390
        %v507 = vunpack.c.l.b16 %v391
        %v508 = vunpack.c.h.b16 %v391
        %v509 = vunpack.c.l.b16 %v392
        %v510 = vunpack.c.h.b16 %v392
        %v511 = vunpack.c.l.b16 %v393
        %v512 = vunpack.c.h.b16 %v393
        %v513 = vunpack.c.l.b16 %v394
        %v514 = vunpack.c.h.b16 %v394
        %v515 = vunpack.c.l.b16 %v395
        %v516 = vunpack.c.h.b16 %v395
        %v517 = vunpack.c.l.b16 %v396
        %v518 = vunpack.c.h.b16 %v396
        %v519 = vunpack.c.l.b16 %v397
        %v520 = vunpack.c.h.b16 %v397
        %v521 = vunpack.c.l.b16 %v398
        %v522 = vunpack.c.h.b16 %v398
        %v523 = vunpack.c.l.b16 %v399
        %v524 = vunpack.c.h.b16 %v399
        %v525 = vunpack.c.l.b16 %v400
        %v526 = vunpack.c.h.b16 %v400
        %v527 = vunpack.c.l.b16 %v401
        %v528 = vunpack.c.h.b16 %v401
        %v529 = vunpack.c.l.b16 %v402
        %v530 = vunpack.c.h.b16 %v402
        %v531 = vunpack.c.l.b16 %v403
        %v532 = vunpack.c.h.b16 %v403
        %v533 = vunpack.c.l.b16 %v404
        %v534 = vunpack.c.h.b16 %v404
        %v535 = vunpack.c.l.b16 %v405
        %v536 = vunpack.c.h.b16 %v405
        %v537 = vunpack.c.l.b16 %v406
        %v538 = vunpack.c.h.b16 %v406
        %v539 = vunpack.c.l.b16 %v407
        %v540 = vunpack.c.h.b16 %v407
        %v541 = vunpack.c.l.b16 %v408
        %v542 = vunpack.c.h.b16 %v408
        %v543 = vunpack.c.l.b16 %v409
        %v544 = vunpack.c.h.b16 %v409
        %v545 = vunpack.c.l.b16 %v410
        %v546 = vunpack.c.h.b16 %v410
        %v547 = vpack.c.b16 %v485, %v483
        %v548 = vpack.c.b16 %v486, %v484
        %v549 = vpack.c.b16 %v489, %v487
        %v550 = vpack.c.b16 %v490, %v488
        %v551 = vpack.c.b16 %v493, %v491
        %v552 = vpack.c.b16 %v494, %v492
        %v553 = vpack.c.b16 %v497, %v495
        %v554 = vpack.c.b16 %v498, %v496
        %v555 = vpack.c.b16 %v501, %v499
        %v556 = vpack.c.b16 %v502, %v500
        %v557 = vpack.c.b16 %v505, %v503
        %v558 = vpack.c.b16 %v506, %v504
        %v559 = vpack.c.b16 %v509, %v507
        %v560 = vpack.c.b16 %v510, %v508
        %v561 = vpack.c.b16 %v513, %v511
        %v562 = vpack.c.b16 %v514, %v512
        %v563 = vpack.c.b16 %v517, %v515
        %v564 = vpack.c.b16 %v518, %v516
        %v565 = vpack.c.b16 %v521, %v519
        %v566 = vpack.c.b16 %v522, %v520
        %v567 = vpack.c.b16 %v525, %v523
        %v568 = vpack.c.b16 %v526, %v524
        %v569 = vpack.c.b16 %v529, %v527
        %v570 = vpack.c.b16 %v530, %v528
        %v571 = vpack.c.b16 %v533, %v531
        %v572 = vpack.c.b16 %v534, %v532
        %v573 = vpack.c.b16 %v537, %v535
        %v574 = vpack.c.b16 %v538, %v536
        %v575 = vpack.c.b16 %v541, %v539
        %v576 = vpack.c.b16 %v542, %v540
        %v577 = vpack.c.b16 %v545, %v543
        %v578 = vpack.c.b16 %v546, %v544
        %611 = vmatprep.subr.bf16.mxu0 %v548
        %612 = vmatpush1.bf16.msra.mxu0 %v547
        %613 = vmatprep.subr.bf16.mxu0 %v550
        %614 = vmatpush1.bf16.msra.mxu0 %v549
        %615 = vmatprep.subr.bf16.mxu0 %v552
        %616 = vmatpush1.bf16.msra.mxu0 %v551
        %617 = vmatprep.subr.bf16.mxu0 %v554
        %618 = vmatpush1.bf16.msra.mxu0 %v553
        %619 = vmatprep.subr.bf16.mxu0 %v556
        %620 = vmatpush1.bf16.msra.mxu0 %v555
        %621 = vmatprep.subr.bf16.mxu0 %v558
        %622 = vmatpush1.bf16.msra.mxu0 %v557
        %623 = vmatprep.subr.bf16.mxu0 %v560
        %624 = vmatpush1.bf16.msra.mxu0 %v559
        %625 = vmatprep.subr.bf16.mxu0 %v562
        %626 = vmatpush1.bf16.msra.mxu0 %v561
        %627 = vmatprep.subr.bf16.mxu0 %v564
        %628 = vmatpush1.bf16.msra.mxu0 %v563
        %629 = vmatprep.subr.bf16.mxu0 %v566
        %630 = vmatpush1.bf16.msra.mxu0 %v565
        %631 = vmatprep.subr.bf16.mxu0 %v568
        %632 = vmatpush1.bf16.msra.mxu0 %v567
        %633 = vmatprep.subr.bf16.mxu0 %v570
        %634 = vmatpush1.bf16.msra.mxu0 %v569
        %635 = vmatprep.subr.bf16.mxu0 %v572
        %636 = vmatpush1.bf16.msra.mxu0 %v571
        %637 = vmatprep.subr.bf16.mxu0 %v574
        %638 = vmatpush1.bf16.msra.mxu0 %v573
        %639 = vmatprep.subr.bf16.mxu0 %v576
        %640 = vmatpush1.bf16.msra.mxu0 %v575
        %641 = vmatprep.subr.bf16.mxu0 %v578
        %642 = vmatpush1.bf16.msra.mxu0 %v577
        %643 = vmatprep.mubr.bf16.mxu0 %v436
        %644 = vmatmul.mubr.bf16.gmra.mrb[0].mxu0 %v435
        %v645 = vpop.f32.mrb[0].mxu0
        %v646 = vadd.f32 0.0, %v645
        %v647 = vpop.f32.mrb[0].mxu0
        %v648 = vadd.f32 0.0, %v647
        %v649 = vpop.f32.mrb[0].mxu0
        %v650 = vadd.f32 0.0, %v649
        %v651 = vpop.f32.mrb[0].mxu0
        %v652 = vadd.f32 0.0, %v651
        %653 = vmatprep.mubr.bf16.mxu0 %v438
        %654 = vmatmul.mubr.bf16.gmra.mrb[0].mxu0 %v437
        %v655 = vpop.f32.mrb[0].mxu0
        %v656 = vadd.f32 0.0, %v655
        %v657 = vpop.f32.mrb[0].mxu0
        %v658 = vadd.f32 0.0, %v657
        %v659 = vpop.f32.mrb[0].mxu0
        %v660 = vadd.f32 0.0, %v659
        %v661 = vpop.f32.mrb[0].mxu0
        %v662 = vadd.f32 0.0, %v661
        %663 = vmatprep.mubr.bf16.mxu0 %v440
        %664 = vmatmul.mubr.bf16.gmra.mrb[0].mxu0 %v439
        %v665 = vpop.f32.mrb[0].mxu0
        %v666 = vadd.f32 0.0, %v665
        %v667 = vpop.f32.mrb[0].mxu0
        %v668 = vadd.f32 0.0, %v667
        %v669 = vpop.f32.mrb[0].mxu0
        %v670 = vadd.f32 0.0, %v669
        %v671 = vpop.f32.mrb[0].mxu0
        %v672 = vadd.f32 0.0, %v671
        %673 = vmatprep.mubr.bf16.mxu0 %v442
        %674 = vmatmul.mubr.bf16.gmra.mrb[0].mxu0 %v441
        %v675 = vpop.f32.mrb[0].mxu0
        %v676 = vadd.f32 0.0, %v675
        %v677 = vpop.f32.mrb[0].mxu0
        %v678 = vadd.f32 0.0, %v677
        %v679 = vpop.f32.mrb[0].mxu0
        %v680 = vadd.f32 0.0, %v679
        %v681 = vpop.f32.mrb[0].mxu0
        %v682 = vadd.f32 0.0, %v681
        %683 = vdwg.mxu0
        %v684 = vadd.f32 %v355, %v646
        %v685 = vadd.f32 %v356, %v648
        %v686 = vadd.f32 %v357, %v650
        %v687 = vadd.f32 %v358, %v652
        %v688 = vadd.f32 %v359, %v656
        %v689 = vadd.f32 %v360, %v658
        %v690 = vadd.f32 %v361, %v660
        %v691 = vadd.f32 %v362, %v662
        %v692 = vadd.f32 %v363, %v666
        %v693 = vadd.f32 %v364, %v668
        %v694 = vadd.f32 %v365, %v670
        %v695 = vadd.f32 %v366, %v672
        %v696 = vadd.f32 %v367, %v676
        %v697 = vadd.f32 %v368, %v678
        %v698 = vadd.f32 %v369, %v680
        %v699 = vadd.f32 %v370, %v682
        %700 = vst [vmem:[#allocation2] sm:$0xff] %v684
        %vm701 = vcmask 523264
        %702 = vst.msk [vmem:[#allocation2 + $0x8] sm:$0xff] %vm701, %v685
        %703 = vst [vmem:[#allocation2 + $0x10] sm:$0xff] %v686
        %704 = vst.msk [vmem:[#allocation2 + $0x18] sm:$0xff] %vm701, %v687
        %705 = vst [vmem:[#allocation2 + $0x20] sm:$0xff] %v688
        %706 = vst.msk [vmem:[#allocation2 + $0x28] sm:$0xff] %vm701, %v689
        %707 = vst [vmem:[#allocation2 + $0x30] sm:$0xff] %v690
        %708 = vst.msk [vmem:[#allocation2 + $0x38] sm:$0xff] %vm701, %v691
        %709 = vst [vmem:[#allocation2 + $0x40] sm:$0xff] %v692
        %710 = vst.msk [vmem:[#allocation2 + $0x48] sm:$0xff] %vm701, %v693
        %711 = vst [vmem:[#allocation2 + $0x50] sm:$0xff] %v694
        %712 = vst.msk [vmem:[#allocation2 + $0x58] sm:$0xff] %vm701, %v695
        %713 = vst [vmem:[#allocation2 + $0x60] sm:$0xff] %v696
        %714 = vst.msk [vmem:[#allocation2 + $0x68] sm:$0xff] %vm701, %v697
        %715 = vst [vmem:[#allocation2 + $0x70] sm:$0xff] %v698
        %716 = vst.msk [vmem:[#allocation2 + $0x78] sm:$0xff] %vm701, %v699
        %p717 = scmp.eq.s32.totalorder %s21, 6
        // Predicated region
        $region75: #{localizer_alexnet_forward.13} parent=65 // pred_check
          %p718 = pneg %p717
        $region76: #{localizer_alexnet_forward.13} parent=65 // pred_check_branch
          %720 = sbr.rel (%p718) target = $region78
        $region77: #{localizer_alexnet_forward.13} parent=65 // pred_region
          %v721 = vld [vmem:[#allocation2] sm:$0xff]
          %v722 = vld [vmem:[#allocation2 + $0x8] sm:$0xff]
          %v723 = vld [vmem:[#allocation2 + $0x10] sm:$0xff]
          %v724 = vld [vmem:[#allocation2 + $0x18] sm:$0xff]
          %v725 = vld [vmem:[#allocation2 + $0x20] sm:$0xff]
          %v726 = vld [vmem:[#allocation2 + $0x28] sm:$0xff]
          %v727 = vld [vmem:[#allocation2 + $0x30] sm:$0xff]
          %v728 = vld [vmem:[#allocation2 + $0x38] sm:$0xff]
          %v729 = vld [vmem:[#allocation2 + $0x40] sm:$0xff]
          %v730 = vld [vmem:[#allocation2 + $0x48] sm:$0xff]
          %v731 = vld [vmem:[#allocation2 + $0x50] sm:$0xff]
          %v732 = vld [vmem:[#allocation2 + $0x58] sm:$0xff]
          %v733 = vld [vmem:[#allocation2 + $0x60] sm:$0xff]
          %v734 = vld [vmem:[#allocation2 + $0x68] sm:$0xff]
          %v735 = vld [vmem:[#allocation2 + $0x70] sm:$0xff]
          %v736 = vld [vmem:[#allocation2 + $0x78] sm:$0xff]
          %v737 = vld [vmem:[%s320] sm:$0x3]
          %v739 = vlaneseq
          %v740 = vshrl.u32 %v739, 7
          %v741 = vsub.s32 0, %v740
          %v742 = vrot.slane %v737, %v741
          %v743 = vlaneseq
          %v744 = vshrl.u32 %v743, 7
          %v745 = vsub.s32 1, %v744
          %v746 = vrot.slane %v737, %v745
          %v749 = vadd.f32 %v721, %v742
          %v750 = vadd.f32 %v722, %v746
          %v751 = vadd.f32 %v723, %v742
          %v752 = vadd.f32 %v724, %v746
          %v753 = vadd.f32 %v725, %v742
          %v754 = vadd.f32 %v726, %v746
          %v755 = vadd.f32 %v727, %v742
          %v756 = vadd.f32 %v728, %v746
          %v757 = vadd.f32 %v729, %v742
          %v758 = vadd.f32 %v730, %v746
          %v759 = vadd.f32 %v731, %v742
          %v760 = vadd.f32 %v732, %v746
          %v761 = vadd.f32 %v733, %v742
          %v762 = vadd.f32 %v734, %v746
          %v763 = vadd.f32 %v735, %v742
          %v764 = vadd.f32 %v736, %v746
          %v765 = vmax.f32 %v749, 0.0
          %v766 = vmax.f32 %v750, 0.0
          %v767 = vmax.f32 %v751, 0.0
          %v768 = vmax.f32 %v752, 0.0
          %v769 = vmax.f32 %v753, 0.0
          %v770 = vmax.f32 %v754, 0.0
          %v771 = vmax.f32 %v755, 0.0
          %v772 = vmax.f32 %v756, 0.0
          %v773 = vmax.f32 %v757, 0.0
          %v774 = vmax.f32 %v758, 0.0
          %v775 = vmax.f32 %v759, 0.0
          %v776 = vmax.f32 %v760, 0.0
          %v777 = vmax.f32 %v761, 0.0
          %v778 = vmax.f32 %v762, 0.0
          %v779 = vmax.f32 %v763, 0.0
          %v780 = vmax.f32 %v764, 0.0
          %v781 = vpack.c.bf16 %v767, %v765
          %v782 = vpack.c.bf16 %v768, %v766
          %v783 = vpack.c.bf16 %v771, %v769
          %v784 = vpack.c.bf16 %v772, %v770
          %v785 = vpack.c.bf16 %v775, %v773
          %v786 = vpack.c.bf16 %v776, %v774
          %v787 = vpack.c.bf16 %v779, %v777
          %v788 = vpack.c.bf16 %v780, %v778
          %v797 = vunpack.c.l.b16 %v781
          %v798 = vunpack.c.l.b16 %v782
          %v799 = vunpack.c.h.b16 %v781
          %v800 = vunpack.c.h.b16 %v782
          %v801 = vunpack.c.l.b16 %v783
          %v802 = vunpack.c.l.b16 %v784
          %v803 = vunpack.c.h.b16 %v783
          %v804 = vunpack.c.h.b16 %v784
          %v805 = vunpack.c.l.b16 %v785
          %v806 = vunpack.c.l.b16 %v786
          %v807 = vunpack.c.h.b16 %v785
          %v808 = vunpack.c.h.b16 %v786
          %v809 = vunpack.c.l.b16 %v787
          %v810 = vunpack.c.l.b16 %v788
          %v811 = vunpack.c.h.b16 %v787
          %v812 = vunpack.c.h.b16 %v788
          %v813 = vpack.c.b16 %v798, %v797
          %v814 = vpack.c.b16 %v800, %v799
          %v815 = vpack.c.b16 %v802, %v801
          %v816 = vpack.c.b16 %v804, %v803
          %v817 = vpack.c.b16 %v806, %v805
          %v818 = vpack.c.b16 %v808, %v807
          %v819 = vpack.c.b16 %v810, %v809
          %v820 = vpack.c.b16 %v812, %v811
          %vm829 = vcmask 1043456
          %vm830 = vcmask 523268
          %vm831 = vmor %vm830, %vm829
          %832 = vst.msk [vmem:[%s331] sm:$0xff] %vm831, %v813
          %833 = vst.msk [vmem:[%s331 + $0x8] sm:$0xff] %vm831, %v814
          %834 = vst.msk [vmem:[%s331 + $0x10] sm:$0xff] %vm831, %v815
          %835 = vst.msk [vmem:[%s331 + $0x18] sm:$0xff] %vm831, %v816
          %836 = vst.msk [vmem:[%s331 + $0x20] sm:$0xff] %vm831, %v817
          %837 = vst.msk [vmem:[%s331 + $0x28] sm:$0xff] %vm831, %v818
          %838 = vst.msk [vmem:[%s331 + $0x30] sm:$0xff] %vm831, %v819
          %839 = vst.msk [vmem:[%s331 + $0x38] sm:$0xff] %vm831, %v820
        $region78: #{localizer_alexnet_forward.13} parent=65 // pred_fallthru
          _
        %s840 = smul.u32 8, %s19
        %s841 = smul.u32 2, %s20
        %p842 = scmp.lt.s32.totalorder %s840, 15
        %s843 = scalar_select %p842, %s840, 15
        %p844 = scmp.lt.s32.totalorder %s841, 1
        %s845 = scalar_select %p844, %s841, 1
        %s846 = smul.addr %s843, 2
        %s847 = sadd.s32 %s845, %s846
        %s848 = smul.addr %s847, 4
        %s849 = scalar_lea.vmem %s3, %s848
        // Predicated region
        $region79: #{localizer_alexnet_forward.13} parent=65 // pred_check
          %p850 = pneg %p135
        $region80: #{localizer_alexnet_forward.13} parent=65 // pred_check_branch
          %852 = sbr.rel (%p850) target = $region82
        $region81: #{localizer_alexnet_forward.13} parent=65 // pred_region
          %s853 = smul.u32 8, %s19
          %s854 = smul.u32 2, %s20
        $region82: #{localizer_alexnet_forward.13} parent=65 // pred_fallthru
          _
      $region66: #{localizer_alexnet_forward.13} parent=5 // pred_fallthru
        _
      %p855 = scmp.le.s32.totalorder 2, %s9
      // Predicated region
      $region83: #{localizer_alexnet_forward.13} parent=5 // pred_check
        %p856 = pneg %p855
      $region84: #{localizer_alexnet_forward.13} parent=5 // pred_check_branch
        %858 = sbr.rel (%p856) target = $region86
      $region85: #{localizer_alexnet_forward.13} parent=5 // pred_region
        %s859 = ssub.s32 %s9, 2
        // Predicated region
        $region87: #{localizer_alexnet_forward.13} parent=85 // pred_check
          %p860 = pneg %p141
        $region88: #{localizer_alexnet_forward.13} parent=85 // pred_check_branch
          %862 = sbr.rel (%p860) target = $region90
        $region89: #{localizer_alexnet_forward.13} parent=85 // pred_region
          %s863 = smul.u32 8, %s22
          %s864 = smul.u32 2, %s23
          %p865 = scmp.lt.s32.totalorder %s863, 15
          %s866 = scalar_select %p865, %s863, 15
          %p867 = scmp.lt.s32.totalorder %s864, 1
          %s868 = scalar_select %p867, %s864, 1
          %s869 = smul.addr %s866, 2
          %s870 = sadd.s32 %s868, %s869
          %s871 = smul.addr %s870, 4
          %s872 = scalar_lea.vmem %s3, %s871
        $region90: #{localizer_alexnet_forward.13} parent=85 // pred_fallthru
          _
      $region86: #{localizer_alexnet_forward.13} parent=5 // pred_fallthru
        _
    $region6: #{localizer_alexnet_forward.13} parent=1 // loop_footer
      %s13 = sadd.s32 1, %s9
    $region7: #{localizer_alexnet_forward.13} parent=1 // loop_footer_branch
      %8 = sbr.rel target = $region3
    $region8: #{localizer_alexnet_forward.13} parent=1 // loop_exit
      _

// kernel: localizer_alexnet_forward.14
$region0: #{localizer_alexnet_forward.14}
  #allocation0 [shape = 'u32[]', space=smem, size = 0x4, offset = 0x4, fixed_abs, tag = 'smem constant byte address 0x4 - core index']
  #allocation1 [shape = 'u32[144,128]{1,0:T(1,128)}', space=vmem, size = 0x12000, scoped, tag = 'internal scratch']
  %s0 = inlined_call_operand.vmem [shape: bf16[2,7,4,384], index: 0, kind: input, shape index: {}, may-alias: {0,1,2}]
  %s1 = inlined_call_operand.vmem [shape: bf16[2,7,4,384], index: 1, kind: input, shape index: {}, may-alias: {0,1,2}]
  %s2 = inlined_call_operand.vmem [shape: bf16[2,7,4,384], index: 2, kind: input, shape index: {}, may-alias: {0,1,2}]
  %s3 = inlined_call_operand.vmem [shape: bf16[2,3,3,192], index: 3, kind: output, shape index: {}]
  %s4 = sld [smem:[#allocation0]]
  $region205: #{localizer_alexnet_forward.14} parent=0
    _
  %s6 = ssub.s32 1, %s4
  %s7 = scalar_select 0, %s6, %s4
  $region1: #{localizer_alexnet_forward.14} parent=0
    #allocation2 [shape = 'u8[12288]{0}', space=vmem, size = 0x3000, scoped, tag = 'input window, operand 0']
    #allocation3 [shape = 'u8[12288]{0}', space=vmem, size = 0x3000, scoped, tag = 'input window, operand 1']
    #allocation4 [shape = 'u8[12288]{0}', space=vmem, size = 0x3000, scoped, tag = 'input window, operand 2']
    #allocation5 [shape = 'u8[8192]{0}', space=vmem, size = 0x2000, scoped, tag = 'output window, operand 0']
    loop: start=0, step=1, limit=5
    $region2: #{localizer_alexnet_forward.14} parent=1 // loop_pre_header
      _
    $region3: #{localizer_alexnet_forward.14} parent=1 // loop_header
      %s9 = sphi 0, %s13
      %p10 = scmp.ge.s32.totalorder %s9, 5
      %s21 = sphi 0, %s23
      %s24 = sphi 0, %s21
      %s25 = sphi 0, %s24
      %s41 = sphi 0, %s25
      %s51 = sphi 0, %s53
      %s54 = sphi 0, %s51
      %s55 = sphi 0, %s54
      %s71 = sphi 0, %s55
      %s81 = sphi 0, %s83
      %s84 = sphi 0, %s81
      %s85 = sphi 0, %s84
      %s101 = sphi 0, %s85
      %s107 = sphi 0, %s109
      %s110 = sphi 0, %s107
      %s111 = sphi 0, %s110
      %s127 = sphi 0, %s111
    $region4: #{localizer_alexnet_forward.14} parent=1 // loop_header_branch
      %12 = sbr.rel (%p10) target = $region8
    $region5: #{localizer_alexnet_forward.14} parent=1 // loop_body
      %s14 = ssub.s32 %s9, 1
      %s15 = ssub.s32 %s9, 2
      %s16 = sadd.s32 %s9, 1
      %s17 = smul.u32 %s9, 2
      %s18 = smul.u32 %s16, 2
      %s19 = ssub.s32 %s17, %s18
      %p20 = scmp.eq.s32.totalorder %s19, 0
      %s22 = sadd.s32 %s21, 1
      %s23 = scalar_select %p20, %s21, %s22
      %p26 = pneg %p20
      %p27 = scmp.eq.s32.totalorder %s9, 2
      %p28 = por %p26, %p27
      %p29 = scmp.ne.s32.totalorder %s21, %s24
      %p30 = scmp.eq.s32.totalorder %s9, 0
      %p31 = por %p29, %p30
      %p32 = scmp.ne.s32.totalorder %s21, %s24
      %p33 = scmp.eq.s32.totalorder %s14, 2
      %p34 = por %p32, %p33
      %p35 = scmp.ne.s32.totalorder %s24, %s25
      %p36 = scmp.eq.s32.totalorder %s14, 0
      %p37 = por %p35, %p36
      %p38 = scmp.ne.s32.totalorder %s24, %s25
      %p39 = scmp.eq.s32.totalorder %s15, 2
      %p40 = por %p38, %p39
      %p42 = scmp.ne.s32.totalorder %s25, %s41
      %p43 = scmp.eq.s32.totalorder %s15, 0
      %p44 = por %p42, %p43
      %s45 = smul.u32 %s9, 2
      %s46 = sadd.s32 %s45, 1
      %s47 = smul.u32 %s16, 2
      %s48 = sadd.s32 %s47, 1
      %s49 = ssub.s32 %s46, %s48
      %p50 = scmp.eq.s32.totalorder %s49, 0
      %s52 = sadd.s32 %s51, 1
      %s53 = scalar_select %p50, %s51, %s52
      %p56 = pneg %p50
      %p57 = scmp.eq.s32.totalorder %s9, 2
      %p58 = por %p56, %p57
      %p59 = scmp.ne.s32.totalorder %s51, %s54
      %p60 = scmp.eq.s32.totalorder %s9, 0
      %p61 = por %p59, %p60
      %p62 = scmp.ne.s32.totalorder %s51, %s54
      %p63 = scmp.eq.s32.totalorder %s14, 2
      %p64 = por %p62, %p63
      %p65 = scmp.ne.s32.totalorder %s54, %s55
      %p66 = scmp.eq.s32.totalorder %s14, 0
      %p67 = por %p65, %p66
      %p68 = scmp.ne.s32.totalorder %s54, %s55
      %p69 = scmp.eq.s32.totalorder %s15, 2
      %p70 = por %p68, %p69
      %p72 = scmp.ne.s32.totalorder %s55, %s71
      %p73 = scmp.eq.s32.totalorder %s15, 0
      %p74 = por %p72, %p73
      %s75 = smul.u32 %s9, 2
      %s76 = sadd.s32 %s75, 2
      %s77 = smul.u32 %s16, 2
      %s78 = sadd.s32 %s77, 2
      %s79 = ssub.s32 %s76, %s78
      %p80 = scmp.eq.s32.totalorder %s79, 0
      %s82 = sadd.s32 %s81, 1
      %s83 = scalar_select %p80, %s81, %s82
      %p86 = pneg %p80
      %p87 = scmp.eq.s32.totalorder %s9, 2
      %p88 = por %p86, %p87
      %p89 = scmp.ne.s32.totalorder %s81, %s84
      %p90 = scmp.eq.s32.totalorder %s9, 0
      %p91 = por %p89, %p90
      %p92 = scmp.ne.s32.totalorder %s81, %s84
      %p93 = scmp.eq.s32.totalorder %s14, 2
      %p94 = por %p92, %p93
      %p95 = scmp.ne.s32.totalorder %s84, %s85
      %p96 = scmp.eq.s32.totalorder %s14, 0
      %p97 = por %p95, %p96
      %p98 = scmp.ne.s32.totalorder %s84, %s85
      %p99 = scmp.eq.s32.totalorder %s15, 2
      %p100 = por %p98, %p99
      %p102 = scmp.ne.s32.totalorder %s85, %s101
      %p103 = scmp.eq.s32.totalorder %s15, 0
      %p104 = por %p102, %p103
      %s105 = ssub.s32 %s9, %s16
      %p106 = scmp.eq.s32.totalorder %s105, 0
      %s108 = sadd.s32 %s107, 1
      %s109 = scalar_select %p106, %s107, %s108
      %p112 = pneg %p106
      %p113 = scmp.eq.s32.totalorder %s9, 2
      %p114 = por %p112, %p113
      %p115 = scmp.ne.s32.totalorder %s107, %s110
      %p116 = scmp.eq.s32.totalorder %s9, 0
      %p117 = por %p115, %p116
      %p118 = scmp.ne.s32.totalorder %s107, %s110
      %p119 = scmp.eq.s32.totalorder %s14, 2
      %p120 = por %p118, %p119
      %p121 = scmp.ne.s32.totalorder %s110, %s111
      %p122 = scmp.eq.s32.totalorder %s14, 0
      %p123 = por %p121, %p122
      %p124 = scmp.ne.s32.totalorder %s110, %s111
      %p125 = scmp.eq.s32.totalorder %s15, 2
      %p126 = por %p124, %p125
      %p128 = scmp.ne.s32.totalorder %s111, %s127
      %p129 = scmp.eq.s32.totalorder %s15, 0
      %p130 = por %p128, %p129
      %p131 = scmp.le.s32.totalorder 1, %s9
      %p132 = scmp.lt.s32.totalorder %s9, 4
      %p133 = pnand %p131, %p132
      %p134 = pneg %p133
      // Predicated region
      $region9: #{localizer_alexnet_forward.14} parent=5 // pred_check
        _
      $region10: #{localizer_alexnet_forward.14} parent=5 // pred_check_branch
        %136 = sbr.rel (%p133) target = $region12
      $region11: #{localizer_alexnet_forward.14} parent=5 // pred_region
        %s137 = ssub.s32 %s9, 1
      $region12: #{localizer_alexnet_forward.14} parent=5 // pred_fallthru
        _
      %p138 = scmp.lt.s32.totalorder %s9, 3
      // Predicated region
      $region13: #{localizer_alexnet_forward.14} parent=5 // pred_check
        %p139 = pneg %p138
      $region14: #{localizer_alexnet_forward.14} parent=5 // pred_check_branch
        %141 = sbr.rel (%p139) target = $region16
      $region15: #{localizer_alexnet_forward.14} parent=5 // pred_region
        // Predicated region
        $region17: #{localizer_alexnet_forward.14} parent=15 // pred_check
          %p142 = pneg %p31
        $region18: #{localizer_alexnet_forward.14} parent=15 // pred_check_branch
          %144 = sbr.rel (%p142) target = $region20
        $region19: #{localizer_alexnet_forward.14} parent=15 // pred_region
          %s145 = sand.u32 %s21, 1
          %s146 = sand.u32 %s21, 1
          %s147 = smul.addr %s146, 12
          %s148 = scalar_lea.vmem [#allocation2], %s147
          %s149 = smul.u32 %s9, 2
          %s150 = smul.addr %s149, 3
          %s151 = smul.addr %s150, 2
          %s152 = scalar_lea.vmem %s0, %s151
          // Predicated region
          $region21: #{localizer_alexnet_forward.14} parent=19 // pred_check
            _
          $region22: #{localizer_alexnet_forward.14} parent=19 // pred_check_branch
            %154 = sbr.rel (0) target = $region24
          $region23: #{localizer_alexnet_forward.14} parent=19 // pred_region
            // Predicated region
            $region25: #{localizer_alexnet_forward.14} parent=23 // pred_check
              _
            $region26: #{localizer_alexnet_forward.14} parent=23 // pred_check_branch
              %156 = sbr.rel target = $region28
            $region27: #{localizer_alexnet_forward.14} parent=23 // pred_region
              // Predicated region
              $region40: #{localizer_alexnet_forward.14} parent=27 // pred_check
                _
              $region41: #{localizer_alexnet_forward.14} parent=27 // pred_check_branch
                %173 = sbr.rel (0) target = $region43
              $region42: #{localizer_alexnet_forward.14} parent=27 // pred_region
                loop: start=0, step=1, limit=1
                $region44: #{localizer_alexnet_forward.14} parent=42 // loop_pre_header
                  _
                $region45: #{localizer_alexnet_forward.14} parent=42 // loop_header
                  %s175 = sphi 0, %s179
                  %p176 = scmp.ge.s32.totalorder %s175, 1
                  %s180 = sphi %s152, %s152
                  %s181 = sphi %s148, %s148
                $region46: #{localizer_alexnet_forward.14} parent=42 // loop_header_branch
                  %178 = sbr.rel (%p176) target = $region50
                $region47: #{localizer_alexnet_forward.14} parent=42 // loop_body
                  _
                $region48: #{localizer_alexnet_forward.14} parent=42 // loop_footer
                  %s179 = sadd.s32 1, %s175
                $region49: #{localizer_alexnet_forward.14} parent=42 // loop_footer_branch
                  %174 = sbr.rel target = $region45
                $region50: #{localizer_alexnet_forward.14} parent=42 // loop_exit
                  _
                loop: start=0, step=1, limit=1
                $region51: #{localizer_alexnet_forward.14} parent=42 // loop_pre_header
                  _
                $region52: #{localizer_alexnet_forward.14} parent=42 // loop_header
                  %s184 = sphi 0, %s188
                  %p185 = scmp.ge.s32.totalorder %s184, 1
                  %s189 = sphi %s152, %s152
                  %s190 = sphi %s148, %s148
                $region53: #{localizer_alexnet_forward.14} parent=42 // loop_header_branch
                  %187 = sbr.rel (%p185) target = $region57
                $region54: #{localizer_alexnet_forward.14} parent=42 // loop_body
                  %v191 = vld [vmem:[%s189] sm:$0x3f]
                  %192 = vst [vmem:[%s190] sm:$0x3f] %v191
                  %v193 = vld [vmem:[%s189 + $0x2a] sm:$0x3f]
                  %194 = vst [vmem:[%s190 + $0x6] sm:$0x3f] %v193
                $region55: #{localizer_alexnet_forward.14} parent=42 // loop_footer
                  %s188 = sadd.s32 1, %s184
                $region56: #{localizer_alexnet_forward.14} parent=42 // loop_footer_branch
                  %183 = sbr.rel target = $region52
                $region57: #{localizer_alexnet_forward.14} parent=42 // loop_exit
                  _
              $region43: #{localizer_alexnet_forward.14} parent=27 // pred_fallthru
                _
            $region28: #{localizer_alexnet_forward.14} parent=23 // pred_fallthru
              _
            // Predicated region
            $region29: #{localizer_alexnet_forward.14} parent=23 // pred_check
              _
            $region30: #{localizer_alexnet_forward.14} parent=23 // pred_check_branch
              %158 = sbr.rel (0) target = $region32
            $region31: #{localizer_alexnet_forward.14} parent=23 // pred_region
              loop: start=0, step=1, limit=1
              $region33: #{localizer_alexnet_forward.14} parent=31 // loop_pre_header
                _
              $region34: #{localizer_alexnet_forward.14} parent=31 // loop_header
                %s161 = sphi 0, %s165
                %p162 = scmp.ge.s32.totalorder %s161, 1
                %s166 = sphi %s152, %s152
                %s167 = sphi %s148, %s148
              $region35: #{localizer_alexnet_forward.14} parent=31 // loop_header_branch
                %164 = sbr.rel (%p162) target = $region39
              $region36: #{localizer_alexnet_forward.14} parent=31 // loop_body
                %v168 = vld [vmem:[%s166] sm:$0x3f]
                %169 = vst [vmem:[%s167] sm:$0x3f] %v168
                %v170 = vld [vmem:[%s166 + $0x2a] sm:$0x3f]
                %171 = vst [vmem:[%s167 + $0x6] sm:$0x3f] %v170
              $region37: #{localizer_alexnet_forward.14} parent=31 // loop_footer
                %s165 = sadd.s32 1, %s161
              $region38: #{localizer_alexnet_forward.14} parent=31 // loop_footer_branch
                %160 = sbr.rel target = $region34
              $region39: #{localizer_alexnet_forward.14} parent=31 // loop_exit
                _
            $region32: #{localizer_alexnet_forward.14} parent=23 // pred_fallthru
              _
          $region24: #{localizer_alexnet_forward.14} parent=19 // pred_fallthru
            _
          %195 = vnop
        $region20: #{localizer_alexnet_forward.14} parent=15 // pred_fallthru
          _
        // Predicated region
        $region58: #{localizer_alexnet_forward.14} parent=15 // pred_check
          %p196 = pneg %p61
        $region59: #{localizer_alexnet_forward.14} parent=15 // pred_check_branch
          %198 = sbr.rel (%p196) target = $region61
        $region60: #{localizer_alexnet_forward.14} parent=15 // pred_region
          %s199 = sand.u32 %s51, 1
          %s200 = sand.u32 %s51, 1
          %s201 = smul.addr %s200, 12
          %s202 = scalar_lea.vmem [#allocation3], %s201
          %s203 = smul.u32 %s9, 2
          %s204 = sadd.s32 %s203, 1
          %s205 = smul.addr %s204, 3
          %s206 = smul.addr %s205, 2
          %s207 = scalar_lea.vmem %s1, %s206
          // Predicated region
          $region62: #{localizer_alexnet_forward.14} parent=60 // pred_check
            _
          $region63: #{localizer_alexnet_forward.14} parent=60 // pred_check_branch
            %209 = sbr.rel (0) target = $region65
          $region64: #{localizer_alexnet_forward.14} parent=60 // pred_region
            // Predicated region
            $region66: #{localizer_alexnet_forward.14} parent=64 // pred_check
              _
            $region67: #{localizer_alexnet_forward.14} parent=64 // pred_check_branch
              %211 = sbr.rel target = $region69
            $region68: #{localizer_alexnet_forward.14} parent=64 // pred_region
              // Predicated region
              $region81: #{localizer_alexnet_forward.14} parent=68 // pred_check
                _
              $region82: #{localizer_alexnet_forward.14} parent=68 // pred_check_branch
                %228 = sbr.rel (0) target = $region84
              $region83: #{localizer_alexnet_forward.14} parent=68 // pred_region
                loop: start=0, step=1, limit=1
                $region85: #{localizer_alexnet_forward.14} parent=83 // loop_pre_header
                  _
                $region86: #{localizer_alexnet_forward.14} parent=83 // loop_header
                  %s230 = sphi 0, %s234
                  %p231 = scmp.ge.s32.totalorder %s230, 1
                  %s235 = sphi %s207, %s207
                  %s236 = sphi %s202, %s202
                $region87: #{localizer_alexnet_forward.14} parent=83 // loop_header_branch
                  %233 = sbr.rel (%p231) target = $region91
                $region88: #{localizer_alexnet_forward.14} parent=83 // loop_body
                  _
                $region89: #{localizer_alexnet_forward.14} parent=83 // loop_footer
                  %s234 = sadd.s32 1, %s230
                $region90: #{localizer_alexnet_forward.14} parent=83 // loop_footer_branch
                  %229 = sbr.rel target = $region86
                $region91: #{localizer_alexnet_forward.14} parent=83 // loop_exit
                  _
                loop: start=0, step=1, limit=1
                $region92: #{localizer_alexnet_forward.14} parent=83 // loop_pre_header
                  _
                $region93: #{localizer_alexnet_forward.14} parent=83 // loop_header
                  %s239 = sphi 0, %s243
                  %p240 = scmp.ge.s32.totalorder %s239, 1
                  %s244 = sphi %s207, %s207
                  %s245 = sphi %s202, %s202
                $region94: #{localizer_alexnet_forward.14} parent=83 // loop_header_branch
                  %242 = sbr.rel (%p240) target = $region98
                $region95: #{localizer_alexnet_forward.14} parent=83 // loop_body
                  %v246 = vld [vmem:[%s244] sm:$0x3f]
                  %247 = vst [vmem:[%s245] sm:$0x3f] %v246
                  %v248 = vld [vmem:[%s244 + $0x2a] sm:$0x3f]
                  %249 = vst [vmem:[%s245 + $0x6] sm:$0x3f] %v248
                $region96: #{localizer_alexnet_forward.14} parent=83 // loop_footer
                  %s243 = sadd.s32 1, %s239
                $region97: #{localizer_alexnet_forward.14} parent=83 // loop_footer_branch
                  %238 = sbr.rel target = $region93
                $region98: #{localizer_alexnet_forward.14} parent=83 // loop_exit
                  _
              $region84: #{localizer_alexnet_forward.14} parent=68 // pred_fallthru
                _
            $region69: #{localizer_alexnet_forward.14} parent=64 // pred_fallthru
              _
            // Predicated region
            $region70: #{localizer_alexnet_forward.14} parent=64 // pred_check
              _
            $region71: #{localizer_alexnet_forward.14} parent=64 // pred_check_branch
              %213 = sbr.rel (0) target = $region73
            $region72: #{localizer_alexnet_forward.14} parent=64 // pred_region
              loop: start=0, step=1, limit=1
              $region74: #{localizer_alexnet_forward.14} parent=72 // loop_pre_header
                _
              $region75: #{localizer_alexnet_forward.14} parent=72 // loop_header
                %s216 = sphi 0, %s220
                %p217 = scmp.ge.s32.totalorder %s216, 1
                %s221 = sphi %s207, %s207
                %s222 = sphi %s202, %s202
              $region76: #{localizer_alexnet_forward.14} parent=72 // loop_header_branch
                %219 = sbr.rel (%p217) target = $region80
              $region77: #{localizer_alexnet_forward.14} parent=72 // loop_body
                %v223 = vld [vmem:[%s221] sm:$0x3f]
                %224 = vst [vmem:[%s222] sm:$0x3f] %v223
                %v225 = vld [vmem:[%s221 + $0x2a] sm:$0x3f]
                %226 = vst [vmem:[%s222 + $0x6] sm:$0x3f] %v225
              $region78: #{localizer_alexnet_forward.14} parent=72 // loop_footer
                %s220 = sadd.s32 1, %s216
              $region79: #{localizer_alexnet_forward.14} parent=72 // loop_footer_branch
                %215 = sbr.rel target = $region75
              $region80: #{localizer_alexnet_forward.14} parent=72 // loop_exit
                _
            $region73: #{localizer_alexnet_forward.14} parent=64 // pred_fallthru
              _
          $region65: #{localizer_alexnet_forward.14} parent=60 // pred_fallthru
            _
          %250 = vnop
        $region61: #{localizer_alexnet_forward.14} parent=15 // pred_fallthru
          _
        // Predicated region
        $region99: #{localizer_alexnet_forward.14} parent=15 // pred_check
          %p251 = pneg %p91
        $region100: #{localizer_alexnet_forward.14} parent=15 // pred_check_branch
          %253 = sbr.rel (%p251) target = $region102
        $region101: #{localizer_alexnet_forward.14} parent=15 // pred_region
          %s254 = sand.u32 %s81, 1
          %s255 = sand.u32 %s81, 1
          %s256 = smul.addr %s255, 12
          %s257 = scalar_lea.vmem [#allocation4], %s256
          %s258 = smul.u32 %s9, 2
          %s259 = sadd.s32 %s258, 2
          %s260 = smul.addr %s259, 3
          %s261 = smul.addr %s260, 2
          %s262 = scalar_lea.vmem %s2, %s261
          // Predicated region
          $region103: #{localizer_alexnet_forward.14} parent=101 // pred_check
            _
          $region104: #{localizer_alexnet_forward.14} parent=101 // pred_check_branch
            %264 = sbr.rel (0) target = $region106
          $region105: #{localizer_alexnet_forward.14} parent=101 // pred_region
            // Predicated region
            $region107: #{localizer_alexnet_forward.14} parent=105 // pred_check
              _
            $region108: #{localizer_alexnet_forward.14} parent=105 // pred_check_branch
              %266 = sbr.rel target = $region110
            $region109: #{localizer_alexnet_forward.14} parent=105 // pred_region
              // Predicated region
              $region122: #{localizer_alexnet_forward.14} parent=109 // pred_check
                _
              $region123: #{localizer_alexnet_forward.14} parent=109 // pred_check_branch
                %283 = sbr.rel (0) target = $region125
              $region124: #{localizer_alexnet_forward.14} parent=109 // pred_region
                loop: start=0, step=1, limit=1
                $region126: #{localizer_alexnet_forward.14} parent=124 // loop_pre_header
                  _
                $region127: #{localizer_alexnet_forward.14} parent=124 // loop_header
                  %s285 = sphi 0, %s289
                  %p286 = scmp.ge.s32.totalorder %s285, 1
                  %s290 = sphi %s262, %s262
                  %s291 = sphi %s257, %s257
                $region128: #{localizer_alexnet_forward.14} parent=124 // loop_header_branch
                  %288 = sbr.rel (%p286) target = $region132
                $region129: #{localizer_alexnet_forward.14} parent=124 // loop_body
                  _
                $region130: #{localizer_alexnet_forward.14} parent=124 // loop_footer
                  %s289 = sadd.s32 1, %s285
                $region131: #{localizer_alexnet_forward.14} parent=124 // loop_footer_branch
                  %284 = sbr.rel target = $region127
                $region132: #{localizer_alexnet_forward.14} parent=124 // loop_exit
                  _
                loop: start=0, step=1, limit=1
                $region133: #{localizer_alexnet_forward.14} parent=124 // loop_pre_header
                  _
                $region134: #{localizer_alexnet_forward.14} parent=124 // loop_header
                  %s294 = sphi 0, %s298
                  %p295 = scmp.ge.s32.totalorder %s294, 1
                  %s299 = sphi %s262, %s262
                  %s300 = sphi %s257, %s257
                $region135: #{localizer_alexnet_forward.14} parent=124 // loop_header_branch
                  %297 = sbr.rel (%p295) target = $region139
                $region136: #{localizer_alexnet_forward.14} parent=124 // loop_body
                  %v301 = vld [vmem:[%s299] sm:$0x3f]
                  %302 = vst [vmem:[%s300] sm:$0x3f] %v301
                  %v303 = vld [vmem:[%s299 + $0x2a] sm:$0x3f]
                  %304 = vst [vmem:[%s300 + $0x6] sm:$0x3f] %v303
                $region137: #{localizer_alexnet_forward.14} parent=124 // loop_footer
                  %s298 = sadd.s32 1, %s294
                $region138: #{localizer_alexnet_forward.14} parent=124 // loop_footer_branch
                  %293 = sbr.rel target = $region134
                $region139: #{localizer_alexnet_forward.14} parent=124 // loop_exit
                  _
              $region125: #{localizer_alexnet_forward.14} parent=109 // pred_fallthru
                _
            $region110: #{localizer_alexnet_forward.14} parent=105 // pred_fallthru
              _
            // Predicated region
            $region111: #{localizer_alexnet_forward.14} parent=105 // pred_check
              _
            $region112: #{localizer_alexnet_forward.14} parent=105 // pred_check_branch
              %268 = sbr.rel (0) target = $region114
            $region113: #{localizer_alexnet_forward.14} parent=105 // pred_region
              loop: start=0, step=1, limit=1
              $region115: #{localizer_alexnet_forward.14} parent=113 // loop_pre_header
                _
              $region116: #{localizer_alexnet_forward.14} parent=113 // loop_header
                %s271 = sphi 0, %s275
                %p272 = scmp.ge.s32.totalorder %s271, 1
                %s276 = sphi %s262, %s262
                %s277 = sphi %s257, %s257
              $region117: #{localizer_alexnet_forward.14} parent=113 // loop_header_branch
                %274 = sbr.rel (%p272) target = $region121
              $region118: #{localizer_alexnet_forward.14} parent=113 // loop_body
                %v278 = vld [vmem:[%s276] sm:$0x3f]
                %279 = vst [vmem:[%s277] sm:$0x3f] %v278
                %v280 = vld [vmem:[%s276 + $0x2a] sm:$0x3f]
                %281 = vst [vmem:[%s277 + $0x6] sm:$0x3f] %v280
              $region119: #{localizer_alexnet_forward.14} parent=113 // loop_footer
                %s275 = sadd.s32 1, %s271
              $region120: #{localizer_alexnet_forward.14} parent=113 // loop_footer_branch
                %270 = sbr.rel target = $region116
              $region121: #{localizer_alexnet_forward.14} parent=113 // loop_exit
                _
            $region114: #{localizer_alexnet_forward.14} parent=105 // pred_fallthru
              _
          $region106: #{localizer_alexnet_forward.14} parent=101 // pred_fallthru
            _
          %305 = vnop
        $region102: #{localizer_alexnet_forward.14} parent=15 // pred_fallthru
          _
      $region16: #{localizer_alexnet_forward.14} parent=5 // pred_fallthru
        _
      %p306 = scmp.le.s32.totalorder 1, %s9
      %p307 = scmp.lt.s32.totalorder %s9, 4
      %p308 = pnand %p306, %p307
      %p309 = pneg %p308
      // Predicated region
      $region140: #{localizer_alexnet_forward.14} parent=5 // pred_check
        _
      $region141: #{localizer_alexnet_forward.14} parent=5 // pred_check_branch
        %311 = sbr.rel (%p308) target = $region143
      $region142: #{localizer_alexnet_forward.14} parent=5 // pred_region
        %s312 = ssub.s32 %s9, 1
        %s313 = sand.u32 %s24, 1
        %s314 = sand.u32 %s24, 1
        %s315 = smul.addr %s314, 12
        %s316 = scalar_lea.vmem [#allocation2], %s315
        // Predicated region
        $region144: #{localizer_alexnet_forward.14} parent=142 // pred_check
          %p317 = pneg %p37
        $region145: #{localizer_alexnet_forward.14} parent=142 // pred_check_branch
          %319 = sbr.rel (%p317) target = $region147
        $region146: #{localizer_alexnet_forward.14} parent=142 // pred_region
          _
        $region147: #{localizer_alexnet_forward.14} parent=142 // pred_fallthru
          _
        %s320 = sand.u32 %s54, 1
        %s321 = sand.u32 %s54, 1
        %s322 = smul.addr %s321, 12
        %s323 = scalar_lea.vmem [#allocation3], %s322
        // Predicated region
        $region148: #{localizer_alexnet_forward.14} parent=142 // pred_check
          %p324 = pneg %p67
        $region149: #{localizer_alexnet_forward.14} parent=142 // pred_check_branch
          %326 = sbr.rel (%p324) target = $region151
        $region150: #{localizer_alexnet_forward.14} parent=142 // pred_region
          _
        $region151: #{localizer_alexnet_forward.14} parent=142 // pred_fallthru
          _
        %s327 = sand.u32 %s84, 1
        %s328 = sand.u32 %s84, 1
        %s329 = smul.addr %s328, 12
        %s330 = scalar_lea.vmem [#allocation4], %s329
        // Predicated region
        $region152: #{localizer_alexnet_forward.14} parent=142 // pred_check
          %p331 = pneg %p97
        $region153: #{localizer_alexnet_forward.14} parent=142 // pred_check_branch
          %333 = sbr.rel (%p331) target = $region155
        $region154: #{localizer_alexnet_forward.14} parent=142 // pred_region
          _
        $region155: #{localizer_alexnet_forward.14} parent=142 // pred_fallthru
          _
        %s334 = sand.u32 %s24, 1
        %s335 = sand.u32 %s24, 1
        %s336 = smul.addr %s335, 12
        %s337 = scalar_lea.vmem [#allocation2], %s336
        %p338 = pneg %p37
        %p339 = pneg %p34
        %s340 = sand.u32 %s54, 1
        %s341 = sand.u32 %s54, 1
        %s342 = smul.addr %s341, 12
        %s343 = scalar_lea.vmem [#allocation3], %s342
        %p344 = pneg %p67
        %p345 = pneg %p64
        %s346 = sand.u32 %s84, 1
        %s347 = sand.u32 %s84, 1
        %s348 = smul.addr %s347, 12
        %s349 = scalar_lea.vmem [#allocation4], %s348
        %p350 = pneg %p97
        %p351 = pneg %p94
        %p352 = pneg %p123
        %p353 = pneg %p120
        %s354 = sand.u32 %s110, 1
        %s355 = sand.u32 %s110, 1
        %s356 = smul.addr %s355, 8
        %s357 = scalar_lea.vmem [#allocation5], %s356
        %s358 = smul.u32 %s14, 2
        %s359 = smul.u32 %s14, 2
        %s360 = sadd.s32 %s359, 1
        %s361 = smul.u32 %s14, 2
        %s362 = sadd.s32 %s361, 2
        %v363 = vld [vmem:[%s316] sm:$0x3f]
        %v364 = vld [vmem:[%s316 + $0x6] sm:$0x3f]
        %v365 = vld [vmem:[%s323] sm:$0x3f]
        %v366 = vld [vmem:[%s323 + $0x6] sm:$0x3f]
        %v367 = vmax.bf16 %v363, %v365
        %v368 = vmax.bf16 %v364, %v366
        %v369 = vld [vmem:[%s330] sm:$0x3f]
        %v370 = vld [vmem:[%s330 + $0x6] sm:$0x3f]
        %v371 = vmax.bf16 %v367, %v369
        %v372 = vmax.bf16 %v368, %v370
        %375 = vrot.lane.b32.xlu0 %v371, 64
        %v376 = vpop.permute.xlu0 %375
        %377 = vrot.lane.b32.xlu0 %v372, 64
        %v378 = vpop.permute.xlu0 %377
        %v379 = vrot.slane %v376, 2
        %v380 = vrot.slane %v378, 2
        %v381 = vrot.slane %v376, 4
        %v382 = vrot.slane %v378, 4
        %vm383 = vcmask 523264
        %v384 = vsel %vm383, %v379, %v381
        %v385 = vsel %vm383, %v380, %v382
        %v388 = vmax.bf16 %v371, %v384
        %v389 = vmax.bf16 %v372, %v385
        %v391 = vshrl.u32 %v371, 16
        %v393 = vrot.slane %v391, 6
        %v394 = vshll.u32 %v371, 16
        %v396 = vrot.slane %v394, 7
        %v397 = vor.u32 %v393, %v396
        %v398 = vrot.slane %v397, 2
        %v400 = vshrl.u32 %v372, 16
        %v402 = vrot.slane %v400, 6
        %v403 = vshll.u32 %v372, 16
        %v405 = vrot.slane %v403, 7
        %v406 = vor.u32 %v402, %v405
        %v407 = vrot.slane %v406, 2
        %v410 = vmax.bf16 %v388, %v398
        %v411 = vmax.bf16 %v389, %v407
        %vm412 = vcmask 1041408
        %vm413 = vsmask.f32 1280
        %vm414 = vmand %vm412, %vm413
        %vm415 = vcmask 519170
        %vm416 = vsmask.f32 3328
        %vm417 = vmand %vm415, %vm416
        %vm418 = vmor %vm417, %vm414
        %v419 = vld [vmem:[%s357] sm:$0xf]
        %v420 = vsel %vm418, %v410, %v419
        %421 = vst [vmem:[%s357] sm:$0xf] %v420
        %v422 = vld [vmem:[%s357 + $0x4] sm:$0xf]
        %v423 = vsel %vm418, %v411, %v422
        %424 = vst [vmem:[%s357 + $0x4] sm:$0xf] %v423
        %s425 = sand.u32 %s110, 1
        %s426 = sand.u32 %s110, 1
        %s427 = smul.addr %s426, 8
        %s428 = scalar_lea.vmem [#allocation5], %s427
        // Predicated region
        $region156: #{localizer_alexnet_forward.14} parent=142 // pred_check
          %p429 = pneg %p120
        $region157: #{localizer_alexnet_forward.14} parent=142 // pred_check_branch
          %431 = sbr.rel (%p429) target = $region159
        $region158: #{localizer_alexnet_forward.14} parent=142 // pred_region
          %s432 = smul.addr %s14, 2
          %s433 = smul.addr %s432, 2
          %s434 = scalar_lea.vmem %s3, %s433
          // Predicated region
          $region160: #{localizer_alexnet_forward.14} parent=158 // pred_check
            _
          $region161: #{localizer_alexnet_forward.14} parent=158 // pred_check_branch
            %436 = sbr.rel (0) target = $region163
          $region162: #{localizer_alexnet_forward.14} parent=158 // pred_region
            // Predicated region
            $region164: #{localizer_alexnet_forward.14} parent=162 // pred_check
              _
            $region165: #{localizer_alexnet_forward.14} parent=162 // pred_check_branch
              %438 = sbr.rel target = $region167
            $region166: #{localizer_alexnet_forward.14} parent=162 // pred_region
              // Predicated region
              $region179: #{localizer_alexnet_forward.14} parent=166 // pred_check
                _
              $region180: #{localizer_alexnet_forward.14} parent=166 // pred_check_branch
                %455 = sbr.rel (0) target = $region182
              $region181: #{localizer_alexnet_forward.14} parent=166 // pred_region
                loop: start=0, step=1, limit=1
                $region183: #{localizer_alexnet_forward.14} parent=181 // loop_pre_header
                  _
                $region184: #{localizer_alexnet_forward.14} parent=181 // loop_header
                  %s457 = sphi 0, %s461
                  %p458 = scmp.ge.s32.totalorder %s457, 1
                  %s462 = sphi %s428, %s428
                  %s463 = sphi %s434, %s434
                $region185: #{localizer_alexnet_forward.14} parent=181 // loop_header_branch
                  %460 = sbr.rel (%p458) target = $region189
                $region186: #{localizer_alexnet_forward.14} parent=181 // loop_body
                  _
                $region187: #{localizer_alexnet_forward.14} parent=181 // loop_footer
                  %s461 = sadd.s32 1, %s457
                $region188: #{localizer_alexnet_forward.14} parent=181 // loop_footer_branch
                  %456 = sbr.rel target = $region184
                $region189: #{localizer_alexnet_forward.14} parent=181 // loop_exit
                  _
                loop: start=0, step=1, limit=1
                $region190: #{localizer_alexnet_forward.14} parent=181 // loop_pre_header
                  _
                $region191: #{localizer_alexnet_forward.14} parent=181 // loop_header
                  %s466 = sphi 0, %s470
                  %p467 = scmp.ge.s32.totalorder %s466, 1
                  %s471 = sphi %s428, %s428
                  %s472 = sphi %s434, %s434
                $region192: #{localizer_alexnet_forward.14} parent=181 // loop_header_branch
                  %469 = sbr.rel (%p467) target = $region196
                $region193: #{localizer_alexnet_forward.14} parent=181 // loop_body
                  %v473 = vld [vmem:[%s471] sm:$0xf]
                  %474 = vst [vmem:[%s472] sm:$0xf] %v473
                  %v475 = vld [vmem:[%s471 + $0x4] sm:$0xf]
                  %476 = vst [vmem:[%s472 + $0xc] sm:$0xf] %v475
                $region194: #{localizer_alexnet_forward.14} parent=181 // loop_footer
                  %s470 = sadd.s32 1, %s466
                $region195: #{localizer_alexnet_forward.14} parent=181 // loop_footer_branch
                  %465 = sbr.rel target = $region191
                $region196: #{localizer_alexnet_forward.14} parent=181 // loop_exit
                  _
              $region182: #{localizer_alexnet_forward.14} parent=166 // pred_fallthru
                _
            $region167: #{localizer_alexnet_forward.14} parent=162 // pred_fallthru
              _
            // Predicated region
            $region168: #{localizer_alexnet_forward.14} parent=162 // pred_check
              _
            $region169: #{localizer_alexnet_forward.14} parent=162 // pred_check_branch
              %440 = sbr.rel (0) target = $region171
            $region170: #{localizer_alexnet_forward.14} parent=162 // pred_region
              loop: start=0, step=1, limit=1
              $region172: #{localizer_alexnet_forward.14} parent=170 // loop_pre_header
                _
              $region173: #{localizer_alexnet_forward.14} parent=170 // loop_header
                %s443 = sphi 0, %s447
                %p444 = scmp.ge.s32.totalorder %s443, 1
                %s448 = sphi %s428, %s428
                %s449 = sphi %s434, %s434
              $region174: #{localizer_alexnet_forward.14} parent=170 // loop_header_branch
                %446 = sbr.rel (%p444) target = $region178
              $region175: #{localizer_alexnet_forward.14} parent=170 // loop_body
                %v450 = vld [vmem:[%s448] sm:$0xf]
                %451 = vst [vmem:[%s449] sm:$0xf] %v450
                %v452 = vld [vmem:[%s448 + $0x4] sm:$0xf]
                %453 = vst [vmem:[%s449 + $0xc] sm:$0xf] %v452
              $region176: #{localizer_alexnet_forward.14} parent=170 // loop_footer
                %s447 = sadd.s32 1, %s443
              $region177: #{localizer_alexnet_forward.14} parent=170 // loop_footer_branch
                %442 = sbr.rel target = $region173
              $region178: #{localizer_alexnet_forward.14} parent=170 // loop_exit
                _
            $region171: #{localizer_alexnet_forward.14} parent=162 // pred_fallthru
              _
          $region163: #{localizer_alexnet_forward.14} parent=158 // pred_fallthru
            _
          %477 = vnop
        $region159: #{localizer_alexnet_forward.14} parent=142 // pred_fallthru
          _
      $region143: #{localizer_alexnet_forward.14} parent=5 // pred_fallthru
        _
      %p478 = scmp.le.s32.totalorder 2, %s9
      // Predicated region
      $region197: #{localizer_alexnet_forward.14} parent=5 // pred_check
        %p479 = pneg %p478
      $region198: #{localizer_alexnet_forward.14} parent=5 // pred_check_branch
        %481 = sbr.rel (%p479) target = $region200
      $region199: #{localizer_alexnet_forward.14} parent=5 // pred_region
        %s482 = ssub.s32 %s9, 2
        // Predicated region
        $region201: #{localizer_alexnet_forward.14} parent=199 // pred_check
          %p483 = pneg %p126
        $region202: #{localizer_alexnet_forward.14} parent=199 // pred_check_branch
          %485 = sbr.rel (%p483) target = $region204
        $region203: #{localizer_alexnet_forward.14} parent=199 // pred_region
          %s486 = sand.u32 %s111, 1
          %s487 = sand.u32 %s111, 1
          %s488 = smul.addr %s487, 8
          %s489 = scalar_lea.vmem [#allocation5], %s488
        $region204: #{localizer_alexnet_forward.14} parent=199 // pred_fallthru
          _
      $region200: #{localizer_alexnet_forward.14} parent=5 // pred_fallthru
        _
    $region6: #{localizer_alexnet_forward.14} parent=1 // loop_footer
      %s13 = sadd.s32 1, %s9
    $region7: #{localizer_alexnet_forward.14} parent=1 // loop_footer_branch
      %8 = sbr.rel target = $region3
    $region8: #{localizer_alexnet_forward.14} parent=1 // loop_exit
      _

// kernel: localizer_alexnet_forward.15
$region0: #{localizer_alexnet_forward.15}
  #allocation0 [shape = 'u32[]', space=smem, size = 0x4, offset = 0x4, fixed_abs, tag = 'smem constant byte address 0x4 - core index']
  #allocation1 [shape = 'u32[144,128]{1,0:T(1,128)}', space=vmem, size = 0x12000, scoped, tag = 'internal scratch']
  #allocation2 [shape = 'f32[16,384]{1,0:T(8,128)}', space=vmem, size = 0x6000, scoped, tag = 'scratch operand']
  %s0 = inlined_call_operand.vmem [shape: bf16[32,1920], index: 0, kind: input, shape index: {}]
  %s1 = inlined_call_operand.vmem [shape: bf16[1920,384], index: 1, kind: input, shape index: {}]
  %s2 = inlined_call_operand.vmem [shape: f32[1,384], index: 2, kind: input, shape index: {}]
  %s3 = inlined_call_operand.vmem [shape: bf16[32,384], index: 3, kind: output, shape index: {}]
  %s4 = sld [smem:[#allocation0]]
  $region79: #{localizer_alexnet_forward.15} parent=0
    _
  %s6 = ssub.s32 1, %s4
  %s7 = scalar_select 0, %s6, %s4
  $region1: #{localizer_alexnet_forward.15} parent=0
    #allocation3 [shape = 'u8[24576]{0}', space=vmem, size = 0x6000, scoped, tag = 'input window, operand 0']
    loop: start=0, step=1, limit=12
    $region2: #{localizer_alexnet_forward.15} parent=1 // loop_pre_header
      _
    $region3: #{localizer_alexnet_forward.15} parent=1 // loop_header
      %s9 = sphi 0, %s13
      %p10 = scmp.ge.s32.totalorder %s9, 12
      %s16 = sphi 0, %s35
      %s17 = sphi 0, %s31
      %s18 = sphi 0, %s27
      %s19 = sphi 0, %s16
      %s20 = sphi 0, %s17
      %s21 = sphi 0, %s18
      %s22 = sphi 0, %s19
      %s23 = sphi 0, %s20
      %s24 = sphi 0, %s21
      %s40 = sphi 0, %s42
      %s43 = sphi 0, %s40
      %s44 = sphi 0, %s43
      %s60 = sphi 0, %s44
      %s68 = sphi 0, %s70
      %s71 = sphi 0, %s68
      %s72 = sphi 0, %s71
      %s88 = sphi 0, %s72
      %s94 = sphi 0, %s96
      %s97 = sphi 0, %s94
      %s98 = sphi 0, %s97
      %s114 = sphi 0, %s98
      %s122 = sphi 0, %s124
      %s125 = sphi 0, %s122
      %s126 = sphi 0, %s125
      %s142 = sphi 0, %s126
    $region4: #{localizer_alexnet_forward.15} parent=1 // loop_header_branch
      %12 = sbr.rel (%p10) target = $region8
    $region5: #{localizer_alexnet_forward.15} parent=1 // loop_body
      %s14 = ssub.s32 %s9, 1
      %s15 = ssub.s32 %s9, 2
      %s25 = sadd.s32 1, %s18
      %p26 = scmp.ge.s32.totalorder %s25, 5
      %s27 = scalar_select %p26, 0, %s25
      %s28 = sadd.s32 1, %s17
      %s29 = scalar_select %p26, %s28, %s17
      %p30 = scmp.ge.s32.totalorder %s29, 1
      %s31 = scalar_select %p30, 0, %s29
      %s32 = sadd.s32 1, %s16
      %s33 = scalar_select %p30, %s32, %s16
      %p34 = scmp.ge.s32.totalorder %s33, 2
      %s35 = scalar_select %p34, 0, %s33
      %s36 = ssub.s32 %s16, %s35
      %s37 = ssub.s32 %s18, %s27
      %s38 = sor.u32 %s36, %s37
      %p39 = scmp.eq.s32.totalorder %s38, 0
      %s41 = sadd.s32 %s40, 1
      %s42 = scalar_select %p39, %s40, %s41
      %p45 = pneg %p39
      %p46 = scmp.eq.s32.totalorder %s9, 9
      %p47 = por %p45, %p46
      %p48 = scmp.ne.s32.totalorder %s40, %s43
      %p49 = scmp.eq.s32.totalorder %s9, 0
      %p50 = por %p48, %p49
      %p51 = scmp.ne.s32.totalorder %s40, %s43
      %p52 = scmp.eq.s32.totalorder %s14, 9
      %p53 = por %p51, %p52
      %p54 = scmp.ne.s32.totalorder %s43, %s44
      %p55 = scmp.eq.s32.totalorder %s14, 0
      %p56 = por %p54, %p55
      %p57 = scmp.ne.s32.totalorder %s43, %s44
      %p58 = scmp.eq.s32.totalorder %s15, 9
      %p59 = por %p57, %p58
      %p61 = scmp.ne.s32.totalorder %s44, %s60
      %p62 = scmp.eq.s32.totalorder %s15, 0
      %p63 = por %p61, %p62
      %s64 = ssub.s32 %s18, %s27
      %s65 = ssub.s32 %s17, %s31
      %s66 = sor.u32 %s64, %s65
      %p67 = scmp.eq.s32.totalorder %s66, 0
      %s69 = sadd.s32 %s68, 1
      %s70 = scalar_select %p67, %s68, %s69
      %p73 = pneg %p67
      %p74 = scmp.eq.s32.totalorder %s9, 9
      %p75 = por %p73, %p74
      %p76 = scmp.ne.s32.totalorder %s68, %s71
      %p77 = scmp.eq.s32.totalorder %s9, 0
      %p78 = por %p76, %p77
      %p79 = scmp.ne.s32.totalorder %s68, %s71
      %p80 = scmp.eq.s32.totalorder %s14, 9
      %p81 = por %p79, %p80
      %p82 = scmp.ne.s32.totalorder %s71, %s72
      %p83 = scmp.eq.s32.totalorder %s14, 0
      %p84 = por %p82, %p83
      %p85 = scmp.ne.s32.totalorder %s71, %s72
      %p86 = scmp.eq.s32.totalorder %s15, 9
      %p87 = por %p85, %p86
      %p89 = scmp.ne.s32.totalorder %s72, %s88
      %p90 = scmp.eq.s32.totalorder %s15, 0
      %p91 = por %p89, %p90
      %s92 = ssub.s32 %s17, %s31
      %p93 = scmp.eq.s32.totalorder %s92, 0
      %s95 = sadd.s32 %s94, 1
      %s96 = scalar_select %p93, %s94, %s95
      %p99 = pneg %p93
      %p100 = scmp.eq.s32.totalorder %s9, 9
      %p101 = por %p99, %p100
      %p102 = scmp.ne.s32.totalorder %s94, %s97
      %p103 = scmp.eq.s32.totalorder %s9, 0
      %p104 = por %p102, %p103
      %p105 = scmp.ne.s32.totalorder %s94, %s97
      %p106 = scmp.eq.s32.totalorder %s14, 9
      %p107 = por %p105, %p106
      %p108 = scmp.ne.s32.totalorder %s97, %s98
      %p109 = scmp.eq.s32.totalorder %s14, 0
      %p110 = por %p108, %p109
      %p111 = scmp.ne.s32.totalorder %s97, %s98
      %p112 = scmp.eq.s32.totalorder %s15, 9
      %p113 = por %p111, %p112
      %p115 = scmp.ne.s32.totalorder %s98, %s114
      %p116 = scmp.eq.s32.totalorder %s15, 0
      %p117 = por %p115, %p116
      %s118 = ssub.s32 %s16, %s35
      %s119 = ssub.s32 %s17, %s31
      %s120 = sor.u32 %s118, %s119
      %p121 = scmp.eq.s32.totalorder %s120, 0
      %s123 = sadd.s32 %s122, 1
      %s124 = scalar_select %p121, %s122, %s123
      %p127 = pneg %p121
      %p128 = scmp.eq.s32.totalorder %s9, 9
      %p129 = por %p127, %p128
      %p130 = scmp.ne.s32.totalorder %s122, %s125
      %p131 = scmp.eq.s32.totalorder %s9, 0
      %p132 = por %p130, %p131
      %p133 = scmp.ne.s32.totalorder %s122, %s125
      %p134 = scmp.eq.s32.totalorder %s14, 9
      %p135 = por %p133, %p134
      %p136 = scmp.ne.s32.totalorder %s125, %s126
      %p137 = scmp.eq.s32.totalorder %s14, 0
      %p138 = por %p136, %p137
      %p139 = scmp.ne.s32.totalorder %s125, %s126
      %p140 = scmp.eq.s32.totalorder %s15, 9
      %p141 = por %p139, %p140
      %p143 = scmp.ne.s32.totalorder %s126, %s142
      %p144 = scmp.eq.s32.totalorder %s15, 0
      %p145 = por %p143, %p144
      %p146 = scmp.le.s32.totalorder 1, %s9
      %p147 = scmp.lt.s32.totalorder %s9, 11
      %p148 = pnand %p146, %p147
      %p149 = pneg %p148
      // Predicated region
      $region9: #{localizer_alexnet_forward.15} parent=5 // pred_check
        _
      $region10: #{localizer_alexnet_forward.15} parent=5 // pred_check_branch
        %151 = sbr.rel (%p148) target = $region12
      $region11: #{localizer_alexnet_forward.15} parent=5 // pred_region
        %s152 = ssub.s32 %s9, 1
        // Predicated region
        $region13: #{localizer_alexnet_forward.15} parent=11 // pred_check
          %p153 = pneg %p110
        $region14: #{localizer_alexnet_forward.15} parent=11 // pred_check_branch
          %155 = sbr.rel (%p153) target = $region16
        $region15: #{localizer_alexnet_forward.15} parent=11 // pred_region
          %s156 = smul.u32 3, %s20
          %p157 = scmp.lt.s32.totalorder %s156, 2
          %s158 = scalar_select %p157, %s156, 2
          %s159 = scalar_lea.vmem %s2, %s158
          %s160 = smul.u32 3, %s20
        $region16: #{localizer_alexnet_forward.15} parent=11 // pred_fallthru
          _
      $region12: #{localizer_alexnet_forward.15} parent=5 // pred_fallthru
        _
      %p161 = scmp.lt.s32.totalorder %s9, 10
      // Predicated region
      $region17: #{localizer_alexnet_forward.15} parent=5 // pred_check
        %p162 = pneg %p161
      $region18: #{localizer_alexnet_forward.15} parent=5 // pred_check_branch
        %164 = sbr.rel (%p162) target = $region20
      $region19: #{localizer_alexnet_forward.15} parent=5 // pred_region
        // Predicated region
        $region21: #{localizer_alexnet_forward.15} parent=19 // pred_check
          %p165 = pneg %p50
        $region22: #{localizer_alexnet_forward.15} parent=19 // pred_check_branch
          %167 = sbr.rel (%p165) target = $region24
        $region23: #{localizer_alexnet_forward.15} parent=19 // pred_region
          %s168 = sand.u32 %s40, 1
          %s169 = sand.u32 %s40, 1
          %s170 = smul.addr %s169, 24
          %s171 = scalar_lea.vmem [#allocation3], %s170
          %s172 = smul.u32 2, %s16
          %s173 = smul.u32 3, %s18
          %s174 = smul.addr %s172, 15
          %s175 = sadd.s32 %s173, %s174
          %s176 = smul.addr %s175, 4
          %s177 = scalar_lea.vmem %s0, %s176
          // Predicated region
          $region25: #{localizer_alexnet_forward.15} parent=23 // pred_check
            _
          $region26: #{localizer_alexnet_forward.15} parent=23 // pred_check_branch
            %179 = sbr.rel (0) target = $region28
          $region27: #{localizer_alexnet_forward.15} parent=23 // pred_region
            // Predicated region
            $region29: #{localizer_alexnet_forward.15} parent=27 // pred_check
              _
            $region30: #{localizer_alexnet_forward.15} parent=27 // pred_check_branch
              %181 = sbr.rel (0) target = $region32
            $region31: #{localizer_alexnet_forward.15} parent=27 // pred_region
              %s182 = scalar_lea.vmem %s177, 8
              %s183 = scalar_lea.vmem %s171, 8 [#allocation3]
              loop: start=0, step=1, limit=1
              $region33: #{localizer_alexnet_forward.15} parent=31 // loop_pre_header
                _
              $region34: #{localizer_alexnet_forward.15} parent=31 // loop_header
                %s185 = sphi 0, %s189
                %p186 = scmp.ge.s32.totalorder %s185, 1
                %s190 = sphi %s177, %s177
                %s191 = sphi %s171, %s171
              $region35: #{localizer_alexnet_forward.15} parent=31 // loop_header_branch
                %188 = sbr.rel (%p186) target = $region39
              $region36: #{localizer_alexnet_forward.15} parent=31 // loop_body
                %v192 = vld [vmem:[%s190] sm:$0xff]
                %193 = vst [vmem:[%s191] sm:$0xff] %v192
                %v194 = vld [vmem:[%s190 + $0x3c] sm:$0xff]
                %195 = vst [vmem:[%s191 + $0xc] sm:$0xff] %v194
              $region37: #{localizer_alexnet_forward.15} parent=31 // loop_footer
                %s189 = sadd.s32 1, %s185
              $region38: #{localizer_alexnet_forward.15} parent=31 // loop_footer_branch
                %184 = sbr.rel target = $region34
              $region39: #{localizer_alexnet_forward.15} parent=31 // loop_exit
                _
              loop: start=0, step=1, limit=1
              $region40: #{localizer_alexnet_forward.15} parent=31 // loop_pre_header
                _
              $region41: #{localizer_alexnet_forward.15} parent=31 // loop_header
                %s198 = sphi 0, %s202
                %p199 = scmp.ge.s32.totalorder %s198, 1
                %s203 = sphi %s182, %s182
                %s204 = sphi %s183, %s183
              $region42: #{localizer_alexnet_forward.15} parent=31 // loop_header_branch
                %201 = sbr.rel (%p199) target = $region46
              $region43: #{localizer_alexnet_forward.15} parent=31 // loop_body
                %v205 = vld [vmem:[%s203] sm:$0xf]
                %206 = vst [vmem:[%s204] sm:$0xf] %v205
                %v207 = vld [vmem:[%s203 + $0x3c] sm:$0xf]
                %208 = vst [vmem:[%s204 + $0xc] sm:$0xf] %v207
              $region44: #{localizer_alexnet_forward.15} parent=31 // loop_footer
                %s202 = sadd.s32 1, %s198
              $region45: #{localizer_alexnet_forward.15} parent=31 // loop_footer_branch
                %197 = sbr.rel target = $region41
              $region46: #{localizer_alexnet_forward.15} parent=31 // loop_exit
                _
            $region32: #{localizer_alexnet_forward.15} parent=27 // pred_fallthru
              _
          $region28: #{localizer_alexnet_forward.15} parent=23 // pred_fallthru
            _
          %209 = vnop
        $region24: #{localizer_alexnet_forward.15} parent=19 // pred_fallthru
          _
        // Predicated region
        $region47: #{localizer_alexnet_forward.15} parent=19 // pred_check
          %p210 = pneg %p78
        $region48: #{localizer_alexnet_forward.15} parent=19 // pred_check_branch
          %212 = sbr.rel (%p210) target = $region50
        $region49: #{localizer_alexnet_forward.15} parent=19 // pred_region
          %s213 = smul.u32 48, %s18
          %s214 = smul.u32 3, %s17
          %p215 = scmp.lt.s32.totalorder %s213, 239
          %s216 = scalar_select %p215, %s213, 239
          %p217 = scmp.lt.s32.totalorder %s214, 2
          %s218 = scalar_select %p217, %s214, 2
          %s219 = smul.addr %s216, 3
          %s220 = sadd.s32 %s218, %s219
          %s221 = smul.addr %s220, 4
          %s222 = scalar_lea.vmem %s1, %s221
          %s223 = smul.u32 48, %s18
          %s224 = smul.u32 3, %s17
        $region50: #{localizer_alexnet_forward.15} parent=19 // pred_fallthru
          _
      $region20: #{localizer_alexnet_forward.15} parent=5 // pred_fallthru
        _
      %p225 = scmp.le.s32.totalorder 1, %s9
      %p226 = scmp.lt.s32.totalorder %s9, 11
      %p227 = pnand %p225, %p226
      %p228 = pneg %p227
      // Predicated region
      $region51: #{localizer_alexnet_forward.15} parent=5 // pred_check
        _
      $region52: #{localizer_alexnet_forward.15} parent=5 // pred_check_branch
        %230 = sbr.rel (%p227) target = $region54
      $region53: #{localizer_alexnet_forward.15} parent=5 // pred_region
        %s231 = ssub.s32 %s9, 1
        %s232 = sand.u32 %s43, 1
        %s233 = sand.u32 %s43, 1
        %s234 = smul.addr %s233, 24
        %s235 = scalar_lea.vmem [#allocation3], %s234
        // Predicated region
        $region55: #{localizer_alexnet_forward.15} parent=53 // pred_check
          %p236 = pneg %p56
        $region56: #{localizer_alexnet_forward.15} parent=53 // pred_check_branch
          %238 = sbr.rel (%p236) target = $region58
        $region57: #{localizer_alexnet_forward.15} parent=53 // pred_region
          _
        $region58: #{localizer_alexnet_forward.15} parent=53 // pred_fallthru
          _
        %s239 = sand.u32 %s43, 1
        %s240 = sand.u32 %s43, 1
        %s241 = smul.addr %s240, 24
        %s242 = scalar_lea.vmem [#allocation3], %s241
        %p243 = pneg %p56
        %p244 = pneg %p53
        %s245 = smul.u32 48, %s21
        %s246 = smul.u32 3, %s20
        %p247 = scmp.lt.s32.totalorder %s245, 239
        %s248 = scalar_select %p247, %s245, 239
        %p249 = scmp.lt.s32.totalorder %s246, 2
        %s250 = scalar_select %p249, %s246, 2
        %s251 = smul.addr %s248, 3
        %s252 = sadd.s32 %s250, %s251
        %s253 = smul.addr %s252, 4
        %s254 = scalar_lea.vmem %s1, %s253
        %p255 = pneg %p84
        %p256 = pneg %p81
        %s257 = smul.u32 3, %s20
        %p258 = scmp.lt.s32.totalorder %s257, 2
        %s259 = scalar_select %p258, %s257, 2
        %s260 = scalar_lea.vmem %s2, %s259
        %p261 = pneg %p110
        %p262 = pneg %p107
        %p263 = pneg %p138
        %p264 = pneg %p135
        %s265 = smul.u32 2, %s19
        %s266 = smul.u32 3, %s20
        %p267 = scmp.lt.s32.totalorder %s265, 3
        %s268 = scalar_select %p267, %s265, 3
        %p269 = scmp.lt.s32.totalorder %s266, 2
        %s270 = scalar_select %p269, %s266, 2
        %s271 = smul.addr %s268, 3
        %s272 = sadd.s32 %s270, %s271
        %s273 = smul.addr %s272, 4
        %s274 = scalar_lea.vmem %s3, %s273
        %s275 = smul.u32 2, %s19
        %s276 = smul.u32 3, %s21
        %s277 = smul.u32 48, %s21
        %s278 = smul.u32 3, %s20
        %p279 = scmp.lt.s32.totalorder %s277, 239
        %s280 = scalar_select %p279, %s277, 239
        %p281 = scmp.lt.s32.totalorder %s278, 2
        %s282 = scalar_select %p281, %s278, 2
        %s283 = smul.addr %s280, 3
        %s284 = sadd.s32 %s282, %s283
        %s285 = smul.addr %s284, 4
        %s286 = scalar_lea.vmem %s1, %s285
        %s287 = smul.u32 48, %s21
        %s288 = smul.u32 3, %s20
        %s289 = smul.u32 3, %s20
        %p290 = scmp.lt.s32.totalorder %s289, 2
        %s291 = scalar_select %p290, %s289, 2
        %s292 = scalar_lea.vmem %s2, %s291
        %s293 = smul.u32 3, %s20
        %s294 = smul.u32 2, %s19
        %s295 = smul.u32 3, %s20
        %p296 = scmp.lt.s32.totalorder %s294, 3
        %s297 = scalar_select %p296, %s294, 3
        %p298 = scmp.lt.s32.totalorder %s295, 2
        %s299 = scalar_select %p298, %s295, 2
        %s300 = smul.addr %s297, 3
        %s301 = sadd.s32 %s299, %s300
        %s302 = smul.addr %s301, 4
        %s303 = scalar_lea.vmem %s3, %s302
        %s304 = smul.u32 2, %s19
        %s305 = smul.u32 3, %s20
        %p307 = scmp.eq.s32.totalorder %s21, 0
        // Predicated region
        $region59: #{localizer_alexnet_forward.15} parent=53 // pred_check
          %p308 = pneg %p307
        $region60: #{localizer_alexnet_forward.15} parent=53 // pred_check_branch
          %310 = sbr.rel (%p308) target = $region62
        $region61: #{localizer_alexnet_forward.15} parent=53 // pred_region
          %311 = vst [vmem:[#allocation2] sm:$0xff] 0.0
          %312 = vst [vmem:[#allocation2 + $0x8] sm:$0xff] 0.0
          %313 = vst [vmem:[#allocation2 + $0x10] sm:$0xff] 0.0
          %314 = vst [vmem:[#allocation2 + $0x18] sm:$0xff] 0.0
          %315 = vst [vmem:[#allocation2 + $0x20] sm:$0xff] 0.0
          %316 = vst [vmem:[#allocation2 + $0x28] sm:$0xff] 0.0
        $region62: #{localizer_alexnet_forward.15} parent=53 // pred_fallthru
          _
        %v317 = vld [vmem:[#allocation2] sm:$0xff]
        %v318 = vld [vmem:[#allocation2 + $0x8] sm:$0xff]
        %v319 = vld [vmem:[#allocation2 + $0x10] sm:$0xff]
        %v320 = vld [vmem:[#allocation2 + $0x18] sm:$0xff]
        %v321 = vld [vmem:[#allocation2 + $0x20] sm:$0xff]
        %v322 = vld [vmem:[#allocation2 + $0x28] sm:$0xff]
        %v323 = vld [vmem:[%s235] sm:$0xff]
        %v324 = vld [vmem:[%s235 + $0x8] sm:$0xf]
        %v325 = vld [vmem:[%s235 + $0xc] sm:$0xff]
        %v326 = vld [vmem:[%s235 + $0x14] sm:$0xf]
        %v327 = vld [vmem:[%s286] sm:$0xff]
        %v328 = vld [vmem:[%s286 + $0x8] sm:$0xf]
        %v329 = vld [vmem:[%s286 + $0xc] sm:$0xff]
        %v330 = vld [vmem:[%s286 + $0x14] sm:$0xf]
        %v331 = vld [vmem:[%s286 + $0x18] sm:$0xff]
        %v332 = vld [vmem:[%s286 + $0x20] sm:$0xf]
        %v333 = vld [vmem:[%s286 + $0x24] sm:$0xff]
        %v334 = vld [vmem:[%s286 + $0x2c] sm:$0xf]
        %v335 = vld [vmem:[%s286 + $0x30] sm:$0xff]
        %v336 = vld [vmem:[%s286 + $0x38] sm:$0xf]
        %v337 = vld [vmem:[%s286 + $0x3c] sm:$0xff]
        %v338 = vld [vmem:[%s286 + $0x44] sm:$0xf]
        %v339 = vld [vmem:[%s286 + $0x48] sm:$0xff]
        %v340 = vld [vmem:[%s286 + $0x50] sm:$0xf]
        %v341 = vld [vmem:[%s286 + $0x54] sm:$0xff]
        %v342 = vld [vmem:[%s286 + $0x5c] sm:$0xf]
        %v343 = vld [vmem:[%s286 + $0x60] sm:$0xff]
        %v344 = vld [vmem:[%s286 + $0x68] sm:$0xf]
        %v345 = vld [vmem:[%s286 + $0x6c] sm:$0xff]
        %v346 = vld [vmem:[%s286 + $0x74] sm:$0xf]
        %v347 = vld [vmem:[%s286 + $0x78] sm:$0xff]
        %v348 = vld [vmem:[%s286 + $0x80] sm:$0xf]
        %v349 = vld [vmem:[%s286 + $0x84] sm:$0xff]
        %v350 = vld [vmem:[%s286 + $0x8c] sm:$0xf]
        %v351 = vld [vmem:[%s286 + $0x90] sm:$0xff]
        %v352 = vld [vmem:[%s286 + $0x98] sm:$0xf]
        %v353 = vld [vmem:[%s286 + $0x9c] sm:$0xff]
        %v354 = vld [vmem:[%s286 + $0xa4] sm:$0xf]
        %v355 = vld [vmem:[%s286 + $0xa8] sm:$0xff]
        %v356 = vld [vmem:[%s286 + $0xb0] sm:$0xf]
        %v357 = vld [vmem:[%s286 + $0xb4] sm:$0xff]
        %v358 = vld [vmem:[%s286 + $0xbc] sm:$0xf]
        %v359 = vld [vmem:[%s286 + $0xc0] sm:$0xff]
        %v360 = vld [vmem:[%s286 + $0xc8] sm:$0xf]
        %v361 = vld [vmem:[%s286 + $0xcc] sm:$0xff]
        %v362 = vld [vmem:[%s286 + $0xd4] sm:$0xf]
        %v363 = vld [vmem:[%s286 + $0xd8] sm:$0xff]
        %v364 = vld [vmem:[%s286 + $0xe0] sm:$0xf]
        %v365 = vld [vmem:[%s286 + $0xe4] sm:$0xff]
        %v366 = vld [vmem:[%s286 + $0xec] sm:$0xf]
        %v367 = vld [vmem:[%s286 + $0xf0] sm:$0xff]
        %v368 = vld [vmem:[%s286 + $0xf8] sm:$0xf]
        %v369 = vld [vmem:[%s286 + $0xfc] sm:$0xff]
        %v370 = vld [vmem:[%s286 + $0x104] sm:$0xf]
        %v371 = vld [vmem:[%s286 + $0x108] sm:$0xff]
        %v372 = vld [vmem:[%s286 + $0x110] sm:$0xf]
        %v373 = vld [vmem:[%s286 + $0x114] sm:$0xff]
        %v374 = vld [vmem:[%s286 + $0x11c] sm:$0xf]
        %v375 = vld [vmem:[%s286 + $0x120] sm:$0xff]
        %v376 = vld [vmem:[%s286 + $0x128] sm:$0xf]
        %v377 = vld [vmem:[%s286 + $0x12c] sm:$0xff]
        %v378 = vld [vmem:[%s286 + $0x134] sm:$0xf]
        %v379 = vld [vmem:[%s286 + $0x138] sm:$0xff]
        %v380 = vld [vmem:[%s286 + $0x140] sm:$0xf]
        %v381 = vld [vmem:[%s286 + $0x144] sm:$0xff]
        %v382 = vld [vmem:[%s286 + $0x14c] sm:$0xf]
        %v383 = vld [vmem:[%s286 + $0x150] sm:$0xff]
        %v384 = vld [vmem:[%s286 + $0x158] sm:$0xf]
        %v385 = vld [vmem:[%s286 + $0x15c] sm:$0xff]
        %v386 = vld [vmem:[%s286 + $0x164] sm:$0xf]
        %v387 = vld [vmem:[%s286 + $0x168] sm:$0xff]
        %v388 = vld [vmem:[%s286 + $0x170] sm:$0xf]
        %v389 = vld [vmem:[%s286 + $0x174] sm:$0xff]
        %v390 = vld [vmem:[%s286 + $0x17c] sm:$0xf]
        %v391 = vld [vmem:[%s286 + $0x180] sm:$0xff]
        %v392 = vld [vmem:[%s286 + $0x188] sm:$0xf]
        %v393 = vld [vmem:[%s286 + $0x18c] sm:$0xff]
        %v394 = vld [vmem:[%s286 + $0x194] sm:$0xf]
        %v395 = vld [vmem:[%s286 + $0x198] sm:$0xff]
        %v396 = vld [vmem:[%s286 + $0x1a0] sm:$0xf]
        %v397 = vld [vmem:[%s286 + $0x1a4] sm:$0xff]
        %v398 = vld [vmem:[%s286 + $0x1ac] sm:$0xf]
        %v399 = vld [vmem:[%s286 + $0x1b0] sm:$0xff]
        %v400 = vld [vmem:[%s286 + $0x1b8] sm:$0xf]
        %v401 = vld [vmem:[%s286 + $0x1bc] sm:$0xff]
        %v402 = vld [vmem:[%s286 + $0x1c4] sm:$0xf]
        %v403 = vld [vmem:[%s286 + $0x1c8] sm:$0xff]
        %v404 = vld [vmem:[%s286 + $0x1d0] sm:$0xf]
        %v405 = vld [vmem:[%s286 + $0x1d4] sm:$0xff]
        %v406 = vld [vmem:[%s286 + $0x1dc] sm:$0xf]
        %v407 = vld [vmem:[%s286 + $0x1e0] sm:$0xff]
        %v408 = vld [vmem:[%s286 + $0x1e8] sm:$0xf]
        %v409 = vld [vmem:[%s286 + $0x1ec] sm:$0xff]
        %v410 = vld [vmem:[%s286 + $0x1f4] sm:$0xf]
        %v411 = vld [vmem:[%s286 + $0x1f8] sm:$0xff]
        %v412 = vld [vmem:[%s286 + $0x200] sm:$0xf]
        %v413 = vld [vmem:[%s286 + $0x204] sm:$0xff]
        %v414 = vld [vmem:[%s286 + $0x20c] sm:$0xf]
        %v415 = vld [vmem:[%s286 + $0x210] sm:$0xff]
        %v416 = vld [vmem:[%s286 + $0x218] sm:$0xf]
        %v417 = vld [vmem:[%s286 + $0x21c] sm:$0xff]
        %v418 = vld [vmem:[%s286 + $0x224] sm:$0xf]
        %v419 = vld [vmem:[%s286 + $0x228] sm:$0xff]
        %v420 = vld [vmem:[%s286 + $0x230] sm:$0xf]
        %v421 = vld [vmem:[%s286 + $0x234] sm:$0xff]
        %v422 = vld [vmem:[%s286 + $0x23c] sm:$0xf]
        %v427 = vunpack.c.l.b16 %v323
        %v428 = vunpack.c.h.b16 %v323
        %v429 = vunpack.c.l.b16 %v324
        %v430 = vunpack.c.l.b16 %v325
        %v431 = vunpack.c.h.b16 %v325
        %v432 = vunpack.c.l.b16 %v326
        %v433 = vpack.c.b16 %v430, %v427
        %v434 = vpack.c.b16 %v431, %v428
        %v435 = vpack.c.b16 %v432, %v429
        %v535 = vunpack.c.l.b16 %v327
        %v536 = vunpack.c.h.b16 %v327
        %v537 = vunpack.c.l.b16 %v328
        %v538 = vunpack.c.l.b16 %v329
        %v539 = vunpack.c.h.b16 %v329
        %v540 = vunpack.c.l.b16 %v330
        %v541 = vunpack.c.l.b16 %v331
        %v542 = vunpack.c.h.b16 %v331
        %v543 = vunpack.c.l.b16 %v332
        %v544 = vunpack.c.l.b16 %v333
        %v545 = vunpack.c.h.b16 %v333
        %v546 = vunpack.c.l.b16 %v334
        %v547 = vunpack.c.l.b16 %v335
        %v548 = vunpack.c.h.b16 %v335
        %v549 = vunpack.c.l.b16 %v336
        %v550 = vunpack.c.l.b16 %v337
        %v551 = vunpack.c.h.b16 %v337
        %v552 = vunpack.c.l.b16 %v338
        %v553 = vunpack.c.l.b16 %v339
        %v554 = vunpack.c.h.b16 %v339
        %v555 = vunpack.c.l.b16 %v340
        %v556 = vunpack.c.l.b16 %v341
        %v557 = vunpack.c.h.b16 %v341
        %v558 = vunpack.c.l.b16 %v342
        %v559 = vunpack.c.l.b16 %v343
        %v560 = vunpack.c.h.b16 %v343
        %v561 = vunpack.c.l.b16 %v344
        %v562 = vunpack.c.l.b16 %v345
        %v563 = vunpack.c.h.b16 %v345
        %v564 = vunpack.c.l.b16 %v346
        %v565 = vunpack.c.l.b16 %v347
        %v566 = vunpack.c.h.b16 %v347
        %v567 = vunpack.c.l.b16 %v348
        %v568 = vunpack.c.l.b16 %v349
        %v569 = vunpack.c.h.b16 %v349
        %v570 = vunpack.c.l.b16 %v350
        %v571 = vunpack.c.l.b16 %v351
        %v572 = vunpack.c.h.b16 %v351
        %v573 = vunpack.c.l.b16 %v352
        %v574 = vunpack.c.l.b16 %v353
        %v575 = vunpack.c.h.b16 %v353
        %v576 = vunpack.c.l.b16 %v354
        %v577 = vunpack.c.l.b16 %v355
        %v578 = vunpack.c.h.b16 %v355
        %v579 = vunpack.c.l.b16 %v356
        %v580 = vunpack.c.l.b16 %v357
        %v581 = vunpack.c.h.b16 %v357
        %v582 = vunpack.c.l.b16 %v358
        %v583 = vunpack.c.l.b16 %v359
        %v584 = vunpack.c.h.b16 %v359
        %v585 = vunpack.c.l.b16 %v360
        %v586 = vunpack.c.l.b16 %v361
        %v587 = vunpack.c.h.b16 %v361
        %v588 = vunpack.c.l.b16 %v362
        %v589 = vunpack.c.l.b16 %v363
        %v590 = vunpack.c.h.b16 %v363
        %v591 = vunpack.c.l.b16 %v364
        %v592 = vunpack.c.l.b16 %v365
        %v593 = vunpack.c.h.b16 %v365
        %v594 = vunpack.c.l.b16 %v366
        %v595 = vunpack.c.l.b16 %v367
        %v596 = vunpack.c.h.b16 %v367
        %v597 = vunpack.c.l.b16 %v368
        %v598 = vunpack.c.l.b16 %v369
        %v599 = vunpack.c.h.b16 %v369
        %v600 = vunpack.c.l.b16 %v370
        %v601 = vunpack.c.l.b16 %v371
        %v602 = vunpack.c.h.b16 %v371
        %v603 = vunpack.c.l.b16 %v372
        %v604 = vunpack.c.l.b16 %v373
        %v605 = vunpack.c.h.b16 %v373
        %v606 = vunpack.c.l.b16 %v374
        %v607 = vunpack.c.l.b16 %v375
        %v608 = vunpack.c.h.b16 %v375
        %v609 = vunpack.c.l.b16 %v376
        %v610 = vunpack.c.l.b16 %v377
        %v611 = vunpack.c.h.b16 %v377
        %v612 = vunpack.c.l.b16 %v378
        %v613 = vunpack.c.l.b16 %v379
        %v614 = vunpack.c.h.b16 %v379
        %v615 = vunpack.c.l.b16 %v380
        %v616 = vunpack.c.l.b16 %v381
        %v617 = vunpack.c.h.b16 %v381
        %v618 = vunpack.c.l.b16 %v382
        %v619 = vunpack.c.l.b16 %v383
        %v620 = vunpack.c.h.b16 %v383
        %v621 = vunpack.c.l.b16 %v384
        %v622 = vunpack.c.l.b16 %v385
        %v623 = vunpack.c.h.b16 %v385
        %v624 = vunpack.c.l.b16 %v386
        %v625 = vunpack.c.l.b16 %v387
        %v626 = vunpack.c.h.b16 %v387
        %v627 = vunpack.c.l.b16 %v388
        %v628 = vunpack.c.l.b16 %v389
        %v629 = vunpack.c.h.b16 %v389
        %v630 = vunpack.c.l.b16 %v390
        %v631 = vunpack.c.l.b16 %v391
        %v632 = vunpack.c.h.b16 %v391
        %v633 = vunpack.c.l.b16 %v392
        %v634 = vunpack.c.l.b16 %v393
        %v635 = vunpack.c.h.b16 %v393
        %v636 = vunpack.c.l.b16 %v394
        %v637 = vunpack.c.l.b16 %v395
        %v638 = vunpack.c.h.b16 %v395
        %v639 = vunpack.c.l.b16 %v396
        %v640 = vunpack.c.l.b16 %v397
        %v641 = vunpack.c.h.b16 %v397
        %v642 = vunpack.c.l.b16 %v398
        %v643 = vunpack.c.l.b16 %v399
        %v644 = vunpack.c.h.b16 %v399
        %v645 = vunpack.c.l.b16 %v400
        %v646 = vunpack.c.l.b16 %v401
        %v647 = vunpack.c.h.b16 %v401
        %v648 = vunpack.c.l.b16 %v402
        %v649 = vunpack.c.l.b16 %v403
        %v650 = vunpack.c.h.b16 %v403
        %v651 = vunpack.c.l.b16 %v404
        %v652 = vunpack.c.l.b16 %v405
        %v653 = vunpack.c.h.b16 %v405
        %v654 = vunpack.c.l.b16 %v406
        %v655 = vunpack.c.l.b16 %v407
        %v656 = vunpack.c.h.b16 %v407
        %v657 = vunpack.c.l.b16 %v408
        %v658 = vunpack.c.l.b16 %v409
        %v659 = vunpack.c.h.b16 %v409
        %v660 = vunpack.c.l.b16 %v410
        %v661 = vunpack.c.l.b16 %v411
        %v662 = vunpack.c.h.b16 %v411
        %v663 = vunpack.c.l.b16 %v412
        %v664 = vunpack.c.l.b16 %v413
        %v665 = vunpack.c.h.b16 %v413
        %v666 = vunpack.c.l.b16 %v414
        %v667 = vunpack.c.l.b16 %v415
        %v668 = vunpack.c.h.b16 %v415
        %v669 = vunpack.c.l.b16 %v416
        %v670 = vunpack.c.l.b16 %v417
        %v671 = vunpack.c.h.b16 %v417
        %v672 = vunpack.c.l.b16 %v418
        %v673 = vunpack.c.l.b16 %v419
        %v674 = vunpack.c.h.b16 %v419
        %v675 = vunpack.c.l.b16 %v420
        %v676 = vunpack.c.l.b16 %v421
        %v677 = vunpack.c.h.b16 %v421
        %v678 = vunpack.c.l.b16 %v422
        %v679 = vpack.c.b16 %v538, %v535
        %v680 = vpack.c.b16 %v539, %v536
        %v681 = vpack.c.b16 %v540, %v537
        %v682 = vpack.c.b16 %v544, %v541
        %v683 = vpack.c.b16 %v545, %v542
        %v684 = vpack.c.b16 %v546, %v543
        %v685 = vpack.c.b16 %v550, %v547
        %v686 = vpack.c.b16 %v551, %v548
        %v687 = vpack.c.b16 %v552, %v549
        %v688 = vpack.c.b16 %v556, %v553
        %v689 = vpack.c.b16 %v557, %v554
        %v690 = vpack.c.b16 %v558, %v555
        %v691 = vpack.c.b16 %v562, %v559
        %v692 = vpack.c.b16 %v563, %v560
        %v693 = vpack.c.b16 %v564, %v561
        %v694 = vpack.c.b16 %v568, %v565
        %v695 = vpack.c.b16 %v569, %v566
        %v696 = vpack.c.b16 %v570, %v567
        %v697 = vpack.c.b16 %v574, %v571
        %v698 = vpack.c.b16 %v575, %v572
        %v699 = vpack.c.b16 %v576, %v573
        %v700 = vpack.c.b16 %v580, %v577
        %v701 = vpack.c.b16 %v581, %v578
        %v702 = vpack.c.b16 %v582, %v579
        %v703 = vpack.c.b16 %v586, %v583
        %v704 = vpack.c.b16 %v587, %v584
        %v705 = vpack.c.b16 %v588, %v585
        %v706 = vpack.c.b16 %v592, %v589
        %v707 = vpack.c.b16 %v593, %v590
        %v708 = vpack.c.b16 %v594, %v591
        %v709 = vpack.c.b16 %v598, %v595
        %v710 = vpack.c.b16 %v599, %v596
        %v711 = vpack.c.b16 %v600, %v597
        %v712 = vpack.c.b16 %v604, %v601
        %v713 = vpack.c.b16 %v605, %v602
        %v714 = vpack.c.b16 %v606, %v603
        %v715 = vpack.c.b16 %v610, %v607
        %v716 = vpack.c.b16 %v611, %v608
        %v717 = vpack.c.b16 %v612, %v609
        %v718 = vpack.c.b16 %v616, %v613
        %v719 = vpack.c.b16 %v617, %v614
        %v720 = vpack.c.b16 %v618, %v615
        %v721 = vpack.c.b16 %v622, %v619
        %v722 = vpack.c.b16 %v623, %v620
        %v723 = vpack.c.b16 %v624, %v621
        %v724 = vpack.c.b16 %v628, %v625
        %v725 = vpack.c.b16 %v629, %v626
        %v726 = vpack.c.b16 %v630, %v627
        %v727 = vpack.c.b16 %v634, %v631
        %v728 = vpack.c.b16 %v635, %v632
        %v729 = vpack.c.b16 %v636, %v633
        %v730 = vpack.c.b16 %v640, %v637
        %v731 = vpack.c.b16 %v641, %v638
        %v732 = vpack.c.b16 %v642, %v639
        %v733 = vpack.c.b16 %v646, %v643
        %v734 = vpack.c.b16 %v647, %v644
        %v735 = vpack.c.b16 %v648, %v645
        %v736 = vpack.c.b16 %v652, %v649
        %v737 = vpack.c.b16 %v653, %v650
        %v738 = vpack.c.b16 %v654, %v651
        %v739 = vpack.c.b16 %v658, %v655
        %v740 = vpack.c.b16 %v659, %v656
        %v741 = vpack.c.b16 %v660, %v657
        %v742 = vpack.c.b16 %v664, %v661
        %v743 = vpack.c.b16 %v665, %v662
        %v744 = vpack.c.b16 %v666, %v663
        %v745 = vpack.c.b16 %v670, %v667
        %v746 = vpack.c.b16 %v671, %v668
        %v747 = vpack.c.b16 %v672, %v669
        %v748 = vpack.c.b16 %v676, %v673
        %v749 = vpack.c.b16 %v677, %v674
        %v750 = vpack.c.b16 %v678, %v675
        %823 = vmatprep.subr.bf16.mxu0 %v680
        %824 = vmatpush1.bf16.msra.mxu0 %v679
        %825 = vmatprep.subr.bf16.mxu0 %v683
        %826 = vmatpush1.bf16.msra.mxu0 %v682
        %827 = vmatprep.subr.bf16.mxu0 %v686
        %828 = vmatpush1.bf16.msra.mxu0 %v685
        %829 = vmatprep.subr.bf16.mxu0 %v689
        %830 = vmatpush1.bf16.msra.mxu0 %v688
        %831 = vmatprep.subr.bf16.mxu0 %v692
        %832 = vmatpush1.bf16.msra.mxu0 %v691
        %833 = vmatprep.subr.bf16.mxu0 %v695
        %834 = vmatpush1.bf16.msra.mxu0 %v694
        %835 = vmatprep.subr.bf16.mxu0 %v698
        %836 = vmatpush1.bf16.msra.mxu0 %v697
        %837 = vmatprep.subr.bf16.mxu0 %v701
        %838 = vmatpush1.bf16.msra.mxu0 %v700
        %839 = vmatprep.subr.bf16.mxu0 %v704
        %840 = vmatpush1.bf16.msra.mxu0 %v703
        %841 = vmatprep.subr.bf16.mxu0 %v707
        %842 = vmatpush1.bf16.msra.mxu0 %v706
        %843 = vmatprep.subr.bf16.mxu0 %v710
        %844 = vmatpush1.bf16.msra.mxu0 %v709
        %845 = vmatprep.subr.bf16.mxu0 %v713
        %846 = vmatpush1.bf16.msra.mxu0 %v712
        %847 = vmatprep.subr.bf16.mxu0 %v716
        %848 = vmatpush1.bf16.msra.mxu0 %v715
        %849 = vmatprep.subr.bf16.mxu0 %v719
        %850 = vmatpush1.bf16.msra.mxu0 %v718
        %851 = vmatprep.subr.bf16.mxu0 %v722
        %852 = vmatpush1.bf16.msra.mxu0 %v721
        %853 = vmatprep.subr.bf16.mxu0 %v725
        %854 = vmatpush1.bf16.msra.mxu0 %v724
        %855 = vmatprep.mubr.bf16.mxu0 %v434
        %856 = vmatmul.mubr.bf16.gmra.mrb[0].mxu0 %v433
        %v857 = vpop.f32.mrb[0].mxu0
        %v858 = vadd.f32 0.0, %v857
        %v859 = vpop.f32.mrb[0].mxu0
        %v860 = vadd.f32 0.0, %v859
        %v861 = vpop.f32.mrb[0].mxu0
        %v862 = vadd.f32 0.0, %v861
        %v863 = vpop.f32.mrb[0].mxu0
        %v864 = vadd.f32 0.0, %v863
        %865 = vdwg.mxu0
        %866 = vmatprep.subr.bf16.mxu0 %v728
        %867 = vmatpush1.bf16.msra.mxu0 %v727
        %868 = vmatprep.subr.bf16.mxu0 %v731
        %869 = vmatpush1.bf16.msra.mxu0 %v730
        %870 = vmatprep.subr.bf16.mxu0 %v734
        %871 = vmatpush1.bf16.msra.mxu0 %v733
        %872 = vmatprep.subr.bf16.mxu0 %v737
        %873 = vmatpush1.bf16.msra.mxu0 %v736
        %874 = vmatprep.subr.bf16.mxu0 %v740
        %875 = vmatpush1.bf16.msra.mxu0 %v739
        %876 = vmatprep.subr.bf16.mxu0 %v743
        %877 = vmatpush1.bf16.msra.mxu0 %v742
        %878 = vmatprep.subr.bf16.mxu0 %v746
        %879 = vmatpush1.bf16.msra.mxu0 %v745
        %880 = vmatprep.subr.bf16.mxu0 %v749
        %881 = vmatpush1.bf16.msra.mxu0 %v748
        %882 = vmatprep.subr.bf16.mxu0 0
        %883 = vmatpush1.bf16.msra.mxu0 0
        %884 = vmatprep.subr.bf16.mxu0 0
        %885 = vmatpush1.bf16.msra.mxu0 0
        %886 = vmatprep.subr.bf16.mxu0 0
        %887 = vmatpush1.bf16.msra.mxu0 0
        %888 = vmatprep.subr.bf16.mxu0 0
        %889 = vmatpush1.bf16.msra.mxu0 0
        %890 = vmatprep.subr.bf16.mxu0 0
        %891 = vmatpush1.bf16.msra.mxu0 0
        %892 = vmatprep.subr.bf16.mxu0 0
        %893 = vmatpush1.bf16.msra.mxu0 0
        %894 = vmatprep.subr.bf16.mxu0 0
        %895 = vmatpush1.bf16.msra.mxu0 0
        %896 = vmatprep.subr.bf16.mxu0 0
        %897 = vmatpush1.bf16.msra.mxu0 0
        %898 = vmatprep.mubr.bf16.mxu0 0
        %899 = vmatmul.mubr.bf16.gmra.mrb[0].mxu0 %v435
        %v900 = vpop.f32.mrb[0].mxu0
        %v901 = vadd.f32 %v858, %v900
        %v902 = vpop.f32.mrb[0].mxu0
        %v903 = vadd.f32 %v860, %v902
        %v904 = vpop.f32.mrb[0].mxu0
        %v905 = vadd.f32 %v862, %v904
        %v906 = vpop.f32.mrb[0].mxu0
        %v907 = vadd.f32 %v864, %v906
        %908 = vdwg.mxu0
        %909 = vmatprep.subr.bf16.mxu0 0
        %910 = vmatpush1.bf16.msra.mxu0 %v681
        %911 = vmatprep.subr.bf16.mxu0 0
        %912 = vmatpush1.bf16.msra.mxu0 %v684
        %913 = vmatprep.subr.bf16.mxu0 0
        %914 = vmatpush1.bf16.msra.mxu0 %v687
        %915 = vmatprep.subr.bf16.mxu0 0
        %916 = vmatpush1.bf16.msra.mxu0 %v690
        %917 = vmatprep.subr.bf16.mxu0 0
        %918 = vmatpush1.bf16.msra.mxu0 %v693
        %919 = vmatprep.subr.bf16.mxu0 0
        %920 = vmatpush1.bf16.msra.mxu0 %v696
        %921 = vmatprep.subr.bf16.mxu0 0
        %922 = vmatpush1.bf16.msra.mxu0 %v699
        %923 = vmatprep.subr.bf16.mxu0 0
        %924 = vmatpush1.bf16.msra.mxu0 %v702
        %925 = vmatprep.subr.bf16.mxu0 0
        %926 = vmatpush1.bf16.msra.mxu0 %v705
        %927 = vmatprep.subr.bf16.mxu0 0
        %928 = vmatpush1.bf16.msra.mxu0 %v708
        %929 = vmatprep.subr.bf16.mxu0 0
        %930 = vmatpush1.bf16.msra.mxu0 %v711
        %931 = vmatprep.subr.bf16.mxu0 0
        %932 = vmatpush1.bf16.msra.mxu0 %v714
        %933 = vmatprep.subr.bf16.mxu0 0
        %934 = vmatpush1.bf16.msra.mxu0 %v717
        %935 = vmatprep.subr.bf16.mxu0 0
        %936 = vmatpush1.bf16.msra.mxu0 %v720
        %937 = vmatprep.subr.bf16.mxu0 0
        %938 = vmatpush1.bf16.msra.mxu0 %v723
        %939 = vmatprep.subr.bf16.mxu0 0
        %940 = vmatpush1.bf16.msra.mxu0 %v726
        %941 = vmatprep.mubr.bf16.mxu0 %v434
        %942 = vmatmul.mubr.bf16.gmra.mrb[0].mxu0 %v433
        %v943 = vpop.f32.mrb[0].mxu0
        %v944 = vadd.f32 0.0, %v943
        %v945 = vpop.f32.mrb[0].mxu0
        %v946 = vpop.f32.mrb[0].mxu0
        %v947 = vadd.f32 0.0, %v946
        %v948 = vpop.f32.mrb[0].mxu0
        %949 = vdwg.mxu0
        %950 = vmatprep.subr.bf16.mxu0 0
        %951 = vmatpush1.bf16.msra.mxu0 %v729
        %952 = vmatprep.subr.bf16.mxu0 0
        %953 = vmatpush1.bf16.msra.mxu0 %v732
        %954 = vmatprep.subr.bf16.mxu0 0
        %955 = vmatpush1.bf16.msra.mxu0 %v735
        %956 = vmatprep.subr.bf16.mxu0 0
        %957 = vmatpush1.bf16.msra.mxu0 %v738
        %958 = vmatprep.subr.bf16.mxu0 0
        %959 = vmatpush1.bf16.msra.mxu0 %v741
        %960 = vmatprep.subr.bf16.mxu0 0
        %961 = vmatpush1.bf16.msra.mxu0 %v744
        %962 = vmatprep.subr.bf16.mxu0 0
        %963 = vmatpush1.bf16.msra.mxu0 %v747
        %964 = vmatprep.subr.bf16.mxu0 0
        %965 = vmatpush1.bf16.msra.mxu0 %v750
        %966 = vmatprep.subr.bf16.mxu0 0
        %967 = vmatpush1.bf16.msra.mxu0 0
        %968 = vmatprep.subr.bf16.mxu0 0
        %969 = vmatpush1.bf16.msra.mxu0 0
        %970 = vmatprep.subr.bf16.mxu0 0
        %971 = vmatpush1.bf16.msra.mxu0 0
        %972 = vmatprep.subr.bf16.mxu0 0
        %973 = vmatpush1.bf16.msra.mxu0 0
        %974 = vmatprep.subr.bf16.mxu0 0
        %975 = vmatpush1.bf16.msra.mxu0 0
        %976 = vmatprep.subr.bf16.mxu0 0
        %977 = vmatpush1.bf16.msra.mxu0 0
        %978 = vmatprep.subr.bf16.mxu0 0
        %979 = vmatpush1.bf16.msra.mxu0 0
        %980 = vmatprep.subr.bf16.mxu0 0
        %981 = vmatpush1.bf16.msra.mxu0 0
        %982 = vmatprep.mubr.bf16.mxu0 0
        %983 = vmatmul.mubr.bf16.gmra.mrb[0].mxu0 %v435
        %v984 = vpop.f32.mrb[0].mxu0
        %v985 = vadd.f32 %v944, %v984
        %v986 = vpop.f32.mrb[0].mxu0
        %v987 = vpop.f32.mrb[0].mxu0
        %v988 = vadd.f32 %v947, %v987
        %v989 = vpop.f32.mrb[0].mxu0
        %990 = vdwg.mxu0
        %v991 = vadd.f32 %v317, %v901
        %v992 = vadd.f32 %v318, %v903
        %v993 = vadd.f32 %v319, %v985
        %v994 = vadd.f32 %v320, %v905
        %v995 = vadd.f32 %v321, %v907
        %v996 = vadd.f32 %v322, %v988
        %997 = vst [vmem:[#allocation2] sm:$0xff] %v991
        %998 = vst [vmem:[#allocation2 + $0x8] sm:$0xff] %v992
        %999 = vst [vmem:[#allocation2 + $0x10] sm:$0xff] %v993
        %1000 = vst [vmem:[#allocation2 + $0x18] sm:$0xff] %v994
        %1001 = vst [vmem:[#allocation2 + $0x20] sm:$0xff] %v995
        %1002 = vst [vmem:[#allocation2 + $0x28] sm:$0xff] %v996
        %p1003 = scmp.eq.s32.totalorder %s21, 4
        // Predicated region
        $region63: #{localizer_alexnet_forward.15} parent=53 // pred_check
          %p1004 = pneg %p1003
        $region64: #{localizer_alexnet_forward.15} parent=53 // pred_check_branch
          %1006 = sbr.rel (%p1004) target = $region66
        $region65: #{localizer_alexnet_forward.15} parent=53 // pred_region
          %v1007 = vld [vmem:[#allocation2] sm:$0xff]
          %v1008 = vld [vmem:[#allocation2 + $0x8] sm:$0xff]
          %v1009 = vld [vmem:[#allocation2 + $0x10] sm:$0xff]
          %v1010 = vld [vmem:[#allocation2 + $0x18] sm:$0xff]
          %v1011 = vld [vmem:[#allocation2 + $0x20] sm:$0xff]
          %v1012 = vld [vmem:[#allocation2 + $0x28] sm:$0xff]
          %v1013 = vld [vmem:[%s292] sm:$0x7]
          %v1015 = vlaneseq
          %v1016 = vshrl.u32 %v1015, 7
          %v1017 = vsub.s32 0, %v1016
          %v1018 = vrot.slane %v1013, %v1017
          %v1019 = vlaneseq
          %v1020 = vshrl.u32 %v1019, 7
          %v1021 = vsub.s32 1, %v1020
          %v1022 = vrot.slane %v1013, %v1021
          %v1023 = vlaneseq
          %v1024 = vshrl.u32 %v1023, 7
          %v1025 = vsub.s32 2, %v1024
          %v1026 = vrot.slane %v1013, %v1025
          %v1030 = vadd.f32 %v1007, %v1018
          %v1031 = vadd.f32 %v1008, %v1022
          %v1032 = vadd.f32 %v1009, %v1026
          %v1033 = vadd.f32 %v1010, %v1018
          %v1034 = vadd.f32 %v1011, %v1022
          %v1035 = vadd.f32 %v1012, %v1026
          %v1036 = vmax.f32 %v1030, 0.0
          %v1037 = vmax.f32 %v1031, 0.0
          %v1038 = vmax.f32 %v1032, 0.0
          %v1039 = vmax.f32 %v1033, 0.0
          %v1040 = vmax.f32 %v1034, 0.0
          %v1041 = vmax.f32 %v1035, 0.0
          %v1042 = vpack.c.bf16 %v1039, %v1036
          %v1043 = vpack.c.bf16 %v1040, %v1037
          %v1044 = vpack.c.bf16 %v1041, %v1038
          %v1048 = vunpack.c.l.b16 %v1042
          %v1049 = vunpack.c.l.b16 %v1043
          %v1050 = vunpack.c.l.b16 %v1044
          %v1051 = vunpack.c.h.b16 %v1042
          %v1052 = vunpack.c.h.b16 %v1043
          %v1053 = vunpack.c.h.b16 %v1044
          %v1054 = vpack.c.b16 %v1049, %v1048
          %v1055 = vpack.c.b16 %v1050, %v1050
          %v1056 = vpack.c.b16 %v1052, %v1051
          %v1057 = vpack.c.b16 %v1053, %v1053
          %1062 = vst [vmem:[%s303] sm:$0xff] %v1054
          %1063 = vst [vmem:[%s303 + $0x8] sm:$0xf] %v1055
          %1064 = vst [vmem:[%s303 + $0xc] sm:$0xff] %v1056
          %1065 = vst [vmem:[%s303 + $0x14] sm:$0xf] %v1057
        $region66: #{localizer_alexnet_forward.15} parent=53 // pred_fallthru
          _
        %s1066 = smul.u32 2, %s19
        %s1067 = smul.u32 3, %s20
        %p1068 = scmp.lt.s32.totalorder %s1066, 3
        %s1069 = scalar_select %p1068, %s1066, 3
        %p1070 = scmp.lt.s32.totalorder %s1067, 2
        %s1071 = scalar_select %p1070, %s1067, 2
        %s1072 = smul.addr %s1069, 3
        %s1073 = sadd.s32 %s1071, %s1072
        %s1074 = smul.addr %s1073, 4
        %s1075 = scalar_lea.vmem %s3, %s1074
        // Predicated region
        $region67: #{localizer_alexnet_forward.15} parent=53 // pred_check
          %p1076 = pneg %p135
        $region68: #{localizer_alexnet_forward.15} parent=53 // pred_check_branch
          %1078 = sbr.rel (%p1076) target = $region70
        $region69: #{localizer_alexnet_forward.15} parent=53 // pred_region
          %s1079 = smul.u32 2, %s19
          %s1080 = smul.u32 3, %s20
        $region70: #{localizer_alexnet_forward.15} parent=53 // pred_fallthru
          _
      $region54: #{localizer_alexnet_forward.15} parent=5 // pred_fallthru
        _
      %p1081 = scmp.le.s32.totalorder 2, %s9
      // Predicated region
      $region71: #{localizer_alexnet_forward.15} parent=5 // pred_check
        %p1082 = pneg %p1081
      $region72: #{localizer_alexnet_forward.15} parent=5 // pred_check_branch
        %1084 = sbr.rel (%p1082) target = $region74
      $region73: #{localizer_alexnet_forward.15} parent=5 // pred_region
        %s1085 = ssub.s32 %s9, 2
        // Predicated region
        $region75: #{localizer_alexnet_forward.15} parent=73 // pred_check
          %p1086 = pneg %p141
        $region76: #{localizer_alexnet_forward.15} parent=73 // pred_check_branch
          %1088 = sbr.rel (%p1086) target = $region78
        $region77: #{localizer_alexnet_forward.15} parent=73 // pred_region
          %s1089 = smul.u32 2, %s22
          %s1090 = smul.u32 3, %s23
          %p1091 = scmp.lt.s32.totalorder %s1089, 3
          %s1092 = scalar_select %p1091, %s1089, 3
          %p1093 = scmp.lt.s32.totalorder %s1090, 2
          %s1094 = scalar_select %p1093, %s1090, 2
          %s1095 = smul.addr %s1092, 3
          %s1096 = sadd.s32 %s1094, %s1095
          %s1097 = smul.addr %s1096, 4
          %s1098 = scalar_lea.vmem %s3, %s1097
        $region78: #{localizer_alexnet_forward.15} parent=73 // pred_fallthru
          _
      $region74: #{localizer_alexnet_forward.15} parent=5 // pred_fallthru
        _
    $region6: #{localizer_alexnet_forward.15} parent=1 // loop_footer
      %s13 = sadd.s32 1, %s9
    $region7: #{localizer_alexnet_forward.15} parent=1 // loop_footer_branch
      %8 = sbr.rel target = $region3
    $region8: #{localizer_alexnet_forward.15} parent=1 // loop_exit
      _

// kernel: localizer_alexnet_forward.16
$region0: #{localizer_alexnet_forward.16}
  #allocation0 [shape = 'u32[]', space=smem, size = 0x4, offset = 0x4, fixed_abs, tag = 'smem constant byte address 0x4 - core index']
  #allocation1 [shape = 'u32[144,128]{1,0:T(1,128)}', space=vmem, size = 0x12000, scoped, tag = 'internal scratch']
  #allocation2 [shape = 'f32[16,256]{1,0:T(8,128)}', space=vmem, size = 0x4000, scoped, tag = 'scratch operand']
  %s0 = inlined_call_operand.vmem [shape: bf16[32,3584], index: 0, kind: input, shape index: {}]
  %s1 = inlined_call_operand.vmem [shape: bf16[3584,256], index: 1, kind: input, shape index: {}]
  %s2 = inlined_call_operand.vmem [shape: f32[1,256], index: 2, kind: input, shape index: {}]
  %s3 = inlined_call_operand.vmem [shape: bf16[32,256], index: 3, kind: output, shape index: {}]
  %s4 = sld [smem:[#allocation0]]
  $region76: #{localizer_alexnet_forward.16} parent=0
    _
  %s6 = ssub.s32 1, %s4
  %s7 = scalar_select 0, %s6, %s4
  $region1: #{localizer_alexnet_forward.16} parent=0
    #allocation3 [shape = 'u8[32768]{0}', space=vmem, size = 0x8000, scoped, tag = 'input window, operand 0']
    loop: start=0, step=1, limit=16
    $region2: #{localizer_alexnet_forward.16} parent=1 // loop_pre_header
      _
    $region3: #{localizer_alexnet_forward.16} parent=1 // loop_header
      %s9 = sphi 0, %s13
      %p10 = scmp.ge.s32.totalorder %s9, 16
      %s16 = sphi 0, %s35
      %s17 = sphi 0, %s31
      %s18 = sphi 0, %s27
      %s19 = sphi 0, %s16
      %s20 = sphi 0, %s17
      %s21 = sphi 0, %s18
      %s22 = sphi 0, %s19
      %s23 = sphi 0, %s20
      %s24 = sphi 0, %s21
      %s40 = sphi 0, %s42
      %s43 = sphi 0, %s40
      %s44 = sphi 0, %s43
      %s60 = sphi 0, %s44
      %s68 = sphi 0, %s70
      %s71 = sphi 0, %s68
      %s72 = sphi 0, %s71
      %s88 = sphi 0, %s72
      %s94 = sphi 0, %s96
      %s97 = sphi 0, %s94
      %s98 = sphi 0, %s97
      %s114 = sphi 0, %s98
      %s122 = sphi 0, %s124
      %s125 = sphi 0, %s122
      %s126 = sphi 0, %s125
      %s142 = sphi 0, %s126
    $region4: #{localizer_alexnet_forward.16} parent=1 // loop_header_branch
      %12 = sbr.rel (%p10) target = $region8
    $region5: #{localizer_alexnet_forward.16} parent=1 // loop_body
      %s14 = ssub.s32 %s9, 1
      %s15 = ssub.s32 %s9, 2
      %s25 = sadd.s32 1, %s18
      %p26 = scmp.ge.s32.totalorder %s25, 7
      %s27 = scalar_select %p26, 0, %s25
      %s28 = sadd.s32 1, %s17
      %s29 = scalar_select %p26, %s28, %s17
      %p30 = scmp.ge.s32.totalorder %s29, 1
      %s31 = scalar_select %p30, 0, %s29
      %s32 = sadd.s32 1, %s16
      %s33 = scalar_select %p30, %s32, %s16
      %p34 = scmp.ge.s32.totalorder %s33, 2
      %s35 = scalar_select %p34, 0, %s33
      %s36 = ssub.s32 %s16, %s35
      %s37 = ssub.s32 %s18, %s27
      %s38 = sor.u32 %s36, %s37
      %p39 = scmp.eq.s32.totalorder %s38, 0
      %s41 = sadd.s32 %s40, 1
      %s42 = scalar_select %p39, %s40, %s41
      %p45 = pneg %p39
      %p46 = scmp.eq.s32.totalorder %s9, 13
      %p47 = por %p45, %p46
      %p48 = scmp.ne.s32.totalorder %s40, %s43
      %p49 = scmp.eq.s32.totalorder %s9, 0
      %p50 = por %p48, %p49
      %p51 = scmp.ne.s32.totalorder %s40, %s43
      %p52 = scmp.eq.s32.totalorder %s14, 13
      %p53 = por %p51, %p52
      %p54 = scmp.ne.s32.totalorder %s43, %s44
      %p55 = scmp.eq.s32.totalorder %s14, 0
      %p56 = por %p54, %p55
      %p57 = scmp.ne.s32.totalorder %s43, %s44
      %p58 = scmp.eq.s32.totalorder %s15, 13
      %p59 = por %p57, %p58
      %p61 = scmp.ne.s32.totalorder %s44, %s60
      %p62 = scmp.eq.s32.totalorder %s15, 0
      %p63 = por %p61, %p62
      %s64 = ssub.s32 %s18, %s27
      %s65 = ssub.s32 %s17, %s31
      %s66 = sor.u32 %s64, %s65
      %p67 = scmp.eq.s32.totalorder %s66, 0
      %s69 = sadd.s32 %s68, 1
      %s70 = scalar_select %p67, %s68, %s69
      %p73 = pneg %p67
      %p74 = scmp.eq.s32.totalorder %s9, 13
      %p75 = por %p73, %p74
      %p76 = scmp.ne.s32.totalorder %s68, %s71
      %p77 = scmp.eq.s32.totalorder %s9, 0
      %p78 = por %p76, %p77
      %p79 = scmp.ne.s32.totalorder %s68, %s71
      %p80 = scmp.eq.s32.totalorder %s14, 13
      %p81 = por %p79, %p80
      %p82 = scmp.ne.s32.totalorder %s71, %s72
      %p83 = scmp.eq.s32.totalorder %s14, 0
      %p84 = por %p82, %p83
      %p85 = scmp.ne.s32.totalorder %s71, %s72
      %p86 = scmp.eq.s32.totalorder %s15, 13
      %p87 = por %p85, %p86
      %p89 = scmp.ne.s32.totalorder %s72, %s88
      %p90 = scmp.eq.s32.totalorder %s15, 0
      %p91 = por %p89, %p90
      %s92 = ssub.s32 %s17, %s31
      %p93 = scmp.eq.s32.totalorder %s92, 0
      %s95 = sadd.s32 %s94, 1
      %s96 = scalar_select %p93, %s94, %s95
      %p99 = pneg %p93
      %p100 = scmp.eq.s32.totalorder %s9, 13
      %p101 = por %p99, %p100
      %p102 = scmp.ne.s32.totalorder %s94, %s97
      %p103 = scmp.eq.s32.totalorder %s9, 0
      %p104 = por %p102, %p103
      %p105 = scmp.ne.s32.totalorder %s94, %s97
      %p106 = scmp.eq.s32.totalorder %s14, 13
      %p107 = por %p105, %p106
      %p108 = scmp.ne.s32.totalorder %s97, %s98
      %p109 = scmp.eq.s32.totalorder %s14, 0
      %p110 = por %p108, %p109
      %p111 = scmp.ne.s32.totalorder %s97, %s98
      %p112 = scmp.eq.s32.totalorder %s15, 13
      %p113 = por %p111, %p112
      %p115 = scmp.ne.s32.totalorder %s98, %s114
      %p116 = scmp.eq.s32.totalorder %s15, 0
      %p117 = por %p115, %p116
      %s118 = ssub.s32 %s16, %s35
      %s119 = ssub.s32 %s17, %s31
      %s120 = sor.u32 %s118, %s119
      %p121 = scmp.eq.s32.totalorder %s120, 0
      %s123 = sadd.s32 %s122, 1
      %s124 = scalar_select %p121, %s122, %s123
      %p127 = pneg %p121
      %p128 = scmp.eq.s32.totalorder %s9, 13
      %p129 = por %p127, %p128
      %p130 = scmp.ne.s32.totalorder %s122, %s125
      %p131 = scmp.eq.s32.totalorder %s9, 0
      %p132 = por %p130, %p131
      %p133 = scmp.ne.s32.totalorder %s122, %s125
      %p134 = scmp.eq.s32.totalorder %s14, 13
      %p135 = por %p133, %p134
      %p136 = scmp.ne.s32.totalorder %s125, %s126
      %p137 = scmp.eq.s32.totalorder %s14, 0
      %p138 = por %p136, %p137
      %p139 = scmp.ne.s32.totalorder %s125, %s126
      %p140 = scmp.eq.s32.totalorder %s15, 13
      %p141 = por %p139, %p140
      %p143 = scmp.ne.s32.totalorder %s126, %s142
      %p144 = scmp.eq.s32.totalorder %s15, 0
      %p145 = por %p143, %p144
      %p146 = scmp.le.s32.totalorder 1, %s9
      %p147 = scmp.lt.s32.totalorder %s9, 15
      %p148 = pnand %p146, %p147
      %p149 = pneg %p148
      // Predicated region
      $region9: #{localizer_alexnet_forward.16} parent=5 // pred_check
        _
      $region10: #{localizer_alexnet_forward.16} parent=5 // pred_check_branch
        %151 = sbr.rel (%p148) target = $region12
      $region11: #{localizer_alexnet_forward.16} parent=5 // pred_region
        %s152 = ssub.s32 %s9, 1
        // Predicated region
        $region13: #{localizer_alexnet_forward.16} parent=11 // pred_check
          %p153 = pneg %p110
        $region14: #{localizer_alexnet_forward.16} parent=11 // pred_check_branch
          %155 = sbr.rel (%p153) target = $region16
        $region15: #{localizer_alexnet_forward.16} parent=11 // pred_region
          %s156 = smul.u32 2, %s20
          %p157 = scmp.lt.s32.totalorder %s156, 1
          %s158 = scalar_select %p157, %s156, 1
          %s159 = scalar_lea.vmem %s2, %s158
          %s160 = smul.u32 2, %s20
        $region16: #{localizer_alexnet_forward.16} parent=11 // pred_fallthru
          _
      $region12: #{localizer_alexnet_forward.16} parent=5 // pred_fallthru
        _
      %p161 = scmp.lt.s32.totalorder %s9, 14
      // Predicated region
      $region17: #{localizer_alexnet_forward.16} parent=5 // pred_check
        %p162 = pneg %p161
      $region18: #{localizer_alexnet_forward.16} parent=5 // pred_check_branch
        %164 = sbr.rel (%p162) target = $region20
      $region19: #{localizer_alexnet_forward.16} parent=5 // pred_region
        // Predicated region
        $region21: #{localizer_alexnet_forward.16} parent=19 // pred_check
          %p165 = pneg %p50
        $region22: #{localizer_alexnet_forward.16} parent=19 // pred_check_branch
          %167 = sbr.rel (%p165) target = $region24
        $region23: #{localizer_alexnet_forward.16} parent=19 // pred_region
          %s168 = sand.u32 %s40, 1
          %s169 = sand.u32 %s40, 1
          %s170 = smul.addr %s169, 32
          %s171 = scalar_lea.vmem [#allocation3], %s170
          %s172 = smul.u32 2, %s16
          %s173 = smul.u32 4, %s18
          %s174 = smul.addr %s172, 28
          %s175 = sadd.s32 %s173, %s174
          %s176 = smul.addr %s175, 4
          %s177 = scalar_lea.vmem %s0, %s176
          // Predicated region
          $region25: #{localizer_alexnet_forward.16} parent=23 // pred_check
            _
          $region26: #{localizer_alexnet_forward.16} parent=23 // pred_check_branch
            %179 = sbr.rel (0) target = $region28
          $region27: #{localizer_alexnet_forward.16} parent=23 // pred_region
            // Predicated region
            $region29: #{localizer_alexnet_forward.16} parent=27 // pred_check
              _
            $region30: #{localizer_alexnet_forward.16} parent=27 // pred_check_branch
              %181 = sbr.rel (0) target = $region32
            $region31: #{localizer_alexnet_forward.16} parent=27 // pred_region
              loop: start=0, step=1, limit=1
              $region33: #{localizer_alexnet_forward.16} parent=31 // loop_pre_header
                _
              $region34: #{localizer_alexnet_forward.16} parent=31 // loop_header
                %s183 = sphi 0, %s187
                %p184 = scmp.ge.s32.totalorder %s183, 1
                %s188 = sphi %s177, %s177
                %s189 = sphi %s171, %s171
              $region35: #{localizer_alexnet_forward.16} parent=31 // loop_header_branch
                %186 = sbr.rel (%p184) target = $region39
              $region36: #{localizer_alexnet_forward.16} parent=31 // loop_body
                %v190 = vld [vmem:[%s188] sm:$0xff]
                %191 = vst [vmem:[%s189] sm:$0xff] %v190
                %v192 = vld [vmem:[%s188 + $0x8] sm:$0xff]
                %193 = vst [vmem:[%s189 + $0x8] sm:$0xff] %v192
                %v194 = vld [vmem:[%s188 + $0x70] sm:$0xff]
                %195 = vst [vmem:[%s189 + $0x10] sm:$0xff] %v194
                %v196 = vld [vmem:[%s188 + $0x78] sm:$0xff]
                %197 = vst [vmem:[%s189 + $0x18] sm:$0xff] %v196
              $region37: #{localizer_alexnet_forward.16} parent=31 // loop_footer
                %s187 = sadd.s32 1, %s183
              $region38: #{localizer_alexnet_forward.16} parent=31 // loop_footer_branch
                %182 = sbr.rel target = $region34
              $region39: #{localizer_alexnet_forward.16} parent=31 // loop_exit
                _
            $region32: #{localizer_alexnet_forward.16} parent=27 // pred_fallthru
              _
            // Predicated region
            $region40: #{localizer_alexnet_forward.16} parent=27 // pred_check
              _
            $region41: #{localizer_alexnet_forward.16} parent=27 // pred_check_branch
              %199 = sbr.rel target = $region43
            $region42: #{localizer_alexnet_forward.16} parent=27 // pred_region
              _
            $region43: #{localizer_alexnet_forward.16} parent=27 // pred_fallthru
              _
          $region28: #{localizer_alexnet_forward.16} parent=23 // pred_fallthru
            _
          %200 = vnop
        $region24: #{localizer_alexnet_forward.16} parent=19 // pred_fallthru
          _
        // Predicated region
        $region44: #{localizer_alexnet_forward.16} parent=19 // pred_check
          %p201 = pneg %p78
        $region45: #{localizer_alexnet_forward.16} parent=19 // pred_check_branch
          %203 = sbr.rel (%p201) target = $region47
        $region46: #{localizer_alexnet_forward.16} parent=19 // pred_region
          %s204 = smul.u32 64, %s18
          %s205 = smul.u32 2, %s17
          %p206 = scmp.lt.s32.totalorder %s204, 447
          %s207 = scalar_select %p206, %s204, 447
          %p208 = scmp.lt.s32.totalorder %s205, 1
          %s209 = scalar_select %p208, %s205, 1
          %s210 = smul.addr %s207, 2
          %s211 = sadd.s32 %s209, %s210
          %s212 = smul.addr %s211, 4
          %s213 = scalar_lea.vmem %s1, %s212
          %s214 = smul.u32 64, %s18
          %s215 = smul.u32 2, %s17
        $region47: #{localizer_alexnet_forward.16} parent=19 // pred_fallthru
          _
      $region20: #{localizer_alexnet_forward.16} parent=5 // pred_fallthru
        _
      %p216 = scmp.le.s32.totalorder 1, %s9
      %p217 = scmp.lt.s32.totalorder %s9, 15
      %p218 = pnand %p216, %p217
      %p219 = pneg %p218
      // Predicated region
      $region48: #{localizer_alexnet_forward.16} parent=5 // pred_check
        _
      $region49: #{localizer_alexnet_forward.16} parent=5 // pred_check_branch
        %221 = sbr.rel (%p218) target = $region51
      $region50: #{localizer_alexnet_forward.16} parent=5 // pred_region
        %s222 = ssub.s32 %s9, 1
        %s223 = sand.u32 %s43, 1
        %s224 = sand.u32 %s43, 1
        %s225 = smul.addr %s224, 32
        %s226 = scalar_lea.vmem [#allocation3], %s225
        // Predicated region
        $region52: #{localizer_alexnet_forward.16} parent=50 // pred_check
          %p227 = pneg %p56
        $region53: #{localizer_alexnet_forward.16} parent=50 // pred_check_branch
          %229 = sbr.rel (%p227) target = $region55
        $region54: #{localizer_alexnet_forward.16} parent=50 // pred_region
          _
        $region55: #{localizer_alexnet_forward.16} parent=50 // pred_fallthru
          _
        %s230 = sand.u32 %s43, 1
        %s231 = sand.u32 %s43, 1
        %s232 = smul.addr %s231, 32
        %s233 = scalar_lea.vmem [#allocation3], %s232
        %p234 = pneg %p56
        %p235 = pneg %p53
        %s236 = smul.u32 64, %s21
        %s237 = smul.u32 2, %s20
        %p238 = scmp.lt.s32.totalorder %s236, 447
        %s239 = scalar_select %p238, %s236, 447
        %p240 = scmp.lt.s32.totalorder %s237, 1
        %s241 = scalar_select %p240, %s237, 1
        %s242 = smul.addr %s239, 2
        %s243 = sadd.s32 %s241, %s242
        %s244 = smul.addr %s243, 4
        %s245 = scalar_lea.vmem %s1, %s244
        %p246 = pneg %p84
        %p247 = pneg %p81
        %s248 = smul.u32 2, %s20
        %p249 = scmp.lt.s32.totalorder %s248, 1
        %s250 = scalar_select %p249, %s248, 1
        %s251 = scalar_lea.vmem %s2, %s250
        %p252 = pneg %p110
        %p253 = pneg %p107
        %p254 = pneg %p138
        %p255 = pneg %p135
        %s256 = smul.u32 2, %s19
        %s257 = smul.u32 2, %s20
        %p258 = scmp.lt.s32.totalorder %s256, 3
        %s259 = scalar_select %p258, %s256, 3
        %p260 = scmp.lt.s32.totalorder %s257, 1
        %s261 = scalar_select %p260, %s257, 1
        %s262 = smul.addr %s259, 2
        %s263 = sadd.s32 %s261, %s262
        %s264 = smul.addr %s263, 4
        %s265 = scalar_lea.vmem %s3, %s264
        %s266 = smul.u32 2, %s19
        %s267 = smul.u32 4, %s21
        %s268 = smul.u32 64, %s21
        %s269 = smul.u32 2, %s20
        %p270 = scmp.lt.s32.totalorder %s268, 447
        %s271 = scalar_select %p270, %s268, 447
        %p272 = scmp.lt.s32.totalorder %s269, 1
        %s273 = scalar_select %p272, %s269, 1
        %s274 = smul.addr %s271, 2
        %s275 = sadd.s32 %s273, %s274
        %s276 = smul.addr %s275, 4
        %s277 = scalar_lea.vmem %s1, %s276
        %s278 = smul.u32 64, %s21
        %s279 = smul.u32 2, %s20
        %s280 = smul.u32 2, %s20
        %p281 = scmp.lt.s32.totalorder %s280, 1
        %s282 = scalar_select %p281, %s280, 1
        %s283 = scalar_lea.vmem %s2, %s282
        %s284 = smul.u32 2, %s20
        %s285 = smul.u32 2, %s19
        %s286 = smul.u32 2, %s20
        %p287 = scmp.lt.s32.totalorder %s285, 3
        %s288 = scalar_select %p287, %s285, 3
        %p289 = scmp.lt.s32.totalorder %s286, 1
        %s290 = scalar_select %p289, %s286, 1
        %s291 = smul.addr %s288, 2
        %s292 = sadd.s32 %s290, %s291
        %s293 = smul.addr %s292, 4
        %s294 = scalar_lea.vmem %s3, %s293
        %s295 = smul.u32 2, %s19
        %s296 = smul.u32 2, %s20
        %p297 = scmp.eq.s32.totalorder %s21, 0
        // Predicated region
        $region56: #{localizer_alexnet_forward.16} parent=50 // pred_check
          %p298 = pneg %p297
        $region57: #{localizer_alexnet_forward.16} parent=50 // pred_check_branch
          %300 = sbr.rel (%p298) target = $region59
        $region58: #{localizer_alexnet_forward.16} parent=50 // pred_region
          %301 = vst [vmem:[#allocation2] sm:$0xff] 0.0
          %302 = vst [vmem:[#allocation2 + $0x8] sm:$0xff] 0.0
          %303 = vst [vmem:[#allocation2 + $0x10] sm:$0xff] 0.0
          %304 = vst [vmem:[#allocation2 + $0x18] sm:$0xff] 0.0
        $region59: #{localizer_alexnet_forward.16} parent=50 // pred_fallthru
          _
        %v305 = vld [vmem:[#allocation2] sm:$0xff]
        %v306 = vld [vmem:[#allocation2 + $0x8] sm:$0xff]
        %v307 = vld [vmem:[#allocation2 + $0x10] sm:$0xff]
        %v308 = vld [vmem:[#allocation2 + $0x18] sm:$0xff]
        %v309 = vld [vmem:[%s226] sm:$0xff]
        %v310 = vld [vmem:[%s226 + $0x8] sm:$0xff]
        %v311 = vld [vmem:[%s226 + $0x10] sm:$0xff]
        %v312 = vld [vmem:[%s226 + $0x18] sm:$0xff]
        %v313 = vld [vmem:[%s277] sm:$0xff]
        %v314 = vld [vmem:[%s277 + $0x8] sm:$0xff]
        %v315 = vld [vmem:[%s277 + $0x10] sm:$0xff]
        %v316 = vld [vmem:[%s277 + $0x18] sm:$0xff]
        %v317 = vld [vmem:[%s277 + $0x20] sm:$0xff]
        %v318 = vld [vmem:[%s277 + $0x28] sm:$0xff]
        %v319 = vld [vmem:[%s277 + $0x30] sm:$0xff]
        %v320 = vld [vmem:[%s277 + $0x38] sm:$0xff]
        %v321 = vld [vmem:[%s277 + $0x40] sm:$0xff]
        %v322 = vld [vmem:[%s277 + $0x48] sm:$0xff]
        %v323 = vld [vmem:[%s277 + $0x50] sm:$0xff]
        %v324 = vld [vmem:[%s277 + $0x58] sm:$0xff]
        %v325 = vld [vmem:[%s277 + $0x60] sm:$0xff]
        %v326 = vld [vmem:[%s277 + $0x68] sm:$0xff]
        %v327 = vld [vmem:[%s277 + $0x70] sm:$0xff]
        %v328 = vld [vmem:[%s277 + $0x78] sm:$0xff]
        %v329 = vld [vmem:[%s277 + $0x80] sm:$0xff]
        %v330 = vld [vmem:[%s277 + $0x88] sm:$0xff]
        %v331 = vld [vmem:[%s277 + $0x90] sm:$0xff]
        %v332 = vld [vmem:[%s277 + $0x98] sm:$0xff]
        %v333 = vld [vmem:[%s277 + $0xa0] sm:$0xff]
        %v334 = vld [vmem:[%s277 + $0xa8] sm:$0xff]
        %v335 = vld [vmem:[%s277 + $0xb0] sm:$0xff]
        %v336 = vld [vmem:[%s277 + $0xb8] sm:$0xff]
        %v337 = vld [vmem:[%s277 + $0xc0] sm:$0xff]
        %v338 = vld [vmem:[%s277 + $0xc8] sm:$0xff]
        %v339 = vld [vmem:[%s277 + $0xd0] sm:$0xff]
        %v340 = vld [vmem:[%s277 + $0xd8] sm:$0xff]
        %v341 = vld [vmem:[%s277 + $0xe0] sm:$0xff]
        %v342 = vld [vmem:[%s277 + $0xe8] sm:$0xff]
        %v343 = vld [vmem:[%s277 + $0xf0] sm:$0xff]
        %v344 = vld [vmem:[%s277 + $0xf8] sm:$0xff]
        %v345 = vld [vmem:[%s277 + $0x100] sm:$0xff]
        %v346 = vld [vmem:[%s277 + $0x108] sm:$0xff]
        %v347 = vld [vmem:[%s277 + $0x110] sm:$0xff]
        %v348 = vld [vmem:[%s277 + $0x118] sm:$0xff]
        %v349 = vld [vmem:[%s277 + $0x120] sm:$0xff]
        %v350 = vld [vmem:[%s277 + $0x128] sm:$0xff]
        %v351 = vld [vmem:[%s277 + $0x130] sm:$0xff]
        %v352 = vld [vmem:[%s277 + $0x138] sm:$0xff]
        %v353 = vld [vmem:[%s277 + $0x140] sm:$0xff]
        %v354 = vld [vmem:[%s277 + $0x148] sm:$0xff]
        %v355 = vld [vmem:[%s277 + $0x150] sm:$0xff]
        %v356 = vld [vmem:[%s277 + $0x158] sm:$0xff]
        %v357 = vld [vmem:[%s277 + $0x160] sm:$0xff]
        %v358 = vld [vmem:[%s277 + $0x168] sm:$0xff]
        %v359 = vld [vmem:[%s277 + $0x170] sm:$0xff]
        %v360 = vld [vmem:[%s277 + $0x178] sm:$0xff]
        %v361 = vld [vmem:[%s277 + $0x180] sm:$0xff]
        %v362 = vld [vmem:[%s277 + $0x188] sm:$0xff]
        %v363 = vld [vmem:[%s277 + $0x190] sm:$0xff]
        %v364 = vld [vmem:[%s277 + $0x198] sm:$0xff]
        %v365 = vld [vmem:[%s277 + $0x1a0] sm:$0xff]
        %v366 = vld [vmem:[%s277 + $0x1a8] sm:$0xff]
        %v367 = vld [vmem:[%s277 + $0x1b0] sm:$0xff]
        %v368 = vld [vmem:[%s277 + $0x1b8] sm:$0xff]
        %v369 = vld [vmem:[%s277 + $0x1c0] sm:$0xff]
        %v370 = vld [vmem:[%s277 + $0x1c8] sm:$0xff]
        %v371 = vld [vmem:[%s277 + $0x1d0] sm:$0xff]
        %v372 = vld [vmem:[%s277 + $0x1d8] sm:$0xff]
        %v373 = vld [vmem:[%s277 + $0x1e0] sm:$0xff]
        %v374 = vld [vmem:[%s277 + $0x1e8] sm:$0xff]
        %v375 = vld [vmem:[%s277 + $0x1f0] sm:$0xff]
        %v376 = vld [vmem:[%s277 + $0x1f8] sm:$0xff]
        %v381 = vunpack.c.l.b16 %v309
        %v382 = vunpack.c.h.b16 %v309
        %v383 = vunpack.c.l.b16 %v310
        %v384 = vunpack.c.h.b16 %v310
        %v385 = vunpack.c.l.b16 %v311
        %v386 = vunpack.c.h.b16 %v311
        %v387 = vunpack.c.l.b16 %v312
        %v388 = vunpack.c.h.b16 %v312
        %v389 = vpack.c.b16 %v385, %v381
        %v390 = vpack.c.b16 %v386, %v382
        %v391 = vpack.c.b16 %v387, %v383
        %v392 = vpack.c.b16 %v388, %v384
        %v461 = vunpack.c.l.b16 %v313
        %v462 = vunpack.c.h.b16 %v313
        %v463 = vunpack.c.l.b16 %v314
        %v464 = vunpack.c.h.b16 %v314
        %v465 = vunpack.c.l.b16 %v315
        %v466 = vunpack.c.h.b16 %v315
        %v467 = vunpack.c.l.b16 %v316
        %v468 = vunpack.c.h.b16 %v316
        %v469 = vunpack.c.l.b16 %v317
        %v470 = vunpack.c.h.b16 %v317
        %v471 = vunpack.c.l.b16 %v318
        %v472 = vunpack.c.h.b16 %v318
        %v473 = vunpack.c.l.b16 %v319
        %v474 = vunpack.c.h.b16 %v319
        %v475 = vunpack.c.l.b16 %v320
        %v476 = vunpack.c.h.b16 %v320
        %v477 = vunpack.c.l.b16 %v321
        %v478 = vunpack.c.h.b16 %v321
        %v479 = vunpack.c.l.b16 %v322
        %v480 = vunpack.c.h.b16 %v322
        %v481 = vunpack.c.l.b16 %v323
        %v482 = vunpack.c.h.b16 %v323
        %v483 = vunpack.c.l.b16 %v324
        %v484 = vunpack.c.h.b16 %v324
        %v485 = vunpack.c.l.b16 %v325
        %v486 = vunpack.c.h.b16 %v325
        %v487 = vunpack.c.l.b16 %v326
        %v488 = vunpack.c.h.b16 %v326
        %v489 = vunpack.c.l.b16 %v327
        %v490 = vunpack.c.h.b16 %v327
        %v491 = vunpack.c.l.b16 %v328
        %v492 = vunpack.c.h.b16 %v328
        %v493 = vunpack.c.l.b16 %v329
        %v494 = vunpack.c.h.b16 %v329
        %v495 = vunpack.c.l.b16 %v330
        %v496 = vunpack.c.h.b16 %v330
        %v497 = vunpack.c.l.b16 %v331
        %v498 = vunpack.c.h.b16 %v331
        %v499 = vunpack.c.l.b16 %v332
        %v500 = vunpack.c.h.b16 %v332
        %v501 = vunpack.c.l.b16 %v333
        %v502 = vunpack.c.h.b16 %v333
        %v503 = vunpack.c.l.b16 %v334
        %v504 = vunpack.c.h.b16 %v334
        %v505 = vunpack.c.l.b16 %v335
        %v506 = vunpack.c.h.b16 %v335
        %v507 = vunpack.c.l.b16 %v336
        %v508 = vunpack.c.h.b16 %v336
        %v509 = vunpack.c.l.b16 %v337
        %v510 = vunpack.c.h.b16 %v337
        %v511 = vunpack.c.l.b16 %v338
        %v512 = vunpack.c.h.b16 %v338
        %v513 = vunpack.c.l.b16 %v339
        %v514 = vunpack.c.h.b16 %v339
        %v515 = vunpack.c.l.b16 %v340
        %v516 = vunpack.c.h.b16 %v340
        %v517 = vunpack.c.l.b16 %v341
        %v518 = vunpack.c.h.b16 %v341
        %v519 = vunpack.c.l.b16 %v342
        %v520 = vunpack.c.h.b16 %v342
        %v521 = vunpack.c.l.b16 %v343
        %v522 = vunpack.c.h.b16 %v343
        %v523 = vunpack.c.l.b16 %v344
        %v524 = vunpack.c.h.b16 %v344
        %v525 = vunpack.c.l.b16 %v345
        %v526 = vunpack.c.h.b16 %v345
        %v527 = vunpack.c.l.b16 %v346
        %v528 = vunpack.c.h.b16 %v346
        %v529 = vunpack.c.l.b16 %v347
        %v530 = vunpack.c.h.b16 %v347
        %v531 = vunpack.c.l.b16 %v348
        %v532 = vunpack.c.h.b16 %v348
        %v533 = vunpack.c.l.b16 %v349
        %v534 = vunpack.c.h.b16 %v349
        %v535 = vunpack.c.l.b16 %v350
        %v536 = vunpack.c.h.b16 %v350
        %v537 = vunpack.c.l.b16 %v351
        %v538 = vunpack.c.h.b16 %v351
        %v539 = vunpack.c.l.b16 %v352
        %v540 = vunpack.c.h.b16 %v352
        %v541 = vunpack.c.l.b16 %v353
        %v542 = vunpack.c.h.b16 %v353
        %v543 = vunpack.c.l.b16 %v354
        %v544 = vunpack.c.h.b16 %v354
        %v545 = vunpack.c.l.b16 %v355
        %v546 = vunpack.c.h.b16 %v355
        %v547 = vunpack.c.l.b16 %v356
        %v548 = vunpack.c.h.b16 %v356
        %v549 = vunpack.c.l.b16 %v357
        %v550 = vunpack.c.h.b16 %v357
        %v551 = vunpack.c.l.b16 %v358
        %v552 = vunpack.c.h.b16 %v358
        %v553 = vunpack.c.l.b16 %v359
        %v554 = vunpack.c.h.b16 %v359
        %v555 = vunpack.c.l.b16 %v360
        %v556 = vunpack.c.h.b16 %v360
        %v557 = vunpack.c.l.b16 %v361
        %v558 = vunpack.c.h.b16 %v361
        %v559 = vunpack.c.l.b16 %v362
        %v560 = vunpack.c.h.b16 %v362
        %v561 = vunpack.c.l.b16 %v363
        %v562 = vunpack.c.h.b16 %v363
        %v563 = vunpack.c.l.b16 %v364
        %v564 = vunpack.c.h.b16 %v364
        %v565 = vunpack.c.l.b16 %v365
        %v566 = vunpack.c.h.b16 %v365
        %v567 = vunpack.c.l.b16 %v366
        %v568 = vunpack.c.h.b16 %v366
        %v569 = vunpack.c.l.b16 %v367
        %v570 = vunpack.c.h.b16 %v367
        %v571 = vunpack.c.l.b16 %v368
        %v572 = vunpack.c.h.b16 %v368
        %v573 = vunpack.c.l.b16 %v369
        %v574 = vunpack.c.h.b16 %v369
        %v575 = vunpack.c.l.b16 %v370
        %v576 = vunpack.c.h.b16 %v370
        %v577 = vunpack.c.l.b16 %v371
        %v578 = vunpack.c.h.b16 %v371
        %v579 = vunpack.c.l.b16 %v372
        %v580 = vunpack.c.h.b16 %v372
        %v581 = vunpack.c.l.b16 %v373
        %v582 = vunpack.c.h.b16 %v373
        %v583 = vunpack.c.l.b16 %v374
        %v584 = vunpack.c.h.b16 %v374
        %v585 = vunpack.c.l.b16 %v375
        %v586 = vunpack.c.h.b16 %v375
        %v587 = vunpack.c.l.b16 %v376
        %v588 = vunpack.c.h.b16 %v376
        %v589 = vpack.c.b16 %v463, %v461
        %v590 = vpack.c.b16 %v464, %v462
        %v591 = vpack.c.b16 %v467, %v465
        %v592 = vpack.c.b16 %v468, %v466
        %v593 = vpack.c.b16 %v471, %v469
        %v594 = vpack.c.b16 %v472, %v470
        %v595 = vpack.c.b16 %v475, %v473
        %v596 = vpack.c.b16 %v476, %v474
        %v597 = vpack.c.b16 %v479, %v477
        %v598 = vpack.c.b16 %v480, %v478
        %v599 = vpack.c.b16 %v483, %v481
        %v600 = vpack.c.b16 %v484, %v482
        %v601 = vpack.c.b16 %v487, %v485
        %v602 = vpack.c.b16 %v488, %v486
        %v603 = vpack.c.b16 %v491, %v489
        %v604 = vpack.c.b16 %v492, %v490
        %v605 = vpack.c.b16 %v495, %v493
        %v606 = vpack.c.b16 %v496, %v494
        %v607 = vpack.c.b16 %v499, %v497
        %v608 = vpack.c.b16 %v500, %v498
        %v609 = vpack.c.b16 %v503, %v501
        %v610 = vpack.c.b16 %v504, %v502
        %v611 = vpack.c.b16 %v507, %v505
        %v612 = vpack.c.b16 %v508, %v506
        %v613 = vpack.c.b16 %v511, %v509
        %v614 = vpack.c.b16 %v512, %v510
        %v615 = vpack.c.b16 %v515, %v513
        %v616 = vpack.c.b16 %v516, %v514
        %v617 = vpack.c.b16 %v519, %v517
        %v618 = vpack.c.b16 %v520, %v518
        %v619 = vpack.c.b16 %v523, %v521
        %v620 = vpack.c.b16 %v524, %v522
        %v621 = vpack.c.b16 %v527, %v525
        %v622 = vpack.c.b16 %v528, %v526
        %v623 = vpack.c.b16 %v531, %v529
        %v624 = vpack.c.b16 %v532, %v530
        %v625 = vpack.c.b16 %v535, %v533
        %v626 = vpack.c.b16 %v536, %v534
        %v627 = vpack.c.b16 %v539, %v537
        %v628 = vpack.c.b16 %v540, %v538
        %v629 = vpack.c.b16 %v543, %v541
        %v630 = vpack.c.b16 %v544, %v542
        %v631 = vpack.c.b16 %v547, %v545
        %v632 = vpack.c.b16 %v548, %v546
        %v633 = vpack.c.b16 %v551, %v549
        %v634 = vpack.c.b16 %v552, %v550
        %v635 = vpack.c.b16 %v555, %v553
        %v636 = vpack.c.b16 %v556, %v554
        %v637 = vpack.c.b16 %v559, %v557
        %v638 = vpack.c.b16 %v560, %v558
        %v639 = vpack.c.b16 %v563, %v561
        %v640 = vpack.c.b16 %v564, %v562
        %v641 = vpack.c.b16 %v567, %v565
        %v642 = vpack.c.b16 %v568, %v566
        %v643 = vpack.c.b16 %v571, %v569
        %v644 = vpack.c.b16 %v572, %v570
        %v645 = vpack.c.b16 %v575, %v573
        %v646 = vpack.c.b16 %v576, %v574
        %v647 = vpack.c.b16 %v579, %v577
        %v648 = vpack.c.b16 %v580, %v578
        %v649 = vpack.c.b16 %v583, %v581
        %v650 = vpack.c.b16 %v584, %v582
        %v651 = vpack.c.b16 %v587, %v585
        %v652 = vpack.c.b16 %v588, %v586
        %717 = vmatprep.subr.bf16.mxu0 %v590
        %718 = vmatpush1.bf16.msra.mxu0 %v589
        %719 = vmatprep.subr.bf16.mxu0 %v592
        %720 = vmatpush1.bf16.msra.mxu0 %v591
        %721 = vmatprep.subr.bf16.mxu0 %v594
        %722 = vmatpush1.bf16.msra.mxu0 %v593
        %723 = vmatprep.subr.bf16.mxu0 %v596
        %724 = vmatpush1.bf16.msra.mxu0 %v595
        %725 = vmatprep.subr.bf16.mxu0 %v598
        %726 = vmatpush1.bf16.msra.mxu0 %v597
        %727 = vmatprep.subr.bf16.mxu0 %v600
        %728 = vmatpush1.bf16.msra.mxu0 %v599
        %729 = vmatprep.subr.bf16.mxu0 %v602
        %730 = vmatpush1.bf16.msra.mxu0 %v601
        %731 = vmatprep.subr.bf16.mxu0 %v604
        %732 = vmatpush1.bf16.msra.mxu0 %v603
        %733 = vmatprep.subr.bf16.mxu0 %v606
        %734 = vmatpush1.bf16.msra.mxu0 %v605
        %735 = vmatprep.subr.bf16.mxu0 %v608
        %736 = vmatpush1.bf16.msra.mxu0 %v607
        %737 = vmatprep.subr.bf16.mxu0 %v610
        %738 = vmatpush1.bf16.msra.mxu0 %v609
        %739 = vmatprep.subr.bf16.mxu0 %v612
        %740 = vmatpush1.bf16.msra.mxu0 %v611
        %741 = vmatprep.subr.bf16.mxu0 %v614
        %742 = vmatpush1.bf16.msra.mxu0 %v613
        %743 = vmatprep.subr.bf16.mxu0 %v616
        %744 = vmatpush1.bf16.msra.mxu0 %v615
        %745 = vmatprep.subr.bf16.mxu0 %v618
        %746 = vmatpush1.bf16.msra.mxu0 %v617
        %747 = vmatprep.subr.bf16.mxu0 %v620
        %748 = vmatpush1.bf16.msra.mxu0 %v619
        %749 = vmatprep.mubr.bf16.mxu0 %v390
        %750 = vmatmul.mubr.bf16.gmra.mrb[0].mxu0 %v389
        %v751 = vpop.f32.mrb[0].mxu0
        %v752 = vadd.f32 0.0, %v751
        %v753 = vpop.f32.mrb[0].mxu0
        %v754 = vadd.f32 0.0, %v753
        %v755 = vpop.f32.mrb[0].mxu0
        %v756 = vadd.f32 0.0, %v755
        %v757 = vpop.f32.mrb[0].mxu0
        %v758 = vadd.f32 0.0, %v757
        %759 = vdwg.mxu0
        %760 = vmatprep.subr.bf16.mxu0 %v622
        %761 = vmatpush1.bf16.msra.mxu0 %v621
        %762 = vmatprep.subr.bf16.mxu0 %v624
        %763 = vmatpush1.bf16.msra.mxu0 %v623
        %764 = vmatprep.subr.bf16.mxu0 %v626
        %765 = vmatpush1.bf16.msra.mxu0 %v625
        %766 = vmatprep.subr.bf16.mxu0 %v628
        %767 = vmatpush1.bf16.msra.mxu0 %v627
        %768 = vmatprep.subr.bf16.mxu0 %v630
        %769 = vmatpush1.bf16.msra.mxu0 %v629
        %770 = vmatprep.subr.bf16.mxu0 %v632
        %771 = vmatpush1.bf16.msra.mxu0 %v631
        %772 = vmatprep.subr.bf16.mxu0 %v634
        %773 = vmatpush1.bf16.msra.mxu0 %v633
        %774 = vmatprep.subr.bf16.mxu0 %v636
        %775 = vmatpush1.bf16.msra.mxu0 %v635
        %776 = vmatprep.subr.bf16.mxu0 %v638
        %777 = vmatpush1.bf16.msra.mxu0 %v637
        %778 = vmatprep.subr.bf16.mxu0 %v640
        %779 = vmatpush1.bf16.msra.mxu0 %v639
        %780 = vmatprep.subr.bf16.mxu0 %v642
        %781 = vmatpush1.bf16.msra.mxu0 %v641
        %782 = vmatprep.subr.bf16.mxu0 %v644
        %783 = vmatpush1.bf16.msra.mxu0 %v643
        %784 = vmatprep.subr.bf16.mxu0 %v646
        %785 = vmatpush1.bf16.msra.mxu0 %v645
        %786 = vmatprep.subr.bf16.mxu0 %v648
        %787 = vmatpush1.bf16.msra.mxu0 %v647
        %788 = vmatprep.subr.bf16.mxu0 %v650
        %789 = vmatpush1.bf16.msra.mxu0 %v649
        %790 = vmatprep.subr.bf16.mxu0 %v652
        %791 = vmatpush1.bf16.msra.mxu0 %v651
        %792 = vmatprep.mubr.bf16.mxu0 %v392
        %793 = vmatmul.mubr.bf16.gmra.mrb[0].mxu0 %v391
        %v794 = vpop.f32.mrb[0].mxu0
        %v795 = vadd.f32 %v752, %v794
        %v796 = vpop.f32.mrb[0].mxu0
        %v797 = vadd.f32 %v754, %v796
        %v798 = vpop.f32.mrb[0].mxu0
        %v799 = vadd.f32 %v756, %v798
        %v800 = vpop.f32.mrb[0].mxu0
        %v801 = vadd.f32 %v758, %v800
        %802 = vdwg.mxu0
        %v803 = vadd.f32 %v305, %v795
        %v804 = vadd.f32 %v306, %v797
        %v805 = vadd.f32 %v307, %v799
        %v806 = vadd.f32 %v308, %v801
        %807 = vst [vmem:[#allocation2] sm:$0xff] %v803
        %808 = vst [vmem:[#allocation2 + $0x8] sm:$0xff] %v804
        %809 = vst [vmem:[#allocation2 + $0x10] sm:$0xff] %v805
        %810 = vst [vmem:[#allocation2 + $0x18] sm:$0xff] %v806
        %p811 = scmp.eq.s32.totalorder %s21, 6
        // Predicated region
        $region60: #{localizer_alexnet_forward.16} parent=50 // pred_check
          %p812 = pneg %p811
        $region61: #{localizer_alexnet_forward.16} parent=50 // pred_check_branch
          %814 = sbr.rel (%p812) target = $region63
        $region62: #{localizer_alexnet_forward.16} parent=50 // pred_region
          %v815 = vld [vmem:[#allocation2] sm:$0xff]
          %v816 = vld [vmem:[#allocation2 + $0x8] sm:$0xff]
          %v817 = vld [vmem:[#allocation2 + $0x10] sm:$0xff]
          %v818 = vld [vmem:[#allocation2 + $0x18] sm:$0xff]
          %v819 = vld [vmem:[%s283] sm:$0x3]
          %v821 = vlaneseq
          %v822 = vshrl.u32 %v821, 7
          %v823 = vsub.s32 0, %v822
          %v824 = vrot.slane %v819, %v823
          %v825 = vlaneseq
          %v826 = vshrl.u32 %v825, 7
          %v827 = vsub.s32 1, %v826
          %v828 = vrot.slane %v819, %v827
          %v831 = vadd.f32 %v815, %v824
          %v832 = vadd.f32 %v816, %v828
          %v833 = vadd.f32 %v817, %v824
          %v834 = vadd.f32 %v818, %v828
          %v835 = vmax.f32 %v831, 0.0
          %v836 = vmax.f32 %v832, 0.0
          %v837 = vmax.f32 %v833, 0.0
          %v838 = vmax.f32 %v834, 0.0
          %v839 = vpack.c.bf16 %v837, %v835
          %v840 = vpack.c.bf16 %v838, %v836
          %v843 = vunpack.c.l.b16 %v839
          %v844 = vunpack.c.l.b16 %v840
          %v845 = vunpack.c.h.b16 %v839
          %v846 = vunpack.c.h.b16 %v840
          %v847 = vpack.c.b16 %v844, %v843
          %v848 = vpack.c.b16 %v846, %v845
          %851 = vst [vmem:[%s294] sm:$0xff] %v847
          %852 = vst [vmem:[%s294 + $0x8] sm:$0xff] %v848
        $region63: #{localizer_alexnet_forward.16} parent=50 // pred_fallthru
          _
        %s853 = smul.u32 2, %s19
        %s854 = smul.u32 2, %s20
        %p855 = scmp.lt.s32.totalorder %s853, 3
        %s856 = scalar_select %p855, %s853, 3
        %p857 = scmp.lt.s32.totalorder %s854, 1
        %s858 = scalar_select %p857, %s854, 1
        %s859 = smul.addr %s856, 2
        %s860 = sadd.s32 %s858, %s859
        %s861 = smul.addr %s860, 4
        %s862 = scalar_lea.vmem %s3, %s861
        // Predicated region
        $region64: #{localizer_alexnet_forward.16} parent=50 // pred_check
          %p863 = pneg %p135
        $region65: #{localizer_alexnet_forward.16} parent=50 // pred_check_branch
          %865 = sbr.rel (%p863) target = $region67
        $region66: #{localizer_alexnet_forward.16} parent=50 // pred_region
          %s866 = smul.u32 2, %s19
          %s867 = smul.u32 2, %s20
        $region67: #{localizer_alexnet_forward.16} parent=50 // pred_fallthru
          _
      $region51: #{localizer_alexnet_forward.16} parent=5 // pred_fallthru
        _
      %p868 = scmp.le.s32.totalorder 2, %s9
      // Predicated region
      $region68: #{localizer_alexnet_forward.16} parent=5 // pred_check
        %p869 = pneg %p868
      $region69: #{localizer_alexnet_forward.16} parent=5 // pred_check_branch
        %871 = sbr.rel (%p869) target = $region71
      $region70: #{localizer_alexnet_forward.16} parent=5 // pred_region
        %s872 = ssub.s32 %s9, 2
        // Predicated region
        $region72: #{localizer_alexnet_forward.16} parent=70 // pred_check
          %p873 = pneg %p141
        $region73: #{localizer_alexnet_forward.16} parent=70 // pred_check_branch
          %875 = sbr.rel (%p873) target = $region75
        $region74: #{localizer_alexnet_forward.16} parent=70 // pred_region
          %s876 = smul.u32 2, %s22
          %s877 = smul.u32 2, %s23
          %p878 = scmp.lt.s32.totalorder %s876, 3
          %s879 = scalar_select %p878, %s876, 3
          %p880 = scmp.lt.s32.totalorder %s877, 1
          %s881 = scalar_select %p880, %s877, 1
          %s882 = smul.addr %s879, 2
          %s883 = sadd.s32 %s881, %s882
          %s884 = smul.addr %s883, 4
          %s885 = scalar_lea.vmem %s3, %s884
        $region75: #{localizer_alexnet_forward.16} parent=70 // pred_fallthru
          _
      $region71: #{localizer_alexnet_forward.16} parent=5 // pred_fallthru
        _
    $region6: #{localizer_alexnet_forward.16} parent=1 // loop_footer
      %s13 = sadd.s32 1, %s9
    $region7: #{localizer_alexnet_forward.16} parent=1 // loop_footer_branch
      %8 = sbr.rel target = $region3
    $region8: #{localizer_alexnet_forward.16} parent=1 // loop_exit
      _

// kernel: localizer_alexnet_forward.17
$region0: #{localizer_alexnet_forward.17}
  #allocation0 [shape = 'u32[]', space=smem, size = 0x4, offset = 0x4, fixed_abs, tag = 'smem constant byte address 0x4 - core index']
  #allocation1 [shape = 'u32[144,128]{1,0:T(1,128)}', space=vmem, size = 0x12000, scoped, tag = 'internal scratch']
  #allocation2 [shape = 'f32[16,256]{1,0:T(8,128)}', space=vmem, size = 0x4000, scoped, tag = 'scratch operand']
  %s0 = inlined_call_operand.vmem [shape: bf16[32,2560], index: 0, kind: input, shape index: {}]
  %s1 = inlined_call_operand.vmem [shape: bf16[2560,256], index: 1, kind: input, shape index: {}]
  %s2 = inlined_call_operand.vmem [shape: f32[1,256], index: 2, kind: input, shape index: {}]
  %s3 = inlined_call_operand.vmem [shape: bf16[32,256], index: 3, kind: output, shape index: {}]
  %s4 = sld [smem:[#allocation0]]
  $region76: #{localizer_alexnet_forward.17} parent=0
    _
  %s6 = ssub.s32 1, %s4
  %s7 = scalar_select 0, %s6, %s4
  $region1: #{localizer_alexnet_forward.17} parent=0
    #allocation3 [shape = 'u8[32768]{0}', space=vmem, size = 0x8000, scoped, tag = 'input window, operand 0']
    loop: start=0, step=1, limit=12
    $region2: #{localizer_alexnet_forward.17} parent=1 // loop_pre_header
      _
    $region3: #{localizer_alexnet_forward.17} parent=1 // loop_header
      %s9 = sphi 0, %s13
      %p10 = scmp.ge.s32.totalorder %s9, 12
      %s16 = sphi 0, %s35
      %s17 = sphi 0, %s31
      %s18 = sphi 0, %s27
      %s19 = sphi 0, %s16
      %s20 = sphi 0, %s17
      %s21 = sphi 0, %s18
      %s22 = sphi 0, %s19
      %s23 = sphi 0, %s20
      %s24 = sphi 0, %s21
      %s40 = sphi 0, %s42
      %s43 = sphi 0, %s40
      %s44 = sphi 0, %s43
      %s60 = sphi 0, %s44
      %s68 = sphi 0, %s70
      %s71 = sphi 0, %s68
      %s72 = sphi 0, %s71
      %s88 = sphi 0, %s72
      %s94 = sphi 0, %s96
      %s97 = sphi 0, %s94
      %s98 = sphi 0, %s97
      %s114 = sphi 0, %s98
      %s122 = sphi 0, %s124
      %s125 = sphi 0, %s122
      %s126 = sphi 0, %s125
      %s142 = sphi 0, %s126
    $region4: #{localizer_alexnet_forward.17} parent=1 // loop_header_branch
      %12 = sbr.rel (%p10) target = $region8
    $region5: #{localizer_alexnet_forward.17} parent=1 // loop_body
      %s14 = ssub.s32 %s9, 1
      %s15 = ssub.s32 %s9, 2
      %s25 = sadd.s32 1, %s18
      %p26 = scmp.ge.s32.totalorder %s25, 5
      %s27 = scalar_select %p26, 0, %s25
      %s28 = sadd.s32 1, %s17
      %s29 = scalar_select %p26, %s28, %s17
      %p30 = scmp.ge.s32.totalorder %s29, 1
      %s31 = scalar_select %p30, 0, %s29
      %s32 = sadd.s32 1, %s16
      %s33 = scalar_select %p30, %s32, %s16
      %p34 = scmp.ge.s32.totalorder %s33, 2
      %s35 = scalar_select %p34, 0, %s33
      %s36 = ssub.s32 %s16, %s35
      %s37 = ssub.s32 %s18, %s27
      %s38 = sor.u32 %s36, %s37
      %p39 = scmp.eq.s32.totalorder %s38, 0
      %s41 = sadd.s32 %s40, 1
      %s42 = scalar_select %p39, %s40, %s41
      %p45 = pneg %p39
      %p46 = scmp.eq.s32.totalorder %s9, 9
      %p47 = por %p45, %p46
      %p48 = scmp.ne.s32.totalorder %s40, %s43
      %p49 = scmp.eq.s32.totalorder %s9, 0
      %p50 = por %p48, %p49
      %p51 = scmp.ne.s32.totalorder %s40, %s43
      %p52 = scmp.eq.s32.totalorder %s14, 9
      %p53 = por %p51, %p52
      %p54 = scmp.ne.s32.totalorder %s43, %s44
      %p55 = scmp.eq.s32.totalorder %s14, 0
      %p56 = por %p54, %p55
      %p57 = scmp.ne.s32.totalorder %s43, %s44
      %p58 = scmp.eq.s32.totalorder %s15, 9
      %p59 = por %p57, %p58
      %p61 = scmp.ne.s32.totalorder %s44, %s60
      %p62 = scmp.eq.s32.totalorder %s15, 0
      %p63 = por %p61, %p62
      %s64 = ssub.s32 %s18, %s27
      %s65 = ssub.s32 %s17, %s31
      %s66 = sor.u32 %s64, %s65
      %p67 = scmp.eq.s32.totalorder %s66, 0
      %s69 = sadd.s32 %s68, 1
      %s70 = scalar_select %p67, %s68, %s69
      %p73 = pneg %p67
      %p74 = scmp.eq.s32.totalorder %s9, 9
      %p75 = por %p73, %p74
      %p76 = scmp.ne.s32.totalorder %s68, %s71
      %p77 = scmp.eq.s32.totalorder %s9, 0
      %p78 = por %p76, %p77
      %p79 = scmp.ne.s32.totalorder %s68, %s71
      %p80 = scmp.eq.s32.totalorder %s14, 9
      %p81 = por %p79, %p80
      %p82 = scmp.ne.s32.totalorder %s71, %s72
      %p83 = scmp.eq.s32.totalorder %s14, 0
      %p84 = por %p82, %p83
      %p85 = scmp.ne.s32.totalorder %s71, %s72
      %p86 = scmp.eq.s32.totalorder %s15, 9
      %p87 = por %p85, %p86
      %p89 = scmp.ne.s32.totalorder %s72, %s88
      %p90 = scmp.eq.s32.totalorder %s15, 0
      %p91 = por %p89, %p90
      %s92 = ssub.s32 %s17, %s31
      %p93 = scmp.eq.s32.totalorder %s92, 0
      %s95 = sadd.s32 %s94, 1
      %s96 = scalar_select %p93, %s94, %s95
      %p99 = pneg %p93
      %p100 = scmp.eq.s32.totalorder %s9, 9
      %p101 = por %p99, %p100
      %p102 = scmp.ne.s32.totalorder %s94, %s97
      %p103 = scmp.eq.s32.totalorder %s9, 0
      %p104 = por %p102, %p103
      %p105 = scmp.ne.s32.totalorder %s94, %s97
      %p106 = scmp.eq.s32.totalorder %s14, 9
      %p107 = por %p105, %p106
      %p108 = scmp.ne.s32.totalorder %s97, %s98
      %p109 = scmp.eq.s32.totalorder %s14, 0
      %p110 = por %p108, %p109
      %p111 = scmp.ne.s32.totalorder %s97, %s98
      %p112 = scmp.eq.s32.totalorder %s15, 9
      %p113 = por %p111, %p112
      %p115 = scmp.ne.s32.totalorder %s98, %s114
      %p116 = scmp.eq.s32.totalorder %s15, 0
      %p117 = por %p115, %p116
      %s118 = ssub.s32 %s16, %s35
      %s119 = ssub.s32 %s17, %s31
      %s120 = sor.u32 %s118, %s119
      %p121 = scmp.eq.s32.totalorder %s120, 0
      %s123 = sadd.s32 %s122, 1
      %s124 = scalar_select %p121, %s122, %s123
      %p127 = pneg %p121
      %p128 = scmp.eq.s32.totalorder %s9, 9
      %p129 = por %p127, %p128
      %p130 = scmp.ne.s32.totalorder %s122, %s125
      %p131 = scmp.eq.s32.totalorder %s9, 0
      %p132 = por %p130, %p131
      %p133 = scmp.ne.s32.totalorder %s122, %s125
      %p134 = scmp.eq.s32.totalorder %s14, 9
      %p135 = por %p133, %p134
      %p136 = scmp.ne.s32.totalorder %s125, %s126
      %p137 = scmp.eq.s32.totalorder %s14, 0
      %p138 = por %p136, %p137
      %p139 = scmp.ne.s32.totalorder %s125, %s126
      %p140 = scmp.eq.s32.totalorder %s15, 9
      %p141 = por %p139, %p140
      %p143 = scmp.ne.s32.totalorder %s126, %s142
      %p144 = scmp.eq.s32.totalorder %s15, 0
      %p145 = por %p143, %p144
      %p146 = scmp.le.s32.totalorder 1, %s9
      %p147 = scmp.lt.s32.totalorder %s9, 11
      %p148 = pnand %p146, %p147
      %p149 = pneg %p148
      // Predicated region
      $region9: #{localizer_alexnet_forward.17} parent=5 // pred_check
        _
      $region10: #{localizer_alexnet_forward.17} parent=5 // pred_check_branch
        %151 = sbr.rel (%p148) target = $region12
      $region11: #{localizer_alexnet_forward.17} parent=5 // pred_region
        %s152 = ssub.s32 %s9, 1
        // Predicated region
        $region13: #{localizer_alexnet_forward.17} parent=11 // pred_check
          %p153 = pneg %p110
        $region14: #{localizer_alexnet_forward.17} parent=11 // pred_check_branch
          %155 = sbr.rel (%p153) target = $region16
        $region15: #{localizer_alexnet_forward.17} parent=11 // pred_region
          %s156 = smul.u32 2, %s20
          %p157 = scmp.lt.s32.totalorder %s156, 1
          %s158 = scalar_select %p157, %s156, 1
          %s159 = scalar_lea.vmem %s2, %s158
          %s160 = smul.u32 2, %s20
        $region16: #{localizer_alexnet_forward.17} parent=11 // pred_fallthru
          _
      $region12: #{localizer_alexnet_forward.17} parent=5 // pred_fallthru
        _
      %p161 = scmp.lt.s32.totalorder %s9, 10
      // Predicated region
      $region17: #{localizer_alexnet_forward.17} parent=5 // pred_check
        %p162 = pneg %p161
      $region18: #{localizer_alexnet_forward.17} parent=5 // pred_check_branch
        %164 = sbr.rel (%p162) target = $region20
      $region19: #{localizer_alexnet_forward.17} parent=5 // pred_region
        // Predicated region
        $region21: #{localizer_alexnet_forward.17} parent=19 // pred_check
          %p165 = pneg %p50
        $region22: #{localizer_alexnet_forward.17} parent=19 // pred_check_branch
          %167 = sbr.rel (%p165) target = $region24
        $region23: #{localizer_alexnet_forward.17} parent=19 // pred_region
          %s168 = sand.u32 %s40, 1
          %s169 = sand.u32 %s40, 1
          %s170 = smul.addr %s169, 32
          %s171 = scalar_lea.vmem [#allocation3], %s170
          %s172 = smul.u32 2, %s16
          %s173 = smul.u32 4, %s18
          %s174 = smul.addr %s172, 20
          %s175 = sadd.s32 %s173, %s174
          %s176 = smul.addr %s175, 4
          %s177 = scalar_lea.vmem %s0, %s176
          // Predicated region
          $region25: #{localizer_alexnet_forward.17} parent=23 // pred_check
            _
          $region26: #{localizer_alexnet_forward.17} parent=23 // pred_check_branch
            %179 = sbr.rel (0) target = $region28
          $region27: #{localizer_alexnet_forward.17} parent=23 // pred_region
            // Predicated region
            $region29: #{localizer_alexnet_forward.17} parent=27 // pred_check
              _
            $region30: #{localizer_alexnet_forward.17} parent=27 // pred_check_branch
              %181 = sbr.rel (0) target = $region32
            $region31: #{localizer_alexnet_forward.17} parent=27 // pred_region
              loop: start=0, step=1, limit=1
              $region33: #{localizer_alexnet_forward.17} parent=31 // loop_pre_header
                _
              $region34: #{localizer_alexnet_forward.17} parent=31 // loop_header
                %s183 = sphi 0, %s187
                %p184 = scmp.ge.s32.totalorder %s183, 1
                %s188 = sphi %s177, %s177
                %s189 = sphi %s171, %s171
              $region35: #{localizer_alexnet_forward.17} parent=31 // loop_header_branch
                %186 = sbr.rel (%p184) target = $region39
              $region36: #{localizer_alexnet_forward.17} parent=31 // loop_body
                %v190 = vld [vmem:[%s188] sm:$0xff]
                %191 = vst [vmem:[%s189] sm:$0xff] %v190
                %v192 = vld [vmem:[%s188 + $0x8] sm:$0xff]
                %193 = vst [vmem:[%s189 + $0x8] sm:$0xff] %v192
                %v194 = vld [vmem:[%s188 + $0x50] sm:$0xff]
                %195 = vst [vmem:[%s189 + $0x10] sm:$0xff] %v194
                %v196 = vld [vmem:[%s188 + $0x58] sm:$0xff]
                %197 = vst [vmem:[%s189 + $0x18] sm:$0xff] %v196
              $region37: #{localizer_alexnet_forward.17} parent=31 // loop_footer
                %s187 = sadd.s32 1, %s183
              $region38: #{localizer_alexnet_forward.17} parent=31 // loop_footer_branch
                %182 = sbr.rel target = $region34
              $region39: #{localizer_alexnet_forward.17} parent=31 // loop_exit
                _
            $region32: #{localizer_alexnet_forward.17} parent=27 // pred_fallthru
              _
            // Predicated region
            $region40: #{localizer_alexnet_forward.17} parent=27 // pred_check
              _
            $region41: #{localizer_alexnet_forward.17} parent=27 // pred_check_branch
              %199 = sbr.rel target = $region43
            $region42: #{localizer_alexnet_forward.17} parent=27 // pred_region
              _
            $region43: #{localizer_alexnet_forward.17} parent=27 // pred_fallthru
              _
          $region28: #{localizer_alexnet_forward.17} parent=23 // pred_fallthru
            _
          %200 = vnop
        $region24: #{localizer_alexnet_forward.17} parent=19 // pred_fallthru
          _
        // Predicated region
        $region44: #{localizer_alexnet_forward.17} parent=19 // pred_check
          %p201 = pneg %p78
        $region45: #{localizer_alexnet_forward.17} parent=19 // pred_check_branch
          %203 = sbr.rel (%p201) target = $region47
        $region46: #{localizer_alexnet_forward.17} parent=19 // pred_region
          %s204 = smul.u32 64, %s18
          %s205 = smul.u32 2, %s17
          %p206 = scmp.lt.s32.totalorder %s204, 319
          %s207 = scalar_select %p206, %s204, 319
          %p208 = scmp.lt.s32.totalorder %s205, 1
          %s209 = scalar_select %p208, %s205, 1
          %s210 = smul.addr %s207, 2
          %s211 = sadd.s32 %s209, %s210
          %s212 = smul.addr %s211, 4
          %s213 = scalar_lea.vmem %s1, %s212
          %s214 = smul.u32 64, %s18
          %s215 = smul.u32 2, %s17
        $region47: #{localizer_alexnet_forward.17} parent=19 // pred_fallthru
          _
      $region20: #{localizer_alexnet_forward.17} parent=5 // pred_fallthru
        _
      %p216 = scmp.le.s32.totalorder 1, %s9
      %p217 = scmp.lt.s32.totalorder %s9, 11
      %p218 = pnand %p216, %p217
      %p219 = pneg %p218
      // Predicated region
      $region48: #{localizer_alexnet_forward.17} parent=5 // pred_check
        _
      $region49: #{localizer_alexnet_forward.17} parent=5 // pred_check_branch
        %221 = sbr.rel (%p218) target = $region51
      $region50: #{localizer_alexnet_forward.17} parent=5 // pred_region
        %s222 = ssub.s32 %s9, 1
        %s223 = sand.u32 %s43, 1
        %s224 = sand.u32 %s43, 1
        %s225 = smul.addr %s224, 32
        %s226 = scalar_lea.vmem [#allocation3], %s225
        // Predicated region
        $region52: #{localizer_alexnet_forward.17} parent=50 // pred_check
          %p227 = pneg %p56
        $region53: #{localizer_alexnet_forward.17} parent=50 // pred_check_branch
          %229 = sbr.rel (%p227) target = $region55
        $region54: #{localizer_alexnet_forward.17} parent=50 // pred_region
          _
        $region55: #{localizer_alexnet_forward.17} parent=50 // pred_fallthru
          _
        %s230 = sand.u32 %s43, 1
        %s231 = sand.u32 %s43, 1
        %s232 = smul.addr %s231, 32
        %s233 = scalar_lea.vmem [#allocation3], %s232
        %p234 = pneg %p56
        %p235 = pneg %p53
        %s236 = smul.u32 64, %s21
        %s237 = smul.u32 2, %s20
        %p238 = scmp.lt.s32.totalorder %s236, 319
        %s239 = scalar_select %p238, %s236, 319
        %p240 = scmp.lt.s32.totalorder %s237, 1
        %s241 = scalar_select %p240, %s237, 1
        %s242 = smul.addr %s239, 2
        %s243 = sadd.s32 %s241, %s242
        %s244 = smul.addr %s243, 4
        %s245 = scalar_lea.vmem %s1, %s244
        %p246 = pneg %p84
        %p247 = pneg %p81
        %s248 = smul.u32 2, %s20
        %p249 = scmp.lt.s32.totalorder %s248, 1
        %s250 = scalar_select %p249, %s248, 1
        %s251 = scalar_lea.vmem %s2, %s250
        %p252 = pneg %p110
        %p253 = pneg %p107
        %p254 = pneg %p138
        %p255 = pneg %p135
        %s256 = smul.u32 2, %s19
        %s257 = smul.u32 2, %s20
        %p258 = scmp.lt.s32.totalorder %s256, 3
        %s259 = scalar_select %p258, %s256, 3
        %p260 = scmp.lt.s32.totalorder %s257, 1
        %s261 = scalar_select %p260, %s257, 1
        %s262 = smul.addr %s259, 2
        %s263 = sadd.s32 %s261, %s262
        %s264 = smul.addr %s263, 4
        %s265 = scalar_lea.vmem %s3, %s264
        %s266 = smul.u32 2, %s19
        %s267 = smul.u32 4, %s21
        %s268 = smul.u32 64, %s21
        %s269 = smul.u32 2, %s20
        %p270 = scmp.lt.s32.totalorder %s268, 319
        %s271 = scalar_select %p270, %s268, 319
        %p272 = scmp.lt.s32.totalorder %s269, 1
        %s273 = scalar_select %p272, %s269, 1
        %s274 = smul.addr %s271, 2
        %s275 = sadd.s32 %s273, %s274
        %s276 = smul.addr %s275, 4
        %s277 = scalar_lea.vmem %s1, %s276
        %s278 = smul.u32 64, %s21
        %s279 = smul.u32 2, %s20
        %s280 = smul.u32 2, %s20
        %p281 = scmp.lt.s32.totalorder %s280, 1
        %s282 = scalar_select %p281, %s280, 1
        %s283 = scalar_lea.vmem %s2, %s282
        %s284 = smul.u32 2, %s20
        %s285 = smul.u32 2, %s19
        %s286 = smul.u32 2, %s20
        %p287 = scmp.lt.s32.totalorder %s285, 3
        %s288 = scalar_select %p287, %s285, 3
        %p289 = scmp.lt.s32.totalorder %s286, 1
        %s290 = scalar_select %p289, %s286, 1
        %s291 = smul.addr %s288, 2
        %s292 = sadd.s32 %s290, %s291
        %s293 = smul.addr %s292, 4
        %s294 = scalar_lea.vmem %s3, %s293
        %s295 = smul.u32 2, %s19
        %s296 = smul.u32 2, %s20
        %p297 = scmp.eq.s32.totalorder %s21, 0
        // Predicated region
        $region56: #{localizer_alexnet_forward.17} parent=50 // pred_check
          %p298 = pneg %p297
        $region57: #{localizer_alexnet_forward.17} parent=50 // pred_check_branch
          %300 = sbr.rel (%p298) target = $region59
        $region58: #{localizer_alexnet_forward.17} parent=50 // pred_region
          %301 = vst [vmem:[#allocation2] sm:$0xff] 0.0
          %302 = vst [vmem:[#allocation2 + $0x8] sm:$0xff] 0.0
          %303 = vst [vmem:[#allocation2 + $0x10] sm:$0xff] 0.0
          %304 = vst [vmem:[#allocation2 + $0x18] sm:$0xff] 0.0
        $region59: #{localizer_alexnet_forward.17} parent=50 // pred_fallthru
          _
        %v305 = vld [vmem:[#allocation2] sm:$0xff]
        %v306 = vld [vmem:[#allocation2 + $0x8] sm:$0xff]
        %v307 = vld [vmem:[#allocation2 + $0x10] sm:$0xff]
        %v308 = vld [vmem:[#allocation2 + $0x18] sm:$0xff]
        %v309 = vld [vmem:[%s226] sm:$0xff]
        %v310 = vld [vmem:[%s226 + $0x8] sm:$0xff]
        %v311 = vld [vmem:[%s226 + $0x10] sm:$0xff]
        %v312 = vld [vmem:[%s226 + $0x18] sm:$0xff]
        %v313 = vld [vmem:[%s277] sm:$0xff]
        %v314 = vld [vmem:[%s277 + $0x8] sm:$0xff]
        %v315 = vld [vmem:[%s277 + $0x10] sm:$0xff]
        %v316 = vld [vmem:[%s277 + $0x18] sm:$0xff]
        %v317 = vld [vmem:[%s277 + $0x20] sm:$0xff]
        %v318 = vld [vmem:[%s277 + $0x28] sm:$0xff]
        %v319 = vld [vmem:[%s277 + $0x30] sm:$0xff]
        %v320 = vld [vmem:[%s277 + $0x38] sm:$0xff]
        %v321 = vld [vmem:[%s277 + $0x40] sm:$0xff]
        %v322 = vld [vmem:[%s277 + $0x48] sm:$0xff]
        %v323 = vld [vmem:[%s277 + $0x50] sm:$0xff]
        %v324 = vld [vmem:[%s277 + $0x58] sm:$0xff]
        %v325 = vld [vmem:[%s277 + $0x60] sm:$0xff]
        %v326 = vld [vmem:[%s277 + $0x68] sm:$0xff]
        %v327 = vld [vmem:[%s277 + $0x70] sm:$0xff]
        %v328 = vld [vmem:[%s277 + $0x78] sm:$0xff]
        %v329 = vld [vmem:[%s277 + $0x80] sm:$0xff]
        %v330 = vld [vmem:[%s277 + $0x88] sm:$0xff]
        %v331 = vld [vmem:[%s277 + $0x90] sm:$0xff]
        %v332 = vld [vmem:[%s277 + $0x98] sm:$0xff]
        %v333 = vld [vmem:[%s277 + $0xa0] sm:$0xff]
        %v334 = vld [vmem:[%s277 + $0xa8] sm:$0xff]
        %v335 = vld [vmem:[%s277 + $0xb0] sm:$0xff]
        %v336 = vld [vmem:[%s277 + $0xb8] sm:$0xff]
        %v337 = vld [vmem:[%s277 + $0xc0] sm:$0xff]
        %v338 = vld [vmem:[%s277 + $0xc8] sm:$0xff]
        %v339 = vld [vmem:[%s277 + $0xd0] sm:$0xff]
        %v340 = vld [vmem:[%s277 + $0xd8] sm:$0xff]
        %v341 = vld [vmem:[%s277 + $0xe0] sm:$0xff]
        %v342 = vld [vmem:[%s277 + $0xe8] sm:$0xff]
        %v343 = vld [vmem:[%s277 + $0xf0] sm:$0xff]
        %v344 = vld [vmem:[%s277 + $0xf8] sm:$0xff]
        %v345 = vld [vmem:[%s277 + $0x100] sm:$0xff]
        %v346 = vld [vmem:[%s277 + $0x108] sm:$0xff]
        %v347 = vld [vmem:[%s277 + $0x110] sm:$0xff]
        %v348 = vld [vmem:[%s277 + $0x118] sm:$0xff]
        %v349 = vld [vmem:[%s277 + $0x120] sm:$0xff]
        %v350 = vld [vmem:[%s277 + $0x128] sm:$0xff]
        %v351 = vld [vmem:[%s277 + $0x130] sm:$0xff]
        %v352 = vld [vmem:[%s277 + $0x138] sm:$0xff]
        %v353 = vld [vmem:[%s277 + $0x140] sm:$0xff]
        %v354 = vld [vmem:[%s277 + $0x148] sm:$0xff]
        %v355 = vld [vmem:[%s277 + $0x150] sm:$0xff]
        %v356 = vld [vmem:[%s277 + $0x158] sm:$0xff]
        %v357 = vld [vmem:[%s277 + $0x160] sm:$0xff]
        %v358 = vld [vmem:[%s277 + $0x168] sm:$0xff]
        %v359 = vld [vmem:[%s277 + $0x170] sm:$0xff]
        %v360 = vld [vmem:[%s277 + $0x178] sm:$0xff]
        %v361 = vld [vmem:[%s277 + $0x180] sm:$0xff]
        %v362 = vld [vmem:[%s277 + $0x188] sm:$0xff]
        %v363 = vld [vmem:[%s277 + $0x190] sm:$0xff]
        %v364 = vld [vmem:[%s277 + $0x198] sm:$0xff]
        %v365 = vld [vmem:[%s277 + $0x1a0] sm:$0xff]
        %v366 = vld [vmem:[%s277 + $0x1a8] sm:$0xff]
        %v367 = vld [vmem:[%s277 + $0x1b0] sm:$0xff]
        %v368 = vld [vmem:[%s277 + $0x1b8] sm:$0xff]
        %v369 = vld [vmem:[%s277 + $0x1c0] sm:$0xff]
        %v370 = vld [vmem:[%s277 + $0x1c8] sm:$0xff]
        %v371 = vld [vmem:[%s277 + $0x1d0] sm:$0xff]
        %v372 = vld [vmem:[%s277 + $0x1d8] sm:$0xff]
        %v373 = vld [vmem:[%s277 + $0x1e0] sm:$0xff]
        %v374 = vld [vmem:[%s277 + $0x1e8] sm:$0xff]
        %v375 = vld [vmem:[%s277 + $0x1f0] sm:$0xff]
        %v376 = vld [vmem:[%s277 + $0x1f8] sm:$0xff]
        %v381 = vunpack.c.l.b16 %v309
        %v382 = vunpack.c.h.b16 %v309
        %v383 = vunpack.c.l.b16 %v310
        %v384 = vunpack.c.h.b16 %v310
        %v385 = vunpack.c.l.b16 %v311
        %v386 = vunpack.c.h.b16 %v311
        %v387 = vunpack.c.l.b16 %v312
        %v388 = vunpack.c.h.b16 %v312
        %v389 = vpack.c.b16 %v385, %v381
        %v390 = vpack.c.b16 %v386, %v382
        %v391 = vpack.c.b16 %v387, %v383
        %v392 = vpack.c.b16 %v388, %v384
        %v461 = vunpack.c.l.b16 %v313
        %v462 = vunpack.c.h.b16 %v313
        %v463 = vunpack.c.l.b16 %v314
        %v464 = vunpack.c.h.b16 %v314
        %v465 = vunpack.c.l.b16 %v315
        %v466 = vunpack.c.h.b16 %v315
        %v467 = vunpack.c.l.b16 %v316
        %v468 = vunpack.c.h.b16 %v316
        %v469 = vunpack.c.l.b16 %v317
        %v470 = vunpack.c.h.b16 %v317
        %v471 = vunpack.c.l.b16 %v318
        %v472 = vunpack.c.h.b16 %v318
        %v473 = vunpack.c.l.b16 %v319
        %v474 = vunpack.c.h.b16 %v319
        %v475 = vunpack.c.l.b16 %v320
        %v476 = vunpack.c.h.b16 %v320
        %v477 = vunpack.c.l.b16 %v321
        %v478 = vunpack.c.h.b16 %v321
        %v479 = vunpack.c.l.b16 %v322
        %v480 = vunpack.c.h.b16 %v322
        %v481 = vunpack.c.l.b16 %v323
        %v482 = vunpack.c.h.b16 %v323
        %v483 = vunpack.c.l.b16 %v324
        %v484 = vunpack.c.h.b16 %v324
        %v485 = vunpack.c.l.b16 %v325
        %v486 = vunpack.c.h.b16 %v325
        %v487 = vunpack.c.l.b16 %v326
        %v488 = vunpack.c.h.b16 %v326
        %v489 = vunpack.c.l.b16 %v327
        %v490 = vunpack.c.h.b16 %v327
        %v491 = vunpack.c.l.b16 %v328
        %v492 = vunpack.c.h.b16 %v328
        %v493 = vunpack.c.l.b16 %v329
        %v494 = vunpack.c.h.b16 %v329
        %v495 = vunpack.c.l.b16 %v330
        %v496 = vunpack.c.h.b16 %v330
        %v497 = vunpack.c.l.b16 %v331
        %v498 = vunpack.c.h.b16 %v331
        %v499 = vunpack.c.l.b16 %v332
        %v500 = vunpack.c.h.b16 %v332
        %v501 = vunpack.c.l.b16 %v333
        %v502 = vunpack.c.h.b16 %v333
        %v503 = vunpack.c.l.b16 %v334
        %v504 = vunpack.c.h.b16 %v334
        %v505 = vunpack.c.l.b16 %v335
        %v506 = vunpack.c.h.b16 %v335
        %v507 = vunpack.c.l.b16 %v336
        %v508 = vunpack.c.h.b16 %v336
        %v509 = vunpack.c.l.b16 %v337
        %v510 = vunpack.c.h.b16 %v337
        %v511 = vunpack.c.l.b16 %v338
        %v512 = vunpack.c.h.b16 %v338
        %v513 = vunpack.c.l.b16 %v339
        %v514 = vunpack.c.h.b16 %v339
        %v515 = vunpack.c.l.b16 %v340
        %v516 = vunpack.c.h.b16 %v340
        %v517 = vunpack.c.l.b16 %v341
        %v518 = vunpack.c.h.b16 %v341
        %v519 = vunpack.c.l.b16 %v342
        %v520 = vunpack.c.h.b16 %v342
        %v521 = vunpack.c.l.b16 %v343
        %v522 = vunpack.c.h.b16 %v343
        %v523 = vunpack.c.l.b16 %v344
        %v524 = vunpack.c.h.b16 %v344
        %v525 = vunpack.c.l.b16 %v345
        %v526 = vunpack.c.h.b16 %v345
        %v527 = vunpack.c.l.b16 %v346
        %v528 = vunpack.c.h.b16 %v346
        %v529 = vunpack.c.l.b16 %v347
        %v530 = vunpack.c.h.b16 %v347
        %v531 = vunpack.c.l.b16 %v348
        %v532 = vunpack.c.h.b16 %v348
        %v533 = vunpack.c.l.b16 %v349
        %v534 = vunpack.c.h.b16 %v349
        %v535 = vunpack.c.l.b16 %v350
        %v536 = vunpack.c.h.b16 %v350
        %v537 = vunpack.c.l.b16 %v351
        %v538 = vunpack.c.h.b16 %v351
        %v539 = vunpack.c.l.b16 %v352
        %v540 = vunpack.c.h.b16 %v352
        %v541 = vunpack.c.l.b16 %v353
        %v542 = vunpack.c.h.b16 %v353
        %v543 = vunpack.c.l.b16 %v354
        %v544 = vunpack.c.h.b16 %v354
        %v545 = vunpack.c.l.b16 %v355
        %v546 = vunpack.c.h.b16 %v355
        %v547 = vunpack.c.l.b16 %v356
        %v548 = vunpack.c.h.b16 %v356
        %v549 = vunpack.c.l.b16 %v357
        %v550 = vunpack.c.h.b16 %v357
        %v551 = vunpack.c.l.b16 %v358
        %v552 = vunpack.c.h.b16 %v358
        %v553 = vunpack.c.l.b16 %v359
        %v554 = vunpack.c.h.b16 %v359
        %v555 = vunpack.c.l.b16 %v360
        %v556 = vunpack.c.h.b16 %v360
        %v557 = vunpack.c.l.b16 %v361
        %v558 = vunpack.c.h.b16 %v361
        %v559 = vunpack.c.l.b16 %v362
        %v560 = vunpack.c.h.b16 %v362
        %v561 = vunpack.c.l.b16 %v363
        %v562 = vunpack.c.h.b16 %v363
        %v563 = vunpack.c.l.b16 %v364
        %v564 = vunpack.c.h.b16 %v364
        %v565 = vunpack.c.l.b16 %v365
        %v566 = vunpack.c.h.b16 %v365
        %v567 = vunpack.c.l.b16 %v366
        %v568 = vunpack.c.h.b16 %v366
        %v569 = vunpack.c.l.b16 %v367
        %v570 = vunpack.c.h.b16 %v367
        %v571 = vunpack.c.l.b16 %v368
        %v572 = vunpack.c.h.b16 %v368
        %v573 = vunpack.c.l.b16 %v369
        %v574 = vunpack.c.h.b16 %v369
        %v575 = vunpack.c.l.b16 %v370
        %v576 = vunpack.c.h.b16 %v370
        %v577 = vunpack.c.l.b16 %v371
        %v578 = vunpack.c.h.b16 %v371
        %v579 = vunpack.c.l.b16 %v372
        %v580 = vunpack.c.h.b16 %v372
        %v581 = vunpack.c.l.b16 %v373
        %v582 = vunpack.c.h.b16 %v373
        %v583 = vunpack.c.l.b16 %v374
        %v584 = vunpack.c.h.b16 %v374
        %v585 = vunpack.c.l.b16 %v375
        %v586 = vunpack.c.h.b16 %v375
        %v587 = vunpack.c.l.b16 %v376
        %v588 = vunpack.c.h.b16 %v376
        %v589 = vpack.c.b16 %v463, %v461
        %v590 = vpack.c.b16 %v464, %v462
        %v591 = vpack.c.b16 %v467, %v465
        %v592 = vpack.c.b16 %v468, %v466
        %v593 = vpack.c.b16 %v471, %v469
        %v594 = vpack.c.b16 %v472, %v470
        %v595 = vpack.c.b16 %v475, %v473
        %v596 = vpack.c.b16 %v476, %v474
        %v597 = vpack.c.b16 %v479, %v477
        %v598 = vpack.c.b16 %v480, %v478
        %v599 = vpack.c.b16 %v483, %v481
        %v600 = vpack.c.b16 %v484, %v482
        %v601 = vpack.c.b16 %v487, %v485
        %v602 = vpack.c.b16 %v488, %v486
        %v603 = vpack.c.b16 %v491, %v489
        %v604 = vpack.c.b16 %v492, %v490
        %v605 = vpack.c.b16 %v495, %v493
        %v606 = vpack.c.b16 %v496, %v494
        %v607 = vpack.c.b16 %v499, %v497
        %v608 = vpack.c.b16 %v500, %v498
        %v609 = vpack.c.b16 %v503, %v501
        %v610 = vpack.c.b16 %v504, %v502
        %v611 = vpack.c.b16 %v507, %v505
        %v612 = vpack.c.b16 %v508, %v506
        %v613 = vpack.c.b16 %v511, %v509
        %v614 = vpack.c.b16 %v512, %v510
        %v615 = vpack.c.b16 %v515, %v513
        %v616 = vpack.c.b16 %v516, %v514
        %v617 = vpack.c.b16 %v519, %v517
        %v618 = vpack.c.b16 %v520, %v518
        %v619 = vpack.c.b16 %v523, %v521
        %v620 = vpack.c.b16 %v524, %v522
        %v621 = vpack.c.b16 %v527, %v525
        %v622 = vpack.c.b16 %v528, %v526
        %v623 = vpack.c.b16 %v531, %v529
        %v624 = vpack.c.b16 %v532, %v530
        %v625 = vpack.c.b16 %v535, %v533
        %v626 = vpack.c.b16 %v536, %v534
        %v627 = vpack.c.b16 %v539, %v537
        %v628 = vpack.c.b16 %v540, %v538
        %v629 = vpack.c.b16 %v543, %v541
        %v630 = vpack.c.b16 %v544, %v542
        %v631 = vpack.c.b16 %v547, %v545
        %v632 = vpack.c.b16 %v548, %v546
        %v633 = vpack.c.b16 %v551, %v549
        %v634 = vpack.c.b16 %v552, %v550
        %v635 = vpack.c.b16 %v555, %v553
        %v636 = vpack.c.b16 %v556, %v554
        %v637 = vpack.c.b16 %v559, %v557
        %v638 = vpack.c.b16 %v560, %v558
        %v639 = vpack.c.b16 %v563, %v561
        %v640 = vpack.c.b16 %v564, %v562
        %v641 = vpack.c.b16 %v567, %v565
        %v642 = vpack.c.b16 %v568, %v566
        %v643 = vpack.c.b16 %v571, %v569
        %v644 = vpack.c.b16 %v572, %v570
        %v645 = vpack.c.b16 %v575, %v573
        %v646 = vpack.c.b16 %v576, %v574
        %v647 = vpack.c.b16 %v579, %v577
        %v648 = vpack.c.b16 %v580, %v578
        %v649 = vpack.c.b16 %v583, %v581
        %v650 = vpack.c.b16 %v584, %v582
        %v651 = vpack.c.b16 %v587, %v585
        %v652 = vpack.c.b16 %v588, %v586
        %717 = vmatprep.subr.bf16.mxu0 %v590
        %718 = vmatpush1.bf16.msra.mxu0 %v589
        %719 = vmatprep.subr.bf16.mxu0 %v592
        %720 = vmatpush1.bf16.msra.mxu0 %v591
        %721 = vmatprep.subr.bf16.mxu0 %v594
        %722 = vmatpush1.bf16.msra.mxu0 %v593
        %723 = vmatprep.subr.bf16.mxu0 %v596
        %724 = vmatpush1.bf16.msra.mxu0 %v595
        %725 = vmatprep.subr.bf16.mxu0 %v598
        %726 = vmatpush1.bf16.msra.mxu0 %v597
        %727 = vmatprep.subr.bf16.mxu0 %v600
        %728 = vmatpush1.bf16.msra.mxu0 %v599
        %729 = vmatprep.subr.bf16.mxu0 %v602
        %730 = vmatpush1.bf16.msra.mxu0 %v601
        %731 = vmatprep.subr.bf16.mxu0 %v604
        %732 = vmatpush1.bf16.msra.mxu0 %v603
        %733 = vmatprep.subr.bf16.mxu0 %v606
        %734 = vmatpush1.bf16.msra.mxu0 %v605
        %735 = vmatprep.subr.bf16.mxu0 %v608
        %736 = vmatpush1.bf16.msra.mxu0 %v607
        %737 = vmatprep.subr.bf16.mxu0 %v610
        %738 = vmatpush1.bf16.msra.mxu0 %v609
        %739 = vmatprep.subr.bf16.mxu0 %v612
        %740 = vmatpush1.bf16.msra.mxu0 %v611
        %741 = vmatprep.subr.bf16.mxu0 %v614
        %742 = vmatpush1.bf16.msra.mxu0 %v613
        %743 = vmatprep.subr.bf16.mxu0 %v616
        %744 = vmatpush1.bf16.msra.mxu0 %v615
        %745 = vmatprep.subr.bf16.mxu0 %v618
        %746 = vmatpush1.bf16.msra.mxu0 %v617
        %747 = vmatprep.subr.bf16.mxu0 %v620
        %748 = vmatpush1.bf16.msra.mxu0 %v619
        %749 = vmatprep.mubr.bf16.mxu0 %v390
        %750 = vmatmul.mubr.bf16.gmra.mrb[0].mxu0 %v389
        %v751 = vpop.f32.mrb[0].mxu0
        %v752 = vadd.f32 0.0, %v751
        %v753 = vpop.f32.mrb[0].mxu0
        %v754 = vadd.f32 0.0, %v753
        %v755 = vpop.f32.mrb[0].mxu0
        %v756 = vadd.f32 0.0, %v755
        %v757 = vpop.f32.mrb[0].mxu0
        %v758 = vadd.f32 0.0, %v757
        %759 = vdwg.mxu0
        %760 = vmatprep.subr.bf16.mxu0 %v622
        %761 = vmatpush1.bf16.msra.mxu0 %v621
        %762 = vmatprep.subr.bf16.mxu0 %v624
        %763 = vmatpush1.bf16.msra.mxu0 %v623
        %764 = vmatprep.subr.bf16.mxu0 %v626
        %765 = vmatpush1.bf16.msra.mxu0 %v625
        %766 = vmatprep.subr.bf16.mxu0 %v628
        %767 = vmatpush1.bf16.msra.mxu0 %v627
        %768 = vmatprep.subr.bf16.mxu0 %v630
        %769 = vmatpush1.bf16.msra.mxu0 %v629
        %770 = vmatprep.subr.bf16.mxu0 %v632
        %771 = vmatpush1.bf16.msra.mxu0 %v631
        %772 = vmatprep.subr.bf16.mxu0 %v634
        %773 = vmatpush1.bf16.msra.mxu0 %v633
        %774 = vmatprep.subr.bf16.mxu0 %v636
        %775 = vmatpush1.bf16.msra.mxu0 %v635
        %776 = vmatprep.subr.bf16.mxu0 %v638
        %777 = vmatpush1.bf16.msra.mxu0 %v637
        %778 = vmatprep.subr.bf16.mxu0 %v640
        %779 = vmatpush1.bf16.msra.mxu0 %v639
        %780 = vmatprep.subr.bf16.mxu0 %v642
        %781 = vmatpush1.bf16.msra.mxu0 %v641
        %782 = vmatprep.subr.bf16.mxu0 %v644
        %783 = vmatpush1.bf16.msra.mxu0 %v643
        %784 = vmatprep.subr.bf16.mxu0 %v646
        %785 = vmatpush1.bf16.msra.mxu0 %v645
        %786 = vmatprep.subr.bf16.mxu0 %v648
        %787 = vmatpush1.bf16.msra.mxu0 %v647
        %788 = vmatprep.subr.bf16.mxu0 %v650
        %789 = vmatpush1.bf16.msra.mxu0 %v649
        %790 = vmatprep.subr.bf16.mxu0 %v652
        %791 = vmatpush1.bf16.msra.mxu0 %v651
        %792 = vmatprep.mubr.bf16.mxu0 %v392
        %793 = vmatmul.mubr.bf16.gmra.mrb[0].mxu0 %v391
        %v794 = vpop.f32.mrb[0].mxu0
        %v795 = vadd.f32 %v752, %v794
        %v796 = vpop.f32.mrb[0].mxu0
        %v797 = vadd.f32 %v754, %v796
        %v798 = vpop.f32.mrb[0].mxu0
        %v799 = vadd.f32 %v756, %v798
        %v800 = vpop.f32.mrb[0].mxu0
        %v801 = vadd.f32 %v758, %v800
        %802 = vdwg.mxu0
        %v803 = vadd.f32 %v305, %v795
        %v804 = vadd.f32 %v306, %v797
        %v805 = vadd.f32 %v307, %v799
        %v806 = vadd.f32 %v308, %v801
        %807 = vst [vmem:[#allocation2] sm:$0xff] %v803
        %808 = vst [vmem:[#allocation2 + $0x8] sm:$0xff] %v804
        %809 = vst [vmem:[#allocation2 + $0x10] sm:$0xff] %v805
        %810 = vst [vmem:[#allocation2 + $0x18] sm:$0xff] %v806
        %p811 = scmp.eq.s32.totalorder %s21, 4
        // Predicated region
        $region60: #{localizer_alexnet_forward.17} parent=50 // pred_check
          %p812 = pneg %p811
        $region61: #{localizer_alexnet_forward.17} parent=50 // pred_check_branch
          %814 = sbr.rel (%p812) target = $region63
        $region62: #{localizer_alexnet_forward.17} parent=50 // pred_region
          %v815 = vld [vmem:[#allocation2] sm:$0xff]
          %v816 = vld [vmem:[#allocation2 + $0x8] sm:$0xff]
          %v817 = vld [vmem:[#allocation2 + $0x10] sm:$0xff]
          %v818 = vld [vmem:[#allocation2 + $0x18] sm:$0xff]
          %v819 = vld [vmem:[%s283] sm:$0x3]
          %v821 = vlaneseq
          %v822 = vshrl.u32 %v821, 7
          %v823 = vsub.s32 0, %v822
          %v824 = vrot.slane %v819, %v823
          %v825 = vlaneseq
          %v826 = vshrl.u32 %v825, 7
          %v827 = vsub.s32 1, %v826
          %v828 = vrot.slane %v819, %v827
          %v831 = vadd.f32 %v815, %v824
          %v832 = vadd.f32 %v816, %v828
          %v833 = vadd.f32 %v817, %v824
          %v834 = vadd.f32 %v818, %v828
          %v835 = vmax.f32 %v831, 0.0
          %v836 = vmax.f32 %v832, 0.0
          %v837 = vmax.f32 %v833, 0.0
          %v838 = vmax.f32 %v834, 0.0
          %v839 = vpack.c.bf16 %v837, %v835
          %v840 = vpack.c.bf16 %v838, %v836
          %v843 = vunpack.c.l.b16 %v839
          %v844 = vunpack.c.l.b16 %v840
          %v845 = vunpack.c.h.b16 %v839
          %v846 = vunpack.c.h.b16 %v840
          %v847 = vpack.c.b16 %v844, %v843
          %v848 = vpack.c.b16 %v846, %v845
          %851 = vst [vmem:[%s294] sm:$0xff] %v847
          %852 = vst [vmem:[%s294 + $0x8] sm:$0xff] %v848
        $region63: #{localizer_alexnet_forward.17} parent=50 // pred_fallthru
          _
        %s853 = smul.u32 2, %s19
        %s854 = smul.u32 2, %s20
        %p855 = scmp.lt.s32.totalorder %s853, 3
        %s856 = scalar_select %p855, %s853, 3
        %p857 = scmp.lt.s32.totalorder %s854, 1
        %s858 = scalar_select %p857, %s854, 1
        %s859 = smul.addr %s856, 2
        %s860 = sadd.s32 %s858, %s859
        %s861 = smul.addr %s860, 4
        %s862 = scalar_lea.vmem %s3, %s861
        // Predicated region
        $region64: #{localizer_alexnet_forward.17} parent=50 // pred_check
          %p863 = pneg %p135
        $region65: #{localizer_alexnet_forward.17} parent=50 // pred_check_branch
          %865 = sbr.rel (%p863) target = $region67
        $region66: #{localizer_alexnet_forward.17} parent=50 // pred_region
          %s866 = smul.u32 2, %s19
          %s867 = smul.u32 2, %s20
        $region67: #{localizer_alexnet_forward.17} parent=50 // pred_fallthru
          _
      $region51: #{localizer_alexnet_forward.17} parent=5 // pred_fallthru
        _
      %p868 = scmp.le.s32.totalorder 2, %s9
      // Predicated region
      $region68: #{localizer_alexnet_forward.17} parent=5 // pred_check
        %p869 = pneg %p868
      $region69: #{localizer_alexnet_forward.17} parent=5 // pred_check_branch
        %871 = sbr.rel (%p869) target = $region71
      $region70: #{localizer_alexnet_forward.17} parent=5 // pred_region
        %s872 = ssub.s32 %s9, 2
        // Predicated region
        $region72: #{localizer_alexnet_forward.17} parent=70 // pred_check
          %p873 = pneg %p141
        $region73: #{localizer_alexnet_forward.17} parent=70 // pred_check_branch
          %875 = sbr.rel (%p873) target = $region75
        $region74: #{localizer_alexnet_forward.17} parent=70 // pred_region
          %s876 = smul.u32 2, %s22
          %s877 = smul.u32 2, %s23
          %p878 = scmp.lt.s32.totalorder %s876, 3
          %s879 = scalar_select %p878, %s876, 3
          %p880 = scmp.lt.s32.totalorder %s877, 1
          %s881 = scalar_select %p880, %s877, 1
          %s882 = smul.addr %s879, 2
          %s883 = sadd.s32 %s881, %s882
          %s884 = smul.addr %s883, 4
          %s885 = scalar_lea.vmem %s3, %s884
        $region75: #{localizer_alexnet_forward.17} parent=70 // pred_fallthru
          _
      $region71: #{localizer_alexnet_forward.17} parent=5 // pred_fallthru
        _
    $region6: #{localizer_alexnet_forward.17} parent=1 // loop_footer
      %s13 = sadd.s32 1, %s9
    $region7: #{localizer_alexnet_forward.17} parent=1 // loop_footer_branch
      %8 = sbr.rel target = $region3
    $region8: #{localizer_alexnet_forward.17} parent=1 // loop_exit
      _

// kernel: localizer_alexnet_forward.18
$region0: #{localizer_alexnet_forward.18}
  #allocation0 [shape = 'u32[]', space=smem, size = 0x4, offset = 0x4, fixed_abs, tag = 'smem constant byte address 0x4 - core index']
  #allocation1 [shape = 'u32[144,128]{1,0:T(1,128)}', space=vmem, size = 0x12000, scoped, tag = 'internal scratch']
  #allocation2 [shape = 'f32[16,256]{1,0:T(8,128)}', space=vmem, size = 0x4000, scoped, tag = 'scratch operand']
  %s0 = inlined_call_operand.vmem [shape: bf16[16,2560], index: 0, kind: input, shape index: {}]
  %s1 = inlined_call_operand.vmem [shape: bf16[2560,256], index: 1, kind: input, shape index: {}]
  %s2 = inlined_call_operand.vmem [shape: f32[1,256], index: 2, kind: input, shape index: {}]
  %s3 = inlined_call_operand.vmem [shape: bf16[16,256], index: 3, kind: output, shape index: {}]
  %s4 = sld [smem:[#allocation0]]
  $region76: #{localizer_alexnet_forward.18} parent=0
    _
  %s6 = ssub.s32 1, %s4
  %s7 = scalar_select 0, %s6, %s4
  $region1: #{localizer_alexnet_forward.18} parent=0
    #allocation3 [shape = 'u8[32768]{0}', space=vmem, size = 0x8000, scoped, tag = 'input window, operand 0']
    loop: start=0, step=1, limit=7
    $region2: #{localizer_alexnet_forward.18} parent=1 // loop_pre_header
      _
    $region3: #{localizer_alexnet_forward.18} parent=1 // loop_header
      %s9 = sphi 0, %s13
      %p10 = scmp.ge.s32.totalorder %s9, 7
      %s16 = sphi 0, %s35
      %s17 = sphi 0, %s31
      %s18 = sphi 0, %s27
      %s19 = sphi 0, %s16
      %s20 = sphi 0, %s17
      %s21 = sphi 0, %s18
      %s22 = sphi 0, %s19
      %s23 = sphi 0, %s20
      %s24 = sphi 0, %s21
      %s40 = sphi 0, %s42
      %s43 = sphi 0, %s40
      %s44 = sphi 0, %s43
      %s60 = sphi 0, %s44
      %s68 = sphi 0, %s70
      %s71 = sphi 0, %s68
      %s72 = sphi 0, %s71
      %s88 = sphi 0, %s72
      %s94 = sphi 0, %s96
      %s97 = sphi 0, %s94
      %s98 = sphi 0, %s97
      %s114 = sphi 0, %s98
      %s122 = sphi 0, %s124
      %s125 = sphi 0, %s122
      %s126 = sphi 0, %s125
      %s142 = sphi 0, %s126
    $region4: #{localizer_alexnet_forward.18} parent=1 // loop_header_branch
      %12 = sbr.rel (%p10) target = $region8
    $region5: #{localizer_alexnet_forward.18} parent=1 // loop_body
      %s14 = ssub.s32 %s9, 1
      %s15 = ssub.s32 %s9, 2
      %s25 = sadd.s32 1, %s18
      %p26 = scmp.ge.s32.totalorder %s25, 5
      %s27 = scalar_select %p26, 0, %s25
      %s28 = sadd.s32 1, %s17
      %s29 = scalar_select %p26, %s28, %s17
      %p30 = scmp.ge.s32.totalorder %s29, 1
      %s31 = scalar_select %p30, 0, %s29
      %s32 = sadd.s32 1, %s16
      %s33 = scalar_select %p30, %s32, %s16
      %p34 = scmp.ge.s32.totalorder %s33, 1
      %s35 = scalar_select %p34, 0, %s33
      %s36 = ssub.s32 %s16, %s35
      %s37 = ssub.s32 %s18, %s27
      %s38 = sor.u32 %s36, %s37
      %p39 = scmp.eq.s32.totalorder %s38, 0
      %s41 = sadd.s32 %s40, 1
      %s42 = scalar_select %p39, %s40, %s41
      %p45 = pneg %p39
      %p46 = scmp.eq.s32.totalorder %s9, 4
      %p47 = por %p45, %p46
      %p48 = scmp.ne.s32.totalorder %s40, %s43
      %p49 = scmp.eq.s32.totalorder %s9, 0
      %p50 = por %p48, %p49
      %p51 = scmp.ne.s32.totalorder %s40, %s43
      %p52 = scmp.eq.s32.totalorder %s14, 4
      %p53 = por %p51, %p52
      %p54 = scmp.ne.s32.totalorder %s43, %s44
      %p55 = scmp.eq.s32.totalorder %s14, 0
      %p56 = por %p54, %p55
      %p57 = scmp.ne.s32.totalorder %s43, %s44
      %p58 = scmp.eq.s32.totalorder %s15, 4
      %p59 = por %p57, %p58
      %p61 = scmp.ne.s32.totalorder %s44, %s60
      %p62 = scmp.eq.s32.totalorder %s15, 0
      %p63 = por %p61, %p62
      %s64 = ssub.s32 %s18, %s27
      %s65 = ssub.s32 %s17, %s31
      %s66 = sor.u32 %s64, %s65
      %p67 = scmp.eq.s32.totalorder %s66, 0
      %s69 = sadd.s32 %s68, 1
      %s70 = scalar_select %p67, %s68, %s69
      %p73 = pneg %p67
      %p74 = scmp.eq.s32.totalorder %s9, 4
      %p75 = por %p73, %p74
      %p76 = scmp.ne.s32.totalorder %s68, %s71
      %p77 = scmp.eq.s32.totalorder %s9, 0
      %p78 = por %p76, %p77
      %p79 = scmp.ne.s32.totalorder %s68, %s71
      %p80 = scmp.eq.s32.totalorder %s14, 4
      %p81 = por %p79, %p80
      %p82 = scmp.ne.s32.totalorder %s71, %s72
      %p83 = scmp.eq.s32.totalorder %s14, 0
      %p84 = por %p82, %p83
      %p85 = scmp.ne.s32.totalorder %s71, %s72
      %p86 = scmp.eq.s32.totalorder %s15, 4
      %p87 = por %p85, %p86
      %p89 = scmp.ne.s32.totalorder %s72, %s88
      %p90 = scmp.eq.s32.totalorder %s15, 0
      %p91 = por %p89, %p90
      %s92 = ssub.s32 %s17, %s31
      %p93 = scmp.eq.s32.totalorder %s92, 0
      %s95 = sadd.s32 %s94, 1
      %s96 = scalar_select %p93, %s94, %s95
      %p99 = pneg %p93
      %p100 = scmp.eq.s32.totalorder %s9, 4
      %p101 = por %p99, %p100
      %p102 = scmp.ne.s32.totalorder %s94, %s97
      %p103 = scmp.eq.s32.totalorder %s9, 0
      %p104 = por %p102, %p103
      %p105 = scmp.ne.s32.totalorder %s94, %s97
      %p106 = scmp.eq.s32.totalorder %s14, 4
      %p107 = por %p105, %p106
      %p108 = scmp.ne.s32.totalorder %s97, %s98
      %p109 = scmp.eq.s32.totalorder %s14, 0
      %p110 = por %p108, %p109
      %p111 = scmp.ne.s32.totalorder %s97, %s98
      %p112 = scmp.eq.s32.totalorder %s15, 4
      %p113 = por %p111, %p112
      %p115 = scmp.ne.s32.totalorder %s98, %s114
      %p116 = scmp.eq.s32.totalorder %s15, 0
      %p117 = por %p115, %p116
      %s118 = ssub.s32 %s16, %s35
      %s119 = ssub.s32 %s17, %s31
      %s120 = sor.u32 %s118, %s119
      %p121 = scmp.eq.s32.totalorder %s120, 0
      %s123 = sadd.s32 %s122, 1
      %s124 = scalar_select %p121, %s122, %s123
      %p127 = pneg %p121
      %p128 = scmp.eq.s32.totalorder %s9, 4
      %p129 = por %p127, %p128
      %p130 = scmp.ne.s32.totalorder %s122, %s125
      %p131 = scmp.eq.s32.totalorder %s9, 0
      %p132 = por %p130, %p131
      %p133 = scmp.ne.s32.totalorder %s122, %s125
      %p134 = scmp.eq.s32.totalorder %s14, 4
      %p135 = por %p133, %p134
      %p136 = scmp.ne.s32.totalorder %s125, %s126
      %p137 = scmp.eq.s32.totalorder %s14, 0
      %p138 = por %p136, %p137
      %p139 = scmp.ne.s32.totalorder %s125, %s126
      %p140 = scmp.eq.s32.totalorder %s15, 4
      %p141 = por %p139, %p140
      %p143 = scmp.ne.s32.totalorder %s126, %s142
      %p144 = scmp.eq.s32.totalorder %s15, 0
      %p145 = por %p143, %p144
      %p146 = scmp.le.s32.totalorder 1, %s9
      %p147 = scmp.lt.s32.totalorder %s9, 6
      %p148 = pnand %p146, %p147
      %p149 = pneg %p148
      // Predicated region
      $region9: #{localizer_alexnet_forward.18} parent=5 // pred_check
        _
      $region10: #{localizer_alexnet_forward.18} parent=5 // pred_check_branch
        %151 = sbr.rel (%p148) target = $region12
      $region11: #{localizer_alexnet_forward.18} parent=5 // pred_region
        %s152 = ssub.s32 %s9, 1
        // Predicated region
        $region13: #{localizer_alexnet_forward.18} parent=11 // pred_check
          %p153 = pneg %p110
        $region14: #{localizer_alexnet_forward.18} parent=11 // pred_check_branch
          %155 = sbr.rel (%p153) target = $region16
        $region15: #{localizer_alexnet_forward.18} parent=11 // pred_region
          %s156 = smul.u32 2, %s20
          %p157 = scmp.lt.s32.totalorder %s156, 1
          %s158 = scalar_select %p157, %s156, 1
          %s159 = scalar_lea.vmem %s2, %s158
          %s160 = smul.u32 2, %s20
        $region16: #{localizer_alexnet_forward.18} parent=11 // pred_fallthru
          _
      $region12: #{localizer_alexnet_forward.18} parent=5 // pred_fallthru
        _
      %p161 = scmp.lt.s32.totalorder %s9, 5
      // Predicated region
      $region17: #{localizer_alexnet_forward.18} parent=5 // pred_check
        %p162 = pneg %p161
      $region18: #{localizer_alexnet_forward.18} parent=5 // pred_check_branch
        %164 = sbr.rel (%p162) target = $region20
      $region19: #{localizer_alexnet_forward.18} parent=5 // pred_region
        // Predicated region
        $region21: #{localizer_alexnet_forward.18} parent=19 // pred_check
          %p165 = pneg %p50
        $region22: #{localizer_alexnet_forward.18} parent=19 // pred_check_branch
          %167 = sbr.rel (%p165) target = $region24
        $region23: #{localizer_alexnet_forward.18} parent=19 // pred_region
          %s168 = sand.u32 %s40, 1
          %s169 = sand.u32 %s40, 1
          %s170 = smul.addr %s169, 32
          %s171 = scalar_lea.vmem [#allocation3], %s170
          %s172 = smul.u32 2, %s16
          %s173 = smul.u32 4, %s18
          %s174 = smul.addr %s172, 20
          %s175 = sadd.s32 %s173, %s174
          %s176 = smul.addr %s175, 4
          %s177 = scalar_lea.vmem %s0, %s176
          // Predicated region
          $region25: #{localizer_alexnet_forward.18} parent=23 // pred_check
            _
          $region26: #{localizer_alexnet_forward.18} parent=23 // pred_check_branch
            %179 = sbr.rel (0) target = $region28
          $region27: #{localizer_alexnet_forward.18} parent=23 // pred_region
            // Predicated region
            $region29: #{localizer_alexnet_forward.18} parent=27 // pred_check
              _
            $region30: #{localizer_alexnet_forward.18} parent=27 // pred_check_branch
              %181 = sbr.rel (0) target = $region32
            $region31: #{localizer_alexnet_forward.18} parent=27 // pred_region
              loop: start=0, step=1, limit=1
              $region33: #{localizer_alexnet_forward.18} parent=31 // loop_pre_header
                _
              $region34: #{localizer_alexnet_forward.18} parent=31 // loop_header
                %s183 = sphi 0, %s187
                %p184 = scmp.ge.s32.totalorder %s183, 1
                %s188 = sphi %s177, %s177
                %s189 = sphi %s171, %s171
              $region35: #{localizer_alexnet_forward.18} parent=31 // loop_header_branch
                %186 = sbr.rel (%p184) target = $region39
              $region36: #{localizer_alexnet_forward.18} parent=31 // loop_body
                %v190 = vld [vmem:[%s188] sm:$0xff]
                %191 = vst [vmem:[%s189] sm:$0xff] %v190
                %v192 = vld [vmem:[%s188 + $0x8] sm:$0xff]
                %193 = vst [vmem:[%s189 + $0x8] sm:$0xff] %v192
                %v194 = vld [vmem:[%s188 + $0x50] sm:$0xff]
                %195 = vst [vmem:[%s189 + $0x10] sm:$0xff] %v194
                %v196 = vld [vmem:[%s188 + $0x58] sm:$0xff]
                %197 = vst [vmem:[%s189 + $0x18] sm:$0xff] %v196
              $region37: #{localizer_alexnet_forward.18} parent=31 // loop_footer
                %s187 = sadd.s32 1, %s183
              $region38: #{localizer_alexnet_forward.18} parent=31 // loop_footer_branch
                %182 = sbr.rel target = $region34
              $region39: #{localizer_alexnet_forward.18} parent=31 // loop_exit
                _
            $region32: #{localizer_alexnet_forward.18} parent=27 // pred_fallthru
              _
            // Predicated region
            $region40: #{localizer_alexnet_forward.18} parent=27 // pred_check
              _
            $region41: #{localizer_alexnet_forward.18} parent=27 // pred_check_branch
              %199 = sbr.rel target = $region43
            $region42: #{localizer_alexnet_forward.18} parent=27 // pred_region
              _
            $region43: #{localizer_alexnet_forward.18} parent=27 // pred_fallthru
              _
          $region28: #{localizer_alexnet_forward.18} parent=23 // pred_fallthru
            _
          %200 = vnop
        $region24: #{localizer_alexnet_forward.18} parent=19 // pred_fallthru
          _
        // Predicated region
        $region44: #{localizer_alexnet_forward.18} parent=19 // pred_check
          %p201 = pneg %p78
        $region45: #{localizer_alexnet_forward.18} parent=19 // pred_check_branch
          %203 = sbr.rel (%p201) target = $region47
        $region46: #{localizer_alexnet_forward.18} parent=19 // pred_region
          %s204 = smul.u32 64, %s18
          %s205 = smul.u32 2, %s17
          %p206 = scmp.lt.s32.totalorder %s204, 319
          %s207 = scalar_select %p206, %s204, 319
          %p208 = scmp.lt.s32.totalorder %s205, 1
          %s209 = scalar_select %p208, %s205, 1
          %s210 = smul.addr %s207, 2
          %s211 = sadd.s32 %s209, %s210
          %s212 = smul.addr %s211, 4
          %s213 = scalar_lea.vmem %s1, %s212
          %s214 = smul.u32 64, %s18
          %s215 = smul.u32 2, %s17
        $region47: #{localizer_alexnet_forward.18} parent=19 // pred_fallthru
          _
      $region20: #{localizer_alexnet_forward.18} parent=5 // pred_fallthru
        _
      %p216 = scmp.le.s32.totalorder 1, %s9
      %p217 = scmp.lt.s32.totalorder %s9, 6
      %p218 = pnand %p216, %p217
      %p219 = pneg %p218
      // Predicated region
      $region48: #{localizer_alexnet_forward.18} parent=5 // pred_check
        _
      $region49: #{localizer_alexnet_forward.18} parent=5 // pred_check_branch
        %221 = sbr.rel (%p218) target = $region51
      $region50: #{localizer_alexnet_forward.18} parent=5 // pred_region
        %s222 = ssub.s32 %s9, 1
        %s223 = sand.u32 %s43, 1
        %s224 = sand.u32 %s43, 1
        %s225 = smul.addr %s224, 32
        %s226 = scalar_lea.vmem [#allocation3], %s225
        // Predicated region
        $region52: #{localizer_alexnet_forward.18} parent=50 // pred_check
          %p227 = pneg %p56
        $region53: #{localizer_alexnet_forward.18} parent=50 // pred_check_branch
          %229 = sbr.rel (%p227) target = $region55
        $region54: #{localizer_alexnet_forward.18} parent=50 // pred_region
          _
        $region55: #{localizer_alexnet_forward.18} parent=50 // pred_fallthru
          _
        %s230 = sand.u32 %s43, 1
        %s231 = sand.u32 %s43, 1
        %s232 = smul.addr %s231, 32
        %s233 = scalar_lea.vmem [#allocation3], %s232
        %p234 = pneg %p56
        %p235 = pneg %p53
        %s236 = smul.u32 64, %s21
        %s237 = smul.u32 2, %s20
        %p238 = scmp.lt.s32.totalorder %s236, 319
        %s239 = scalar_select %p238, %s236, 319
        %p240 = scmp.lt.s32.totalorder %s237, 1
        %s241 = scalar_select %p240, %s237, 1
        %s242 = smul.addr %s239, 2
        %s243 = sadd.s32 %s241, %s242
        %s244 = smul.addr %s243, 4
        %s245 = scalar_lea.vmem %s1, %s244
        %p246 = pneg %p84
        %p247 = pneg %p81
        %s248 = smul.u32 2, %s20
        %p249 = scmp.lt.s32.totalorder %s248, 1
        %s250 = scalar_select %p249, %s248, 1
        %s251 = scalar_lea.vmem %s2, %s250
        %p252 = pneg %p110
        %p253 = pneg %p107
        %p254 = pneg %p138
        %p255 = pneg %p135
        %s256 = smul.u32 2, %s19
        %s257 = smul.u32 2, %s20
        %p258 = scmp.lt.s32.totalorder %s256, 1
        %s259 = scalar_select %p258, %s256, 1
        %p260 = scmp.lt.s32.totalorder %s257, 1
        %s261 = scalar_select %p260, %s257, 1
        %s262 = smul.addr %s259, 2
        %s263 = sadd.s32 %s261, %s262
        %s264 = smul.addr %s263, 4
        %s265 = scalar_lea.vmem %s3, %s264
        %s266 = smul.u32 2, %s19
        %s267 = smul.u32 4, %s21
        %s268 = smul.u32 64, %s21
        %s269 = smul.u32 2, %s20
        %p270 = scmp.lt.s32.totalorder %s268, 319
        %s271 = scalar_select %p270, %s268, 319
        %p272 = scmp.lt.s32.totalorder %s269, 1
        %s273 = scalar_select %p272, %s269, 1
        %s274 = smul.addr %s271, 2
        %s275 = sadd.s32 %s273, %s274
        %s276 = smul.addr %s275, 4
        %s277 = scalar_lea.vmem %s1, %s276
        %s278 = smul.u32 64, %s21
        %s279 = smul.u32 2, %s20
        %s280 = smul.u32 2, %s20
        %p281 = scmp.lt.s32.totalorder %s280, 1
        %s282 = scalar_select %p281, %s280, 1
        %s283 = scalar_lea.vmem %s2, %s282
        %s284 = smul.u32 2, %s20
        %s285 = smul.u32 2, %s19
        %s286 = smul.u32 2, %s20
        %p287 = scmp.lt.s32.totalorder %s285, 1
        %s288 = scalar_select %p287, %s285, 1
        %p289 = scmp.lt.s32.totalorder %s286, 1
        %s290 = scalar_select %p289, %s286, 1
        %s291 = smul.addr %s288, 2
        %s292 = sadd.s32 %s290, %s291
        %s293 = smul.addr %s292, 4
        %s294 = scalar_lea.vmem %s3, %s293
        %s295 = smul.u32 2, %s19
        %s296 = smul.u32 2, %s20
        %p297 = scmp.eq.s32.totalorder %s21, 0
        // Predicated region
        $region56: #{localizer_alexnet_forward.18} parent=50 // pred_check
          %p298 = pneg %p297
        $region57: #{localizer_alexnet_forward.18} parent=50 // pred_check_branch
          %300 = sbr.rel (%p298) target = $region59
        $region58: #{localizer_alexnet_forward.18} parent=50 // pred_region
          %301 = vst [vmem:[#allocation2] sm:$0xff] 0.0
          %302 = vst [vmem:[#allocation2 + $0x8] sm:$0xff] 0.0
          %303 = vst [vmem:[#allocation2 + $0x10] sm:$0xff] 0.0
          %304 = vst [vmem:[#allocation2 + $0x18] sm:$0xff] 0.0
        $region59: #{localizer_alexnet_forward.18} parent=50 // pred_fallthru
          _
        %v305 = vld [vmem:[#allocation2] sm:$0xff]
        %v306 = vld [vmem:[#allocation2 + $0x8] sm:$0xff]
        %v307 = vld [vmem:[#allocation2 + $0x10] sm:$0xff]
        %v308 = vld [vmem:[#allocation2 + $0x18] sm:$0xff]
        %v309 = vld [vmem:[%s226] sm:$0xff]
        %v310 = vld [vmem:[%s226 + $0x8] sm:$0xff]
        %v311 = vld [vmem:[%s226 + $0x10] sm:$0xff]
        %v312 = vld [vmem:[%s226 + $0x18] sm:$0xff]
        %v313 = vld [vmem:[%s277] sm:$0xff]
        %v314 = vld [vmem:[%s277 + $0x8] sm:$0xff]
        %v315 = vld [vmem:[%s277 + $0x10] sm:$0xff]
        %v316 = vld [vmem:[%s277 + $0x18] sm:$0xff]
        %v317 = vld [vmem:[%s277 + $0x20] sm:$0xff]
        %v318 = vld [vmem:[%s277 + $0x28] sm:$0xff]
        %v319 = vld [vmem:[%s277 + $0x30] sm:$0xff]
        %v320 = vld [vmem:[%s277 + $0x38] sm:$0xff]
        %v321 = vld [vmem:[%s277 + $0x40] sm:$0xff]
        %v322 = vld [vmem:[%s277 + $0x48] sm:$0xff]
        %v323 = vld [vmem:[%s277 + $0x50] sm:$0xff]
        %v324 = vld [vmem:[%s277 + $0x58] sm:$0xff]
        %v325 = vld [vmem:[%s277 + $0x60] sm:$0xff]
        %v326 = vld [vmem:[%s277 + $0x68] sm:$0xff]
        %v327 = vld [vmem:[%s277 + $0x70] sm:$0xff]
        %v328 = vld [vmem:[%s277 + $0x78] sm:$0xff]
        %v329 = vld [vmem:[%s277 + $0x80] sm:$0xff]
        %v330 = vld [vmem:[%s277 + $0x88] sm:$0xff]
        %v331 = vld [vmem:[%s277 + $0x90] sm:$0xff]
        %v332 = vld [vmem:[%s277 + $0x98] sm:$0xff]
        %v333 = vld [vmem:[%s277 + $0xa0] sm:$0xff]
        %v334 = vld [vmem:[%s277 + $0xa8] sm:$0xff]
        %v335 = vld [vmem:[%s277 + $0xb0] sm:$0xff]
        %v336 = vld [vmem:[%s277 + $0xb8] sm:$0xff]
        %v337 = vld [vmem:[%s277 + $0xc0] sm:$0xff]
        %v338 = vld [vmem:[%s277 + $0xc8] sm:$0xff]
        %v339 = vld [vmem:[%s277 + $0xd0] sm:$0xff]
        %v340 = vld [vmem:[%s277 + $0xd8] sm:$0xff]
        %v341 = vld [vmem:[%s277 + $0xe0] sm:$0xff]
        %v342 = vld [vmem:[%s277 + $0xe8] sm:$0xff]
        %v343 = vld [vmem:[%s277 + $0xf0] sm:$0xff]
        %v344 = vld [vmem:[%s277 + $0xf8] sm:$0xff]
        %v345 = vld [vmem:[%s277 + $0x100] sm:$0xff]
        %v346 = vld [vmem:[%s277 + $0x108] sm:$0xff]
        %v347 = vld [vmem:[%s277 + $0x110] sm:$0xff]
        %v348 = vld [vmem:[%s277 + $0x118] sm:$0xff]
        %v349 = vld [vmem:[%s277 + $0x120] sm:$0xff]
        %v350 = vld [vmem:[%s277 + $0x128] sm:$0xff]
        %v351 = vld [vmem:[%s277 + $0x130] sm:$0xff]
        %v352 = vld [vmem:[%s277 + $0x138] sm:$0xff]
        %v353 = vld [vmem:[%s277 + $0x140] sm:$0xff]
        %v354 = vld [vmem:[%s277 + $0x148] sm:$0xff]
        %v355 = vld [vmem:[%s277 + $0x150] sm:$0xff]
        %v356 = vld [vmem:[%s277 + $0x158] sm:$0xff]
        %v357 = vld [vmem:[%s277 + $0x160] sm:$0xff]
        %v358 = vld [vmem:[%s277 + $0x168] sm:$0xff]
        %v359 = vld [vmem:[%s277 + $0x170] sm:$0xff]
        %v360 = vld [vmem:[%s277 + $0x178] sm:$0xff]
        %v361 = vld [vmem:[%s277 + $0x180] sm:$0xff]
        %v362 = vld [vmem:[%s277 + $0x188] sm:$0xff]
        %v363 = vld [vmem:[%s277 + $0x190] sm:$0xff]
        %v364 = vld [vmem:[%s277 + $0x198] sm:$0xff]
        %v365 = vld [vmem:[%s277 + $0x1a0] sm:$0xff]
        %v366 = vld [vmem:[%s277 + $0x1a8] sm:$0xff]
        %v367 = vld [vmem:[%s277 + $0x1b0] sm:$0xff]
        %v368 = vld [vmem:[%s277 + $0x1b8] sm:$0xff]
        %v369 = vld [vmem:[%s277 + $0x1c0] sm:$0xff]
        %v370 = vld [vmem:[%s277 + $0x1c8] sm:$0xff]
        %v371 = vld [vmem:[%s277 + $0x1d0] sm:$0xff]
        %v372 = vld [vmem:[%s277 + $0x1d8] sm:$0xff]
        %v373 = vld [vmem:[%s277 + $0x1e0] sm:$0xff]
        %v374 = vld [vmem:[%s277 + $0x1e8] sm:$0xff]
        %v375 = vld [vmem:[%s277 + $0x1f0] sm:$0xff]
        %v376 = vld [vmem:[%s277 + $0x1f8] sm:$0xff]
        %v381 = vunpack.c.l.b16 %v309
        %v382 = vunpack.c.h.b16 %v309
        %v383 = vunpack.c.l.b16 %v310
        %v384 = vunpack.c.h.b16 %v310
        %v385 = vunpack.c.l.b16 %v311
        %v386 = vunpack.c.h.b16 %v311
        %v387 = vunpack.c.l.b16 %v312
        %v388 = vunpack.c.h.b16 %v312
        %v389 = vpack.c.b16 %v385, %v381
        %v390 = vpack.c.b16 %v386, %v382
        %v391 = vpack.c.b16 %v387, %v383
        %v392 = vpack.c.b16 %v388, %v384
        %v461 = vunpack.c.l.b16 %v313
        %v462 = vunpack.c.h.b16 %v313
        %v463 = vunpack.c.l.b16 %v314
        %v464 = vunpack.c.h.b16 %v314
        %v465 = vunpack.c.l.b16 %v315
        %v466 = vunpack.c.h.b16 %v315
        %v467 = vunpack.c.l.b16 %v316
        %v468 = vunpack.c.h.b16 %v316
        %v469 = vunpack.c.l.b16 %v317
        %v470 = vunpack.c.h.b16 %v317
        %v471 = vunpack.c.l.b16 %v318
        %v472 = vunpack.c.h.b16 %v318
        %v473 = vunpack.c.l.b16 %v319
        %v474 = vunpack.c.h.b16 %v319
        %v475 = vunpack.c.l.b16 %v320
        %v476 = vunpack.c.h.b16 %v320
        %v477 = vunpack.c.l.b16 %v321
        %v478 = vunpack.c.h.b16 %v321
        %v479 = vunpack.c.l.b16 %v322
        %v480 = vunpack.c.h.b16 %v322
        %v481 = vunpack.c.l.b16 %v323
        %v482 = vunpack.c.h.b16 %v323
        %v483 = vunpack.c.l.b16 %v324
        %v484 = vunpack.c.h.b16 %v324
        %v485 = vunpack.c.l.b16 %v325
        %v486 = vunpack.c.h.b16 %v325
        %v487 = vunpack.c.l.b16 %v326
        %v488 = vunpack.c.h.b16 %v326
        %v489 = vunpack.c.l.b16 %v327
        %v490 = vunpack.c.h.b16 %v327
        %v491 = vunpack.c.l.b16 %v328
        %v492 = vunpack.c.h.b16 %v328
        %v493 = vunpack.c.l.b16 %v329
        %v494 = vunpack.c.h.b16 %v329
        %v495 = vunpack.c.l.b16 %v330
        %v496 = vunpack.c.h.b16 %v330
        %v497 = vunpack.c.l.b16 %v331
        %v498 = vunpack.c.h.b16 %v331
        %v499 = vunpack.c.l.b16 %v332
        %v500 = vunpack.c.h.b16 %v332
        %v501 = vunpack.c.l.b16 %v333
        %v502 = vunpack.c.h.b16 %v333
        %v503 = vunpack.c.l.b16 %v334
        %v504 = vunpack.c.h.b16 %v334
        %v505 = vunpack.c.l.b16 %v335
        %v506 = vunpack.c.h.b16 %v335
        %v507 = vunpack.c.l.b16 %v336
        %v508 = vunpack.c.h.b16 %v336
        %v509 = vunpack.c.l.b16 %v337
        %v510 = vunpack.c.h.b16 %v337
        %v511 = vunpack.c.l.b16 %v338
        %v512 = vunpack.c.h.b16 %v338
        %v513 = vunpack.c.l.b16 %v339
        %v514 = vunpack.c.h.b16 %v339
        %v515 = vunpack.c.l.b16 %v340
        %v516 = vunpack.c.h.b16 %v340
        %v517 = vunpack.c.l.b16 %v341
        %v518 = vunpack.c.h.b16 %v341
        %v519 = vunpack.c.l.b16 %v342
        %v520 = vunpack.c.h.b16 %v342
        %v521 = vunpack.c.l.b16 %v343
        %v522 = vunpack.c.h.b16 %v343
        %v523 = vunpack.c.l.b16 %v344
        %v524 = vunpack.c.h.b16 %v344
        %v525 = vunpack.c.l.b16 %v345
        %v526 = vunpack.c.h.b16 %v345
        %v527 = vunpack.c.l.b16 %v346
        %v528 = vunpack.c.h.b16 %v346
        %v529 = vunpack.c.l.b16 %v347
        %v530 = vunpack.c.h.b16 %v347
        %v531 = vunpack.c.l.b16 %v348
        %v532 = vunpack.c.h.b16 %v348
        %v533 = vunpack.c.l.b16 %v349
        %v534 = vunpack.c.h.b16 %v349
        %v535 = vunpack.c.l.b16 %v350
        %v536 = vunpack.c.h.b16 %v350
        %v537 = vunpack.c.l.b16 %v351
        %v538 = vunpack.c.h.b16 %v351
        %v539 = vunpack.c.l.b16 %v352
        %v540 = vunpack.c.h.b16 %v352
        %v541 = vunpack.c.l.b16 %v353
        %v542 = vunpack.c.h.b16 %v353
        %v543 = vunpack.c.l.b16 %v354
        %v544 = vunpack.c.h.b16 %v354
        %v545 = vunpack.c.l.b16 %v355
        %v546 = vunpack.c.h.b16 %v355
        %v547 = vunpack.c.l.b16 %v356
        %v548 = vunpack.c.h.b16 %v356
        %v549 = vunpack.c.l.b16 %v357
        %v550 = vunpack.c.h.b16 %v357
        %v551 = vunpack.c.l.b16 %v358
        %v552 = vunpack.c.h.b16 %v358
        %v553 = vunpack.c.l.b16 %v359
        %v554 = vunpack.c.h.b16 %v359
        %v555 = vunpack.c.l.b16 %v360
        %v556 = vunpack.c.h.b16 %v360
        %v557 = vunpack.c.l.b16 %v361
        %v558 = vunpack.c.h.b16 %v361
        %v559 = vunpack.c.l.b16 %v362
        %v560 = vunpack.c.h.b16 %v362
        %v561 = vunpack.c.l.b16 %v363
        %v562 = vunpack.c.h.b16 %v363
        %v563 = vunpack.c.l.b16 %v364
        %v564 = vunpack.c.h.b16 %v364
        %v565 = vunpack.c.l.b16 %v365
        %v566 = vunpack.c.h.b16 %v365
        %v567 = vunpack.c.l.b16 %v366
        %v568 = vunpack.c.h.b16 %v366
        %v569 = vunpack.c.l.b16 %v367
        %v570 = vunpack.c.h.b16 %v367
        %v571 = vunpack.c.l.b16 %v368
        %v572 = vunpack.c.h.b16 %v368
        %v573 = vunpack.c.l.b16 %v369
        %v574 = vunpack.c.h.b16 %v369
        %v575 = vunpack.c.l.b16 %v370
        %v576 = vunpack.c.h.b16 %v370
        %v577 = vunpack.c.l.b16 %v371
        %v578 = vunpack.c.h.b16 %v371
        %v579 = vunpack.c.l.b16 %v372
        %v580 = vunpack.c.h.b16 %v372
        %v581 = vunpack.c.l.b16 %v373
        %v582 = vunpack.c.h.b16 %v373
        %v583 = vunpack.c.l.b16 %v374
        %v584 = vunpack.c.h.b16 %v374
        %v585 = vunpack.c.l.b16 %v375
        %v586 = vunpack.c.h.b16 %v375
        %v587 = vunpack.c.l.b16 %v376
        %v588 = vunpack.c.h.b16 %v376
        %v589 = vpack.c.b16 %v463, %v461
        %v590 = vpack.c.b16 %v464, %v462
        %v591 = vpack.c.b16 %v467, %v465
        %v592 = vpack.c.b16 %v468, %v466
        %v593 = vpack.c.b16 %v471, %v469
        %v594 = vpack.c.b16 %v472, %v470
        %v595 = vpack.c.b16 %v475, %v473
        %v596 = vpack.c.b16 %v476, %v474
        %v597 = vpack.c.b16 %v479, %v477
        %v598 = vpack.c.b16 %v480, %v478
        %v599 = vpack.c.b16 %v483, %v481
        %v600 = vpack.c.b16 %v484, %v482
        %v601 = vpack.c.b16 %v487, %v485
        %v602 = vpack.c.b16 %v488, %v486
        %v603 = vpack.c.b16 %v491, %v489
        %v604 = vpack.c.b16 %v492, %v490
        %v605 = vpack.c.b16 %v495, %v493
        %v606 = vpack.c.b16 %v496, %v494
        %v607 = vpack.c.b16 %v499, %v497
        %v608 = vpack.c.b16 %v500, %v498
        %v609 = vpack.c.b16 %v503, %v501
        %v610 = vpack.c.b16 %v504, %v502
        %v611 = vpack.c.b16 %v507, %v505
        %v612 = vpack.c.b16 %v508, %v506
        %v613 = vpack.c.b16 %v511, %v509
        %v614 = vpack.c.b16 %v512, %v510
        %v615 = vpack.c.b16 %v515, %v513
        %v616 = vpack.c.b16 %v516, %v514
        %v617 = vpack.c.b16 %v519, %v517
        %v618 = vpack.c.b16 %v520, %v518
        %v619 = vpack.c.b16 %v523, %v521
        %v620 = vpack.c.b16 %v524, %v522
        %v621 = vpack.c.b16 %v527, %v525
        %v622 = vpack.c.b16 %v528, %v526
        %v623 = vpack.c.b16 %v531, %v529
        %v624 = vpack.c.b16 %v532, %v530
        %v625 = vpack.c.b16 %v535, %v533
        %v626 = vpack.c.b16 %v536, %v534
        %v627 = vpack.c.b16 %v539, %v537
        %v628 = vpack.c.b16 %v540, %v538
        %v629 = vpack.c.b16 %v543, %v541
        %v630 = vpack.c.b16 %v544, %v542
        %v631 = vpack.c.b16 %v547, %v545
        %v632 = vpack.c.b16 %v548, %v546
        %v633 = vpack.c.b16 %v551, %v549
        %v634 = vpack.c.b16 %v552, %v550
        %v635 = vpack.c.b16 %v555, %v553
        %v636 = vpack.c.b16 %v556, %v554
        %v637 = vpack.c.b16 %v559, %v557
        %v638 = vpack.c.b16 %v560, %v558
        %v639 = vpack.c.b16 %v563, %v561
        %v640 = vpack.c.b16 %v564, %v562
        %v641 = vpack.c.b16 %v567, %v565
        %v642 = vpack.c.b16 %v568, %v566
        %v643 = vpack.c.b16 %v571, %v569
        %v644 = vpack.c.b16 %v572, %v570
        %v645 = vpack.c.b16 %v575, %v573
        %v646 = vpack.c.b16 %v576, %v574
        %v647 = vpack.c.b16 %v579, %v577
        %v648 = vpack.c.b16 %v580, %v578
        %v649 = vpack.c.b16 %v583, %v581
        %v650 = vpack.c.b16 %v584, %v582
        %v651 = vpack.c.b16 %v587, %v585
        %v652 = vpack.c.b16 %v588, %v586
        %717 = vmatprep.subr.bf16.mxu0 %v590
        %718 = vmatpush1.bf16.msra.mxu0 %v589
        %719 = vmatprep.subr.bf16.mxu0 %v592
        %720 = vmatpush1.bf16.msra.mxu0 %v591
        %721 = vmatprep.subr.bf16.mxu0 %v594
        %722 = vmatpush1.bf16.msra.mxu0 %v593
        %723 = vmatprep.subr.bf16.mxu0 %v596
        %724 = vmatpush1.bf16.msra.mxu0 %v595
        %725 = vmatprep.subr.bf16.mxu0 %v598
        %726 = vmatpush1.bf16.msra.mxu0 %v597
        %727 = vmatprep.subr.bf16.mxu0 %v600
        %728 = vmatpush1.bf16.msra.mxu0 %v599
        %729 = vmatprep.subr.bf16.mxu0 %v602
        %730 = vmatpush1.bf16.msra.mxu0 %v601
        %731 = vmatprep.subr.bf16.mxu0 %v604
        %732 = vmatpush1.bf16.msra.mxu0 %v603
        %733 = vmatprep.subr.bf16.mxu0 %v606
        %734 = vmatpush1.bf16.msra.mxu0 %v605
        %735 = vmatprep.subr.bf16.mxu0 %v608
        %736 = vmatpush1.bf16.msra.mxu0 %v607
        %737 = vmatprep.subr.bf16.mxu0 %v610
        %738 = vmatpush1.bf16.msra.mxu0 %v609
        %739 = vmatprep.subr.bf16.mxu0 %v612
        %740 = vmatpush1.bf16.msra.mxu0 %v611
        %741 = vmatprep.subr.bf16.mxu0 %v614
        %742 = vmatpush1.bf16.msra.mxu0 %v613
        %743 = vmatprep.subr.bf16.mxu0 %v616
        %744 = vmatpush1.bf16.msra.mxu0 %v615
        %745 = vmatprep.subr.bf16.mxu0 %v618
        %746 = vmatpush1.bf16.msra.mxu0 %v617
        %747 = vmatprep.subr.bf16.mxu0 %v620
        %748 = vmatpush1.bf16.msra.mxu0 %v619
        %749 = vmatprep.mubr.bf16.mxu0 %v390
        %750 = vmatmul.mubr.bf16.gmra.mrb[0].mxu0 %v389
        %v751 = vpop.f32.mrb[0].mxu0
        %v752 = vadd.f32 0.0, %v751
        %v753 = vpop.f32.mrb[0].mxu0
        %v754 = vadd.f32 0.0, %v753
        %v755 = vpop.f32.mrb[0].mxu0
        %v756 = vadd.f32 0.0, %v755
        %v757 = vpop.f32.mrb[0].mxu0
        %v758 = vadd.f32 0.0, %v757
        %759 = vdwg.mxu0
        %760 = vmatprep.subr.bf16.mxu0 %v622
        %761 = vmatpush1.bf16.msra.mxu0 %v621
        %762 = vmatprep.subr.bf16.mxu0 %v624
        %763 = vmatpush1.bf16.msra.mxu0 %v623
        %764 = vmatprep.subr.bf16.mxu0 %v626
        %765 = vmatpush1.bf16.msra.mxu0 %v625
        %766 = vmatprep.subr.bf16.mxu0 %v628
        %767 = vmatpush1.bf16.msra.mxu0 %v627
        %768 = vmatprep.subr.bf16.mxu0 %v630
        %769 = vmatpush1.bf16.msra.mxu0 %v629
        %770 = vmatprep.subr.bf16.mxu0 %v632
        %771 = vmatpush1.bf16.msra.mxu0 %v631
        %772 = vmatprep.subr.bf16.mxu0 %v634
        %773 = vmatpush1.bf16.msra.mxu0 %v633
        %774 = vmatprep.subr.bf16.mxu0 %v636
        %775 = vmatpush1.bf16.msra.mxu0 %v635
        %776 = vmatprep.subr.bf16.mxu0 %v638
        %777 = vmatpush1.bf16.msra.mxu0 %v637
        %778 = vmatprep.subr.bf16.mxu0 %v640
        %779 = vmatpush1.bf16.msra.mxu0 %v639
        %780 = vmatprep.subr.bf16.mxu0 %v642
        %781 = vmatpush1.bf16.msra.mxu0 %v641
        %782 = vmatprep.subr.bf16.mxu0 %v644
        %783 = vmatpush1.bf16.msra.mxu0 %v643
        %784 = vmatprep.subr.bf16.mxu0 %v646
        %785 = vmatpush1.bf16.msra.mxu0 %v645
        %786 = vmatprep.subr.bf16.mxu0 %v648
        %787 = vmatpush1.bf16.msra.mxu0 %v647
        %788 = vmatprep.subr.bf16.mxu0 %v650
        %789 = vmatpush1.bf16.msra.mxu0 %v649
        %790 = vmatprep.subr.bf16.mxu0 %v652
        %791 = vmatpush1.bf16.msra.mxu0 %v651
        %792 = vmatprep.mubr.bf16.mxu0 %v392
        %793 = vmatmul.mubr.bf16.gmra.mrb[0].mxu0 %v391
        %v794 = vpop.f32.mrb[0].mxu0
        %v795 = vadd.f32 %v752, %v794
        %v796 = vpop.f32.mrb[0].mxu0
        %v797 = vadd.f32 %v754, %v796
        %v798 = vpop.f32.mrb[0].mxu0
        %v799 = vadd.f32 %v756, %v798
        %v800 = vpop.f32.mrb[0].mxu0
        %v801 = vadd.f32 %v758, %v800
        %802 = vdwg.mxu0
        %v803 = vadd.f32 %v305, %v795
        %v804 = vadd.f32 %v306, %v797
        %v805 = vadd.f32 %v307, %v799
        %v806 = vadd.f32 %v308, %v801
        %807 = vst [vmem:[#allocation2] sm:$0xff] %v803
        %808 = vst [vmem:[#allocation2 + $0x8] sm:$0xff] %v804
        %809 = vst [vmem:[#allocation2 + $0x10] sm:$0xff] %v805
        %810 = vst [vmem:[#allocation2 + $0x18] sm:$0xff] %v806
        %p811 = scmp.eq.s32.totalorder %s21, 4
        // Predicated region
        $region60: #{localizer_alexnet_forward.18} parent=50 // pred_check
          %p812 = pneg %p811
        $region61: #{localizer_alexnet_forward.18} parent=50 // pred_check_branch
          %814 = sbr.rel (%p812) target = $region63
        $region62: #{localizer_alexnet_forward.18} parent=50 // pred_region
          %v815 = vld [vmem:[#allocation2] sm:$0xff]
          %v816 = vld [vmem:[#allocation2 + $0x8] sm:$0xff]
          %v817 = vld [vmem:[#allocation2 + $0x10] sm:$0xff]
          %v818 = vld [vmem:[#allocation2 + $0x18] sm:$0xff]
          %v819 = vld [vmem:[%s283] sm:$0x3]
          %v821 = vlaneseq
          %v822 = vshrl.u32 %v821, 7
          %v823 = vsub.s32 0, %v822
          %v824 = vrot.slane %v819, %v823
          %v825 = vlaneseq
          %v826 = vshrl.u32 %v825, 7
          %v827 = vsub.s32 1, %v826
          %v828 = vrot.slane %v819, %v827
          %v831 = vadd.f32 %v815, %v824
          %v832 = vadd.f32 %v816, %v828
          %v833 = vadd.f32 %v817, %v824
          %v834 = vadd.f32 %v818, %v828
          %v835 = vmax.f32 %v831, 0.0
          %v836 = vmax.f32 %v832, 0.0
          %v837 = vmax.f32 %v833, 0.0
          %v838 = vmax.f32 %v834, 0.0
          %v839 = vpack.c.bf16 %v837, %v835
          %v840 = vpack.c.bf16 %v838, %v836
          %v843 = vunpack.c.l.b16 %v839
          %v844 = vunpack.c.l.b16 %v840
          %v845 = vunpack.c.h.b16 %v839
          %v846 = vunpack.c.h.b16 %v840
          %v847 = vpack.c.b16 %v844, %v843
          %v848 = vpack.c.b16 %v846, %v845
          %851 = vst [vmem:[%s294] sm:$0xff] %v847
          %852 = vst [vmem:[%s294 + $0x8] sm:$0xff] %v848
        $region63: #{localizer_alexnet_forward.18} parent=50 // pred_fallthru
          _
        %s853 = smul.u32 2, %s19
        %s854 = smul.u32 2, %s20
        %p855 = scmp.lt.s32.totalorder %s853, 1
        %s856 = scalar_select %p855, %s853, 1
        %p857 = scmp.lt.s32.totalorder %s854, 1
        %s858 = scalar_select %p857, %s854, 1
        %s859 = smul.addr %s856, 2
        %s860 = sadd.s32 %s858, %s859
        %s861 = smul.addr %s860, 4
        %s862 = scalar_lea.vmem %s3, %s861
        // Predicated region
        $region64: #{localizer_alexnet_forward.18} parent=50 // pred_check
          %p863 = pneg %p135
        $region65: #{localizer_alexnet_forward.18} parent=50 // pred_check_branch
          %865 = sbr.rel (%p863) target = $region67
        $region66: #{localizer_alexnet_forward.18} parent=50 // pred_region
          %s866 = smul.u32 2, %s19
          %s867 = smul.u32 2, %s20
        $region67: #{localizer_alexnet_forward.18} parent=50 // pred_fallthru
          _
        // Predicated region
        $region68: #{localizer_alexnet_forward.18} parent=50 // pred_check
          %p868 = pneg %p135
        $region69: #{localizer_alexnet_forward.18} parent=50 // pred_check_branch
          %870 = sbr.rel (%p868) target = $region71
        $region70: #{localizer_alexnet_forward.18} parent=50 // pred_region
          %s871 = smul.u32 2, %s19
          %s872 = smul.u32 2, %s20
          %p873 = scmp.lt.s32.totalorder %s871, 1
          %s874 = scalar_select %p873, %s871, 1
          %p875 = scmp.lt.s32.totalorder %s872, 1
          %s876 = scalar_select %p875, %s872, 1
          %s877 = smul.addr %s874, 2
          %s878 = sadd.s32 %s876, %s877
          %s879 = smul.addr %s878, 4
          %s880 = scalar_lea.vmem %s3, %s879
        $region71: #{localizer_alexnet_forward.18} parent=50 // pred_fallthru
          _
      $region51: #{localizer_alexnet_forward.18} parent=5 // pred_fallthru
        _
      %p881 = scmp.le.s32.totalorder 2, %s9
      // Predicated region
      $region72: #{localizer_alexnet_forward.18} parent=5 // pred_check
        %p882 = pneg %p881
      $region73: #{localizer_alexnet_forward.18} parent=5 // pred_check_branch
        %884 = sbr.rel (%p882) target = $region75
      $region74: #{localizer_alexnet_forward.18} parent=5 // pred_region
        %s885 = ssub.s32 %s9, 2
      $region75: #{localizer_alexnet_forward.18} parent=5 // pred_fallthru
        _
    $region6: #{localizer_alexnet_forward.18} parent=1 // loop_footer
      %s13 = sadd.s32 1, %s9
    $region7: #{localizer_alexnet_forward.18} parent=1 // loop_footer_branch
      %8 = sbr.rel target = $region3
    $region8: #{localizer_alexnet_forward.18} parent=1 // loop_exit
      _

// kernel: localizer_alexnet_forward.19
$region0: #{localizer_alexnet_forward.19}
  #allocation0 [shape = 'u32[]', space=smem, size = 0x4, offset = 0x4, fixed_abs, tag = 'smem constant byte address 0x4 - core index']
  #allocation1 [shape = 'u32[144,128]{1,0:T(1,128)}', space=vmem, size = 0x12000, scoped, tag = 'internal scratch']
  %s0 = inlined_call_operand.vmem [shape: bf16[16,256], index: 0, kind: input, shape index: {}]
  %s1 = inlined_call_operand.vmem [shape: bf16[256,256], index: 1, kind: input, shape index: {}]
  %s2 = inlined_call_operand.vmem [shape: f32[1,256], index: 2, kind: input, shape index: {}]
  %s3 = inlined_call_operand.vmem [shape: bf16[16,256], index: 3, kind: output, shape index: {}]
  %s4 = sld [smem:[#allocation0]]
  $region22: #{localizer_alexnet_forward.19} parent=0
    _
  %s6 = ssub.s32 1, %s4
  %s7 = scalar_select 0, %s6, %s4
  // Predicated region
  $region2: #{localizer_alexnet_forward.19} parent=0 // pred_check
    _
  $region3: #{localizer_alexnet_forward.19} parent=0 // pred_check_branch
    %9 = sbr.rel (0) target = $region5
  $region4: #{localizer_alexnet_forward.19} parent=0 // pred_region
    _
  $region5: #{localizer_alexnet_forward.19} parent=0 // pred_fallthru
    _
  // Predicated region
  $region6: #{localizer_alexnet_forward.19} parent=0 // pred_check
    _
  $region7: #{localizer_alexnet_forward.19} parent=0 // pred_check_branch
    %11 = sbr.rel (0) target = $region9
  $region8: #{localizer_alexnet_forward.19} parent=0 // pred_region
    _
  $region9: #{localizer_alexnet_forward.19} parent=0 // pred_fallthru
    _
  // Predicated region
  $region10: #{localizer_alexnet_forward.19} parent=0 // pred_check
    _
  $region11: #{localizer_alexnet_forward.19} parent=0 // pred_check_branch
    %13 = sbr.rel (0) target = $region13
  $region12: #{localizer_alexnet_forward.19} parent=0 // pred_region
    _
  $region13: #{localizer_alexnet_forward.19} parent=0 // pred_fallthru
    _
  %v14 = vld [vmem:[%s0] sm:$0xff]
  %v15 = vld [vmem:[%s0 + $0x8] sm:$0xff]
  %v16 = vld [vmem:[%s1] sm:$0xff]
  %v17 = vld [vmem:[%s1 + $0x8] sm:$0xff]
  %v18 = vld [vmem:[%s1 + $0x10] sm:$0xff]
  %v19 = vld [vmem:[%s1 + $0x18] sm:$0xff]
  %v20 = vld [vmem:[%s1 + $0x20] sm:$0xff]
  %v21 = vld [vmem:[%s1 + $0x28] sm:$0xff]
  %v22 = vld [vmem:[%s1 + $0x30] sm:$0xff]
  %v23 = vld [vmem:[%s1 + $0x38] sm:$0xff]
  %v24 = vld [vmem:[%s1 + $0x40] sm:$0xff]
  %v25 = vld [vmem:[%s1 + $0x48] sm:$0xff]
  %v26 = vld [vmem:[%s1 + $0x50] sm:$0xff]
  %v27 = vld [vmem:[%s1 + $0x58] sm:$0xff]
  %v28 = vld [vmem:[%s1 + $0x60] sm:$0xff]
  %v29 = vld [vmem:[%s1 + $0x68] sm:$0xff]
  %v30 = vld [vmem:[%s1 + $0x70] sm:$0xff]
  %v31 = vld [vmem:[%s1 + $0x78] sm:$0xff]
  %v32 = vld [vmem:[%s1 + $0x80] sm:$0xff]
  %v33 = vld [vmem:[%s1 + $0x88] sm:$0xff]
  %v34 = vld [vmem:[%s1 + $0x90] sm:$0xff]
  %v35 = vld [vmem:[%s1 + $0x98] sm:$0xff]
  %v36 = vld [vmem:[%s1 + $0xa0] sm:$0xff]
  %v37 = vld [vmem:[%s1 + $0xa8] sm:$0xff]
  %v38 = vld [vmem:[%s1 + $0xb0] sm:$0xff]
  %v39 = vld [vmem:[%s1 + $0xb8] sm:$0xff]
  %v40 = vld [vmem:[%s1 + $0xc0] sm:$0xff]
  %v41 = vld [vmem:[%s1 + $0xc8] sm:$0xff]
  %v42 = vld [vmem:[%s1 + $0xd0] sm:$0xff]
  %v43 = vld [vmem:[%s1 + $0xd8] sm:$0xff]
  %v44 = vld [vmem:[%s1 + $0xe0] sm:$0xff]
  %v45 = vld [vmem:[%s1 + $0xe8] sm:$0xff]
  %v46 = vld [vmem:[%s1 + $0xf0] sm:$0xff]
  %v47 = vld [vmem:[%s1 + $0xf8] sm:$0xff]
  %v48 = vld [vmem:[%s2] sm:$0x3]
  %v50 = vlaneseq
  %v51 = vshrl.u32 %v50, 7
  %v52 = vsub.s32 0, %v51
  %v53 = vrot.slane %v48, %v52
  %v54 = vlaneseq
  %v55 = vshrl.u32 %v54, 7
  %v56 = vsub.s32 1, %v55
  %v57 = vrot.slane %v48, %v56
  %v62 = vunpack.c.l.b16 %v14
  %v63 = vunpack.c.h.b16 %v14
  %v64 = vunpack.c.l.b16 %v15
  %v65 = vunpack.c.h.b16 %v15
  %v66 = vpack.c.b16 %v64, %v62
  %v67 = vpack.c.b16 %v65, %v63
  %v102 = vunpack.c.l.b16 %v16
  %v103 = vunpack.c.h.b16 %v16
  %v104 = vunpack.c.l.b16 %v17
  %v105 = vunpack.c.h.b16 %v17
  %v106 = vunpack.c.l.b16 %v18
  %v107 = vunpack.c.h.b16 %v18
  %v108 = vunpack.c.l.b16 %v19
  %v109 = vunpack.c.h.b16 %v19
  %v110 = vunpack.c.l.b16 %v20
  %v111 = vunpack.c.h.b16 %v20
  %v112 = vunpack.c.l.b16 %v21
  %v113 = vunpack.c.h.b16 %v21
  %v114 = vunpack.c.l.b16 %v22
  %v115 = vunpack.c.h.b16 %v22
  %v116 = vunpack.c.l.b16 %v23
  %v117 = vunpack.c.h.b16 %v23
  %v118 = vunpack.c.l.b16 %v24
  %v119 = vunpack.c.h.b16 %v24
  %v120 = vunpack.c.l.b16 %v25
  %v121 = vunpack.c.h.b16 %v25
  %v122 = vunpack.c.l.b16 %v26
  %v123 = vunpack.c.h.b16 %v26
  %v124 = vunpack.c.l.b16 %v27
  %v125 = vunpack.c.h.b16 %v27
  %v126 = vunpack.c.l.b16 %v28
  %v127 = vunpack.c.h.b16 %v28
  %v128 = vunpack.c.l.b16 %v29
  %v129 = vunpack.c.h.b16 %v29
  %v130 = vunpack.c.l.b16 %v30
  %v131 = vunpack.c.h.b16 %v30
  %v132 = vunpack.c.l.b16 %v31
  %v133 = vunpack.c.h.b16 %v31
  %v134 = vunpack.c.l.b16 %v32
  %v135 = vunpack.c.h.b16 %v32
  %v136 = vunpack.c.l.b16 %v33
  %v137 = vunpack.c.h.b16 %v33
  %v138 = vunpack.c.l.b16 %v34
  %v139 = vunpack.c.h.b16 %v34
  %v140 = vunpack.c.l.b16 %v35
  %v141 = vunpack.c.h.b16 %v35
  %v142 = vunpack.c.l.b16 %v36
  %v143 = vunpack.c.h.b16 %v36
  %v144 = vunpack.c.l.b16 %v37
  %v145 = vunpack.c.h.b16 %v37
  %v146 = vunpack.c.l.b16 %v38
  %v147 = vunpack.c.h.b16 %v38
  %v148 = vunpack.c.l.b16 %v39
  %v149 = vunpack.c.h.b16 %v39
  %v150 = vunpack.c.l.b16 %v40
  %v151 = vunpack.c.h.b16 %v40
  %v152 = vunpack.c.l.b16 %v41
  %v153 = vunpack.c.h.b16 %v41
  %v154 = vunpack.c.l.b16 %v42
  %v155 = vunpack.c.h.b16 %v42
  %v156 = vunpack.c.l.b16 %v43
  %v157 = vunpack.c.h.b16 %v43
  %v158 = vunpack.c.l.b16 %v44
  %v159 = vunpack.c.h.b16 %v44
  %v160 = vunpack.c.l.b16 %v45
  %v161 = vunpack.c.h.b16 %v45
  %v162 = vunpack.c.l.b16 %v46
  %v163 = vunpack.c.h.b16 %v46
  %v164 = vunpack.c.l.b16 %v47
  %v165 = vunpack.c.h.b16 %v47
  %v166 = vpack.c.b16 %v104, %v102
  %v167 = vpack.c.b16 %v105, %v103
  %v168 = vpack.c.b16 %v108, %v106
  %v169 = vpack.c.b16 %v109, %v107
  %v170 = vpack.c.b16 %v112, %v110
  %v171 = vpack.c.b16 %v113, %v111
  %v172 = vpack.c.b16 %v116, %v114
  %v173 = vpack.c.b16 %v117, %v115
  %v174 = vpack.c.b16 %v120, %v118
  %v175 = vpack.c.b16 %v121, %v119
  %v176 = vpack.c.b16 %v124, %v122
  %v177 = vpack.c.b16 %v125, %v123
  %v178 = vpack.c.b16 %v128, %v126
  %v179 = vpack.c.b16 %v129, %v127
  %v180 = vpack.c.b16 %v132, %v130
  %v181 = vpack.c.b16 %v133, %v131
  %v182 = vpack.c.b16 %v136, %v134
  %v183 = vpack.c.b16 %v137, %v135
  %v184 = vpack.c.b16 %v140, %v138
  %v185 = vpack.c.b16 %v141, %v139
  %v186 = vpack.c.b16 %v144, %v142
  %v187 = vpack.c.b16 %v145, %v143
  %v188 = vpack.c.b16 %v148, %v146
  %v189 = vpack.c.b16 %v149, %v147
  %v190 = vpack.c.b16 %v152, %v150
  %v191 = vpack.c.b16 %v153, %v151
  %v192 = vpack.c.b16 %v156, %v154
  %v193 = vpack.c.b16 %v157, %v155
  %v194 = vpack.c.b16 %v160, %v158
  %v195 = vpack.c.b16 %v161, %v159
  %v196 = vpack.c.b16 %v164, %v162
  %v197 = vpack.c.b16 %v165, %v163
  %230 = vmatprep.subr.bf16.mxu0 %v167
  %231 = vmatpush1.bf16.msra.mxu0 %v166
  %232 = vmatprep.subr.bf16.mxu0 %v169
  %233 = vmatpush1.bf16.msra.mxu0 %v168
  %234 = vmatprep.subr.bf16.mxu0 %v171
  %235 = vmatpush1.bf16.msra.mxu0 %v170
  %236 = vmatprep.subr.bf16.mxu0 %v173
  %237 = vmatpush1.bf16.msra.mxu0 %v172
  %238 = vmatprep.subr.bf16.mxu0 %v175
  %239 = vmatpush1.bf16.msra.mxu0 %v174
  %240 = vmatprep.subr.bf16.mxu0 %v177
  %241 = vmatpush1.bf16.msra.mxu0 %v176
  %242 = vmatprep.subr.bf16.mxu0 %v179
  %243 = vmatpush1.bf16.msra.mxu0 %v178
  %244 = vmatprep.subr.bf16.mxu0 %v181
  %245 = vmatpush1.bf16.msra.mxu0 %v180
  %246 = vmatprep.subr.bf16.mxu0 %v183
  %247 = vmatpush1.bf16.msra.mxu0 %v182
  %248 = vmatprep.subr.bf16.mxu0 %v185
  %249 = vmatpush1.bf16.msra.mxu0 %v184
  %250 = vmatprep.subr.bf16.mxu0 %v187
  %251 = vmatpush1.bf16.msra.mxu0 %v186
  %252 = vmatprep.subr.bf16.mxu0 %v189
  %253 = vmatpush1.bf16.msra.mxu0 %v188
  %254 = vmatprep.subr.bf16.mxu0 %v191
  %255 = vmatpush1.bf16.msra.mxu0 %v190
  %256 = vmatprep.subr.bf16.mxu0 %v193
  %257 = vmatpush1.bf16.msra.mxu0 %v192
  %258 = vmatprep.subr.bf16.mxu0 %v195
  %259 = vmatpush1.bf16.msra.mxu0 %v194
  %260 = vmatprep.subr.bf16.mxu0 %v197
  %261 = vmatpush1.bf16.msra.mxu0 %v196
  %262 = vmatprep.mubr.bf16.mxu0 %v67
  %263 = vmatmul.mubr.bf16.gmra.mrb[0].mxu0 %v66
  %v264 = vpop.f32.mrb[0].mxu0
  %v265 = vadd.f32 %v53, %v264
  %v266 = vpop.f32.mrb[0].mxu0
  %v267 = vadd.f32 %v57, %v266
  %v268 = vpop.f32.mrb[0].mxu0
  %v269 = vadd.f32 %v53, %v268
  %v270 = vpop.f32.mrb[0].mxu0
  %v271 = vadd.f32 %v57, %v270
  %272 = vdwg.mxu0
  %v273 = vmax.f32 %v265, 0.0
  %v274 = vmax.f32 %v267, 0.0
  %v275 = vmax.f32 %v269, 0.0
  %v276 = vmax.f32 %v271, 0.0
  %v277 = vpack.c.bf16 %v275, %v273
  %v278 = vpack.c.bf16 %v276, %v274
  %v281 = vunpack.c.l.b16 %v277
  %v282 = vunpack.c.l.b16 %v278
  %v283 = vunpack.c.h.b16 %v277
  %v284 = vunpack.c.h.b16 %v278
  %v285 = vpack.c.b16 %v282, %v281
  %v286 = vpack.c.b16 %v284, %v283
  %289 = vst [vmem:[%s3] sm:$0xff] %v285
  %290 = vst [vmem:[%s3 + $0x8] sm:$0xff] %v286
  // Predicated region
  $region14: #{localizer_alexnet_forward.19} parent=0 // pred_check
    _
  $region15: #{localizer_alexnet_forward.19} parent=0 // pred_check_branch
    %292 = sbr.rel (0) target = $region17
  $region16: #{localizer_alexnet_forward.19} parent=0 // pred_region
    _
  $region17: #{localizer_alexnet_forward.19} parent=0 // pred_fallthru
    _
  // Predicated region
  $region18: #{localizer_alexnet_forward.19} parent=0 // pred_check
    _
  $region19: #{localizer_alexnet_forward.19} parent=0 // pred_check_branch
    %294 = sbr.rel (0) target = $region21
  $region20: #{localizer_alexnet_forward.19} parent=0 // pred_region
    _
  $region21: #{localizer_alexnet_forward.19} parent=0 // pred_fallthru
    _

// kernel: localizer_alexnet_forward.21
$region0: #{localizer_alexnet_forward.21}
  #allocation0 [shape = 'u32[]', space=smem, size = 0x4, offset = 0x4, fixed_abs, tag = 'smem constant byte address 0x4 - core index']
  #allocation1 [shape = 'u32[144,128]{1,0:T(1,128)}', space=vmem, size = 0x12000, scoped, tag = 'internal scratch']
  %s0 = inlined_call_operand.vmem [shape: f32[2,1,20], index: 0, kind: input, shape index: {}]
  %s1 = inlined_call_operand.hbm [shape: f32[2,1,20], index: 1, kind: output, shape index: {}]
  %s2 = sld [smem:[#allocation0]]
  $region14: #{localizer_alexnet_forward.21} parent=0
    _
  %s4 = ssub.s32 1, %s2
  %s5 = scalar_select 0, %s4, %s2
  $region1: #{localizer_alexnet_forward.21} parent=0
    #allocation2 [shape = 'u8[1024]{0}', space=vmem, size = 0x400, scoped, tag = 'output window, operand 0, single buffered']
    #allocation3 [shape = 's32[1]{0}', space=sflag, size = 0x4, scoped, tag = 'scoped memory for localizer_alexnet_forward.21']
    %6 = vsyncpa [#allocation3], 0
    // Predicated region
    $region2: #{localizer_alexnet_forward.21} parent=1 // pred_check
      _
    $region3: #{localizer_alexnet_forward.21} parent=1 // pred_check_branch
      %8 = sbr.rel (0) target = $region5
    $region4: #{localizer_alexnet_forward.21} parent=1 // pred_region
      _
    $region5: #{localizer_alexnet_forward.21} parent=1 // pred_fallthru
      _
    %v9 = vld [vmem:[%s0] sm:$0x1]
    %v10 = vld [vmem:[%s0 + $0x1] sm:$0x1]
    %vm11 = vcmask 155648
    %12 = vst.msk [vmem:[#allocation2] sm:$0x1] %vm11, %v9
    %13 = vst.msk [vmem:[#allocation2 + $0x1] sm:$0x1] %vm11, %v10
    // Predicated region
    $region6: #{localizer_alexnet_forward.21} parent=1 // pred_check
      _
    $region7: #{localizer_alexnet_forward.21} parent=1 // pred_check_branch
      %15 = sbr.rel (0) target = $region9
    $region8: #{localizer_alexnet_forward.21} parent=1 // pred_region
      %s17 = ssub.s32 32, 32
      %18 = vsyncadd [#allocation3], %s17
      %s19 = sshll.u32 [#allocation2], 4
      %s20 = int_to_ptr.vmem [resolvable:$true] %s19
      %25 = dma.vmem_to_hbm [thread:$0]  %s20, 32, %s1, [#allocation3], 16, 16, 1
    $region9: #{localizer_alexnet_forward.21} parent=1 // pred_fallthru
      _
    // Predicated region
    $region10: #{localizer_alexnet_forward.21} parent=1 // pred_check
      _
    $region11: #{localizer_alexnet_forward.21} parent=1 // pred_check_branch
      %27 = sbr.rel (0) target = $region13
    $region12: #{localizer_alexnet_forward.21} parent=1 // pred_region
      %28 = dma.done [#allocation3], 32
    $region13: #{localizer_alexnet_forward.21} parent=1 // pred_fallthru
      _
    %29 = vsyncpa [#allocation3], 1

// kernel: localizer_alexnet_forward.20
$region0: #{localizer_alexnet_forward.20}
  #allocation0 [shape = 'u32[]', space=smem, size = 0x4, offset = 0x4, fixed_abs, tag = 'smem constant byte address 0x4 - core index']
  #allocation1 [shape = 'u32[144,128]{1,0:T(1,128)}', space=vmem, size = 0x12000, scoped, tag = 'internal scratch']
  %s0 = inlined_call_operand.vmem [shape: bf16[16,256], index: 0, kind: input, shape index: {}]
  %s1 = inlined_call_operand.vmem [shape: bf16[256,128], index: 1, kind: input, shape index: {}]
  %s2 = inlined_call_operand.vmem [shape: f32[1,128], index: 2, kind: input, shape index: {}]
  %s3 = inlined_call_operand.vmem [shape: f32[16,128], index: 3, kind: output, shape index: {}]
  %s4 = sld [smem:[#allocation0]]
  $region22: #{localizer_alexnet_forward.20} parent=0
    _
  %s6 = ssub.s32 1, %s4
  %s7 = scalar_select 0, %s6, %s4
  // Predicated region
  $region2: #{localizer_alexnet_forward.20} parent=0 // pred_check
    _
  $region3: #{localizer_alexnet_forward.20} parent=0 // pred_check_branch
    %9 = sbr.rel (0) target = $region5
  $region4: #{localizer_alexnet_forward.20} parent=0 // pred_region
    _
  $region5: #{localizer_alexnet_forward.20} parent=0 // pred_fallthru
    _
  // Predicated region
  $region6: #{localizer_alexnet_forward.20} parent=0 // pred_check
    _
  $region7: #{localizer_alexnet_forward.20} parent=0 // pred_check_branch
    %11 = sbr.rel (0) target = $region9
  $region8: #{localizer_alexnet_forward.20} parent=0 // pred_region
    _
  $region9: #{localizer_alexnet_forward.20} parent=0 // pred_fallthru
    _
  // Predicated region
  $region10: #{localizer_alexnet_forward.20} parent=0 // pred_check
    _
  $region11: #{localizer_alexnet_forward.20} parent=0 // pred_check_branch
    %13 = sbr.rel (0) target = $region13
  $region12: #{localizer_alexnet_forward.20} parent=0 // pred_region
    _
  $region13: #{localizer_alexnet_forward.20} parent=0 // pred_fallthru
    _
  %v15 = vld [vmem:[%s0] sm:$0xff]
  %v16 = vld [vmem:[%s0 + $0x8] sm:$0xff]
  %v17 = vld [vmem:[%s1] sm:$0xf]
  %v18 = vld [vmem:[%s1 + $0x4] sm:$0xf]
  %v19 = vld [vmem:[%s1 + $0x8] sm:$0xf]
  %v20 = vld [vmem:[%s1 + $0xc] sm:$0xf]
  %v21 = vld [vmem:[%s1 + $0x10] sm:$0xf]
  %v22 = vld [vmem:[%s1 + $0x14] sm:$0xf]
  %v23 = vld [vmem:[%s1 + $0x18] sm:$0xf]
  %v24 = vld [vmem:[%s1 + $0x1c] sm:$0xf]
  %v25 = vld [vmem:[%s1 + $0x20] sm:$0xf]
  %v26 = vld [vmem:[%s1 + $0x24] sm:$0xf]
  %v27 = vld [vmem:[%s1 + $0x28] sm:$0xf]
  %v28 = vld [vmem:[%s1 + $0x2c] sm:$0xf]
  %v29 = vld [vmem:[%s1 + $0x30] sm:$0xf]
  %v30 = vld [vmem:[%s1 + $0x34] sm:$0xf]
  %v31 = vld [vmem:[%s1 + $0x38] sm:$0xf]
  %v32 = vld [vmem:[%s1 + $0x3c] sm:$0xf]
  %v33 = vld [vmem:[%s1 + $0x40] sm:$0xf]
  %v34 = vld [vmem:[%s1 + $0x44] sm:$0xf]
  %v35 = vld [vmem:[%s1 + $0x48] sm:$0xf]
  %v36 = vld [vmem:[%s1 + $0x4c] sm:$0xf]
  %v37 = vld [vmem:[%s1 + $0x50] sm:$0xf]
  %v38 = vld [vmem:[%s1 + $0x54] sm:$0xf]
  %v39 = vld [vmem:[%s1 + $0x58] sm:$0xf]
  %v40 = vld [vmem:[%s1 + $0x5c] sm:$0xf]
  %v41 = vld [vmem:[%s1 + $0x60] sm:$0xf]
  %v42 = vld [vmem:[%s1 + $0x64] sm:$0xf]
  %v43 = vld [vmem:[%s1 + $0x68] sm:$0xf]
  %v44 = vld [vmem:[%s1 + $0x6c] sm:$0xf]
  %v45 = vld [vmem:[%s1 + $0x70] sm:$0xf]
  %v46 = vld [vmem:[%s1 + $0x74] sm:$0xf]
  %v47 = vld [vmem:[%s1 + $0x78] sm:$0xf]
  %v48 = vld [vmem:[%s1 + $0x7c] sm:$0xf]
  %v49 = vld [vmem:[%s2] sm:$0x1]
  %v51 = vlaneseq
  %v52 = vshrl.u32 %v51, 7
  %v53 = vsub.s32 0, %v52
  %v54 = vrot.slane %v49, %v53
  %v58 = vunpack.c.l.b16 %v15
  %v59 = vunpack.c.h.b16 %v15
  %v60 = vunpack.c.l.b16 %v16
  %v61 = vunpack.c.h.b16 %v16
  %v62 = vpack.c.b16 %v60, %v58
  %v63 = vpack.c.b16 %v61, %v59
  %v98 = vunpack.c.l.b16 %v17
  %v99 = vunpack.c.l.b16 %v18
  %v100 = vunpack.c.l.b16 %v19
  %v101 = vunpack.c.l.b16 %v20
  %v102 = vunpack.c.l.b16 %v21
  %v103 = vunpack.c.l.b16 %v22
  %v104 = vunpack.c.l.b16 %v23
  %v105 = vunpack.c.l.b16 %v24
  %v106 = vunpack.c.l.b16 %v25
  %v107 = vunpack.c.l.b16 %v26
  %v108 = vunpack.c.l.b16 %v27
  %v109 = vunpack.c.l.b16 %v28
  %v110 = vunpack.c.l.b16 %v29
  %v111 = vunpack.c.l.b16 %v30
  %v112 = vunpack.c.l.b16 %v31
  %v113 = vunpack.c.l.b16 %v32
  %v114 = vunpack.c.l.b16 %v33
  %v115 = vunpack.c.l.b16 %v34
  %v116 = vunpack.c.l.b16 %v35
  %v117 = vunpack.c.l.b16 %v36
  %v118 = vunpack.c.l.b16 %v37
  %v119 = vunpack.c.l.b16 %v38
  %v120 = vunpack.c.l.b16 %v39
  %v121 = vunpack.c.l.b16 %v40
  %v122 = vunpack.c.l.b16 %v41
  %v123 = vunpack.c.l.b16 %v42
  %v124 = vunpack.c.l.b16 %v43
  %v125 = vunpack.c.l.b16 %v44
  %v126 = vunpack.c.l.b16 %v45
  %v127 = vunpack.c.l.b16 %v46
  %v128 = vunpack.c.l.b16 %v47
  %v129 = vunpack.c.l.b16 %v48
  %v130 = vpack.c.b16 %v99, %v98
  %v131 = vpack.c.b16 %v101, %v100
  %v132 = vpack.c.b16 %v103, %v102
  %v133 = vpack.c.b16 %v105, %v104
  %v134 = vpack.c.b16 %v107, %v106
  %v135 = vpack.c.b16 %v109, %v108
  %v136 = vpack.c.b16 %v111, %v110
  %v137 = vpack.c.b16 %v113, %v112
  %v138 = vpack.c.b16 %v115, %v114
  %v139 = vpack.c.b16 %v117, %v116
  %v140 = vpack.c.b16 %v119, %v118
  %v141 = vpack.c.b16 %v121, %v120
  %v142 = vpack.c.b16 %v123, %v122
  %v143 = vpack.c.b16 %v125, %v124
  %v144 = vpack.c.b16 %v127, %v126
  %v145 = vpack.c.b16 %v129, %v128
  %162 = vmatprep.subr.bf16.mxu0 0
  %163 = vmatpush1.bf16.msra.mxu0 %v130
  %164 = vmatprep.subr.bf16.mxu0 0
  %165 = vmatpush1.bf16.msra.mxu0 %v131
  %166 = vmatprep.subr.bf16.mxu0 0
  %167 = vmatpush1.bf16.msra.mxu0 %v132
  %168 = vmatprep.subr.bf16.mxu0 0
  %169 = vmatpush1.bf16.msra.mxu0 %v133
  %170 = vmatprep.subr.bf16.mxu0 0
  %171 = vmatpush1.bf16.msra.mxu0 %v134
  %172 = vmatprep.subr.bf16.mxu0 0
  %173 = vmatpush1.bf16.msra.mxu0 %v135
  %174 = vmatprep.subr.bf16.mxu0 0
  %175 = vmatpush1.bf16.msra.mxu0 %v136
  %176 = vmatprep.subr.bf16.mxu0 0
  %177 = vmatpush1.bf16.msra.mxu0 %v137
  %178 = vmatprep.subr.bf16.mxu0 0
  %179 = vmatpush1.bf16.msra.mxu0 %v138
  %180 = vmatprep.subr.bf16.mxu0 0
  %181 = vmatpush1.bf16.msra.mxu0 %v139
  %182 = vmatprep.subr.bf16.mxu0 0
  %183 = vmatpush1.bf16.msra.mxu0 %v140
  %184 = vmatprep.subr.bf16.mxu0 0
  %185 = vmatpush1.bf16.msra.mxu0 %v141
  %186 = vmatprep.subr.bf16.mxu0 0
  %187 = vmatpush1.bf16.msra.mxu0 %v142
  %188 = vmatprep.subr.bf16.mxu0 0
  %189 = vmatpush1.bf16.msra.mxu0 %v143
  %190 = vmatprep.subr.bf16.mxu0 0
  %191 = vmatpush1.bf16.msra.mxu0 %v144
  %192 = vmatprep.subr.bf16.mxu0 0
  %193 = vmatpush1.bf16.msra.mxu0 %v145
  %194 = vmatprep.mubr.bf16.mxu0 %v63
  %195 = vmatmul.mubr.bf16.gmra.mrb[0].mxu0 %v62
  %v196 = vpop.f32.mrb[0].mxu0
  %v197 = vadd.f32 %v54, %v196
  %v198 = vpop.f32.mrb[0].mxu0
  %v199 = vpop.f32.mrb[0].mxu0
  %v200 = vadd.f32 %v54, %v199
  %v201 = vpop.f32.mrb[0].mxu0
  %202 = vdwg.mxu0
  %203 = vst [vmem:[%s3] sm:$0xff] %v197
  %204 = vst [vmem:[%s3 + $0x8] sm:$0xff] %v200
  // Predicated region
  $region14: #{localizer_alexnet_forward.20} parent=0 // pred_check
    _
  $region15: #{localizer_alexnet_forward.20} parent=0 // pred_check_branch
    %206 = sbr.rel (0) target = $region17
  $region16: #{localizer_alexnet_forward.20} parent=0 // pred_region
    _
  $region17: #{localizer_alexnet_forward.20} parent=0 // pred_fallthru
    _
  // Predicated region
  $region18: #{localizer_alexnet_forward.20} parent=0 // pred_check
    _
  $region19: #{localizer_alexnet_forward.20} parent=0 // pred_check_branch
    %208 = sbr.rel (0) target = $region21
  $region20: #{localizer_alexnet_forward.20} parent=0 // pred_region
    _
  $region21: #{localizer_alexnet_forward.20} parent=0 // pred_fallthru
    _

</llo_original>
